<compile_context>
chip_gen: v7x
topology: tpu7x:2x2x1
jax: 0.10.0
libtpu: 0.0.40
codegen_flags: <defaults>
</compile_context>

<pallas_src>
import functools
import math

import jax
import jax.numpy as jnp
from jax.experimental import pallas as pl
from jax.experimental.pallas import tpu as pltpu


def fused_cnn_kernel(t1_ref, w1, b1, w2, b2, w3, b3, w4, b4, w5, b5, w6, b6,
                     o_ref, s1, s2, s3, s4, s5, *, B, Ho, Wo):
    """Fused conv1..conv6 for a block of B images (one grid step).

    t1_ref : (1, R, K1p) bf16    conv1 im2col taps, R = B*Ho*Wo
    wN     : (9*CinN, CoutN) bf16  folded weights, K ordered (kh, kw, cin)
    bN     : (1, CoutN) f32
    o_ref  : (1, 12, R) f32      conv6 output, channel-major (R on lanes)
    sN     : (B, Ho+2, Wo+2, C) bf16  zero-halo padded activations
    """
    M = Ho * Wo
    R = B * M
    Hp, Wp = Ho + 2, Wo + 2

    # Zero only the 1-pixel halo ring; the interior is overwritten below.
    # Done every step (not only step 0) so it is correct under "parallel"
    # megacore sharding, where each core owns its own scratch + step subset.
    def zero_halo(s):
        C = s.shape[-1]
        zrow = jnp.zeros((B, 1, Wp, C), s.dtype)
        zcol = jnp.zeros((B, Hp, 1, C), s.dtype)
        s[:, 0:1, :, :] = zrow
        s[:, Hp - 1:Hp, :, :] = zrow
        s[:, :, 0:1, :] = zcol
        s[:, :, Wp - 1:Wp, :] = zcol

    for s in (s1, s2, s3, s4, s5):
        zero_halo(s)

    def store_interior(s, y):
        C = s.shape[-1]
        s[:, 1:1 + Ho, 1:1 + Wo, :] = y.reshape(B, Ho, Wo, C).astype(s.dtype)

    def conv3x3(srcs, w_ref, b_ref):
        # srcs: list of (padded_ref, cin).  Their channels are contracted in
        # order, matching the (kh, kw, cin) weight fold -- this is how
        # cat([x, x1], dim=1) is consumed without materializing the concat.
        # Each 3x3 tap is its own K=cin GEMM accumulated in f32: the MXU has
        # huge slack at these shapes and this avoids building a (R, 9*cin)
        # im2col operand per layer.
        cin_tot = sum(c for _, c in srcs)
        acc = None
        for kh in range(3):
            for kw in range(3):
                off = (kh * 3 + kw) * cin_tot
                for s, cin in srcs:
                    taps = s[:, kh:kh + Ho, kw:kw + Wo, :].reshape(R, cin)
                    part = jnp.dot(taps, w_ref[off:off + cin, :],
                                   preferred_element_type=jnp.float32)
                    acc = part if acc is None else acc + part
                    off += cin
        return acc + b_ref[...]

    # conv1 (stride 2; im2col taps built in the wrapper, Cin=3) + tanh.
    y = jnp.dot(t1_ref[0], w1[...], preferred_element_type=jnp.float32)
    y = jnp.tanh(y + b1[...])
    store_interior(s1, y)

    y = jnp.maximum(conv3x3([(s1, 16)], w2, b2), 0.0)            # conv2 -> x1
    store_interior(s2, y)

    y = jnp.maximum(conv3x3([(s2, 32)], w3, b3), 0.0)            # conv3
    store_interior(s3, y)

    y = jnp.maximum(conv3x3([(s3, 32)], w4, b4), 0.0)            # conv4
    store_interior(s4, y)

    # conv5 input = cat([conv4_out, x1], channel dim): read both buffers.
    y = jnp.maximum(conv3x3([(s4, 32), (s2, 32)], w5, b5), 0.0)  # conv5
    store_interior(s5, y)

    y = jnp.maximum(conv3x3([(s5, 32)], w6, b6), 0.0)            # conv6: (R, 12)
    # Lane-dense, channel-major store: last dim is R (>= 128 for realistic B).
    o_ref[0] = jnp.transpose(y).astype(o_ref.dtype)


def _ceil_to(a, m):
    return -(-a // m) * m


def _pick_batch_block(N, M, Hp, Wp, scratch_budget_bytes, target_rows=512):
    """Images per grid step: fill the MXU M-dim, keep >= 2 grid steps when
    the batch allows it (v7x megacore), respect the VMEM budget for the five
    padded bf16 scratch buffers (C < 128 pads the lane axis to 128)."""
    B = max(1, min(target_rows // max(M, 1), N))
    if N >= 2 and N < 2 * B:
        B = max(1, N // 2)
    per_image = 5 * Hp * _ceil_to(Wp, 16) * 128 * 2      # bf16, lane-padded
    B = max(1, min(B, scratch_budget_bytes // per_image))
    return B


def _pixel_shuffle_nchw(x, r):
    N, C, H, W = x.shape
    x = x.reshape(N, C // (r * r), r, r, H, W)
    x = jnp.transpose(x, (0, 1, 4, 2, 5, 3))
    return x.reshape(N, C // (r * r), H * r, W * r)


def cnn_forward(x_nchw, params):
    N, Cin, H, W = x_nchw.shape
    Ho = (H + 2 - 3) // 2 + 1
    Wo = (W + 2 - 3) // 2 + 1
    M = Ho * Wo
    Hp, Wp = Ho + 2, Wo + 2
    K1 = 9 * Cin
    K1p = _ceil_to(K1, 8)

    # VMEM budget: ~3/4 of physical (v7x ~48 MiB, v5e/v6e ~96 MiB).
    try:
        vmem_cap = int(pltpu.get_tpu_info().vmem_capacity_bytes)
    except Exception:
        vmem_cap = 64 * 1024 * 1024
    vmem_limit = min((vmem_cap * 3) // 4, 100 * 1024 * 1024)

    B = _pick_batch_block(N, M, Hp, Wp, vmem_limit // 2)
    n_grid = -(-N // B)
    n_pad = n_grid * B
    R = B * M

    # ---- JAX-side layout glue -------------------------------------------
    x = jnp.transpose(x_nchw, (0, 2, 3, 1))                  # NCHW -> NHWC
    xp = jnp.pad(x, ((0, 0), (1, 1), (1, 1), (0, 0)))

    # conv1 im2col (stride 2): Cin=3, tiny.  K ordered (kh, kw, cin),
    # zero-padded K1 -> K1p, streamed as bf16.
    # TODO(synk): fold this stride-2 im2col into the kernel (needs strided
    # sublane loads of the padded input) to drop one small HBM round trip.
    taps1 = jnp.concatenate(
        [jax.lax.slice(xp, (0, kh, kw, 0),
                       (N, kh + 2 * (Ho - 1) + 1, kw + 2 * (Wo - 1) + 1, Cin),
                       (1, 2, 2, 1))
         for kh in range(3) for kw in range(3)],
        axis=-1).reshape(N, M, K1)
    taps1 = jnp.pad(taps1, ((0, n_pad - N), (0, 0), (0, K1p - K1)))
    taps1 = taps1.astype(jnp.bfloat16).reshape(n_grid, R, K1p)

    def fold_w(w, pad_k=0):
        # (Cout, Cin, 3, 3) -> (9*Cin, Cout) with K order (kh, kw, cin).
        cout, cin = w.shape[0], w.shape[1]
        wf = jnp.transpose(w, (2, 3, 1, 0)).reshape(9 * cin, cout)
        if pad_k:
            wf = jnp.pad(wf, ((0, pad_k), (0, 0)))
        return wf.astype(jnp.bfloat16)

    def fold_b(b):
        return b.reshape(1, -1).astype(jnp.float32)

    (w1, b1), (w2, b2), (w3, b3) = params["conv1"], params["conv2"], params["conv3"]
    (w4, b4), (w5, b5), (w6, b6) = params["conv4"], params["conv5"], params["conv6"]

    ins = (taps1,
           fold_w(w1, pad_k=K1p - K1), fold_b(b1),
           fold_w(w2), fold_b(b2),
           fold_w(w3), fold_b(b3),
           fold_w(w4), fold_b(b4),
           fold_w(w5), fold_b(b5),
           fold_w(w6), fold_b(b6))

    def whole(a):   # small grid-invariant operand, kept resident in VMEM
        return pl.BlockSpec(a.shape, lambda n, _nd=a.ndim: (0,) * _nd)

    in_specs = [pl.BlockSpec((1, R, K1p), lambda n: (n, 0, 0))]
    in_specs += [whole(a) for a in ins[1:]]

    out = pl.pallas_call(
        functools.partial(fused_cnn_kernel, B=B, Ho=Ho, Wo=Wo),
        out_shape=jax.ShapeDtypeStruct((n_grid, 12, R), jnp.float32),
        grid_spec=pltpu.PrefetchScalarGridSpec(
            num_scalar_prefetch=0,
            grid=(n_grid,),
            in_specs=in_specs,
            out_specs=pl.BlockSpec((1, 12, R), lambda n: (n, 0, 0)),
            scratch_shapes=[
                pltpu.VMEM((B, Hp, Wp, 16), jnp.bfloat16),   # padded conv1 out
                pltpu.VMEM((B, Hp, Wp, 32), jnp.bfloat16),   # padded conv2 out (x1)
                pltpu.VMEM((B, Hp, Wp, 32), jnp.bfloat16),   # padded conv3 out
                pltpu.VMEM((B, Hp, Wp, 32), jnp.bfloat16),   # padded conv4 out
                pltpu.VMEM((B, Hp, Wp, 32), jnp.bfloat16),   # padded conv5 out
            ]),
        compiler_params=pltpu.CompilerParams(
            dimension_semantics=("parallel",),
            vmem_limit_bytes=int(vmem_limit)),
    )(*ins)

    # (n_grid, 12, B*M) -> NCHW (N, 12, Ho, Wo); drop batch padding.
    y = out.reshape(n_grid, 12, B, Ho, Wo)
    y = jnp.transpose(y, (0, 2, 1, 3, 4)).reshape(n_pad, 12, Ho, Wo)[:N]
    # PixelShuffle(2) directly in NCHW -> final NCHW output.
    return _pixel_shuffle_nchw(y, 2)


# ---------------- pure-JAX reference (for a loose numerical check) ----------
def reference_forward(x, params):
    def conv(x, w, b, stride):
        y = jax.lax.conv_general_dilated(
            x, w, (stride, stride), ((1, 1), (1, 1)),
            dimension_numbers=("NCHW", "OIHW", "NCHW"))
        return y + b.reshape(1, -1, 1, 1)

    x = jnp.tanh(conv(x, *params["conv1"], 2))
    x1 = jax.nn.relu(conv(x, *params["conv2"], 1))
    x = jax.nn.relu(conv(x1, *params["conv3"], 1))
    x = jax.nn.relu(conv(x, *params["conv4"], 1))
    x = jax.nn.relu(conv(jnp.concatenate([x, x1], axis=1), *params["conv5"], 1))
    x = jax.nn.relu(conv(x, *params["conv6"], 1))
    return _pixel_shuffle_nchw(x, 2)


def init_params(key):
    """Deterministic synthetic params with PyTorch Conv2d shapes (Cout,Cin,3,3)."""
    specs = {
        "conv1": (3, 16),
        "conv2": (16, 32),
        "conv3": (32, 32),
        "conv4": (32, 32),
        "conv5": (64, 32),
        "conv6": (32, 12),
    }
    params = {}
    for name, (cin, cout) in specs.items():
        key, kw, kb = jax.random.split(key, 3)
        bound = 1.0 / math.sqrt(cin * 9)
        w = jax.random.uniform(kw, (cout, cin, 3, 3), jnp.float32, -bound, bound)
        b = jax.random.uniform(kb, (cout,), jnp.float32, -bound, bound)
        params[name] = (w, b)
    return params


if __name__ == "__main__":
    key = jax.random.PRNGKey(0)
    pkey, xkey = jax.random.split(key)
    params = init_params(pkey)

    # Small NCHW input consistent with the module (3 input channels).
    x = jax.random.normal(xkey, (2, 3, 16, 16), jnp.float32)

    out = jax.jit(lambda inp: cnn_forward(inp, params))(x)
    out = jax.block_until_ready(out)

    # conv1 stride-2 halves 16->8, PixelShuffle(2) brings it back to 16,
    # channels 12 -> 3.
    assert out.shape == (2, 3, 16, 16), out.shape
    assert out.dtype == jnp.float32

    # Loose check vs. the XLA reference: six chained layers run with bf16
    # MXU operands (intentional), so tolerance is 5e-2.
    ref = jax.block_until_ready(
        jax.jit(lambda inp: reference_forward(inp, params))(x))
    err = float(jnp.max(jnp.abs(out - ref)))
    assert err < 5e-2, f"max abs err {err}"

    print("KERNEL_OK")
</pallas_src>

<mosaic_0001>
module attributes {stable_mosaic.version = 11 : i64} {
  func.func @fused_cnn_kernel(%arg0: i32, %arg1: memref<1x64x32xbf16, #tpu.memory_space<vmem>>, %arg2: memref<32x16xbf16, #tpu.memory_space<vmem>>, %arg3: memref<1x16xf32, #tpu.memory_space<vmem>>, %arg4: memref<144x32xbf16, #tpu.memory_space<vmem>>, %arg5: memref<1x32xf32, #tpu.memory_space<vmem>>, %arg6: memref<288x32xbf16, #tpu.memory_space<vmem>>, %arg7: memref<1x32xf32, #tpu.memory_space<vmem>>, %arg8: memref<288x32xbf16, #tpu.memory_space<vmem>>, %arg9: memref<1x32xf32, #tpu.memory_space<vmem>>, %arg10: memref<576x32xbf16, #tpu.memory_space<vmem>>, %arg11: memref<1x32xf32, #tpu.memory_space<vmem>>, %arg12: memref<288x12xbf16, #tpu.memory_space<vmem>>, %arg13: memref<1x12xf32, #tpu.memory_space<vmem>>, %arg14: memref<1x12x64xf32, #tpu.memory_space<vmem>>, %arg15: memref<1x10x10x16xbf16, #tpu.memory_space<vmem>>, %arg16: memref<1x10x10x32xbf16, #tpu.memory_space<vmem>>, %arg17: memref<1x10x10x32xbf16, #tpu.memory_space<vmem>>, %arg18: memref<1x10x10x32xbf16, #tpu.memory_space<vmem>>, %arg19: memref<1x10x10x32xbf16, #tpu.memory_space<vmem>>) attributes {dimension_semantics = [#tpu.dimension_semantics<parallel>], iteration_bounds = array<i64: 2>, scalar_prefetch = 0 : i64, scratch_operands = 5 : i64, tpu.core_type = #tpu.core_type<tc>, window_params = [{transform_indices = @transform_0, window_bounds = array<i64: 1, 64, 32>}, {pipeline_mode = #tpu.pipeline_mode<synchronous>, transform_indices = @transform_1, window_bounds = array<i64: 32, 16>}, {pipeline_mode = #tpu.pipeline_mode<synchronous>, transform_indices = @transform_2, window_bounds = array<i64: 1, 16>}, {pipeline_mode = #tpu.pipeline_mode<synchronous>, transform_indices = @transform_3, window_bounds = array<i64: 144, 32>}, {pipeline_mode = #tpu.pipeline_mode<synchronous>, transform_indices = @transform_4, window_bounds = array<i64: 1, 32>}, {pipeline_mode = #tpu.pipeline_mode<synchronous>, transform_indices = @transform_5, window_bounds = array<i64: 288, 32>}, {pipeline_mode = #tpu.pipeline_mode<synchronous>, transform_indices = @transform_6, window_bounds = array<i64: 1, 32>}, {pipeline_mode = #tpu.pipeline_mode<synchronous>, transform_indices = @transform_7, window_bounds = array<i64: 288, 32>}, {pipeline_mode = #tpu.pipeline_mode<synchronous>, transform_indices = @transform_8, window_bounds = array<i64: 1, 32>}, {pipeline_mode = #tpu.pipeline_mode<synchronous>, transform_indices = @transform_9, window_bounds = array<i64: 576, 32>}, {pipeline_mode = #tpu.pipeline_mode<synchronous>, transform_indices = @transform_10, window_bounds = array<i64: 1, 32>}, {pipeline_mode = #tpu.pipeline_mode<synchronous>, transform_indices = @transform_11, window_bounds = array<i64: 288, 12>}, {pipeline_mode = #tpu.pipeline_mode<synchronous>, transform_indices = @transform_12, window_bounds = array<i64: 1, 12>}, {transform_indices = @transform_13, window_bounds = array<i64: 1, 12, 64>}]} {
    %cst = arith.constant 0.000000e+00 : bf16
    %0 = vector.broadcast %cst : bf16 to vector<1x1x10x16xbf16>
    %cst_0 = arith.constant 0.000000e+00 : bf16
    %1 = vector.broadcast %cst_0 : bf16 to vector<1x10x1x16xbf16>
    %c0 = arith.constant 0 : index
    %c0_1 = arith.constant 0 : index
    %c0_2 = arith.constant 0 : index
    %c0_3 = arith.constant 0 : index
    %2 = vector.load %arg15[%c0, %c0_1, %c0_2, %c0_3] : memref<1x10x10x16xbf16, #tpu.memory_space<vmem>>, vector<1x1x10x16xbf16>
    tpu.vector_store %arg15[%c0, %c0_1, %c0_2, %c0_3], %0 {strides = array<i32>} : memref<1x10x10x16xbf16, #tpu.memory_space<vmem>>, vector<1x1x10x16xbf16>,
    %c0_4 = arith.constant 0 : index
    %c9 = arith.constant 9 : index
    %c0_5 = arith.constant 0 : index
    %c0_6 = arith.constant 0 : index
    %3 = vector.load %arg15[%c0_4, %c9, %c0_5, %c0_6] : memref<1x10x10x16xbf16, #tpu.memory_space<vmem>>, vector<1x1x10x16xbf16>
    tpu.vector_store %arg15[%c0_4, %c9, %c0_5, %c0_6], %0 {strides = array<i32>} : memref<1x10x10x16xbf16, #tpu.memory_space<vmem>>, vector<1x1x10x16xbf16>,
    %c0_7 = arith.constant 0 : index
    %c0_8 = arith.constant 0 : index
    %c0_9 = arith.constant 0 : index
    %c0_10 = arith.constant 0 : index
    %4 = vector.load %arg15[%c0_7, %c0_8, %c0_9, %c0_10] : memref<1x10x10x16xbf16, #tpu.memory_space<vmem>>, vector<1x10x1x16xbf16>
    tpu.vector_store %arg15[%c0_7, %c0_8, %c0_9, %c0_10], %1 {strides = array<i32>} : memref<1x10x10x16xbf16, #tpu.memory_space<vmem>>, vector<1x10x1x16xbf16>,
    %c0_11 = arith.constant 0 : index
    %c0_12 = arith.constant 0 : index
    %c9_13 = arith.constant 9 : index
    %c0_14 = arith.constant 0 : index
    %5 = vector.load %arg15[%c0_11, %c0_12, %c9_13, %c0_14] : memref<1x10x10x16xbf16, #tpu.memory_space<vmem>>, vector<1x10x1x16xbf16>
    tpu.vector_store %arg15[%c0_11, %c0_12, %c9_13, %c0_14], %1 {strides = array<i32>} : memref<1x10x10x16xbf16, #tpu.memory_space<vmem>>, vector<1x10x1x16xbf16>,
    %cst_15 = arith.constant 0.000000e+00 : bf16
    %6 = vector.broadcast %cst_15 : bf16 to vector<1x1x10x32xbf16>
    %cst_16 = arith.constant 0.000000e+00 : bf16
    %7 = vector.broadcast %cst_16 : bf16 to vector<1x10x1x32xbf16>
    %c0_17 = arith.constant 0 : index
    %c0_18 = arith.constant 0 : index
    %c0_19 = arith.constant 0 : index
    %c0_20 = arith.constant 0 : index
    %8 = vector.load %arg16[%c0_17, %c0_18, %c0_19, %c0_20] : memref<1x10x10x32xbf16, #tpu.memory_space<vmem>>, vector<1x1x10x32xbf16>
    tpu.vector_store %arg16[%c0_17, %c0_18, %c0_19, %c0_20], %6 {strides = array<i32>} : memref<1x10x10x32xbf16, #tpu.memory_space<vmem>>, vector<1x1x10x32xbf16>,
    %c0_21 = arith.constant 0 : index
    %c9_22 = arith.constant 9 : index
    %c0_23 = arith.constant 0 : index
    %c0_24 = arith.constant 0 : index
    %9 = vector.load %arg16[%c0_21, %c9_22, %c0_23, %c0_24] : memref<1x10x10x32xbf16, #tpu.memory_space<vmem>>, vector<1x1x10x32xbf16>
    tpu.vector_store %arg16[%c0_21, %c9_22, %c0_23, %c0_24], %6 {strides = array<i32>} : memref<1x10x10x32xbf16, #tpu.memory_space<vmem>>, vector<1x1x10x32xbf16>,
    %c0_25 = arith.constant 0 : index
    %c0_26 = arith.constant 0 : index
    %c0_27 = arith.constant 0 : index
    %c0_28 = arith.constant 0 : index
    %10 = vector.load %arg16[%c0_25, %c0_26, %c0_27, %c0_28] : memref<1x10x10x32xbf16, #tpu.memory_space<vmem>>, vector<1x10x1x32xbf16>
    tpu.vector_store %arg16[%c0_25, %c0_26, %c0_27, %c0_28], %7 {strides = array<i32>} : memref<1x10x10x32xbf16, #tpu.memory_space<vmem>>, vector<1x10x1x32xbf16>,
    %c0_29 = arith.constant 0 : index
    %c0_30 = arith.constant 0 : index
    %c9_31 = arith.constant 9 : index
    %c0_32 = arith.constant 0 : index
    %11 = vector.load %arg16[%c0_29, %c0_30, %c9_31, %c0_32] : memref<1x10x10x32xbf16, #tpu.memory_space<vmem>>, vector<1x10x1x32xbf16>
    tpu.vector_store %arg16[%c0_29, %c0_30, %c9_31, %c0_32], %7 {strides = array<i32>} : memref<1x10x10x32xbf16, #tpu.memory_space<vmem>>, vector<1x10x1x32xbf16>,
    %cst_33 = arith.constant 0.000000e+00 : bf16
    %12 = vector.broadcast %cst_33 : bf16 to vector<1x1x10x32xbf16>
    %cst_34 = arith.constant 0.000000e+00 : bf16
    %13 = vector.broadcast %cst_34 : bf16 to vector<1x10x1x32xbf16>
    %c0_35 = arith.constant 0 : index
    %c0_36 = arith.constant 0 : index
    %c0_37 = arith.constant 0 : index
    %c0_38 = arith.constant 0 : index
    %14 = vector.load %arg17[%c0_35, %c0_36, %c0_37, %c0_38] : memref<1x10x10x32xbf16, #tpu.memory_space<vmem>>, vector<1x1x10x32xbf16>
    tpu.vector_store %arg17[%c0_35, %c0_36, %c0_37, %c0_38], %12 {strides = array<i32>} : memref<1x10x10x32xbf16, #tpu.memory_space<vmem>>, vector<1x1x10x32xbf16>,
    %c0_39 = arith.constant 0 : index
    %c9_40 = arith.constant 9 : index
    %c0_41 = arith.constant 0 : index
    %c0_42 = arith.constant 0 : index
    %15 = vector.load %arg17[%c0_39, %c9_40, %c0_41, %c0_42] : memref<1x10x10x32xbf16, #tpu.memory_space<vmem>>, vector<1x1x10x32xbf16>
    tpu.vector_store %arg17[%c0_39, %c9_40, %c0_41, %c0_42], %12 {strides = array<i32>} : memref<1x10x10x32xbf16, #tpu.memory_space<vmem>>, vector<1x1x10x32xbf16>,
    %c0_43 = arith.constant 0 : index
    %c0_44 = arith.constant 0 : index
    %c0_45 = arith.constant 0 : index
    %c0_46 = arith.constant 0 : index
    %16 = vector.load %arg17[%c0_43, %c0_44, %c0_45, %c0_46] : memref<1x10x10x32xbf16, #tpu.memory_space<vmem>>, vector<1x10x1x32xbf16>
    tpu.vector_store %arg17[%c0_43, %c0_44, %c0_45, %c0_46], %13 {strides = array<i32>} : memref<1x10x10x32xbf16, #tpu.memory_space<vmem>>, vector<1x10x1x32xbf16>,
    %c0_47 = arith.constant 0 : index
    %c0_48 = arith.constant 0 : index
    %c9_49 = arith.constant 9 : index
    %c0_50 = arith.constant 0 : index
    %17 = vector.load %arg17[%c0_47, %c0_48, %c9_49, %c0_50] : memref<1x10x10x32xbf16, #tpu.memory_space<vmem>>, vector<1x10x1x32xbf16>
    tpu.vector_store %arg17[%c0_47, %c0_48, %c9_49, %c0_50], %13 {strides = array<i32>} : memref<1x10x10x32xbf16, #tpu.memory_space<vmem>>, vector<1x10x1x32xbf16>,
    %cst_51 = arith.constant 0.000000e+00 : bf16
    %18 = vector.broadcast %cst_51 : bf16 to vector<1x1x10x32xbf16>
    %cst_52 = arith.constant 0.000000e+00 : bf16
    %19 = vector.broadcast %cst_52 : bf16 to vector<1x10x1x32xbf16>
    %c0_53 = arith.constant 0 : index
    %c0_54 = arith.constant 0 : index
    %c0_55 = arith.constant 0 : index
    %c0_56 = arith.constant 0 : index
    %20 = vector.load %arg18[%c0_53, %c0_54, %c0_55, %c0_56] : memref<1x10x10x32xbf16, #tpu.memory_space<vmem>>, vector<1x1x10x32xbf16>
    tpu.vector_store %arg18[%c0_53, %c0_54, %c0_55, %c0_56], %18 {strides = array<i32>} : memref<1x10x10x32xbf16, #tpu.memory_space<vmem>>, vector<1x1x10x32xbf16>,
    %c0_57 = arith.constant 0 : index
    %c9_58 = arith.constant 9 : index
    %c0_59 = arith.constant 0 : index
    %c0_60 = arith.constant 0 : index
    %21 = vector.load %arg18[%c0_57, %c9_58, %c0_59, %c0_60] : memref<1x10x10x32xbf16, #tpu.memory_space<vmem>>, vector<1x1x10x32xbf16>
    tpu.vector_store %arg18[%c0_57, %c9_58, %c0_59, %c0_60], %18 {strides = array<i32>} : memref<1x10x10x32xbf16, #tpu.memory_space<vmem>>, vector<1x1x10x32xbf16>,
    %c0_61 = arith.constant 0 : index
    %c0_62 = arith.constant 0 : index
    %c0_63 = arith.constant 0 : index
    %c0_64 = arith.constant 0 : index
    %22 = vector.load %arg18[%c0_61, %c0_62, %c0_63, %c0_64] : memref<1x10x10x32xbf16, #tpu.memory_space<vmem>>, vector<1x10x1x32xbf16>
    tpu.vector_store %arg18[%c0_61, %c0_62, %c0_63, %c0_64], %19 {strides = array<i32>} : memref<1x10x10x32xbf16, #tpu.memory_space<vmem>>, vector<1x10x1x32xbf16>,
    %c0_65 = arith.constant 0 : index
    %c0_66 = arith.constant 0 : index
    %c9_67 = arith.constant 9 : index
    %c0_68 = arith.constant 0 : index
    %23 = vector.load %arg18[%c0_65, %c0_66, %c9_67, %c0_68] : memref<1x10x10x32xbf16, #tpu.memory_space<vmem>>, vector<1x10x1x32xbf16>
    tpu.vector_store %arg18[%c0_65, %c0_66, %c9_67, %c0_68], %19 {strides = array<i32>} : memref<1x10x10x32xbf16, #tpu.memory_space<vmem>>, vector<1x10x1x32xbf16>,
    %cst_69 = arith.constant 0.000000e+00 : bf16
    %24 = vector.broadcast %cst_69 : bf16 to vector<1x1x10x32xbf16>
    %cst_70 = arith.constant 0.000000e+00 : bf16
    %25 = vector.broadcast %cst_70 : bf16 to vector<1x10x1x32xbf16>
    %c0_71 = arith.constant 0 : index
    %c0_72 = arith.constant 0 : index
    %c0_73 = arith.constant 0 : index
    %c0_74 = arith.constant 0 : index
    %26 = vector.load %arg19[%c0_71, %c0_72, %c0_73, %c0_74] : memref<1x10x10x32xbf16, #tpu.memory_space<vmem>>, vector<1x1x10x32xbf16>
    tpu.vector_store %arg19[%c0_71, %c0_72, %c0_73, %c0_74], %24 {strides = array<i32>} : memref<1x10x10x32xbf16, #tpu.memory_space<vmem>>, vector<1x1x10x32xbf16>,
    %c0_75 = arith.constant 0 : index
    %c9_76 = arith.constant 9 : index
    %c0_77 = arith.constant 0 : index
    %c0_78 = arith.constant 0 : index
    %27 = vector.load %arg19[%c0_75, %c9_76, %c0_77, %c0_78] : memref<1x10x10x32xbf16, #tpu.memory_space<vmem>>, vector<1x1x10x32xbf16>
    tpu.vector_store %arg19[%c0_75, %c9_76, %c0_77, %c0_78], %24 {strides = array<i32>} : memref<1x10x10x32xbf16, #tpu.memory_space<vmem>>, vector<1x1x10x32xbf16>,
    %c0_79 = arith.constant 0 : index
    %c0_80 = arith.constant 0 : index
    %c0_81 = arith.constant 0 : index
    %c0_82 = arith.constant 0 : index
    %28 = vector.load %arg19[%c0_79, %c0_80, %c0_81, %c0_82] : memref<1x10x10x32xbf16, #tpu.memory_space<vmem>>, vector<1x10x1x32xbf16>
    tpu.vector_store %arg19[%c0_79, %c0_80, %c0_81, %c0_82], %25 {strides = array<i32>} : memref<1x10x10x32xbf16, #tpu.memory_space<vmem>>, vector<1x10x1x32xbf16>,
    %c0_83 = arith.constant 0 : index
    %c0_84 = arith.constant 0 : index
    %c9_85 = arith.constant 9 : index
    %c0_86 = arith.constant 0 : index
    %29 = vector.load %arg19[%c0_83, %c0_84, %c9_85, %c0_86] : memref<1x10x10x32xbf16, #tpu.memory_space<vmem>>, vector<1x10x1x32xbf16>
    tpu.vector_store %arg19[%c0_83, %c0_84, %c9_85, %c0_86], %25 {strides = array<i32>} : memref<1x10x10x32xbf16, #tpu.memory_space<vmem>>, vector<1x10x1x32xbf16>,
    %c0_87 = arith.constant 0 : index
    %c0_88 = arith.constant 0 : index
    %c0_89 = arith.constant 0 : index
    %30 = vector.load %arg1[%c0_87, %c0_88, %c0_89] : memref<1x64x32xbf16, #tpu.memory_space<vmem>>, vector<1x64x32xbf16>
    %31 = vector.shape_cast %30 : vector<1x64x32xbf16> to vector<64x32xbf16>
    %c0_90 = arith.constant 0 : index
    %c0_91 = arith.constant 0 : index
    %32 = vector.load %arg2[%c0_90, %c0_91] : memref<32x16xbf16, #tpu.memory_space<vmem>>, vector<32x16xbf16>
    %cst_92 = arith.constant dense<0.000000e+00> : vector<64x16xf32>
    %33 = tpu.matmul %31, %32, %cst_92 {dimension_numbers = #tpu.dot_dimension_numbers<[1], [0], [0], [1], [0, 0, 1, 1], [], []>} : vector<64x32xbf16>, vector<32x16xbf16>, vector<64x16xf32> -> vector<64x16xf32>
    %c0_93 = arith.constant 0 : index
    %c0_94 = arith.constant 0 : index
    %34 = vector.load %arg3[%c0_93, %c0_94] : memref<1x16xf32, #tpu.memory_space<vmem>>, vector<1x16xf32>
    %35 = vector.broadcast %34 : vector<1x16xf32> to vector<64x16xf32>
    %36 = arith.addf %33, %35 : vector<64x16xf32>
    %37 = math.tanh %36 : vector<64x16xf32>
    %38 = vector.shape_cast %37 : vector<64x16xf32> to vector<1x8x8x16xf32>
    %39 = arith.truncf %38 : vector<1x8x8x16xf32> to vector<1x8x8x16xbf16>
    %c0_95 = arith.constant 0 : index
    %c1 = arith.constant 1 : index
    %c1_96 = arith.constant 1 : index
    %c0_97 = arith.constant 0 : index
    %40 = vector.load %arg15[%c0_95, %c1, %c1_96, %c0_97] : memref<1x10x10x16xbf16, #tpu.memory_space<vmem>>, vector<1x8x8x16xbf16>
    tpu.vector_store %arg15[%c0_95, %c1, %c1_96, %c0_97], %39 {strides = array<i32>} : memref<1x10x10x16xbf16, #tpu.memory_space<vmem>>, vector<1x8x8x16xbf16>,
    %c0_98 = arith.constant 0 : index
    %c0_99 = arith.constant 0 : index
    %c0_100 = arith.constant 0 : index
    %c0_101 = arith.constant 0 : index
    %41 = vector.load %arg15[%c0_98, %c0_99, %c0_100, %c0_101] : memref<1x10x10x16xbf16, #tpu.memory_space<vmem>>, vector<1x8x8x16xbf16>
    %42 = vector.shape_cast %41 : vector<1x8x8x16xbf16> to vector<64x16xbf16>
    %c0_102 = arith.constant 0 : index
    %c0_103 = arith.constant 0 : index
    %43 = vector.load %arg4[%c0_102, %c0_103] : memref<144x32xbf16, #tpu.memory_space<vmem>>, vector<16x32xbf16>
    %cst_104 = arith.constant dense<0.000000e+00> : vector<64x32xf32>
    %44 = tpu.matmul %42, %43, %cst_104 {dimension_numbers = #tpu.dot_dimension_numbers<[1], [0], [0], [1], [0, 0, 1, 1], [], []>} : vector<64x16xbf16>, vector<16x32xbf16>, vector<64x32xf32> -> vector<64x32xf32>
    %c0_105 = arith.constant 0 : index
    %c0_106 = arith.constant 0 : index
    %c1_107 = arith.constant 1 : index
    %c0_108 = arith.constant 0 : index
    %45 = vector.load %arg15[%c0_105, %c0_106, %c1_107, %c0_108] : memref<1x10x10x16xbf16, #tpu.memory_space<vmem>>, vector<1x8x8x16xbf16>
    %46 = vector.shape_cast %45 : vector<1x8x8x16xbf16> to vector<64x16xbf16>
    %c16 = arith.constant 16 : index
    %c0_109 = arith.constant 0 : index
    %47 = vector.load %arg4[%c16, %c0_109] : memref<144x32xbf16, #tpu.memory_space<vmem>>, vector<16x32xbf16>
    %cst_110 = arith.constant dense<0.000000e+00> : vector<64x32xf32>
    %48 = tpu.matmul %46, %47, %cst_110 {dimension_numbers = #tpu.dot_dimension_numbers<[1], [0], [0], [1], [0, 0, 1, 1], [], []>} : vector<64x16xbf16>, vector<16x32xbf16>, vector<64x32xf32> -> vector<64x32xf32>
    %49 = arith.addf %44, %48 : vector<64x32xf32>
    %c0_111 = arith.constant 0 : index
    %c0_112 = arith.constant 0 : index
    %c2 = arith.constant 2 : index
    %c0_113 = arith.constant 0 : index
    %50 = vector.load %arg15[%c0_111, %c0_112, %c2, %c0_113] : memref<1x10x10x16xbf16, #tpu.memory_space<vmem>>, vector<1x8x8x16xbf16>
    %51 = vector.shape_cast %50 : vector<1x8x8x16xbf16> to vector<64x16xbf16>
    %c32 = arith.constant 32 : index
    %c0_114 = arith.constant 0 : index
    %52 = vector.load %arg4[%c32, %c0_114] : memref<144x32xbf16, #tpu.memory_space<vmem>>, vector<16x32xbf16>
    %cst_115 = arith.constant dense<0.000000e+00> : vector<64x32xf32>
    %53 = tpu.matmul %51, %52, %cst_115 {dimension_numbers = #tpu.dot_dimension_numbers<[1], [0], [0], [1], [0, 0, 1, 1], [], []>} : vector<64x16xbf16>, vector<16x32xbf16>, vector<64x32xf32> -> vector<64x32xf32>
    %54 = arith.addf %49, %53 : vector<64x32xf32>
    %c0_116 = arith.constant 0 : index
    %c1_117 = arith.constant 1 : index
    %c0_118 = arith.constant 0 : index
    %c0_119 = arith.constant 0 : index
    %55 = vector.load %arg15[%c0_116, %c1_117, %c0_118, %c0_119] : memref<1x10x10x16xbf16, #tpu.memory_space<vmem>>, vector<1x8x8x16xbf16>
    %56 = vector.shape_cast %55 : vector<1x8x8x16xbf16> to vector<64x16xbf16>
    %c48 = arith.constant 48 : index
    %c0_120 = arith.constant 0 : index
    %57 = vector.load %arg4[%c48, %c0_120] : memref<144x32xbf16, #tpu.memory_space<vmem>>, vector<16x32xbf16>
    %cst_121 = arith.constant dense<0.000000e+00> : vector<64x32xf32>
    %58 = tpu.matmul %56, %57, %cst_121 {dimension_numbers = #tpu.dot_dimension_numbers<[1], [0], [0], [1], [0, 0, 1, 1], [], []>} : vector<64x16xbf16>, vector<16x32xbf16>, vector<64x32xf32> -> vector<64x32xf32>
    %59 = arith.addf %54, %58 : vector<64x32xf32>
    %c0_122 = arith.constant 0 : index
    %c1_123 = arith.constant 1 : index
    %c1_124 = arith.constant 1 : index
    %c0_125 = arith.constant 0 : index
    %60 = vector.load %arg15[%c0_122, %c1_123, %c1_124, %c0_125] : memref<1x10x10x16xbf16, #tpu.memory_space<vmem>>, vector<1x8x8x16xbf16>
    %61 = vector.shape_cast %60 : vector<1x8x8x16xbf16> to vector<64x16xbf16>
    %c64 = arith.constant 64 : index
    %c0_126 = arith.constant 0 : index
    %62 = vector.load %arg4[%c64, %c0_126] : memref<144x32xbf16, #tpu.memory_space<vmem>>, vector<16x32xbf16>
    %cst_127 = arith.constant dense<0.000000e+00> : vector<64x32xf32>
    %63 = tpu.matmul %61, %62, %cst_127 {dimension_numbers = #tpu.dot_dimension_numbers<[1], [0], [0], [1], [0, 0, 1, 1], [], []>} : vector<64x16xbf16>, vector<16x32xbf16>, vector<64x32xf32> -> vector<64x32xf32>
    %64 = arith.addf %59, %63 : vector<64x32xf32>
    %c0_128 = arith.constant 0 : index
    %c1_129 = arith.constant 1 : index
    %c2_130 = arith.constant 2 : index
    %c0_131 = arith.constant 0 : index
    %65 = vector.load %arg15[%c0_128, %c1_129, %c2_130, %c0_131] : memref<1x10x10x16xbf16, #tpu.memory_space<vmem>>, vector<1x8x8x16xbf16>
    %66 = vector.shape_cast %65 : vector<1x8x8x16xbf16> to vector<64x16xbf16>
    %c80 = arith.constant 80 : index
    %c0_132 = arith.constant 0 : index
    %67 = vector.load %arg4[%c80, %c0_132] : memref<144x32xbf16, #tpu.memory_space<vmem>>, vector<16x32xbf16>
    %cst_133 = arith.constant dense<0.000000e+00> : vector<64x32xf32>
    %68 = tpu.matmul %66, %67, %cst_133 {dimension_numbers = #tpu.dot_dimension_numbers<[1], [0], [0], [1], [0, 0, 1, 1], [], []>} : vector<64x16xbf16>, vector<16x32xbf16>, vector<64x32xf32> -> vector<64x32xf32>
    %69 = arith.addf %64, %68 : vector<64x32xf32>
    %c0_134 = arith.constant 0 : index
    %c2_135 = arith.constant 2 : index
    %c0_136 = arith.constant 0 : index
    %c0_137 = arith.constant 0 : index
    %70 = vector.load %arg15[%c0_134, %c2_135, %c0_136, %c0_137] : memref<1x10x10x16xbf16, #tpu.memory_space<vmem>>, vector<1x8x8x16xbf16>
    %71 = vector.shape_cast %70 : vector<1x8x8x16xbf16> to vector<64x16xbf16>
    %c96 = arith.constant 96 : index
    %c0_138 = arith.constant 0 : index
    %72 = vector.load %arg4[%c96, %c0_138] : memref<144x32xbf16, #tpu.memory_space<vmem>>, vector<16x32xbf16>
    %cst_139 = arith.constant dense<0.000000e+00> : vector<64x32xf32>
    %73 = tpu.matmul %71, %72, %cst_139 {dimension_numbers = #tpu.dot_dimension_numbers<[1], [0], [0], [1], [0, 0, 1, 1], [], []>} : vector<64x16xbf16>, vector<16x32xbf16>, vector<64x32xf32> -> vector<64x32xf32>
    %74 = arith.addf %69, %73 : vector<64x32xf32>
    %c0_140 = arith.constant 0 : index
    %c2_141 = arith.constant 2 : index
    %c1_142 = arith.constant 1 : index
    %c0_143 = arith.constant 0 : index
    %75 = vector.load %arg15[%c0_140, %c2_141, %c1_142, %c0_143] : memref<1x10x10x16xbf16, #tpu.memory_space<vmem>>, vector<1x8x8x16xbf16>
    %76 = vector.shape_cast %75 : vector<1x8x8x16xbf16> to vector<64x16xbf16>
    %c112 = arith.constant 112 : index
    %c0_144 = arith.constant 0 : index
    %77 = vector.load %arg4[%c112, %c0_144] : memref<144x32xbf16, #tpu.memory_space<vmem>>, vector<16x32xbf16>
    %cst_145 = arith.constant dense<0.000000e+00> : vector<64x32xf32>
    %78 = tpu.matmul %76, %77, %cst_145 {dimension_numbers = #tpu.dot_dimension_numbers<[1], [0], [0], [1], [0, 0, 1, 1], [], []>} : vector<64x16xbf16>, vector<16x32xbf16>, vector<64x32xf32> -> vector<64x32xf32>
    %79 = arith.addf %74, %78 : vector<64x32xf32>
    %c0_146 = arith.constant 0 : index
    %c2_147 = arith.constant 2 : index
    %c2_148 = arith.constant 2 : index
    %c0_149 = arith.constant 0 : index
    %80 = vector.load %arg15[%c0_146, %c2_147, %c2_148, %c0_149] : memref<1x10x10x16xbf16, #tpu.memory_space<vmem>>, vector<1x8x8x16xbf16>
    %81 = vector.shape_cast %80 : vector<1x8x8x16xbf16> to vector<64x16xbf16>
    %c128 = arith.constant 128 : index
    %c0_150 = arith.constant 0 : index
    %82 = vector.load %arg4[%c128, %c0_150] : memref<144x32xbf16, #tpu.memory_space<vmem>>, vector<16x32xbf16>
    %cst_151 = arith.constant dense<0.000000e+00> : vector<64x32xf32>
    %83 = tpu.matmul %81, %82, %cst_151 {dimension_numbers = #tpu.dot_dimension_numbers<[1], [0], [0], [1], [0, 0, 1, 1], [], []>} : vector<64x16xbf16>, vector<16x32xbf16>, vector<64x32xf32> -> vector<64x32xf32>
    %84 = arith.addf %79, %83 : vector<64x32xf32>
    %c0_152 = arith.constant 0 : index
    %c0_153 = arith.constant 0 : index
    %85 = vector.load %arg5[%c0_152, %c0_153] : memref<1x32xf32, #tpu.memory_space<vmem>>, vector<1x32xf32>
    %86 = vector.broadcast %85 : vector<1x32xf32> to vector<64x32xf32>
    %87 = arith.addf %84, %86 : vector<64x32xf32>
    %cst_154 = arith.constant 0.000000e+00 : f32
    %88 = vector.broadcast %cst_154 : f32 to vector<64x32xf32>
    %89 = arith.maximumf %87, %88 : vector<64x32xf32>
    %90 = vector.shape_cast %89 : vector<64x32xf32> to vector<1x8x8x32xf32>
    %91 = arith.truncf %90 : vector<1x8x8x32xf32> to vector<1x8x8x32xbf16>
    %c0_155 = arith.constant 0 : index
    %c1_156 = arith.constant 1 : index
    %c1_157 = arith.constant 1 : index
    %c0_158 = arith.constant 0 : index
    %92 = vector.load %arg16[%c0_155, %c1_156, %c1_157, %c0_158] : memref<1x10x10x32xbf16, #tpu.memory_space<vmem>>, vector<1x8x8x32xbf16>
    tpu.vector_store %arg16[%c0_155, %c1_156, %c1_157, %c0_158], %91 {strides = array<i32>} : memref<1x10x10x32xbf16, #tpu.memory_space<vmem>>, vector<1x8x8x32xbf16>,
    %c0_159 = arith.constant 0 : index
    %c0_160 = arith.constant 0 : index
    %c0_161 = arith.constant 0 : index
    %c0_162 = arith.constant 0 : index
    %93 = vector.load %arg16[%c0_159, %c0_160, %c0_161, %c0_162] : memref<1x10x10x32xbf16, #tpu.memory_space<vmem>>, vector<1x8x8x32xbf16>
    %94 = vector.shape_cast %93 : vector<1x8x8x32xbf16> to vector<64x32xbf16>
    %c0_163 = arith.constant 0 : index
    %c0_164 = arith.constant 0 : index
    %95 = vector.load %arg6[%c0_163, %c0_164] : memref<288x32xbf16, #tpu.memory_space<vmem>>, vector<32x32xbf16>
    %cst_165 = arith.constant dense<0.000000e+00> : vector<64x32xf32>
    %96 = tpu.matmul %94, %95, %cst_165 {dimension_numbers = #tpu.dot_dimension_numbers<[1], [0], [0], [1], [0, 0, 1, 1], [], []>} : vector<64x32xbf16>, vector<32x32xbf16>, vector<64x32xf32> -> vector<64x32xf32>
    %c0_166 = arith.constant 0 : index
    %c0_167 = arith.constant 0 : index
    %c1_168 = arith.constant 1 : index
    %c0_169 = arith.constant 0 : index
    %97 = vector.load %arg16[%c0_166, %c0_167, %c1_168, %c0_169] : memref<1x10x10x32xbf16, #tpu.memory_space<vmem>>, vector<1x8x8x32xbf16>
    %98 = vector.shape_cast %97 : vector<1x8x8x32xbf16> to vector<64x32xbf16>
    %c32_170 = arith.constant 32 : index
    %c0_171 = arith.constant 0 : index
    %99 = vector.load %arg6[%c32_170, %c0_171] : memref<288x32xbf16, #tpu.memory_space<vmem>>, vector<32x32xbf16>
    %cst_172 = arith.constant dense<0.000000e+00> : vector<64x32xf32>
    %100 = tpu.matmul %98, %99, %cst_172 {dimension_numbers = #tpu.dot_dimension_numbers<[1], [0], [0], [1], [0, 0, 1, 1], [], []>} : vector<64x32xbf16>, vector<32x32xbf16>, vector<64x32xf32> -> vector<64x32xf32>
    %101 = arith.addf %96, %100 : vector<64x32xf32>
    %c0_173 = arith.constant 0 : index
    %c0_174 = arith.constant 0 : index
    %c2_175 = arith.constant 2 : index
    %c0_176 = arith.constant 0 : index
    %102 = vector.load %arg16[%c0_173, %c0_174, %c2_175, %c0_176] : memref<1x10x10x32xbf16, #tpu.memory_space<vmem>>, vector<1x8x8x32xbf16>
    %103 = vector.shape_cast %102 : vector<1x8x8x32xbf16> to vector<64x32xbf16>
    %c64_177 = arith.constant 64 : index
    %c0_178 = arith.constant 0 : index
    %104 = vector.load %arg6[%c64_177, %c0_178] : memref<288x32xbf16, #tpu.memory_space<vmem>>, vector<32x32xbf16>
    %cst_179 = arith.constant dense<0.000000e+00> : vector<64x32xf32>
    %105 = tpu.matmul %103, %104, %cst_179 {dimension_numbers = #tpu.dot_dimension_numbers<[1], [0], [0], [1], [0, 0, 1, 1], [], []>} : vector<64x32xbf16>, vector<32x32xbf16>, vector<64x32xf32> -> vector<64x32xf32>
    %106 = arith.addf %101, %105 : vector<64x32xf32>
    %c0_180 = arith.constant 0 : index
    %c1_181 = arith.constant 1 : index
    %c0_182 = arith.constant 0 : index
    %c0_183 = arith.constant 0 : index
    %107 = vector.load %arg16[%c0_180, %c1_181, %c0_182, %c0_183] : memref<1x10x10x32xbf16, #tpu.memory_space<vmem>>, vector<1x8x8x32xbf16>
    %108 = vector.shape_cast %107 : vector<1x8x8x32xbf16> to vector<64x32xbf16>
    %c96_184 = arith.constant 96 : index
    %c0_185 = arith.constant 0 : index
    %109 = vector.load %arg6[%c96_184, %c0_185] : memref<288x32xbf16, #tpu.memory_space<vmem>>, vector<32x32xbf16>
    %cst_186 = arith.constant dense<0.000000e+00> : vector<64x32xf32>
    %110 = tpu.matmul %108, %109, %cst_186 {dimension_numbers = #tpu.dot_dimension_numbers<[1], [0], [0], [1], [0, 0, 1, 1], [], []>} : vector<64x32xbf16>, vector<32x32xbf16>, vector<64x32xf32> -> vector<64x32xf32>
    %111 = arith.addf %106, %110 : vector<64x32xf32>
    %c0_187 = arith.constant 0 : index
    %c1_188 = arith.constant 1 : index
    %c1_189 = arith.constant 1 : index
    %c0_190 = arith.constant 0 : index
    %112 = vector.load %arg16[%c0_187, %c1_188, %c1_189, %c0_190] : memref<1x10x10x32xbf16, #tpu.memory_space<vmem>>, vector<1x8x8x32xbf16>
    %113 = vector.shape_cast %112 : vector<1x8x8x32xbf16> to vector<64x32xbf16>
    %c128_191 = arith.constant 128 : index
    %c0_192 = arith.constant 0 : index
    %114 = vector.load %arg6[%c128_191, %c0_192] : memref<288x32xbf16, #tpu.memory_space<vmem>>, vector<32x32xbf16>
    %cst_193 = arith.constant dense<0.000000e+00> : vector<64x32xf32>
    %115 = tpu.matmul %113, %114, %cst_193 {dimension_numbers = #tpu.dot_dimension_numbers<[1], [0], [0], [1], [0, 0, 1, 1], [], []>} : vector<64x32xbf16>, vector<32x32xbf16>, vector<64x32xf32> -> vector<64x32xf32>
    %116 = arith.addf %111, %115 : vector<64x32xf32>
    %c0_194 = arith.constant 0 : index
    %c1_195 = arith.constant 1 : index
    %c2_196 = arith.constant 2 : index
    %c0_197 = arith.constant 0 : index
    %117 = vector.load %arg16[%c0_194, %c1_195, %c2_196, %c0_197] : memref<1x10x10x32xbf16, #tpu.memory_space<vmem>>, vector<1x8x8x32xbf16>
    %118 = vector.shape_cast %117 : vector<1x8x8x32xbf16> to vector<64x32xbf16>
    %c160 = arith.constant 160 : index
    %c0_198 = arith.constant 0 : index
    %119 = vector.load %arg6[%c160, %c0_198] : memref<288x32xbf16, #tpu.memory_space<vmem>>, vector<32x32xbf16>
    %cst_199 = arith.constant dense<0.000000e+00> : vector<64x32xf32>
    %120 = tpu.matmul %118, %119, %cst_199 {dimension_numbers = #tpu.dot_dimension_numbers<[1], [0], [0], [1], [0, 0, 1, 1], [], []>} : vector<64x32xbf16>, vector<32x32xbf16>, vector<64x32xf32> -> vector<64x32xf32>
    %121 = arith.addf %116, %120 : vector<64x32xf32>
    %c0_200 = arith.constant 0 : index
    %c2_201 = arith.constant 2 : index
    %c0_202 = arith.constant 0 : index
    %c0_203 = arith.constant 0 : index
    %122 = vector.load %arg16[%c0_200, %c2_201, %c0_202, %c0_203] : memref<1x10x10x32xbf16, #tpu.memory_space<vmem>>, vector<1x8x8x32xbf16>
    %123 = vector.shape_cast %122 : vector<1x8x8x32xbf16> to vector<64x32xbf16>
    %c192 = arith.constant 192 : index
    %c0_204 = arith.constant 0 : index
    %124 = vector.load %arg6[%c192, %c0_204] : memref<288x32xbf16, #tpu.memory_space<vmem>>, vector<32x32xbf16>
    %cst_205 = arith.constant dense<0.000000e+00> : vector<64x32xf32>
    %125 = tpu.matmul %123, %124, %cst_205 {dimension_numbers = #tpu.dot_dimension_numbers<[1], [0], [0], [1], [0, 0, 1, 1], [], []>} : vector<64x32xbf16>, vector<32x32xbf16>, vector<64x32xf32> -> vector<64x32xf32>
    %126 = arith.addf %121, %125 : vector<64x32xf32>
    %c0_206 = arith.constant 0 : index
    %c2_207 = arith.constant 2 : index
    %c1_208 = arith.constant 1 : index
    %c0_209 = arith.constant 0 : index
    %127 = vector.load %arg16[%c0_206, %c2_207, %c1_208, %c0_209] : memref<1x10x10x32xbf16, #tpu.memory_space<vmem>>, vector<1x8x8x32xbf16>
    %128 = vector.shape_cast %127 : vector<1x8x8x32xbf16> to vector<64x32xbf16>
    %c224 = arith.constant 224 : index
    %c0_210 = arith.constant 0 : index
    %129 = vector.load %arg6[%c224, %c0_210] : memref<288x32xbf16, #tpu.memory_space<vmem>>, vector<32x32xbf16>
    %cst_211 = arith.constant dense<0.000000e+00> : vector<64x32xf32>
    %130 = tpu.matmul %128, %129, %cst_211 {dimension_numbers = #tpu.dot_dimension_numbers<[1], [0], [0], [1], [0, 0, 1, 1], [], []>} : vector<64x32xbf16>, vector<32x32xbf16>, vector<64x32xf32> -> vector<64x32xf32>
    %131 = arith.addf %126, %130 : vector<64x32xf32>
    %c0_212 = arith.constant 0 : index
    %c2_213 = arith.constant 2 : index
    %c2_214 = arith.constant 2 : index
    %c0_215 = arith.constant 0 : index
    %132 = vector.load %arg16[%c0_212, %c2_213, %c2_214, %c0_215] : memref<1x10x10x32xbf16, #tpu.memory_space<vmem>>, vector<1x8x8x32xbf16>
    %133 = vector.shape_cast %132 : vector<1x8x8x32xbf16> to vector<64x32xbf16>
    %c256 = arith.constant 256 : index
    %c0_216 = arith.constant 0 : index
    %134 = vector.load %arg6[%c256, %c0_216] : memref<288x32xbf16, #tpu.memory_space<vmem>>, vector<32x32xbf16>
    %cst_217 = arith.constant dense<0.000000e+00> : vector<64x32xf32>
    %135 = tpu.matmul %133, %134, %cst_217 {dimension_numbers = #tpu.dot_dimension_numbers<[1], [0], [0], [1], [0, 0, 1, 1], [], []>} : vector<64x32xbf16>, vector<32x32xbf16>, vector<64x32xf32> -> vector<64x32xf32>
    %136 = arith.addf %131, %135 : vector<64x32xf32>
    %c0_218 = arith.constant 0 : index
    %c0_219 = arith.constant 0 : index
    %137 = vector.load %arg7[%c0_218, %c0_219] : memref<1x32xf32, #tpu.memory_space<vmem>>, vector<1x32xf32>
    %138 = vector.broadcast %137 : vector<1x32xf32> to vector<64x32xf32>
    %139 = arith.addf %136, %138 : vector<64x32xf32>
    %cst_220 = arith.constant 0.000000e+00 : f32
    %140 = vector.broadcast %cst_220 : f32 to vector<64x32xf32>
    %141 = arith.maximumf %139, %140 : vector<64x32xf32>
    %142 = vector.shape_cast %141 : vector<64x32xf32> to vector<1x8x8x32xf32>
    %143 = arith.truncf %142 : vector<1x8x8x32xf32> to vector<1x8x8x32xbf16>
    %c0_221 = arith.constant 0 : index
    %c1_222 = arith.constant 1 : index
    %c1_223 = arith.constant 1 : index
    %c0_224 = arith.constant 0 : index
    %144 = vector.load %arg17[%c0_221, %c1_222, %c1_223, %c0_224] : memref<1x10x10x32xbf16, #tpu.memory_space<vmem>>, vector<1x8x8x32xbf16>
    tpu.vector_store %arg17[%c0_221, %c1_222, %c1_223, %c0_224], %143 {strides = array<i32>} : memref<1x10x10x32xbf16, #tpu.memory_space<vmem>>, vector<1x8x8x32xbf16>,
    %c0_225 = arith.constant 0 : index
    %c0_226 = arith.constant 0 : index
    %c0_227 = arith.constant 0 : index
    %c0_228 = arith.constant 0 : index
    %145 = vector.load %arg17[%c0_225, %c0_226, %c0_227, %c0_228] : memref<1x10x10x32xbf16, #tpu.memory_space<vmem>>, vector<1x8x8x32xbf16>
    %146 = vector.shape_cast %145 : vector<1x8x8x32xbf16> to vector<64x32xbf16>
    %c0_229 = arith.constant 0 : index
    %c0_230 = arith.constant 0 : index
    %147 = vector.load %arg8[%c0_229, %c0_230] : memref<288x32xbf16, #tpu.memory_space<vmem>>, vector<32x32xbf16>
    %cst_231 = arith.constant dense<0.000000e+00> : vector<64x32xf32>
    %148 = tpu.matmul %146, %147, %cst_231 {dimension_numbers = #tpu.dot_dimension_numbers<[1], [0], [0], [1], [0, 0, 1, 1], [], []>} : vector<64x32xbf16>, vector<32x32xbf16>, vector<64x32xf32> -> vector<64x32xf32>
    %c0_232 = arith.constant 0 : index
    %c0_233 = arith.constant 0 : index
    %c1_234 = arith.constant 1 : index
    %c0_235 = arith.constant 0 : index
    %149 = vector.load %arg17[%c0_232, %c0_233, %c1_234, %c0_235] : memref<1x10x10x32xbf16, #tpu.memory_space<vmem>>, vector<1x8x8x32xbf16>
    %150 = vector.shape_cast %149 : vector<1x8x8x32xbf16> to vector<64x32xbf16>
    %c32_236 = arith.constant 32 : index
    %c0_237 = arith.constant 0 : index
    %151 = vector.load %arg8[%c32_236, %c0_237] : memref<288x32xbf16, #tpu.memory_space<vmem>>, vector<32x32xbf16>
    %cst_238 = arith.constant dense<0.000000e+00> : vector<64x32xf32>
    %152 = tpu.matmul %150, %151, %cst_238 {dimension_numbers = #tpu.dot_dimension_numbers<[1], [0], [0], [1], [0, 0, 1, 1], [], []>} : vector<64x32xbf16>, vector<32x32xbf16>, vector<64x32xf32> -> vector<64x32xf32>
    %153 = arith.addf %148, %152 : vector<64x32xf32>
    %c0_239 = arith.constant 0 : index
    %c0_240 = arith.constant 0 : index
    %c2_241 = arith.constant 2 : index
    %c0_242 = arith.constant 0 : index
    %154 = vector.load %arg17[%c0_239, %c0_240, %c2_241, %c0_242] : memref<1x10x10x32xbf16, #tpu.memory_space<vmem>>, vector<1x8x8x32xbf16>
    %155 = vector.shape_cast %154 : vector<1x8x8x32xbf16> to vector<64x32xbf16>
    %c64_243 = arith.constant 64 : index
    %c0_244 = arith.constant 0 : index
    %156 = vector.load %arg8[%c64_243, %c0_244] : memref<288x32xbf16, #tpu.memory_space<vmem>>, vector<32x32xbf16>
    %cst_245 = arith.constant dense<0.000000e+00> : vector<64x32xf32>
    %157 = tpu.matmul %155, %156, %cst_245 {dimension_numbers = #tpu.dot_dimension_numbers<[1], [0], [0], [1], [0, 0, 1, 1], [], []>} : vector<64x32xbf16>, vector<32x32xbf16>, vector<64x32xf32> -> vector<64x32xf32>
    %158 = arith.addf %153, %157 : vector<64x32xf32>
    %c0_246 = arith.constant 0 : index
    %c1_247 = arith.constant 1 : index
    %c0_248 = arith.constant 0 : index
    %c0_249 = arith.constant 0 : index
    %159 = vector.load %arg17[%c0_246, %c1_247, %c0_248, %c0_249] : memref<1x10x10x32xbf16, #tpu.memory_space<vmem>>, vector<1x8x8x32xbf16>
    %160 = vector.shape_cast %159 : vector<1x8x8x32xbf16> to vector<64x32xbf16>
    %c96_250 = arith.constant 96 : index
    %c0_251 = arith.constant 0 : index
    %161 = vector.load %arg8[%c96_250, %c0_251] : memref<288x32xbf16, #tpu.memory_space<vmem>>, vector<32x32xbf16>
    %cst_252 = arith.constant dense<0.000000e+00> : vector<64x32xf32>
    %162 = tpu.matmul %160, %161, %cst_252 {dimension_numbers = #tpu.dot_dimension_numbers<[1], [0], [0], [1], [0, 0, 1, 1], [], []>} : vector<64x32xbf16>, vector<32x32xbf16>, vector<64x32xf32> -> vector<64x32xf32>
    %163 = arith.addf %158, %162 : vector<64x32xf32>
    %c0_253 = arith.constant 0 : index
    %c1_254 = arith.constant 1 : index
    %c1_255 = arith.constant 1 : index
    %c0_256 = arith.constant 0 : index
    %164 = vector.load %arg17[%c0_253, %c1_254, %c1_255, %c0_256] : memref<1x10x10x32xbf16, #tpu.memory_space<vmem>>, vector<1x8x8x32xbf16>
    %165 = vector.shape_cast %164 : vector<1x8x8x32xbf16> to vector<64x32xbf16>
    %c128_257 = arith.constant 128 : index
    %c0_258 = arith.constant 0 : index
    %166 = vector.load %arg8[%c128_257, %c0_258] : memref<288x32xbf16, #tpu.memory_space<vmem>>, vector<32x32xbf16>
    %cst_259 = arith.constant dense<0.000000e+00> : vector<64x32xf32>
    %167 = tpu.matmul %165, %166, %cst_259 {dimension_numbers = #tpu.dot_dimension_numbers<[1], [0], [0], [1], [0, 0, 1, 1], [], []>} : vector<64x32xbf16>, vector<32x32xbf16>, vector<64x32xf32> -> vector<64x32xf32>
    %168 = arith.addf %163, %167 : vector<64x32xf32>
    %c0_260 = arith.constant 0 : index
    %c1_261 = arith.constant 1 : index
    %c2_262 = arith.constant 2 : index
    %c0_263 = arith.constant 0 : index
    %169 = vector.load %arg17[%c0_260, %c1_261, %c2_262, %c0_263] : memref<1x10x10x32xbf16, #tpu.memory_space<vmem>>, vector<1x8x8x32xbf16>
    %170 = vector.shape_cast %169 : vector<1x8x8x32xbf16> to vector<64x32xbf16>
    %c160_264 = arith.constant 160 : index
    %c0_265 = arith.constant 0 : index
    %171 = vector.load %arg8[%c160_264, %c0_265] : memref<288x32xbf16, #tpu.memory_space<vmem>>, vector<32x32xbf16>
    %cst_266 = arith.constant dense<0.000000e+00> : vector<64x32xf32>
    %172 = tpu.matmul %170, %171, %cst_266 {dimension_numbers = #tpu.dot_dimension_numbers<[1], [0], [0], [1], [0, 0, 1, 1], [], []>} : vector<64x32xbf16>, vector<32x32xbf16>, vector<64x32xf32> -> vector<64x32xf32>
    %173 = arith.addf %168, %172 : vector<64x32xf32>
    %c0_267 = arith.constant 0 : index
    %c2_268 = arith.constant 2 : index
    %c0_269 = arith.constant 0 : index
    %c0_270 = arith.constant 0 : index
    %174 = vector.load %arg17[%c0_267, %c2_268, %c0_269, %c0_270] : memref<1x10x10x32xbf16, #tpu.memory_space<vmem>>, vector<1x8x8x32xbf16>
    %175 = vector.shape_cast %174 : vector<1x8x8x32xbf16> to vector<64x32xbf16>
    %c192_271 = arith.constant 192 : index
    %c0_272 = arith.constant 0 : index
    %176 = vector.load %arg8[%c192_271, %c0_272] : memref<288x32xbf16, #tpu.memory_space<vmem>>, vector<32x32xbf16>
    %cst_273 = arith.constant dense<0.000000e+00> : vector<64x32xf32>
    %177 = tpu.matmul %175, %176, %cst_273 {dimension_numbers = #tpu.dot_dimension_numbers<[1], [0], [0], [1], [0, 0, 1, 1], [], []>} : vector<64x32xbf16>, vector<32x32xbf16>, vector<64x32xf32> -> vector<64x32xf32>
    %178 = arith.addf %173, %177 : vector<64x32xf32>
    %c0_274 = arith.constant 0 : index
    %c2_275 = arith.constant 2 : index
    %c1_276 = arith.constant 1 : index
    %c0_277 = arith.constant 0 : index
    %179 = vector.load %arg17[%c0_274, %c2_275, %c1_276, %c0_277] : memref<1x10x10x32xbf16, #tpu.memory_space<vmem>>, vector<1x8x8x32xbf16>
    %180 = vector.shape_cast %179 : vector<1x8x8x32xbf16> to vector<64x32xbf16>
    %c224_278 = arith.constant 224 : index
    %c0_279 = arith.constant 0 : index
    %181 = vector.load %arg8[%c224_278, %c0_279] : memref<288x32xbf16, #tpu.memory_space<vmem>>, vector<32x32xbf16>
    %cst_280 = arith.constant dense<0.000000e+00> : vector<64x32xf32>
    %182 = tpu.matmul %180, %181, %cst_280 {dimension_numbers = #tpu.dot_dimension_numbers<[1], [0], [0], [1], [0, 0, 1, 1], [], []>} : vector<64x32xbf16>, vector<32x32xbf16>, vector<64x32xf32> -> vector<64x32xf32>
    %183 = arith.addf %178, %182 : vector<64x32xf32>
    %c0_281 = arith.constant 0 : index
    %c2_282 = arith.constant 2 : index
    %c2_283 = arith.constant 2 : index
    %c0_284 = arith.constant 0 : index
    %184 = vector.load %arg17[%c0_281, %c2_282, %c2_283, %c0_284] : memref<1x10x10x32xbf16, #tpu.memory_space<vmem>>, vector<1x8x8x32xbf16>
    %185 = vector.shape_cast %184 : vector<1x8x8x32xbf16> to vector<64x32xbf16>
    %c256_285 = arith.constant 256 : index
    %c0_286 = arith.constant 0 : index
    %186 = vector.load %arg8[%c256_285, %c0_286] : memref<288x32xbf16, #tpu.memory_space<vmem>>, vector<32x32xbf16>
    %cst_287 = arith.constant dense<0.000000e+00> : vector<64x32xf32>
    %187 = tpu.matmul %185, %186, %cst_287 {dimension_numbers = #tpu.dot_dimension_numbers<[1], [0], [0], [1], [0, 0, 1, 1], [], []>} : vector<64x32xbf16>, vector<32x32xbf16>, vector<64x32xf32> -> vector<64x32xf32>
    %188 = arith.addf %183, %187 : vector<64x32xf32>
    %c0_288 = arith.constant 0 : index
    %c0_289 = arith.constant 0 : index
    %189 = vector.load %arg9[%c0_288, %c0_289] : memref<1x32xf32, #tpu.memory_space<vmem>>, vector<1x32xf32>
    %190 = vector.broadcast %189 : vector<1x32xf32> to vector<64x32xf32>
    %191 = arith.addf %188, %190 : vector<64x32xf32>
    %cst_290 = arith.constant 0.000000e+00 : f32
    %192 = vector.broadcast %cst_290 : f32 to vector<64x32xf32>
    %193 = arith.maximumf %191, %192 : vector<64x32xf32>
    %194 = vector.shape_cast %193 : vector<64x32xf32> to vector<1x8x8x32xf32>
    %195 = arith.truncf %194 : vector<1x8x8x32xf32> to vector<1x8x8x32xbf16>
    %c0_291 = arith.constant 0 : index
    %c1_292 = arith.constant 1 : index
    %c1_293 = arith.constant 1 : index
    %c0_294 = arith.constant 0 : index
    %196 = vector.load %arg18[%c0_291, %c1_292, %c1_293, %c0_294] : memref<1x10x10x32xbf16, #tpu.memory_space<vmem>>, vector<1x8x8x32xbf16>
    tpu.vector_store %arg18[%c0_291, %c1_292, %c1_293, %c0_294], %195 {strides = array<i32>} : memref<1x10x10x32xbf16, #tpu.memory_space<vmem>>, vector<1x8x8x32xbf16>,
    %c0_295 = arith.constant 0 : index
    %c0_296 = arith.constant 0 : index
    %c0_297 = arith.constant 0 : index
    %c0_298 = arith.constant 0 : index
    %197 = vector.load %arg18[%c0_295, %c0_296, %c0_297, %c0_298] : memref<1x10x10x32xbf16, #tpu.memory_space<vmem>>, vector<1x8x8x32xbf16>
    %198 = vector.shape_cast %197 : vector<1x8x8x32xbf16> to vector<64x32xbf16>
    %c0_299 = arith.constant 0 : index
    %c0_300 = arith.constant 0 : index
    %199 = vector.load %arg10[%c0_299, %c0_300] : memref<576x32xbf16, #tpu.memory_space<vmem>>, vector<32x32xbf16>
    %cst_301 = arith.constant dense<0.000000e+00> : vector<64x32xf32>
    %200 = tpu.matmul %198, %199, %cst_301 {dimension_numbers = #tpu.dot_dimension_numbers<[1], [0], [0], [1], [0, 0, 1, 1], [], []>} : vector<64x32xbf16>, vector<32x32xbf16>, vector<64x32xf32> -> vector<64x32xf32>
    %c0_302 = arith.constant 0 : index
    %c0_303 = arith.constant 0 : index
    %c0_304 = arith.constant 0 : index
    %c0_305 = arith.constant 0 : index
    %201 = vector.load %arg16[%c0_302, %c0_303, %c0_304, %c0_305] : memref<1x10x10x32xbf16, #tpu.memory_space<vmem>>, vector<1x8x8x32xbf16>
    %202 = vector.shape_cast %201 : vector<1x8x8x32xbf16> to vector<64x32xbf16>
    %c32_306 = arith.constant 32 : index
    %c0_307 = arith.constant 0 : index
    %203 = vector.load %arg10[%c32_306, %c0_307] : memref<576x32xbf16, #tpu.memory_space<vmem>>, vector<32x32xbf16>
    %cst_308 = arith.constant dense<0.000000e+00> : vector<64x32xf32>
    %204 = tpu.matmul %202, %203, %cst_308 {dimension_numbers = #tpu.dot_dimension_numbers<[1], [0], [0], [1], [0, 0, 1, 1], [], []>} : vector<64x32xbf16>, vector<32x32xbf16>, vector<64x32xf32> -> vector<64x32xf32>
    %205 = arith.addf %200, %204 : vector<64x32xf32>
    %c0_309 = arith.constant 0 : index
    %c0_310 = arith.constant 0 : index
    %c1_311 = arith.constant 1 : index
    %c0_312 = arith.constant 0 : index
    %206 = vector.load %arg18[%c0_309, %c0_310, %c1_311, %c0_312] : memref<1x10x10x32xbf16, #tpu.memory_space<vmem>>, vector<1x8x8x32xbf16>
    %207 = vector.shape_cast %206 : vector<1x8x8x32xbf16> to vector<64x32xbf16>
    %c64_313 = arith.constant 64 : index
    %c0_314 = arith.constant 0 : index
    %208 = vector.load %arg10[%c64_313, %c0_314] : memref<576x32xbf16, #tpu.memory_space<vmem>>, vector<32x32xbf16>
    %cst_315 = arith.constant dense<0.000000e+00> : vector<64x32xf32>
    %209 = tpu.matmul %207, %208, %cst_315 {dimension_numbers = #tpu.dot_dimension_numbers<[1], [0], [0], [1], [0, 0, 1, 1], [], []>} : vector<64x32xbf16>, vector<32x32xbf16>, vector<64x32xf32> -> vector<64x32xf32>
    %210 = arith.addf %205, %209 : vector<64x32xf32>
    %c0_316 = arith.constant 0 : index
    %c0_317 = arith.constant 0 : index
    %c1_318 = arith.constant 1 : index
    %c0_319 = arith.constant 0 : index
    %211 = vector.load %arg16[%c0_316, %c0_317, %c1_318, %c0_319] : memref<1x10x10x32xbf16, #tpu.memory_space<vmem>>, vector<1x8x8x32xbf16>
    %212 = vector.shape_cast %211 : vector<1x8x8x32xbf16> to vector<64x32xbf16>
    %c96_320 = arith.constant 96 : index
    %c0_321 = arith.constant 0 : index
    %213 = vector.load %arg10[%c96_320, %c0_321] : memref<576x32xbf16, #tpu.memory_space<vmem>>, vector<32x32xbf16>
    %cst_322 = arith.constant dense<0.000000e+00> : vector<64x32xf32>
    %214 = tpu.matmul %212, %213, %cst_322 {dimension_numbers = #tpu.dot_dimension_numbers<[1], [0], [0], [1], [0, 0, 1, 1], [], []>} : vector<64x32xbf16>, vector<32x32xbf16>, vector<64x32xf32> -> vector<64x32xf32>
    %215 = arith.addf %210, %214 : vector<64x32xf32>
    %c0_323 = arith.constant 0 : index
    %c0_324 = arith.constant 0 : index
    %c2_325 = arith.constant 2 : index
    %c0_326 = arith.constant 0 : index
    %216 = vector.load %arg18[%c0_323, %c0_324, %c2_325, %c0_326] : memref<1x10x10x32xbf16, #tpu.memory_space<vmem>>, vector<1x8x8x32xbf16>
    %217 = vector.shape_cast %216 : vector<1x8x8x32xbf16> to vector<64x32xbf16>
    %c128_327 = arith.constant 128 : index
    %c0_328 = arith.constant 0 : index
    %218 = vector.load %arg10[%c128_327, %c0_328] : memref<576x32xbf16, #tpu.memory_space<vmem>>, vector<32x32xbf16>
    %cst_329 = arith.constant dense<0.000000e+00> : vector<64x32xf32>
    %219 = tpu.matmul %217, %218, %cst_329 {dimension_numbers = #tpu.dot_dimension_numbers<[1], [0], [0], [1], [0, 0, 1, 1], [], []>} : vector<64x32xbf16>, vector<32x32xbf16>, vector<64x32xf32> -> vector<64x32xf32>
    %220 = arith.addf %215, %219 : vector<64x32xf32>
    %c0_330 = arith.constant 0 : index
    %c0_331 = arith.constant 0 : index
    %c2_332 = arith.constant 2 : index
    %c0_333 = arith.constant 0 : index
    %221 = vector.load %arg16[%c0_330, %c0_331, %c2_332, %c0_333] : memref<1x10x10x32xbf16, #tpu.memory_space<vmem>>, vector<1x8x8x32xbf16>
    %222 = vector.shape_cast %221 : vector<1x8x8x32xbf16> to vector<64x32xbf16>
    %c160_334 = arith.constant 160 : index
    %c0_335 = arith.constant 0 : index
    %223 = vector.load %arg10[%c160_334, %c0_335] : memref<576x32xbf16, #tpu.memory_space<vmem>>, vector<32x32xbf16>
    %cst_336 = arith.constant dense<0.000000e+00> : vector<64x32xf32>
    %224 = tpu.matmul %222, %223, %cst_336 {dimension_numbers = #tpu.dot_dimension_numbers<[1], [0], [0], [1], [0, 0, 1, 1], [], []>} : vector<64x32xbf16>, vector<32x32xbf16>, vector<64x32xf32> -> vector<64x32xf32>
    %225 = arith.addf %220, %224 : vector<64x32xf32>
    %c0_337 = arith.constant 0 : index
    %c1_338 = arith.constant 1 : index
    %c0_339 = arith.constant 0 : index
    %c0_340 = arith.constant 0 : index
    %226 = vector.load %arg18[%c0_337, %c1_338, %c0_339, %c0_340] : memref<1x10x10x32xbf16, #tpu.memory_space<vmem>>, vector<1x8x8x32xbf16>
    %227 = vector.shape_cast %226 : vector<1x8x8x32xbf16> to vector<64x32xbf16>
    %c192_341 = arith.constant 192 : index
    %c0_342 = arith.constant 0 : index
    %228 = vector.load %arg10[%c192_341, %c0_342] : memref<576x32xbf16, #tpu.memory_space<vmem>>, vector<32x32xbf16>
    %cst_343 = arith.constant dense<0.000000e+00> : vector<64x32xf32>
    %229 = tpu.matmul %227, %228, %cst_343 {dimension_numbers = #tpu.dot_dimension_numbers<[1], [0], [0], [1], [0, 0, 1, 1], [], []>} : vector<64x32xbf16>, vector<32x32xbf16>, vector<64x32xf32> -> vector<64x32xf32>
    %230 = arith.addf %225, %229 : vector<64x32xf32>
    %c0_344 = arith.constant 0 : index
    %c1_345 = arith.constant 1 : index
    %c0_346 = arith.constant 0 : index
    %c0_347 = arith.constant 0 : index
    %231 = vector.load %arg16[%c0_344, %c1_345, %c0_346, %c0_347] : memref<1x10x10x32xbf16, #tpu.memory_space<vmem>>, vector<1x8x8x32xbf16>
    %232 = vector.shape_cast %231 : vector<1x8x8x32xbf16> to vector<64x32xbf16>
    %c224_348 = arith.constant 224 : index
    %c0_349 = arith.constant 0 : index
    %233 = vector.load %arg10[%c224_348, %c0_349] : memref<576x32xbf16, #tpu.memory_space<vmem>>, vector<32x32xbf16>
    %cst_350 = arith.constant dense<0.000000e+00> : vector<64x32xf32>
    %234 = tpu.matmul %232, %233, %cst_350 {dimension_numbers = #tpu.dot_dimension_numbers<[1], [0], [0], [1], [0, 0, 1, 1], [], []>} : vector<64x32xbf16>, vector<32x32xbf16>, vector<64x32xf32> -> vector<64x32xf32>
    %235 = arith.addf %230, %234 : vector<64x32xf32>
    %c0_351 = arith.constant 0 : index
    %c1_352 = arith.constant 1 : index
    %c1_353 = arith.constant 1 : index
    %c0_354 = arith.constant 0 : index
    %236 = vector.load %arg18[%c0_351, %c1_352, %c1_353, %c0_354] : memref<1x10x10x32xbf16, #tpu.memory_space<vmem>>, vector<1x8x8x32xbf16>
    %237 = vector.shape_cast %236 : vector<1x8x8x32xbf16> to vector<64x32xbf16>
    %c256_355 = arith.constant 256 : index
    %c0_356 = arith.constant 0 : index
    %238 = vector.load %arg10[%c256_355, %c0_356] : memref<576x32xbf16, #tpu.memory_space<vmem>>, vector<32x32xbf16>
    %cst_357 = arith.constant dense<0.000000e+00> : vector<64x32xf32>
    %239 = tpu.matmul %237, %238, %cst_357 {dimension_numbers = #tpu.dot_dimension_numbers<[1], [0], [0], [1], [0, 0, 1, 1], [], []>} : vector<64x32xbf16>, vector<32x32xbf16>, vector<64x32xf32> -> vector<64x32xf32>
    %240 = arith.addf %235, %239 : vector<64x32xf32>
    %c0_358 = arith.constant 0 : index
    %c1_359 = arith.constant 1 : index
    %c1_360 = arith.constant 1 : index
    %c0_361 = arith.constant 0 : index
    %241 = vector.load %arg16[%c0_358, %c1_359, %c1_360, %c0_361] : memref<1x10x10x32xbf16, #tpu.memory_space<vmem>>, vector<1x8x8x32xbf16>
    %242 = vector.shape_cast %241 : vector<1x8x8x32xbf16> to vector<64x32xbf16>
    %c288 = arith.constant 288 : index
    %c0_362 = arith.constant 0 : index
    %243 = vector.load %arg10[%c288, %c0_362] : memref<576x32xbf16, #tpu.memory_space<vmem>>, vector<32x32xbf16>
    %cst_363 = arith.constant dense<0.000000e+00> : vector<64x32xf32>
    %244 = tpu.matmul %242, %243, %cst_363 {dimension_numbers = #tpu.dot_dimension_numbers<[1], [0], [0], [1], [0, 0, 1, 1], [], []>} : vector<64x32xbf16>, vector<32x32xbf16>, vector<64x32xf32> -> vector<64x32xf32>
    %245 = arith.addf %240, %244 : vector<64x32xf32>
    %c0_364 = arith.constant 0 : index
    %c1_365 = arith.constant 1 : index
    %c2_366 = arith.constant 2 : index
    %c0_367 = arith.constant 0 : index
    %246 = vector.load %arg18[%c0_364, %c1_365, %c2_366, %c0_367] : memref<1x10x10x32xbf16, #tpu.memory_space<vmem>>, vector<1x8x8x32xbf16>
    %247 = vector.shape_cast %246 : vector<1x8x8x32xbf16> to vector<64x32xbf16>
    %c320 = arith.constant 320 : index
    %c0_368 = arith.constant 0 : index
    %248 = vector.load %arg10[%c320, %c0_368] : memref<576x32xbf16, #tpu.memory_space<vmem>>, vector<32x32xbf16>
    %cst_369 = arith.constant dense<0.000000e+00> : vector<64x32xf32>
    %249 = tpu.matmul %247, %248, %cst_369 {dimension_numbers = #tpu.dot_dimension_numbers<[1], [0], [0], [1], [0, 0, 1, 1], [], []>} : vector<64x32xbf16>, vector<32x32xbf16>, vector<64x32xf32> -> vector<64x32xf32>
    %250 = arith.addf %245, %249 : vector<64x32xf32>
    %c0_370 = arith.constant 0 : index
    %c1_371 = arith.constant 1 : index
    %c2_372 = arith.constant 2 : index
    %c0_373 = arith.constant 0 : index
    %251 = vector.load %arg16[%c0_370, %c1_371, %c2_372, %c0_373] : memref<1x10x10x32xbf16, #tpu.memory_space<vmem>>, vector<1x8x8x32xbf16>
    %252 = vector.shape_cast %251 : vector<1x8x8x32xbf16> to vector<64x32xbf16>
    %c352 = arith.constant 352 : index
    %c0_374 = arith.constant 0 : index
    %253 = vector.load %arg10[%c352, %c0_374] : memref<576x32xbf16, #tpu.memory_space<vmem>>, vector<32x32xbf16>
    %cst_375 = arith.constant dense<0.000000e+00> : vector<64x32xf32>
    %254 = tpu.matmul %252, %253, %cst_375 {dimension_numbers = #tpu.dot_dimension_numbers<[1], [0], [0], [1], [0, 0, 1, 1], [], []>} : vector<64x32xbf16>, vector<32x32xbf16>, vector<64x32xf32> -> vector<64x32xf32>
    %255 = arith.addf %250, %254 : vector<64x32xf32>
    %c0_376 = arith.constant 0 : index
    %c2_377 = arith.constant 2 : index
    %c0_378 = arith.constant 0 : index
    %c0_379 = arith.constant 0 : index
    %256 = vector.load %arg18[%c0_376, %c2_377, %c0_378, %c0_379] : memref<1x10x10x32xbf16, #tpu.memory_space<vmem>>, vector<1x8x8x32xbf16>
    %257 = vector.shape_cast %256 : vector<1x8x8x32xbf16> to vector<64x32xbf16>
    %c384 = arith.constant 384 : index
    %c0_380 = arith.constant 0 : index
    %258 = vector.load %arg10[%c384, %c0_380] : memref<576x32xbf16, #tpu.memory_space<vmem>>, vector<32x32xbf16>
    %cst_381 = arith.constant dense<0.000000e+00> : vector<64x32xf32>
    %259 = tpu.matmul %257, %258, %cst_381 {dimension_numbers = #tpu.dot_dimension_numbers<[1], [0], [0], [1], [0, 0, 1, 1], [], []>} : vector<64x32xbf16>, vector<32x32xbf16>, vector<64x32xf32> -> vector<64x32xf32>
    %260 = arith.addf %255, %259 : vector<64x32xf32>
    %c0_382 = arith.constant 0 : index
    %c2_383 = arith.constant 2 : index
    %c0_384 = arith.constant 0 : index
    %c0_385 = arith.constant 0 : index
    %261 = vector.load %arg16[%c0_382, %c2_383, %c0_384, %c0_385] : memref<1x10x10x32xbf16, #tpu.memory_space<vmem>>, vector<1x8x8x32xbf16>
    %262 = vector.shape_cast %261 : vector<1x8x8x32xbf16> to vector<64x32xbf16>
    %c416 = arith.constant 416 : index
    %c0_386 = arith.constant 0 : index
    %263 = vector.load %arg10[%c416, %c0_386] : memref<576x32xbf16, #tpu.memory_space<vmem>>, vector<32x32xbf16>
    %cst_387 = arith.constant dense<0.000000e+00> : vector<64x32xf32>
    %264 = tpu.matmul %262, %263, %cst_387 {dimension_numbers = #tpu.dot_dimension_numbers<[1], [0], [0], [1], [0, 0, 1, 1], [], []>} : vector<64x32xbf16>, vector<32x32xbf16>, vector<64x32xf32> -> vector<64x32xf32>
    %265 = arith.addf %260, %264 : vector<64x32xf32>
    %c0_388 = arith.constant 0 : index
    %c2_389 = arith.constant 2 : index
    %c1_390 = arith.constant 1 : index
    %c0_391 = arith.constant 0 : index
    %266 = vector.load %arg18[%c0_388, %c2_389, %c1_390, %c0_391] : memref<1x10x10x32xbf16, #tpu.memory_space<vmem>>, vector<1x8x8x32xbf16>
    %267 = vector.shape_cast %266 : vector<1x8x8x32xbf16> to vector<64x32xbf16>
    %c448 = arith.constant 448 : index
    %c0_392 = arith.constant 0 : index
    %268 = vector.load %arg10[%c448, %c0_392] : memref<576x32xbf16, #tpu.memory_space<vmem>>, vector<32x32xbf16>
    %cst_393 = arith.constant dense<0.000000e+00> : vector<64x32xf32>
    %269 = tpu.matmul %267, %268, %cst_393 {dimension_numbers = #tpu.dot_dimension_numbers<[1], [0], [0], [1], [0, 0, 1, 1], [], []>} : vector<64x32xbf16>, vector<32x32xbf16>, vector<64x32xf32> -> vector<64x32xf32>
    %270 = arith.addf %265, %269 : vector<64x32xf32>
    %c0_394 = arith.constant 0 : index
    %c2_395 = arith.constant 2 : index
    %c1_396 = arith.constant 1 : index
    %c0_397 = arith.constant 0 : index
    %271 = vector.load %arg16[%c0_394, %c2_395, %c1_396, %c0_397] : memref<1x10x10x32xbf16, #tpu.memory_space<vmem>>, vector<1x8x8x32xbf16>
    %272 = vector.shape_cast %271 : vector<1x8x8x32xbf16> to vector<64x32xbf16>
    %c480 = arith.constant 480 : index
    %c0_398 = arith.constant 0 : index
    %273 = vector.load %arg10[%c480, %c0_398] : memref<576x32xbf16, #tpu.memory_space<vmem>>, vector<32x32xbf16>
    %cst_399 = arith.constant dense<0.000000e+00> : vector<64x32xf32>
    %274 = tpu.matmul %272, %273, %cst_399 {dimension_numbers = #tpu.dot_dimension_numbers<[1], [0], [0], [1], [0, 0, 1, 1], [], []>} : vector<64x32xbf16>, vector<32x32xbf16>, vector<64x32xf32> -> vector<64x32xf32>
    %275 = arith.addf %270, %274 : vector<64x32xf32>
    %c0_400 = arith.constant 0 : index
    %c2_401 = arith.constant 2 : index
    %c2_402 = arith.constant 2 : index
    %c0_403 = arith.constant 0 : index
    %276 = vector.load %arg18[%c0_400, %c2_401, %c2_402, %c0_403] : memref<1x10x10x32xbf16, #tpu.memory_space<vmem>>, vector<1x8x8x32xbf16>
    %277 = vector.shape_cast %276 : vector<1x8x8x32xbf16> to vector<64x32xbf16>
    %c512 = arith.constant 512 : index
    %c0_404 = arith.constant 0 : index
    %278 = vector.load %arg10[%c512, %c0_404] : memref<576x32xbf16, #tpu.memory_space<vmem>>, vector<32x32xbf16>
    %cst_405 = arith.constant dense<0.000000e+00> : vector<64x32xf32>
    %279 = tpu.matmul %277, %278, %cst_405 {dimension_numbers = #tpu.dot_dimension_numbers<[1], [0], [0], [1], [0, 0, 1, 1], [], []>} : vector<64x32xbf16>, vector<32x32xbf16>, vector<64x32xf32> -> vector<64x32xf32>
    %280 = arith.addf %275, %279 : vector<64x32xf32>
    %c0_406 = arith.constant 0 : index
    %c2_407 = arith.constant 2 : index
    %c2_408 = arith.constant 2 : index
    %c0_409 = arith.constant 0 : index
    %281 = vector.load %arg16[%c0_406, %c2_407, %c2_408, %c0_409] : memref<1x10x10x32xbf16, #tpu.memory_space<vmem>>, vector<1x8x8x32xbf16>
    %282 = vector.shape_cast %281 : vector<1x8x8x32xbf16> to vector<64x32xbf16>
    %c544 = arith.constant 544 : index
    %c0_410 = arith.constant 0 : index
    %283 = vector.load %arg10[%c544, %c0_410] : memref<576x32xbf16, #tpu.memory_space<vmem>>, vector<32x32xbf16>
    %cst_411 = arith.constant dense<0.000000e+00> : vector<64x32xf32>
    %284 = tpu.matmul %282, %283, %cst_411 {dimension_numbers = #tpu.dot_dimension_numbers<[1], [0], [0], [1], [0, 0, 1, 1], [], []>} : vector<64x32xbf16>, vector<32x32xbf16>, vector<64x32xf32> -> vector<64x32xf32>
    %285 = arith.addf %280, %284 : vector<64x32xf32>
    %c0_412 = arith.constant 0 : index
    %c0_413 = arith.constant 0 : index
    %286 = vector.load %arg11[%c0_412, %c0_413] : memref<1x32xf32, #tpu.memory_space<vmem>>, vector<1x32xf32>
    %287 = vector.broadcast %286 : vector<1x32xf32> to vector<64x32xf32>
    %288 = arith.addf %285, %287 : vector<64x32xf32>
    %cst_414 = arith.constant 0.000000e+00 : f32
    %289 = vector.broadcast %cst_414 : f32 to vector<64x32xf32>
    %290 = arith.maximumf %288, %289 : vector<64x32xf32>
    %291 = vector.shape_cast %290 : vector<64x32xf32> to vector<1x8x8x32xf32>
    %292 = arith.truncf %291 : vector<1x8x8x32xf32> to vector<1x8x8x32xbf16>
    %c0_415 = arith.constant 0 : index
    %c1_416 = arith.constant 1 : index
    %c1_417 = arith.constant 1 : index
    %c0_418 = arith.constant 0 : index
    %293 = vector.load %arg19[%c0_415, %c1_416, %c1_417, %c0_418] : memref<1x10x10x32xbf16, #tpu.memory_space<vmem>>, vector<1x8x8x32xbf16>
    tpu.vector_store %arg19[%c0_415, %c1_416, %c1_417, %c0_418], %292 {strides = array<i32>} : memref<1x10x10x32xbf16, #tpu.memory_space<vmem>>, vector<1x8x8x32xbf16>,
    %c0_419 = arith.constant 0 : index
    %c0_420 = arith.constant 0 : index
    %c0_421 = arith.constant 0 : index
    %c0_422 = arith.constant 0 : index
    %294 = vector.load %arg19[%c0_419, %c0_420, %c0_421, %c0_422] : memref<1x10x10x32xbf16, #tpu.memory_space<vmem>>, vector<1x8x8x32xbf16>
    %295 = vector.shape_cast %294 : vector<1x8x8x32xbf16> to vector<64x32xbf16>
    %c0_423 = arith.constant 0 : index
    %c0_424 = arith.constant 0 : index
    %296 = vector.load %arg12[%c0_423, %c0_424] : memref<288x12xbf16, #tpu.memory_space<vmem>>, vector<32x12xbf16>
    %cst_425 = arith.constant dense<0.000000e+00> : vector<64x12xf32>
    %297 = tpu.matmul %295, %296, %cst_425 {dimension_numbers = #tpu.dot_dimension_numbers<[1], [0], [0], [1], [0, 0, 1, 1], [], []>} : vector<64x32xbf16>, vector<32x12xbf16>, vector<64x12xf32> -> vector<64x12xf32>
    %c0_426 = arith.constant 0 : index
    %c0_427 = arith.constant 0 : index
    %c1_428 = arith.constant 1 : index
    %c0_429 = arith.constant 0 : index
    %298 = vector.load %arg19[%c0_426, %c0_427, %c1_428, %c0_429] : memref<1x10x10x32xbf16, #tpu.memory_space<vmem>>, vector<1x8x8x32xbf16>
    %299 = vector.shape_cast %298 : vector<1x8x8x32xbf16> to vector<64x32xbf16>
    %c32_430 = arith.constant 32 : index
    %c0_431 = arith.constant 0 : index
    %300 = vector.load %arg12[%c32_430, %c0_431] : memref<288x12xbf16, #tpu.memory_space<vmem>>, vector<32x12xbf16>
    %cst_432 = arith.constant dense<0.000000e+00> : vector<64x12xf32>
    %301 = tpu.matmul %299, %300, %cst_432 {dimension_numbers = #tpu.dot_dimension_numbers<[1], [0], [0], [1], [0, 0, 1, 1], [], []>} : vector<64x32xbf16>, vector<32x12xbf16>, vector<64x12xf32> -> vector<64x12xf32>
    %302 = arith.addf %297, %301 : vector<64x12xf32>
    %c0_433 = arith.constant 0 : index
    %c0_434 = arith.constant 0 : index
    %c2_435 = arith.constant 2 : index
    %c0_436 = arith.constant 0 : index
    %303 = vector.load %arg19[%c0_433, %c0_434, %c2_435, %c0_436] : memref<1x10x10x32xbf16, #tpu.memory_space<vmem>>, vector<1x8x8x32xbf16>
    %304 = vector.shape_cast %303 : vector<1x8x8x32xbf16> to vector<64x32xbf16>
    %c64_437 = arith.constant 64 : index
    %c0_438 = arith.constant 0 : index
    %305 = vector.load %arg12[%c64_437, %c0_438] : memref<288x12xbf16, #tpu.memory_space<vmem>>, vector<32x12xbf16>
    %cst_439 = arith.constant dense<0.000000e+00> : vector<64x12xf32>
    %306 = tpu.matmul %304, %305, %cst_439 {dimension_numbers = #tpu.dot_dimension_numbers<[1], [0], [0], [1], [0, 0, 1, 1], [], []>} : vector<64x32xbf16>, vector<32x12xbf16>, vector<64x12xf32> -> vector<64x12xf32>
    %307 = arith.addf %302, %306 : vector<64x12xf32>
    %c0_440 = arith.constant 0 : index
    %c1_441 = arith.constant 1 : index
    %c0_442 = arith.constant 0 : index
    %c0_443 = arith.constant 0 : index
    %308 = vector.load %arg19[%c0_440, %c1_441, %c0_442, %c0_443] : memref<1x10x10x32xbf16, #tpu.memory_space<vmem>>, vector<1x8x8x32xbf16>
    %309 = vector.shape_cast %308 : vector<1x8x8x32xbf16> to vector<64x32xbf16>
    %c96_444 = arith.constant 96 : index
    %c0_445 = arith.constant 0 : index
    %310 = vector.load %arg12[%c96_444, %c0_445] : memref<288x12xbf16, #tpu.memory_space<vmem>>, vector<32x12xbf16>
    %cst_446 = arith.constant dense<0.000000e+00> : vector<64x12xf32>
    %311 = tpu.matmul %309, %310, %cst_446 {dimension_numbers = #tpu.dot_dimension_numbers<[1], [0], [0], [1], [0, 0, 1, 1], [], []>} : vector<64x32xbf16>, vector<32x12xbf16>, vector<64x12xf32> -> vector<64x12xf32>
    %312 = arith.addf %307, %311 : vector<64x12xf32>
    %c0_447 = arith.constant 0 : index
    %c1_448 = arith.constant 1 : index
    %c1_449 = arith.constant 1 : index
    %c0_450 = arith.constant 0 : index
    %313 = vector.load %arg19[%c0_447, %c1_448, %c1_449, %c0_450] : memref<1x10x10x32xbf16, #tpu.memory_space<vmem>>, vector<1x8x8x32xbf16>
    %314 = vector.shape_cast %313 : vector<1x8x8x32xbf16> to vector<64x32xbf16>
    %c128_451 = arith.constant 128 : index
    %c0_452 = arith.constant 0 : index
    %315 = vector.load %arg12[%c128_451, %c0_452] : memref<288x12xbf16, #tpu.memory_space<vmem>>, vector<32x12xbf16>
    %cst_453 = arith.constant dense<0.000000e+00> : vector<64x12xf32>
    %316 = tpu.matmul %314, %315, %cst_453 {dimension_numbers = #tpu.dot_dimension_numbers<[1], [0], [0], [1], [0, 0, 1, 1], [], []>} : vector<64x32xbf16>, vector<32x12xbf16>, vector<64x12xf32> -> vector<64x12xf32>
    %317 = arith.addf %312, %316 : vector<64x12xf32>
    %c0_454 = arith.constant 0 : index
    %c1_455 = arith.constant 1 : index
    %c2_456 = arith.constant 2 : index
    %c0_457 = arith.constant 0 : index
    %318 = vector.load %arg19[%c0_454, %c1_455, %c2_456, %c0_457] : memref<1x10x10x32xbf16, #tpu.memory_space<vmem>>, vector<1x8x8x32xbf16>
    %319 = vector.shape_cast %318 : vector<1x8x8x32xbf16> to vector<64x32xbf16>
    %c160_458 = arith.constant 160 : index
    %c0_459 = arith.constant 0 : index
    %320 = vector.load %arg12[%c160_458, %c0_459] : memref<288x12xbf16, #tpu.memory_space<vmem>>, vector<32x12xbf16>
    %cst_460 = arith.constant dense<0.000000e+00> : vector<64x12xf32>
    %321 = tpu.matmul %319, %320, %cst_460 {dimension_numbers = #tpu.dot_dimension_numbers<[1], [0], [0], [1], [0, 0, 1, 1], [], []>} : vector<64x32xbf16>, vector<32x12xbf16>, vector<64x12xf32> -> vector<64x12xf32>
    %322 = arith.addf %317, %321 : vector<64x12xf32>
    %c0_461 = arith.constant 0 : index
    %c2_462 = arith.constant 2 : index
    %c0_463 = arith.constant 0 : index
    %c0_464 = arith.constant 0 : index
    %323 = vector.load %arg19[%c0_461, %c2_462, %c0_463, %c0_464] : memref<1x10x10x32xbf16, #tpu.memory_space<vmem>>, vector<1x8x8x32xbf16>
    %324 = vector.shape_cast %323 : vector<1x8x8x32xbf16> to vector<64x32xbf16>
    %c192_465 = arith.constant 192 : index
    %c0_466 = arith.constant 0 : index
    %325 = vector.load %arg12[%c192_465, %c0_466] : memref<288x12xbf16, #tpu.memory_space<vmem>>, vector<32x12xbf16>
    %cst_467 = arith.constant dense<0.000000e+00> : vector<64x12xf32>
    %326 = tpu.matmul %324, %325, %cst_467 {dimension_numbers = #tpu.dot_dimension_numbers<[1], [0], [0], [1], [0, 0, 1, 1], [], []>} : vector<64x32xbf16>, vector<32x12xbf16>, vector<64x12xf32> -> vector<64x12xf32>
    %327 = arith.addf %322, %326 : vector<64x12xf32>
    %c0_468 = arith.constant 0 : index
    %c2_469 = arith.constant 2 : index
    %c1_470 = arith.constant 1 : index
    %c0_471 = arith.constant 0 : index
    %328 = vector.load %arg19[%c0_468, %c2_469, %c1_470, %c0_471] : memref<1x10x10x32xbf16, #tpu.memory_space<vmem>>, vector<1x8x8x32xbf16>
    %329 = vector.shape_cast %328 : vector<1x8x8x32xbf16> to vector<64x32xbf16>
    %c224_472 = arith.constant 224 : index
    %c0_473 = arith.constant 0 : index
    %330 = vector.load %arg12[%c224_472, %c0_473] : memref<288x12xbf16, #tpu.memory_space<vmem>>, vector<32x12xbf16>
    %cst_474 = arith.constant dense<0.000000e+00> : vector<64x12xf32>
    %331 = tpu.matmul %329, %330, %cst_474 {dimension_numbers = #tpu.dot_dimension_numbers<[1], [0], [0], [1], [0, 0, 1, 1], [], []>} : vector<64x32xbf16>, vector<32x12xbf16>, vector<64x12xf32> -> vector<64x12xf32>
    %332 = arith.addf %327, %331 : vector<64x12xf32>
    %c0_475 = arith.constant 0 : index
    %c2_476 = arith.constant 2 : index
    %c2_477 = arith.constant 2 : index
    %c0_478 = arith.constant 0 : index
    %333 = vector.load %arg19[%c0_475, %c2_476, %c2_477, %c0_478] : memref<1x10x10x32xbf16, #tpu.memory_space<vmem>>, vector<1x8x8x32xbf16>
    %334 = vector.shape_cast %333 : vector<1x8x8x32xbf16> to vector<64x32xbf16>
    %c256_479 = arith.constant 256 : index
    %c0_480 = arith.constant 0 : index
    %335 = vector.load %arg12[%c256_479, %c0_480] : memref<288x12xbf16, #tpu.memory_space<vmem>>, vector<32x12xbf16>
    %cst_481 = arith.constant dense<0.000000e+00> : vector<64x12xf32>
    %336 = tpu.matmul %334, %335, %cst_481 {dimension_numbers = #tpu.dot_dimension_numbers<[1], [0], [0], [1], [0, 0, 1, 1], [], []>} : vector<64x32xbf16>, vector<32x12xbf16>, vector<64x12xf32> -> vector<64x12xf32>
    %337 = arith.addf %332, %336 : vector<64x12xf32>
    %c0_482 = arith.constant 0 : index
    %c0_483 = arith.constant 0 : index
    %338 = vector.load %arg13[%c0_482, %c0_483] : memref<1x12xf32, #tpu.memory_space<vmem>>, vector<1x12xf32>
    %339 = vector.broadcast %338 : vector<1x12xf32> to vector<64x12xf32>
    %340 = arith.addf %337, %339 : vector<64x12xf32>
    %cst_484 = arith.constant 0.000000e+00 : f32
    %341 = vector.broadcast %cst_484 : f32 to vector<64x12xf32>
    %342 = arith.maximumf %340, %341 : vector<64x12xf32>
    %343 = tpu.transpose %342, [1, 0] : vector<64x12xf32> -> vector<12x64xf32>
    %c0_485 = arith.constant 0 : index
    %c0_486 = arith.constant 0 : index
    %c0_487 = arith.constant 0 : index
    %344 = vector.load %arg14[%c0_485, %c0_486, %c0_487] : memref<1x12x64xf32, #tpu.memory_space<vmem>>, vector<1x12x64xf32>
    %345 = vector.shape_cast %344 : vector<1x12x64xf32> to vector<12x64xf32>
    %346 = vector.shape_cast %343 : vector<12x64xf32> to vector<1x12x64xf32>
    tpu.vector_store %arg14[%c0_485, %c0_486, %c0_487], %346 {strides = array<i32>} : memref<1x12x64xf32, #tpu.memory_space<vmem>>, vector<1x12x64xf32>,
    return
  }
  func.func @transform_0(%arg0: i32) -> (i32, i32, i32) {
    %c0_i32 = arith.constant 0 : i32
    %c0_i32_0 = arith.constant 0 : i32
    %c0_i32_1 = arith.constant 0 : i32
    return %arg0, %c0_i32, %c0_i32_0 : i32, i32, i32
  }
  func.func @transform_1(%arg0: i32) -> (i32, i32) {
    %c0_i32 = arith.constant 0 : i32
    %c0_i32_0 = arith.constant 0 : i32
    %c0_i32_1 = arith.constant 0 : i32
    return %c0_i32, %c0_i32_0 : i32, i32
  }
  func.func @transform_2(%arg0: i32) -> (i32, i32) {
    %c0_i32 = arith.constant 0 : i32
    %c0_i32_0 = arith.constant 0 : i32
    %c0_i32_1 = arith.constant 0 : i32
    return %c0_i32, %c0_i32_0 : i32, i32
  }
  func.func @transform_3(%arg0: i32) -> (i32, i32) {
    %c0_i32 = arith.constant 0 : i32
    %c0_i32_0 = arith.constant 0 : i32
    %c0_i32_1 = arith.constant 0 : i32
    return %c0_i32, %c0_i32_0 : i32, i32
  }
  func.func @transform_4(%arg0: i32) -> (i32, i32) {
    %c0_i32 = arith.constant 0 : i32
    %c0_i32_0 = arith.constant 0 : i32
    %c0_i32_1 = arith.constant 0 : i32
    return %c0_i32, %c0_i32_0 : i32, i32
  }
  func.func @transform_5(%arg0: i32) -> (i32, i32) {
    %c0_i32 = arith.constant 0 : i32
    %c0_i32_0 = arith.constant 0 : i32
    %c0_i32_1 = arith.constant 0 : i32
    return %c0_i32, %c0_i32_0 : i32, i32
  }
  func.func @transform_6(%arg0: i32) -> (i32, i32) {
    %c0_i32 = arith.constant 0 : i32
    %c0_i32_0 = arith.constant 0 : i32
    %c0_i32_1 = arith.constant 0 : i32
    return %c0_i32, %c0_i32_0 : i32, i32
  }
  func.func @transform_7(%arg0: i32) -> (i32, i32) {
    %c0_i32 = arith.constant 0 : i32
    %c0_i32_0 = arith.constant 0 : i32
    %c0_i32_1 = arith.constant 0 : i32
    return %c0_i32, %c0_i32_0 : i32, i32
  }
  func.func @transform_8(%arg0: i32) -> (i32, i32) {
    %c0_i32 = arith.constant 0 : i32
    %c0_i32_0 = arith.constant 0 : i32
    %c0_i32_1 = arith.constant 0 : i32
    return %c0_i32, %c0_i32_0 : i32, i32
  }
  func.func @transform_9(%arg0: i32) -> (i32, i32) {
    %c0_i32 = arith.constant 0 : i32
    %c0_i32_0 = arith.constant 0 : i32
    %c0_i32_1 = arith.constant 0 : i32
    return %c0_i32, %c0_i32_0 : i32, i32
  }
  func.func @transform_10(%arg0: i32) -> (i32, i32) {
    %c0_i32 = arith.constant 0 : i32
    %c0_i32_0 = arith.constant 0 : i32
    %c0_i32_1 = arith.constant 0 : i32
    return %c0_i32, %c0_i32_0 : i32, i32
  }
  func.func @transform_11(%arg0: i32) -> (i32, i32) {
    %c0_i32 = arith.constant 0 : i32
    %c0_i32_0 = arith.constant 0 : i32
    %c0_i32_1 = arith.constant 0 : i32
    return %c0_i32, %c0_i32_0 : i32, i32
  }
  func.func @transform_12(%arg0: i32) -> (i32, i32) {
    %c0_i32 = arith.constant 0 : i32
    %c0_i32_0 = arith.constant 0 : i32
    %c0_i32_1 = arith.constant 0 : i32
    return %c0_i32, %c0_i32_0 : i32, i32
  }
  func.func @transform_13(%arg0: i32) -> (i32, i32, i32) {
    %c0_i32 = arith.constant 0 : i32
    %c0_i32_0 = arith.constant 0 : i32
    %c0_i32_1 = arith.constant 0 : i32
    return %arg0, %c0_i32, %c0_i32_0 : i32, i32, i32
  }
}

</mosaic_0001>

<llo_original>
// kernel: _lambda_.1
$region0: #{_lambda_.1}
  #allocation0 [shape = 'u32[]', space=smem, size = 0x4, offset = 0x4, fixed_abs, tag = 'smem constant byte address 0x4 - core index']
  #allocation1 [shape = 'u32[144,128]{1,0:T(1,128)}', space=vmem, size = 0x12000, scoped, tag = 'internal scratch']
  #allocation2 [shape = 'bf16[1,10,10,16]{3,2,1,0:T(8,128)(2,1)}', space=vmem, size = 0xa000, scoped, tag = 'scratch operand']
  #allocation3 [shape = 'bf16[1,10,10,32]{3,2,1,0:T(8,128)(2,1)}', space=vmem, size = 0xa000, scoped, tag = 'scratch operand']
  #allocation4 [shape = 'bf16[1,10,10,32]{3,2,1,0:T(8,128)(2,1)}', space=vmem, size = 0xa000, scoped, tag = 'scratch operand']
  #allocation5 [shape = 'bf16[1,10,10,32]{3,2,1,0:T(8,128)(2,1)}', space=vmem, size = 0xa000, scoped, tag = 'scratch operand']
  #allocation6 [shape = 'bf16[1,10,10,32]{3,2,1,0:T(8,128)(2,1)}', space=vmem, size = 0xa000, scoped, tag = 'scratch operand']
  %s0 = inlined_call_operand.vmem [shape: bf16[2,64,32], index: 0, kind: input, shape index: {}]
  %s1 = inlined_call_operand.vmem [shape: bf16[32,16], index: 1, kind: input, shape index: {}]
  %s2 = inlined_call_operand.vmem [shape: f32[1,16], index: 2, kind: input, shape index: {}]
  %s3 = inlined_call_operand.vmem [shape: bf16[144,32], index: 3, kind: input, shape index: {}]
  %s4 = inlined_call_operand.vmem [shape: f32[1,32], index: 4, kind: input, shape index: {}]
  %s5 = inlined_call_operand.vmem [shape: bf16[288,32], index: 5, kind: input, shape index: {}]
  %s6 = inlined_call_operand.vmem [shape: f32[1,32], index: 6, kind: input, shape index: {}]
  %s7 = inlined_call_operand.vmem [shape: bf16[288,32], index: 7, kind: input, shape index: {}]
  %s8 = inlined_call_operand.vmem [shape: f32[1,32], index: 8, kind: input, shape index: {}]
  %s9 = inlined_call_operand.vmem [shape: bf16[576,32], index: 9, kind: input, shape index: {}]
  %s10 = inlined_call_operand.vmem [shape: f32[1,32], index: 10, kind: input, shape index: {}]
  %s11 = inlined_call_operand.vmem [shape: bf16[288,12], index: 11, kind: input, shape index: {}]
  %s12 = inlined_call_operand.vmem [shape: f32[1,12], index: 12, kind: input, shape index: {}]
  %s13 = inlined_call_operand.vmem [shape: f32[2,12,64], index: 13, kind: output, shape index: {}]
  %s14 = sld [smem:[#allocation0]]
  $region85: #{_lambda_.1} parent=0
    _
  %s16 = ssub.s32 1, %s14
  %s17 = scalar_select 0, %s16, %s14
  loop: start=0, step=1, limit=4
  $region2: #{_lambda_.1} parent=0 // loop_pre_header
    _
  $region3: #{_lambda_.1} parent=0 // loop_header
    %s19 = sphi 0, %s23
    %p20 = scmp.ge.s32.totalorder %s19, 4
    %s29 = sphi 0, %s31
    %s32 = sphi 0, %s29
    %s33 = sphi 0, %s32
    %s49 = sphi 0, %s33
    %s53 = sphi 0, %s53
    %s55 = sphi 0, %s53
    %s56 = sphi 0, %s55
    %s70 = sphi 0, %s56
    %s74 = sphi 0, %s74
    %s76 = sphi 0, %s74
    %s77 = sphi 0, %s76
    %s91 = sphi 0, %s77
    %s95 = sphi 0, %s95
    %s97 = sphi 0, %s95
    %s98 = sphi 0, %s97
    %s112 = sphi 0, %s98
    %s116 = sphi 0, %s116
    %s118 = sphi 0, %s116
    %s119 = sphi 0, %s118
    %s133 = sphi 0, %s119
    %s137 = sphi 0, %s137
    %s139 = sphi 0, %s137
    %s140 = sphi 0, %s139
    %s154 = sphi 0, %s140
    %s158 = sphi 0, %s158
    %s160 = sphi 0, %s158
    %s161 = sphi 0, %s160
    %s175 = sphi 0, %s161
    %s179 = sphi 0, %s179
    %s181 = sphi 0, %s179
    %s182 = sphi 0, %s181
    %s196 = sphi 0, %s182
    %s200 = sphi 0, %s200
    %s202 = sphi 0, %s200
    %s203 = sphi 0, %s202
    %s217 = sphi 0, %s203
    %s221 = sphi 0, %s221
    %s223 = sphi 0, %s221
    %s224 = sphi 0, %s223
    %s238 = sphi 0, %s224
    %s242 = sphi 0, %s242
    %s244 = sphi 0, %s242
    %s245 = sphi 0, %s244
    %s259 = sphi 0, %s245
    %s263 = sphi 0, %s263
    %s265 = sphi 0, %s263
    %s266 = sphi 0, %s265
    %s280 = sphi 0, %s266
    %s284 = sphi 0, %s284
    %s286 = sphi 0, %s284
    %s287 = sphi 0, %s286
    %s301 = sphi 0, %s287
    %s307 = sphi 0, %s309
    %s310 = sphi 0, %s307
    %s311 = sphi 0, %s310
    %s327 = sphi 0, %s311
  $region4: #{_lambda_.1} parent=0 // loop_header_branch
    %22 = sbr.rel (%p20) target = $region8
  $region5: #{_lambda_.1} parent=0 // loop_body
    %s24 = ssub.s32 %s19, 1
    %s25 = ssub.s32 %s19, 2
    %s26 = sadd.s32 %s19, 1
    %s27 = ssub.s32 %s19, %s26
    %p28 = scmp.eq.s32.totalorder %s27, 0
    %s30 = sadd.s32 %s29, 1
    %s31 = scalar_select %p28, %s29, %s30
    %p34 = pneg %p28
    %p35 = scmp.eq.s32.totalorder %s19, 1
    %p36 = por %p34, %p35
    %p37 = scmp.ne.s32.totalorder %s29, %s32
    %p38 = scmp.eq.s32.totalorder %s19, 0
    %p39 = por %p37, %p38
    %p40 = scmp.ne.s32.totalorder %s29, %s32
    %p41 = scmp.eq.s32.totalorder %s24, 1
    %p42 = por %p40, %p41
    %p43 = scmp.ne.s32.totalorder %s32, %s33
    %p44 = scmp.eq.s32.totalorder %s24, 0
    %p45 = por %p43, %p44
    %p46 = scmp.ne.s32.totalorder %s32, %s33
    %p47 = scmp.eq.s32.totalorder %s25, 1
    %p48 = por %p46, %p47
    %p50 = scmp.ne.s32.totalorder %s33, %s49
    %p51 = scmp.eq.s32.totalorder %s25, 0
    %p52 = por %p50, %p51
    %s54 = sadd.s32 %s53, 1
    %p57 = scmp.eq.s32.totalorder %s19, 1
    %p58 = scmp.ne.s32.totalorder %s53, %s55
    %p59 = scmp.eq.s32.totalorder %s19, 0
    %p60 = por %p58, %p59
    %p61 = scmp.ne.s32.totalorder %s53, %s55
    %p62 = scmp.eq.s32.totalorder %s24, 1
    %p63 = por %p61, %p62
    %p64 = scmp.ne.s32.totalorder %s55, %s56
    %p65 = scmp.eq.s32.totalorder %s24, 0
    %p66 = por %p64, %p65
    %p67 = scmp.ne.s32.totalorder %s55, %s56
    %p68 = scmp.eq.s32.totalorder %s25, 1
    %p69 = por %p67, %p68
    %p71 = scmp.ne.s32.totalorder %s56, %s70
    %p72 = scmp.eq.s32.totalorder %s25, 0
    %p73 = por %p71, %p72
    %s75 = sadd.s32 %s74, 1
    %p78 = scmp.eq.s32.totalorder %s19, 1
    %p79 = scmp.ne.s32.totalorder %s74, %s76
    %p80 = scmp.eq.s32.totalorder %s19, 0
    %p81 = por %p79, %p80
    %p82 = scmp.ne.s32.totalorder %s74, %s76
    %p83 = scmp.eq.s32.totalorder %s24, 1
    %p84 = por %p82, %p83
    %p85 = scmp.ne.s32.totalorder %s76, %s77
    %p86 = scmp.eq.s32.totalorder %s24, 0
    %p87 = por %p85, %p86
    %p88 = scmp.ne.s32.totalorder %s76, %s77
    %p89 = scmp.eq.s32.totalorder %s25, 1
    %p90 = por %p88, %p89
    %p92 = scmp.ne.s32.totalorder %s77, %s91
    %p93 = scmp.eq.s32.totalorder %s25, 0
    %p94 = por %p92, %p93
    %s96 = sadd.s32 %s95, 1
    %p99 = scmp.eq.s32.totalorder %s19, 1
    %p100 = scmp.ne.s32.totalorder %s95, %s97
    %p101 = scmp.eq.s32.totalorder %s19, 0
    %p102 = por %p100, %p101
    %p103 = scmp.ne.s32.totalorder %s95, %s97
    %p104 = scmp.eq.s32.totalorder %s24, 1
    %p105 = por %p103, %p104
    %p106 = scmp.ne.s32.totalorder %s97, %s98
    %p107 = scmp.eq.s32.totalorder %s24, 0
    %p108 = por %p106, %p107
    %p109 = scmp.ne.s32.totalorder %s97, %s98
    %p110 = scmp.eq.s32.totalorder %s25, 1
    %p111 = por %p109, %p110
    %p113 = scmp.ne.s32.totalorder %s98, %s112
    %p114 = scmp.eq.s32.totalorder %s25, 0
    %p115 = por %p113, %p114
    %s117 = sadd.s32 %s116, 1
    %p120 = scmp.eq.s32.totalorder %s19, 1
    %p121 = scmp.ne.s32.totalorder %s116, %s118
    %p122 = scmp.eq.s32.totalorder %s19, 0
    %p123 = por %p121, %p122
    %p124 = scmp.ne.s32.totalorder %s116, %s118
    %p125 = scmp.eq.s32.totalorder %s24, 1
    %p126 = por %p124, %p125
    %p127 = scmp.ne.s32.totalorder %s118, %s119
    %p128 = scmp.eq.s32.totalorder %s24, 0
    %p129 = por %p127, %p128
    %p130 = scmp.ne.s32.totalorder %s118, %s119
    %p131 = scmp.eq.s32.totalorder %s25, 1
    %p132 = por %p130, %p131
    %p134 = scmp.ne.s32.totalorder %s119, %s133
    %p135 = scmp.eq.s32.totalorder %s25, 0
    %p136 = por %p134, %p135
    %s138 = sadd.s32 %s137, 1
    %p141 = scmp.eq.s32.totalorder %s19, 1
    %p142 = scmp.ne.s32.totalorder %s137, %s139
    %p143 = scmp.eq.s32.totalorder %s19, 0
    %p144 = por %p142, %p143
    %p145 = scmp.ne.s32.totalorder %s137, %s139
    %p146 = scmp.eq.s32.totalorder %s24, 1
    %p147 = por %p145, %p146
    %p148 = scmp.ne.s32.totalorder %s139, %s140
    %p149 = scmp.eq.s32.totalorder %s24, 0
    %p150 = por %p148, %p149
    %p151 = scmp.ne.s32.totalorder %s139, %s140
    %p152 = scmp.eq.s32.totalorder %s25, 1
    %p153 = por %p151, %p152
    %p155 = scmp.ne.s32.totalorder %s140, %s154
    %p156 = scmp.eq.s32.totalorder %s25, 0
    %p157 = por %p155, %p156
    %s159 = sadd.s32 %s158, 1
    %p162 = scmp.eq.s32.totalorder %s19, 1
    %p163 = scmp.ne.s32.totalorder %s158, %s160
    %p164 = scmp.eq.s32.totalorder %s19, 0
    %p165 = por %p163, %p164
    %p166 = scmp.ne.s32.totalorder %s158, %s160
    %p167 = scmp.eq.s32.totalorder %s24, 1
    %p168 = por %p166, %p167
    %p169 = scmp.ne.s32.totalorder %s160, %s161
    %p170 = scmp.eq.s32.totalorder %s24, 0
    %p171 = por %p169, %p170
    %p172 = scmp.ne.s32.totalorder %s160, %s161
    %p173 = scmp.eq.s32.totalorder %s25, 1
    %p174 = por %p172, %p173
    %p176 = scmp.ne.s32.totalorder %s161, %s175
    %p177 = scmp.eq.s32.totalorder %s25, 0
    %p178 = por %p176, %p177
    %s180 = sadd.s32 %s179, 1
    %p183 = scmp.eq.s32.totalorder %s19, 1
    %p184 = scmp.ne.s32.totalorder %s179, %s181
    %p185 = scmp.eq.s32.totalorder %s19, 0
    %p186 = por %p184, %p185
    %p187 = scmp.ne.s32.totalorder %s179, %s181
    %p188 = scmp.eq.s32.totalorder %s24, 1
    %p189 = por %p187, %p188
    %p190 = scmp.ne.s32.totalorder %s181, %s182
    %p191 = scmp.eq.s32.totalorder %s24, 0
    %p192 = por %p190, %p191
    %p193 = scmp.ne.s32.totalorder %s181, %s182
    %p194 = scmp.eq.s32.totalorder %s25, 1
    %p195 = por %p193, %p194
    %p197 = scmp.ne.s32.totalorder %s182, %s196
    %p198 = scmp.eq.s32.totalorder %s25, 0
    %p199 = por %p197, %p198
    %s201 = sadd.s32 %s200, 1
    %p204 = scmp.eq.s32.totalorder %s19, 1
    %p205 = scmp.ne.s32.totalorder %s200, %s202
    %p206 = scmp.eq.s32.totalorder %s19, 0
    %p207 = por %p205, %p206
    %p208 = scmp.ne.s32.totalorder %s200, %s202
    %p209 = scmp.eq.s32.totalorder %s24, 1
    %p210 = por %p208, %p209
    %p211 = scmp.ne.s32.totalorder %s202, %s203
    %p212 = scmp.eq.s32.totalorder %s24, 0
    %p213 = por %p211, %p212
    %p214 = scmp.ne.s32.totalorder %s202, %s203
    %p215 = scmp.eq.s32.totalorder %s25, 1
    %p216 = por %p214, %p215
    %p218 = scmp.ne.s32.totalorder %s203, %s217
    %p219 = scmp.eq.s32.totalorder %s25, 0
    %p220 = por %p218, %p219
    %s222 = sadd.s32 %s221, 1
    %p225 = scmp.eq.s32.totalorder %s19, 1
    %p226 = scmp.ne.s32.totalorder %s221, %s223
    %p227 = scmp.eq.s32.totalorder %s19, 0
    %p228 = por %p226, %p227
    %p229 = scmp.ne.s32.totalorder %s221, %s223
    %p230 = scmp.eq.s32.totalorder %s24, 1
    %p231 = por %p229, %p230
    %p232 = scmp.ne.s32.totalorder %s223, %s224
    %p233 = scmp.eq.s32.totalorder %s24, 0
    %p234 = por %p232, %p233
    %p235 = scmp.ne.s32.totalorder %s223, %s224
    %p236 = scmp.eq.s32.totalorder %s25, 1
    %p237 = por %p235, %p236
    %p239 = scmp.ne.s32.totalorder %s224, %s238
    %p240 = scmp.eq.s32.totalorder %s25, 0
    %p241 = por %p239, %p240
    %s243 = sadd.s32 %s242, 1
    %p246 = scmp.eq.s32.totalorder %s19, 1
    %p247 = scmp.ne.s32.totalorder %s242, %s244
    %p248 = scmp.eq.s32.totalorder %s19, 0
    %p249 = por %p247, %p248
    %p250 = scmp.ne.s32.totalorder %s242, %s244
    %p251 = scmp.eq.s32.totalorder %s24, 1
    %p252 = por %p250, %p251
    %p253 = scmp.ne.s32.totalorder %s244, %s245
    %p254 = scmp.eq.s32.totalorder %s24, 0
    %p255 = por %p253, %p254
    %p256 = scmp.ne.s32.totalorder %s244, %s245
    %p257 = scmp.eq.s32.totalorder %s25, 1
    %p258 = por %p256, %p257
    %p260 = scmp.ne.s32.totalorder %s245, %s259
    %p261 = scmp.eq.s32.totalorder %s25, 0
    %p262 = por %p260, %p261
    %s264 = sadd.s32 %s263, 1
    %p267 = scmp.eq.s32.totalorder %s19, 1
    %p268 = scmp.ne.s32.totalorder %s263, %s265
    %p269 = scmp.eq.s32.totalorder %s19, 0
    %p270 = por %p268, %p269
    %p271 = scmp.ne.s32.totalorder %s263, %s265
    %p272 = scmp.eq.s32.totalorder %s24, 1
    %p273 = por %p271, %p272
    %p274 = scmp.ne.s32.totalorder %s265, %s266
    %p275 = scmp.eq.s32.totalorder %s24, 0
    %p276 = por %p274, %p275
    %p277 = scmp.ne.s32.totalorder %s265, %s266
    %p278 = scmp.eq.s32.totalorder %s25, 1
    %p279 = por %p277, %p278
    %p281 = scmp.ne.s32.totalorder %s266, %s280
    %p282 = scmp.eq.s32.totalorder %s25, 0
    %p283 = por %p281, %p282
    %s285 = sadd.s32 %s284, 1
    %p288 = scmp.eq.s32.totalorder %s19, 1
    %p289 = scmp.ne.s32.totalorder %s284, %s286
    %p290 = scmp.eq.s32.totalorder %s19, 0
    %p291 = por %p289, %p290
    %p292 = scmp.ne.s32.totalorder %s284, %s286
    %p293 = scmp.eq.s32.totalorder %s24, 1
    %p294 = por %p292, %p293
    %p295 = scmp.ne.s32.totalorder %s286, %s287
    %p296 = scmp.eq.s32.totalorder %s24, 0
    %p297 = por %p295, %p296
    %p298 = scmp.ne.s32.totalorder %s286, %s287
    %p299 = scmp.eq.s32.totalorder %s25, 1
    %p300 = por %p298, %p299
    %p302 = scmp.ne.s32.totalorder %s287, %s301
    %p303 = scmp.eq.s32.totalorder %s25, 0
    %p304 = por %p302, %p303
    %s305 = ssub.s32 %s19, %s26
    %p306 = scmp.eq.s32.totalorder %s305, 0
    %s308 = sadd.s32 %s307, 1
    %s309 = scalar_select %p306, %s307, %s308
    %p312 = pneg %p306
    %p313 = scmp.eq.s32.totalorder %s19, 1
    %p314 = por %p312, %p313
    %p315 = scmp.ne.s32.totalorder %s307, %s310
    %p316 = scmp.eq.s32.totalorder %s19, 0
    %p317 = por %p315, %p316
    %p318 = scmp.ne.s32.totalorder %s307, %s310
    %p319 = scmp.eq.s32.totalorder %s24, 1
    %p320 = por %p318, %p319
    %p321 = scmp.ne.s32.totalorder %s310, %s311
    %p322 = scmp.eq.s32.totalorder %s24, 0
    %p323 = por %p321, %p322
    %p324 = scmp.ne.s32.totalorder %s310, %s311
    %p325 = scmp.eq.s32.totalorder %s25, 1
    %p326 = por %p324, %p325
    %p328 = scmp.ne.s32.totalorder %s311, %s327
    %p329 = scmp.eq.s32.totalorder %s25, 0
    %p330 = por %p328, %p329
    %p331 = scmp.le.s32.totalorder 1, %s19
    %p332 = scmp.lt.s32.totalorder %s19, 3
    %p333 = pnand %p331, %p332
    %p334 = pneg %p333
    // Predicated region
    $region9: #{_lambda_.1} parent=5 // pred_check
      _
    $region10: #{_lambda_.1} parent=5 // pred_check_branch
      %336 = sbr.rel (%p333) target = $region12
    $region11: #{_lambda_.1} parent=5 // pred_region
      %s337 = ssub.s32 %s19, 1
      // Predicated region
      $region13: #{_lambda_.1} parent=11 // pred_check
        %p338 = pneg %p66
      $region14: #{_lambda_.1} parent=11 // pred_check_branch
        %340 = sbr.rel (%p338) target = $region16
      $region15: #{_lambda_.1} parent=11 // pred_region
        _
      $region16: #{_lambda_.1} parent=11 // pred_fallthru
        _
      // Predicated region
      $region17: #{_lambda_.1} parent=11 // pred_check
        %p341 = pneg %p87
      $region18: #{_lambda_.1} parent=11 // pred_check_branch
        %343 = sbr.rel (%p341) target = $region20
      $region19: #{_lambda_.1} parent=11 // pred_region
        _
      $region20: #{_lambda_.1} parent=11 // pred_fallthru
        _
      // Predicated region
      $region21: #{_lambda_.1} parent=11 // pred_check
        %p344 = pneg %p108
      $region22: #{_lambda_.1} parent=11 // pred_check_branch
        %346 = sbr.rel (%p344) target = $region24
      $region23: #{_lambda_.1} parent=11 // pred_region
        _
      $region24: #{_lambda_.1} parent=11 // pred_fallthru
        _
      // Predicated region
      $region25: #{_lambda_.1} parent=11 // pred_check
        %p347 = pneg %p129
      $region26: #{_lambda_.1} parent=11 // pred_check_branch
        %349 = sbr.rel (%p347) target = $region28
      $region27: #{_lambda_.1} parent=11 // pred_region
        _
      $region28: #{_lambda_.1} parent=11 // pred_fallthru
        _
      // Predicated region
      $region29: #{_lambda_.1} parent=11 // pred_check
        %p350 = pneg %p150
      $region30: #{_lambda_.1} parent=11 // pred_check_branch
        %352 = sbr.rel (%p350) target = $region32
      $region31: #{_lambda_.1} parent=11 // pred_region
        _
      $region32: #{_lambda_.1} parent=11 // pred_fallthru
        _
      // Predicated region
      $region33: #{_lambda_.1} parent=11 // pred_check
        %p353 = pneg %p171
      $region34: #{_lambda_.1} parent=11 // pred_check_branch
        %355 = sbr.rel (%p353) target = $region36
      $region35: #{_lambda_.1} parent=11 // pred_region
        _
      $region36: #{_lambda_.1} parent=11 // pred_fallthru
        _
      // Predicated region
      $region37: #{_lambda_.1} parent=11 // pred_check
        %p356 = pneg %p192
      $region38: #{_lambda_.1} parent=11 // pred_check_branch
        %358 = sbr.rel (%p356) target = $region40
      $region39: #{_lambda_.1} parent=11 // pred_region
        _
      $region40: #{_lambda_.1} parent=11 // pred_fallthru
        _
      // Predicated region
      $region41: #{_lambda_.1} parent=11 // pred_check
        %p359 = pneg %p213
      $region42: #{_lambda_.1} parent=11 // pred_check_branch
        %361 = sbr.rel (%p359) target = $region44
      $region43: #{_lambda_.1} parent=11 // pred_region
        _
      $region44: #{_lambda_.1} parent=11 // pred_fallthru
        _
      // Predicated region
      $region45: #{_lambda_.1} parent=11 // pred_check
        %p362 = pneg %p234
      $region46: #{_lambda_.1} parent=11 // pred_check_branch
        %364 = sbr.rel (%p362) target = $region48
      $region47: #{_lambda_.1} parent=11 // pred_region
        _
      $region48: #{_lambda_.1} parent=11 // pred_fallthru
        _
      // Predicated region
      $region49: #{_lambda_.1} parent=11 // pred_check
        %p365 = pneg %p255
      $region50: #{_lambda_.1} parent=11 // pred_check_branch
        %367 = sbr.rel (%p365) target = $region52
      $region51: #{_lambda_.1} parent=11 // pred_region
        _
      $region52: #{_lambda_.1} parent=11 // pred_fallthru
        _
      // Predicated region
      $region53: #{_lambda_.1} parent=11 // pred_check
        %p368 = pneg %p276
      $region54: #{_lambda_.1} parent=11 // pred_check_branch
        %370 = sbr.rel (%p368) target = $region56
      $region55: #{_lambda_.1} parent=11 // pred_region
        _
      $region56: #{_lambda_.1} parent=11 // pred_fallthru
        _
      // Predicated region
      $region57: #{_lambda_.1} parent=11 // pred_check
        %p371 = pneg %p297
      $region58: #{_lambda_.1} parent=11 // pred_check_branch
        %373 = sbr.rel (%p371) target = $region60
      $region59: #{_lambda_.1} parent=11 // pred_region
        _
      $region60: #{_lambda_.1} parent=11 // pred_fallthru
        _
    $region12: #{_lambda_.1} parent=5 // pred_fallthru
      _
    %p374 = scmp.lt.s32.totalorder %s19, 2
    // Predicated region
    $region61: #{_lambda_.1} parent=5 // pred_check
      %p375 = pneg %p374
    $region62: #{_lambda_.1} parent=5 // pred_check_branch
      %377 = sbr.rel (%p375) target = $region64
    $region63: #{_lambda_.1} parent=5 // pred_region
      // Predicated region
      $region65: #{_lambda_.1} parent=63 // pred_check
        %p378 = pneg %p39
      $region66: #{_lambda_.1} parent=63 // pred_check_branch
        %380 = sbr.rel (%p378) target = $region68
      $region67: #{_lambda_.1} parent=63 // pred_region
        %p381 = scmp.lt.s32.totalorder %s19, 1
        %s382 = scalar_select %p381, %s19, 1
        %s383 = smul.addr %s382, 8
        %s384 = smul.addr %s383, 4
        %s385 = scalar_lea.vmem %s0, %s384
      $region68: #{_lambda_.1} parent=63 // pred_fallthru
        _
    $region64: #{_lambda_.1} parent=5 // pred_fallthru
      _
    %p386 = scmp.le.s32.totalorder 1, %s19
    %p387 = scmp.lt.s32.totalorder %s19, 3
    %p388 = pnand %p386, %p387
    %p389 = pneg %p388
    // Predicated region
    $region69: #{_lambda_.1} parent=5 // pred_check
      _
    $region70: #{_lambda_.1} parent=5 // pred_check_branch
      %391 = sbr.rel (%p388) target = $region72
    $region71: #{_lambda_.1} parent=5 // pred_region
      %s392 = ssub.s32 %s19, 1
      %p393 = scmp.lt.s32.totalorder %s24, 1
      %s394 = scalar_select %p393, %s24, 1
      %s395 = smul.addr %s394, 8
      %s396 = smul.addr %s395, 4
      %s397 = scalar_lea.vmem %s0, %s396
      %p398 = pneg %p45
      %p399 = pneg %p42
      %p400 = pneg %p66
      %p401 = pneg %p63
      %p402 = pneg %p87
      %p403 = pneg %p84
      %p404 = pneg %p108
      %p405 = pneg %p105
      %p406 = pneg %p129
      %p407 = pneg %p126
      %p408 = pneg %p150
      %p409 = pneg %p147
      %p410 = pneg %p171
      %p411 = pneg %p168
      %p412 = pneg %p192
      %p413 = pneg %p189
      %p414 = pneg %p213
      %p415 = pneg %p210
      %p416 = pneg %p234
      %p417 = pneg %p231
      %p418 = pneg %p255
      %p419 = pneg %p252
      %p420 = pneg %p276
      %p421 = pneg %p273
      %p422 = pneg %p297
      %p423 = pneg %p294
      %p424 = pneg %p323
      %p425 = pneg %p320
      %p426 = scmp.lt.s32.totalorder %s24, 1
      %s427 = scalar_select %p426, %s24, 1
      %s428 = smul.addr %s427, 2
      %s429 = smul.addr %s428, 8
      %s430 = scalar_lea.vmem %s13, %s429
      %p431 = scmp.lt.s32.totalorder %s24, 1
      %s432 = scalar_select %p431, %s24, 1
      %s433 = smul.addr %s432, 8
      %s434 = smul.addr %s433, 4
      %s435 = scalar_lea.vmem %s0, %s434
      %p436 = scmp.lt.s32.totalorder %s24, 1
      %s437 = scalar_select %p436, %s24, 1
      %s438 = smul.addr %s437, 2
      %s439 = smul.addr %s438, 8
      %s440 = scalar_lea.vmem %s13, %s439
      %vm442 = vcmask 125952
      %443 = vst.msk [vmem:[#allocation2] sm:$0xf] %vm442, 0
      %vm444 = vcmask 122880
      %445 = vst.msk [vmem:[#allocation2 + $0x4] sm:$0x1] %vm444, 0
      %s446 = scalar_lea.vmem [#allocation2], 72
      %447 = vst.msk [vmem:[%s446] sm:$0xf] %vm442, 0
      %448 = vst.msk [vmem:[%s446 + $0x4] sm:$0x1] %vm444, 0
      %vm449 = vcmask 122880
      %vm450 = vsmask.f32 256
      %vm451 = vmand %vm449, %vm450
      %v452 = vld [vmem:[#allocation2] sm:$0x1]
      %v453 = vsel %vm451, 0, %v452
      %454 = vst [vmem:[#allocation2] sm:$0x1] %v453
      %v455 = vld [vmem:[#allocation2 + $0x8] sm:$0x1]
      %v456 = vsel %vm451, 0, %v455
      %457 = vst [vmem:[#allocation2 + $0x8] sm:$0x1] %v456
      %v458 = vld [vmem:[#allocation2 + $0x10] sm:$0x1]
      %v459 = vsel %vm451, 0, %v458
      %460 = vst [vmem:[#allocation2 + $0x10] sm:$0x1] %v459
      %v461 = vld [vmem:[#allocation2 + $0x18] sm:$0x1]
      %v462 = vsel %vm451, 0, %v461
      %463 = vst [vmem:[#allocation2 + $0x18] sm:$0x1] %v462
      %v464 = vld [vmem:[#allocation2 + $0x20] sm:$0x1]
      %v465 = vsel %vm451, 0, %v464
      %466 = vst [vmem:[#allocation2 + $0x20] sm:$0x1] %v465
      %v467 = vld [vmem:[#allocation2 + $0x28] sm:$0x1]
      %v468 = vsel %vm451, 0, %v467
      %469 = vst [vmem:[#allocation2 + $0x28] sm:$0x1] %v468
      %v470 = vld [vmem:[#allocation2 + $0x30] sm:$0x1]
      %v471 = vsel %vm451, 0, %v470
      %472 = vst [vmem:[#allocation2 + $0x30] sm:$0x1] %v471
      %v473 = vld [vmem:[#allocation2 + $0x38] sm:$0x1]
      %v474 = vsel %vm451, 0, %v473
      %475 = vst [vmem:[#allocation2 + $0x38] sm:$0x1] %v474
      %v476 = vld [vmem:[#allocation2 + $0x40] sm:$0x1]
      %v477 = vsel %vm451, 0, %v476
      %478 = vst [vmem:[#allocation2 + $0x40] sm:$0x1] %v477
      %v479 = vld [vmem:[#allocation2 + $0x48] sm:$0x1]
      %v480 = vsel %vm451, 0, %v479
      %481 = vst [vmem:[#allocation2 + $0x48] sm:$0x1] %v480
      %vm482 = vsmask.f32 7938
      %vm483 = vmand %vm449, %vm482
      %v484 = vld [vmem:[#allocation2 + $0x4] sm:$0x1]
      %v485 = vsel %vm483, 0, %v484
      %486 = vst [vmem:[#allocation2 + $0x4] sm:$0x1] %v485
      %v487 = vld [vmem:[#allocation2 + $0xc] sm:$0x1]
      %v488 = vsel %vm483, 0, %v487
      %489 = vst [vmem:[#allocation2 + $0xc] sm:$0x1] %v488
      %v490 = vld [vmem:[#allocation2 + $0x14] sm:$0x1]
      %v491 = vsel %vm483, 0, %v490
      %492 = vst [vmem:[#allocation2 + $0x14] sm:$0x1] %v491
      %v493 = vld [vmem:[#allocation2 + $0x1c] sm:$0x1]
      %v494 = vsel %vm483, 0, %v493
      %495 = vst [vmem:[#allocation2 + $0x1c] sm:$0x1] %v494
      %v496 = vld [vmem:[#allocation2 + $0x24] sm:$0x1]
      %v497 = vsel %vm483, 0, %v496
      %498 = vst [vmem:[#allocation2 + $0x24] sm:$0x1] %v497
      %v499 = vld [vmem:[#allocation2 + $0x2c] sm:$0x1]
      %v500 = vsel %vm483, 0, %v499
      %501 = vst [vmem:[#allocation2 + $0x2c] sm:$0x1] %v500
      %v502 = vld [vmem:[#allocation2 + $0x34] sm:$0x1]
      %v503 = vsel %vm483, 0, %v502
      %504 = vst [vmem:[#allocation2 + $0x34] sm:$0x1] %v503
      %v505 = vld [vmem:[#allocation2 + $0x3c] sm:$0x1]
      %v506 = vsel %vm483, 0, %v505
      %507 = vst [vmem:[#allocation2 + $0x3c] sm:$0x1] %v506
      %v508 = vld [vmem:[#allocation2 + $0x44] sm:$0x1]
      %v509 = vsel %vm483, 0, %v508
      %510 = vst [vmem:[#allocation2 + $0x44] sm:$0x1] %v509
      %v511 = vld [vmem:[#allocation2 + $0x4c] sm:$0x1]
      %v512 = vsel %vm483, 0, %v511
      %513 = vst [vmem:[#allocation2 + $0x4c] sm:$0x1] %v512
      %vm514 = vcmask 257024
      %515 = vst.msk [vmem:[#allocation3] sm:$0xf] %vm514, 0
      %vm516 = vcmask 253952
      %517 = vst.msk [vmem:[#allocation3 + $0x4] sm:$0x1] %vm516, 0
      %s518 = scalar_lea.vmem [#allocation3], 72
      %519 = vst.msk [vmem:[%s518] sm:$0xf] %vm514, 0
      %520 = vst.msk [vmem:[%s518 + $0x4] sm:$0x1] %vm516, 0
      %vm521 = vcmask 253952
      %vm522 = vmand %vm521, %vm450
      %v523 = vld [vmem:[#allocation3] sm:$0x1]
      %v524 = vsel %vm522, 0, %v523
      %525 = vst [vmem:[#allocation3] sm:$0x1] %v524
      %v526 = vld [vmem:[#allocation3 + $0x8] sm:$0x1]
      %v527 = vsel %vm522, 0, %v526
      %528 = vst [vmem:[#allocation3 + $0x8] sm:$0x1] %v527
      %v529 = vld [vmem:[#allocation3 + $0x10] sm:$0x1]
      %v530 = vsel %vm522, 0, %v529
      %531 = vst [vmem:[#allocation3 + $0x10] sm:$0x1] %v530
      %v532 = vld [vmem:[#allocation3 + $0x18] sm:$0x1]
      %v533 = vsel %vm522, 0, %v532
      %534 = vst [vmem:[#allocation3 + $0x18] sm:$0x1] %v533
      %v535 = vld [vmem:[#allocation3 + $0x20] sm:$0x1]
      %v536 = vsel %vm522, 0, %v535
      %537 = vst [vmem:[#allocation3 + $0x20] sm:$0x1] %v536
      %v538 = vld [vmem:[#allocation3 + $0x28] sm:$0x1]
      %v539 = vsel %vm522, 0, %v538
      %540 = vst [vmem:[#allocation3 + $0x28] sm:$0x1] %v539
      %v541 = vld [vmem:[#allocation3 + $0x30] sm:$0x1]
      %v542 = vsel %vm522, 0, %v541
      %543 = vst [vmem:[#allocation3 + $0x30] sm:$0x1] %v542
      %v544 = vld [vmem:[#allocation3 + $0x38] sm:$0x1]
      %v545 = vsel %vm522, 0, %v544
      %546 = vst [vmem:[#allocation3 + $0x38] sm:$0x1] %v545
      %v547 = vld [vmem:[#allocation3 + $0x40] sm:$0x1]
      %v548 = vsel %vm522, 0, %v547
      %549 = vst [vmem:[#allocation3 + $0x40] sm:$0x1] %v548
      %v550 = vld [vmem:[#allocation3 + $0x48] sm:$0x1]
      %v551 = vsel %vm522, 0, %v550
      %552 = vst [vmem:[#allocation3 + $0x48] sm:$0x1] %v551
      %vm553 = vmand %vm521, %vm482
      %v554 = vld [vmem:[#allocation3 + $0x4] sm:$0x1]
      %v555 = vsel %vm553, 0, %v554
      %556 = vst [vmem:[#allocation3 + $0x4] sm:$0x1] %v555
      %v557 = vld [vmem:[#allocation3 + $0xc] sm:$0x1]
      %v558 = vsel %vm553, 0, %v557
      %559 = vst [vmem:[#allocation3 + $0xc] sm:$0x1] %v558
      %v560 = vld [vmem:[#allocation3 + $0x14] sm:$0x1]
      %v561 = vsel %vm553, 0, %v560
      %562 = vst [vmem:[#allocation3 + $0x14] sm:$0x1] %v561
      %v563 = vld [vmem:[#allocation3 + $0x1c] sm:$0x1]
      %v564 = vsel %vm553, 0, %v563
      %565 = vst [vmem:[#allocation3 + $0x1c] sm:$0x1] %v564
      %v566 = vld [vmem:[#allocation3 + $0x24] sm:$0x1]
      %v567 = vsel %vm553, 0, %v566
      %568 = vst [vmem:[#allocation3 + $0x24] sm:$0x1] %v567
      %v569 = vld [vmem:[#allocation3 + $0x2c] sm:$0x1]
      %v570 = vsel %vm553, 0, %v569
      %571 = vst [vmem:[#allocation3 + $0x2c] sm:$0x1] %v570
      %v572 = vld [vmem:[#allocation3 + $0x34] sm:$0x1]
      %v573 = vsel %vm553, 0, %v572
      %574 = vst [vmem:[#allocation3 + $0x34] sm:$0x1] %v573
      %v575 = vld [vmem:[#allocation3 + $0x3c] sm:$0x1]
      %v576 = vsel %vm553, 0, %v575
      %577 = vst [vmem:[#allocation3 + $0x3c] sm:$0x1] %v576
      %v578 = vld [vmem:[#allocation3 + $0x44] sm:$0x1]
      %v579 = vsel %vm553, 0, %v578
      %580 = vst [vmem:[#allocation3 + $0x44] sm:$0x1] %v579
      %v581 = vld [vmem:[#allocation3 + $0x4c] sm:$0x1]
      %v582 = vsel %vm553, 0, %v581
      %583 = vst [vmem:[#allocation3 + $0x4c] sm:$0x1] %v582
      %584 = vst.msk [vmem:[#allocation4] sm:$0xf] %vm514, 0
      %585 = vst.msk [vmem:[#allocation4 + $0x4] sm:$0x1] %vm516, 0
      %s586 = scalar_lea.vmem [#allocation4], 72
      %587 = vst.msk [vmem:[%s586] sm:$0xf] %vm514, 0
      %588 = vst.msk [vmem:[%s586 + $0x4] sm:$0x1] %vm516, 0
      %v589 = vld [vmem:[#allocation4] sm:$0x1]
      %v590 = vsel %vm522, 0, %v589
      %591 = vst [vmem:[#allocation4] sm:$0x1] %v590
      %v592 = vld [vmem:[#allocation4 + $0x8] sm:$0x1]
      %v593 = vsel %vm522, 0, %v592
      %594 = vst [vmem:[#allocation4 + $0x8] sm:$0x1] %v593
      %v595 = vld [vmem:[#allocation4 + $0x10] sm:$0x1]
      %v596 = vsel %vm522, 0, %v595
      %597 = vst [vmem:[#allocation4 + $0x10] sm:$0x1] %v596
      %v598 = vld [vmem:[#allocation4 + $0x18] sm:$0x1]
      %v599 = vsel %vm522, 0, %v598
      %600 = vst [vmem:[#allocation4 + $0x18] sm:$0x1] %v599
      %v601 = vld [vmem:[#allocation4 + $0x20] sm:$0x1]
      %v602 = vsel %vm522, 0, %v601
      %603 = vst [vmem:[#allocation4 + $0x20] sm:$0x1] %v602
      %v604 = vld [vmem:[#allocation4 + $0x28] sm:$0x1]
      %v605 = vsel %vm522, 0, %v604
      %606 = vst [vmem:[#allocation4 + $0x28] sm:$0x1] %v605
      %v607 = vld [vmem:[#allocation4 + $0x30] sm:$0x1]
      %v608 = vsel %vm522, 0, %v607
      %609 = vst [vmem:[#allocation4 + $0x30] sm:$0x1] %v608
      %v610 = vld [vmem:[#allocation4 + $0x38] sm:$0x1]
      %v611 = vsel %vm522, 0, %v610
      %612 = vst [vmem:[#allocation4 + $0x38] sm:$0x1] %v611
      %v613 = vld [vmem:[#allocation4 + $0x40] sm:$0x1]
      %v614 = vsel %vm522, 0, %v613
      %615 = vst [vmem:[#allocation4 + $0x40] sm:$0x1] %v614
      %v616 = vld [vmem:[#allocation4 + $0x48] sm:$0x1]
      %v617 = vsel %vm522, 0, %v616
      %618 = vst [vmem:[#allocation4 + $0x48] sm:$0x1] %v617
      %v619 = vld [vmem:[#allocation4 + $0x4] sm:$0x1]
      %v620 = vsel %vm553, 0, %v619
      %621 = vst [vmem:[#allocation4 + $0x4] sm:$0x1] %v620
      %v622 = vld [vmem:[#allocation4 + $0xc] sm:$0x1]
      %v623 = vsel %vm553, 0, %v622
      %624 = vst [vmem:[#allocation4 + $0xc] sm:$0x1] %v623
      %v625 = vld [vmem:[#allocation4 + $0x14] sm:$0x1]
      %v626 = vsel %vm553, 0, %v625
      %627 = vst [vmem:[#allocation4 + $0x14] sm:$0x1] %v626
      %v628 = vld [vmem:[#allocation4 + $0x1c] sm:$0x1]
      %v629 = vsel %vm553, 0, %v628
      %630 = vst [vmem:[#allocation4 + $0x1c] sm:$0x1] %v629
      %v631 = vld [vmem:[#allocation4 + $0x24] sm:$0x1]
      %v632 = vsel %vm553, 0, %v631
      %633 = vst [vmem:[#allocation4 + $0x24] sm:$0x1] %v632
      %v634 = vld [vmem:[#allocation4 + $0x2c] sm:$0x1]
      %v635 = vsel %vm553, 0, %v634
      %636 = vst [vmem:[#allocation4 + $0x2c] sm:$0x1] %v635
      %v637 = vld [vmem:[#allocation4 + $0x34] sm:$0x1]
      %v638 = vsel %vm553, 0, %v637
      %639 = vst [vmem:[#allocation4 + $0x34] sm:$0x1] %v638
      %v640 = vld [vmem:[#allocation4 + $0x3c] sm:$0x1]
      %v641 = vsel %vm553, 0, %v640
      %642 = vst [vmem:[#allocation4 + $0x3c] sm:$0x1] %v641
      %v643 = vld [vmem:[#allocation4 + $0x44] sm:$0x1]
      %v644 = vsel %vm553, 0, %v643
      %645 = vst [vmem:[#allocation4 + $0x44] sm:$0x1] %v644
      %v646 = vld [vmem:[#allocation4 + $0x4c] sm:$0x1]
      %v647 = vsel %vm553, 0, %v646
      %648 = vst [vmem:[#allocation4 + $0x4c] sm:$0x1] %v647
      %649 = vst.msk [vmem:[#allocation5] sm:$0xf] %vm514, 0
      %650 = vst.msk [vmem:[#allocation5 + $0x4] sm:$0x1] %vm516, 0
      %s651 = scalar_lea.vmem [#allocation5], 72
      %652 = vst.msk [vmem:[%s651] sm:$0xf] %vm514, 0
      %653 = vst.msk [vmem:[%s651 + $0x4] sm:$0x1] %vm516, 0
      %v654 = vld [vmem:[#allocation5] sm:$0x1]
      %v655 = vsel %vm522, 0, %v654
      %656 = vst [vmem:[#allocation5] sm:$0x1] %v655
      %v657 = vld [vmem:[#allocation5 + $0x8] sm:$0x1]
      %v658 = vsel %vm522, 0, %v657
      %659 = vst [vmem:[#allocation5 + $0x8] sm:$0x1] %v658
      %v660 = vld [vmem:[#allocation5 + $0x10] sm:$0x1]
      %v661 = vsel %vm522, 0, %v660
      %662 = vst [vmem:[#allocation5 + $0x10] sm:$0x1] %v661
      %v663 = vld [vmem:[#allocation5 + $0x18] sm:$0x1]
      %v664 = vsel %vm522, 0, %v663
      %665 = vst [vmem:[#allocation5 + $0x18] sm:$0x1] %v664
      %v666 = vld [vmem:[#allocation5 + $0x20] sm:$0x1]
      %v667 = vsel %vm522, 0, %v666
      %668 = vst [vmem:[#allocation5 + $0x20] sm:$0x1] %v667
      %v669 = vld [vmem:[#allocation5 + $0x28] sm:$0x1]
      %v670 = vsel %vm522, 0, %v669
      %671 = vst [vmem:[#allocation5 + $0x28] sm:$0x1] %v670
      %v672 = vld [vmem:[#allocation5 + $0x30] sm:$0x1]
      %v673 = vsel %vm522, 0, %v672
      %674 = vst [vmem:[#allocation5 + $0x30] sm:$0x1] %v673
      %v675 = vld [vmem:[#allocation5 + $0x38] sm:$0x1]
      %v676 = vsel %vm522, 0, %v675
      %677 = vst [vmem:[#allocation5 + $0x38] sm:$0x1] %v676
      %v678 = vld [vmem:[#allocation5 + $0x40] sm:$0x1]
      %v679 = vsel %vm522, 0, %v678
      %680 = vst [vmem:[#allocation5 + $0x40] sm:$0x1] %v679
      %v681 = vld [vmem:[#allocation5 + $0x48] sm:$0x1]
      %v682 = vsel %vm522, 0, %v681
      %683 = vst [vmem:[#allocation5 + $0x48] sm:$0x1] %v682
      %v684 = vld [vmem:[#allocation5 + $0x4] sm:$0x1]
      %v685 = vsel %vm553, 0, %v684
      %686 = vst [vmem:[#allocation5 + $0x4] sm:$0x1] %v685
      %v687 = vld [vmem:[#allocation5 + $0xc] sm:$0x1]
      %v688 = vsel %vm553, 0, %v687
      %689 = vst [vmem:[#allocation5 + $0xc] sm:$0x1] %v688
      %v690 = vld [vmem:[#allocation5 + $0x14] sm:$0x1]
      %v691 = vsel %vm553, 0, %v690
      %692 = vst [vmem:[#allocation5 + $0x14] sm:$0x1] %v691
      %v693 = vld [vmem:[#allocation5 + $0x1c] sm:$0x1]
      %v694 = vsel %vm553, 0, %v693
      %695 = vst [vmem:[#allocation5 + $0x1c] sm:$0x1] %v694
      %v696 = vld [vmem:[#allocation5 + $0x24] sm:$0x1]
      %v697 = vsel %vm553, 0, %v696
      %698 = vst [vmem:[#allocation5 + $0x24] sm:$0x1] %v697
      %v699 = vld [vmem:[#allocation5 + $0x2c] sm:$0x1]
      %v700 = vsel %vm553, 0, %v699
      %701 = vst [vmem:[#allocation5 + $0x2c] sm:$0x1] %v700
      %v702 = vld [vmem:[#allocation5 + $0x34] sm:$0x1]
      %v703 = vsel %vm553, 0, %v702
      %704 = vst [vmem:[#allocation5 + $0x34] sm:$0x1] %v703
      %v705 = vld [vmem:[#allocation5 + $0x3c] sm:$0x1]
      %v706 = vsel %vm553, 0, %v705
      %707 = vst [vmem:[#allocation5 + $0x3c] sm:$0x1] %v706
      %v708 = vld [vmem:[#allocation5 + $0x44] sm:$0x1]
      %v709 = vsel %vm553, 0, %v708
      %710 = vst [vmem:[#allocation5 + $0x44] sm:$0x1] %v709
      %v711 = vld [vmem:[#allocation5 + $0x4c] sm:$0x1]
      %v712 = vsel %vm553, 0, %v711
      %713 = vst [vmem:[#allocation5 + $0x4c] sm:$0x1] %v712
      %714 = vst.msk [vmem:[#allocation6] sm:$0xf] %vm514, 0
      %715 = vst.msk [vmem:[#allocation6 + $0x4] sm:$0x1] %vm516, 0
      %s716 = scalar_lea.vmem [#allocation6], 72
      %717 = vst.msk [vmem:[%s716] sm:$0xf] %vm514, 0
      %718 = vst.msk [vmem:[%s716 + $0x4] sm:$0x1] %vm516, 0
      %v719 = vld [vmem:[#allocation6] sm:$0x1]
      %v720 = vsel %vm522, 0, %v719
      %721 = vst [vmem:[#allocation6] sm:$0x1] %v720
      %v722 = vld [vmem:[#allocation6 + $0x8] sm:$0x1]
      %v723 = vsel %vm522, 0, %v722
      %724 = vst [vmem:[#allocation6 + $0x8] sm:$0x1] %v723
      %v725 = vld [vmem:[#allocation6 + $0x10] sm:$0x1]
      %v726 = vsel %vm522, 0, %v725
      %727 = vst [vmem:[#allocation6 + $0x10] sm:$0x1] %v726
      %v728 = vld [vmem:[#allocation6 + $0x18] sm:$0x1]
      %v729 = vsel %vm522, 0, %v728
      %730 = vst [vmem:[#allocation6 + $0x18] sm:$0x1] %v729
      %v731 = vld [vmem:[#allocation6 + $0x20] sm:$0x1]
      %v732 = vsel %vm522, 0, %v731
      %733 = vst [vmem:[#allocation6 + $0x20] sm:$0x1] %v732
      %v734 = vld [vmem:[#allocation6 + $0x28] sm:$0x1]
      %v735 = vsel %vm522, 0, %v734
      %736 = vst [vmem:[#allocation6 + $0x28] sm:$0x1] %v735
      %v737 = vld [vmem:[#allocation6 + $0x30] sm:$0x1]
      %v738 = vsel %vm522, 0, %v737
      %739 = vst [vmem:[#allocation6 + $0x30] sm:$0x1] %v738
      %v740 = vld [vmem:[#allocation6 + $0x38] sm:$0x1]
      %v741 = vsel %vm522, 0, %v740
      %742 = vst [vmem:[#allocation6 + $0x38] sm:$0x1] %v741
      %v743 = vld [vmem:[#allocation6 + $0x40] sm:$0x1]
      %v744 = vsel %vm522, 0, %v743
      %745 = vst [vmem:[#allocation6 + $0x40] sm:$0x1] %v744
      %v746 = vld [vmem:[#allocation6 + $0x48] sm:$0x1]
      %v747 = vsel %vm522, 0, %v746
      %748 = vst [vmem:[#allocation6 + $0x48] sm:$0x1] %v747
      %v749 = vld [vmem:[#allocation6 + $0x4] sm:$0x1]
      %v750 = vsel %vm553, 0, %v749
      %751 = vst [vmem:[#allocation6 + $0x4] sm:$0x1] %v750
      %v752 = vld [vmem:[#allocation6 + $0xc] sm:$0x1]
      %v753 = vsel %vm553, 0, %v752
      %754 = vst [vmem:[#allocation6 + $0xc] sm:$0x1] %v753
      %v755 = vld [vmem:[#allocation6 + $0x14] sm:$0x1]
      %v756 = vsel %vm553, 0, %v755
      %757 = vst [vmem:[#allocation6 + $0x14] sm:$0x1] %v756
      %v758 = vld [vmem:[#allocation6 + $0x1c] sm:$0x1]
      %v759 = vsel %vm553, 0, %v758
      %760 = vst [vmem:[#allocation6 + $0x1c] sm:$0x1] %v759
      %v761 = vld [vmem:[#allocation6 + $0x24] sm:$0x1]
      %v762 = vsel %vm553, 0, %v761
      %763 = vst [vmem:[#allocation6 + $0x24] sm:$0x1] %v762
      %v764 = vld [vmem:[#allocation6 + $0x2c] sm:$0x1]
      %v765 = vsel %vm553, 0, %v764
      %766 = vst [vmem:[#allocation6 + $0x2c] sm:$0x1] %v765
      %v767 = vld [vmem:[#allocation6 + $0x34] sm:$0x1]
      %v768 = vsel %vm553, 0, %v767
      %769 = vst [vmem:[#allocation6 + $0x34] sm:$0x1] %v768
      %v770 = vld [vmem:[#allocation6 + $0x3c] sm:$0x1]
      %v771 = vsel %vm553, 0, %v770
      %772 = vst [vmem:[#allocation6 + $0x3c] sm:$0x1] %v771
      %v773 = vld [vmem:[#allocation6 + $0x44] sm:$0x1]
      %v774 = vsel %vm553, 0, %v773
      %775 = vst [vmem:[#allocation6 + $0x44] sm:$0x1] %v774
      %v776 = vld [vmem:[#allocation6 + $0x4c] sm:$0x1]
      %v777 = vsel %vm553, 0, %v776
      %778 = vst [vmem:[#allocation6 + $0x4c] sm:$0x1] %v777
      %v779 = vld [vmem:[%s435] sm:$0xf]
      %v780 = vld [vmem:[%s435 + $0x4] sm:$0xf]
      %v781 = vld [vmem:[%s435 + $0x8] sm:$0xf]
      %v782 = vld [vmem:[%s435 + $0xc] sm:$0xf]
      %v783 = vld [vmem:[%s435 + $0x10] sm:$0xf]
      %v784 = vld [vmem:[%s435 + $0x14] sm:$0xf]
      %v785 = vld [vmem:[%s435 + $0x18] sm:$0xf]
      %v786 = vld [vmem:[%s435 + $0x1c] sm:$0xf]
      %v787 = vld [vmem:[%s1] sm:$0xf]
      %v788 = vld [vmem:[%s1 + $0x4] sm:$0xf]
      %v789 = vld [vmem:[%s1 + $0x8] sm:$0xf]
      %v790 = vld [vmem:[%s1 + $0xc] sm:$0xf]
      %v791 = vld [vmem:[%s2] sm:$0x1]
      %v793 = vlaneseq
      %v794 = vshrl.u32 %v793, 7
      %v795 = vsub.s32 0, %v794
      %v796 = vrot.slane %v791, %v795
      %v806 = vunpack.c.l.b16 %v779
      %v807 = vunpack.c.l.b16 %v780
      %v808 = vunpack.c.l.b16 %v781
      %v809 = vunpack.c.l.b16 %v782
      %v810 = vunpack.c.l.b16 %v783
      %v811 = vunpack.c.l.b16 %v784
      %v812 = vunpack.c.l.b16 %v785
      %v813 = vunpack.c.l.b16 %v786
      %v814 = vpack.c.b16 %v807, %v806
      %v815 = vpack.c.b16 %v809, %v808
      %v816 = vpack.c.b16 %v811, %v810
      %v817 = vpack.c.b16 %v813, %v812
      %v822 = vunpack.c.l.b16 %v787
      %v823 = vunpack.c.l.b16 %v788
      %v824 = vunpack.c.l.b16 %v789
      %v825 = vunpack.c.l.b16 %v790
      %v826 = vpack.c.b16 %v823, %v822
      %v827 = vpack.c.b16 %v825, %v824
      %vm830 = vcmask 261120
      %v832 = vsel %vm830, %v814, 0
      %v835 = vsel %vm830, %v815, 0
      %v838 = vsel %vm830, %v816, 0
      %v841 = vsel %vm830, %v817, 0
      %843 = vmatprep.subr.bf16.mxu0 0
      %844 = vmatpush1.bf16.msra.mxu0 %v826
      %845 = vmatprep.subr.bf16.mxu0 0
      %846 = vmatpush1.bf16.msra.mxu0 %v827
      %847 = vmatprep.subr.bf16.mxu0 0
      %848 = vmatpush1.bf16.msra.mxu0 0
      %849 = vmatprep.subr.bf16.mxu0 0
      %850 = vmatpush1.bf16.msra.mxu0 0
      %851 = vmatprep.subr.bf16.mxu0 0
      %852 = vmatpush1.bf16.msra.mxu0 0
      %853 = vmatprep.subr.bf16.mxu0 0
      %854 = vmatpush1.bf16.msra.mxu0 0
      %855 = vmatprep.subr.bf16.mxu0 0
      %856 = vmatpush1.bf16.msra.mxu0 0
      %857 = vmatprep.subr.bf16.mxu0 0
      %858 = vmatpush1.bf16.msra.mxu0 0
      %859 = vmatprep.subr.bf16.mxu0 0
      %860 = vmatpush1.bf16.msra.mxu0 0
      %861 = vmatprep.subr.bf16.mxu0 0
      %862 = vmatpush1.bf16.msra.mxu0 0
      %863 = vmatprep.subr.bf16.mxu0 0
      %864 = vmatpush1.bf16.msra.mxu0 0
      %865 = vmatprep.subr.bf16.mxu0 0
      %866 = vmatpush1.bf16.msra.mxu0 0
      %867 = vmatprep.subr.bf16.mxu0 0
      %868 = vmatpush1.bf16.msra.mxu0 0
      %869 = vmatprep.subr.bf16.mxu0 0
      %870 = vmatpush1.bf16.msra.mxu0 0
      %871 = vmatprep.subr.bf16.mxu0 0
      %872 = vmatpush1.bf16.msra.mxu0 0
      %873 = vmatprep.subr.bf16.mxu0 0
      %874 = vmatpush1.bf16.msra.mxu0 0
      %875 = vmatprep.mubr.bf16.mxu0 0
      %876 = vmatmul.mubr.bf16.gmra.mrb[0].mxu0 %v832
      %v877 = vpop.f32.mrb[0].mxu0
      %v878 = vadd.f32 %v796, %v877
      %v879 = vpop.f32.mrb[0].mxu0
      %v880 = vpop.f32.mrb[0].mxu0
      %v881 = vadd.f32 %v796, %v880
      %v882 = vpop.f32.mrb[0].mxu0
      %883 = vmatprep.mubr.bf16.mxu0 0
      %884 = vmatmul.mubr.bf16.gmra.mrb[0].mxu0 %v835
      %v885 = vpop.f32.mrb[0].mxu0
      %v886 = vadd.f32 %v796, %v885
      %v887 = vpop.f32.mrb[0].mxu0
      %v888 = vpop.f32.mrb[0].mxu0
      %v889 = vadd.f32 %v796, %v888
      %v890 = vpop.f32.mrb[0].mxu0
      %891 = vmatprep.mubr.bf16.mxu0 0
      %892 = vmatmul.mubr.bf16.gmra.mrb[0].mxu0 %v838
      %v893 = vpop.f32.mrb[0].mxu0
      %v894 = vadd.f32 %v796, %v893
      %v895 = vpop.f32.mrb[0].mxu0
      %v896 = vpop.f32.mrb[0].mxu0
      %v897 = vadd.f32 %v796, %v896
      %v898 = vpop.f32.mrb[0].mxu0
      %899 = vmatprep.mubr.bf16.mxu0 0
      %900 = vmatmul.mubr.bf16.gmra.mrb[0].mxu0 %v841
      %v901 = vpop.f32.mrb[0].mxu0
      %v902 = vadd.f32 %v796, %v901
      %v903 = vpop.f32.mrb[0].mxu0
      %v904 = vpop.f32.mrb[0].mxu0
      %v905 = vadd.f32 %v796, %v904
      %v906 = vpop.f32.mrb[0].mxu0
      %907 = vdwg.mxu0
      %v908 = vtanh.pop %v878
      %v909 = vtanh.pop %v881
      %v910 = vtanh.pop %v886
      %v911 = vtanh.pop %v889
      %v912 = vtanh.pop %v894
      %v913 = vtanh.pop %v897
      %v914 = vtanh.pop %v902
      %v915 = vtanh.pop %v905
      %v916 = vpack.c.bf16 %v908, %v908
      %v917 = vpack.c.bf16 %v909, %v909
      %v918 = vpack.c.bf16 %v910, %v910
      %v919 = vpack.c.bf16 %v911, %v911
      %v920 = vpack.c.bf16 %v912, %v912
      %v921 = vpack.c.bf16 %v913, %v913
      %v922 = vpack.c.bf16 %v914, %v914
      %v923 = vpack.c.bf16 %v915, %v915
      %v932 = vunpack.c.l.b16 %v916
      %v933 = vunpack.c.l.b16 %v917
      %v934 = vunpack.c.l.b16 %v918
      %v935 = vunpack.c.l.b16 %v919
      %v936 = vunpack.c.l.b16 %v920
      %v937 = vunpack.c.l.b16 %v921
      %v938 = vunpack.c.l.b16 %v922
      %v939 = vunpack.c.l.b16 %v923
      %v940 = vpack.c.b16 %v932, %v932
      %v941 = vpack.c.b16 %v933, %v933
      %v942 = vpack.c.b16 %v934, %v934
      %v943 = vpack.c.b16 %v935, %v935
      %v944 = vpack.c.b16 %v936, %v936
      %v945 = vpack.c.b16 %v937, %v937
      %v946 = vpack.c.b16 %v938, %v938
      %v947 = vpack.c.b16 %v939, %v939
      %v949 = vshrl.u32 %v940, 16
      %v951 = vrot.slane %v949, 7
      %v952 = vshll.u32 %v940, 16
      %v954 = vor.u32 %v951, %v952
      %v955 = vrot.slane %v951, 4
      %v957 = vshrl.u32 %v941, 16
      %v959 = vrot.slane %v957, 7
      %v960 = vshll.u32 %v941, 16
      %v962 = vor.u32 %v959, %v960
      %v963 = vrot.slane %v959, 4
      %v965 = vshrl.u32 %v942, 16
      %v967 = vrot.slane %v965, 7
      %v968 = vshll.u32 %v942, 16
      %v970 = vor.u32 %v967, %v968
      %v971 = vrot.slane %v967, 4
      %v973 = vshrl.u32 %v943, 16
      %v975 = vrot.slane %v973, 7
      %v976 = vshll.u32 %v943, 16
      %v978 = vor.u32 %v975, %v976
      %v979 = vrot.slane %v975, 4
      %v981 = vshrl.u32 %v944, 16
      %v983 = vrot.slane %v981, 7
      %v984 = vshll.u32 %v944, 16
      %v986 = vor.u32 %v983, %v984
      %v987 = vrot.slane %v983, 4
      %v989 = vshrl.u32 %v945, 16
      %v991 = vrot.slane %v989, 7
      %v992 = vshll.u32 %v945, 16
      %v994 = vor.u32 %v991, %v992
      %v995 = vrot.slane %v991, 4
      %v997 = vshrl.u32 %v946, 16
      %v999 = vrot.slane %v997, 7
      %v1000 = vshll.u32 %v946, 16
      %v1002 = vor.u32 %v999, %v1000
      %v1003 = vrot.slane %v999, 4
      %v1005 = vshrl.u32 %v947, 16
      %v1007 = vrot.slane %v1005, 7
      %v1008 = vshll.u32 %v947, 16
      %v1010 = vor.u32 %v1007, %v1008
      %v1011 = vrot.slane %v1007, 4
      %s1028 = scalar_lea.vmem [#allocation2], 8
      %vm1029 = vcmask 125952
      %vm1030 = vmand %vm1029, %vm482
      %v1031 = vld [vmem:[%s1028] sm:$0xf]
      %v1032 = vsel %vm1030, %v954, %v1031
      %1033 = vst [vmem:[%s1028] sm:$0xf] %v1032
      %v1034 = vld [vmem:[%s1028 + $0x4] sm:$0x1]
      %v1035 = vsel %vm451, %v955, %v1034
      %1036 = vst [vmem:[%s1028 + $0x4] sm:$0x1] %v1035
      %v1037 = vld [vmem:[%s1028 + $0x8] sm:$0xf]
      %v1038 = vsel %vm1030, %v962, %v1037
      %1039 = vst [vmem:[%s1028 + $0x8] sm:$0xf] %v1038
      %v1040 = vld [vmem:[%s1028 + $0xc] sm:$0x1]
      %v1041 = vsel %vm451, %v963, %v1040
      %1042 = vst [vmem:[%s1028 + $0xc] sm:$0x1] %v1041
      %v1043 = vld [vmem:[%s1028 + $0x10] sm:$0xf]
      %v1044 = vsel %vm1030, %v970, %v1043
      %1045 = vst [vmem:[%s1028 + $0x10] sm:$0xf] %v1044
      %v1046 = vld [vmem:[%s1028 + $0x14] sm:$0x1]
      %v1047 = vsel %vm451, %v971, %v1046
      %1048 = vst [vmem:[%s1028 + $0x14] sm:$0x1] %v1047
      %v1049 = vld [vmem:[%s1028 + $0x18] sm:$0xf]
      %v1050 = vsel %vm1030, %v978, %v1049
      %1051 = vst [vmem:[%s1028 + $0x18] sm:$0xf] %v1050
      %v1052 = vld [vmem:[%s1028 + $0x1c] sm:$0x1]
      %v1053 = vsel %vm451, %v979, %v1052
      %1054 = vst [vmem:[%s1028 + $0x1c] sm:$0x1] %v1053
      %v1055 = vld [vmem:[%s1028 + $0x20] sm:$0xf]
      %v1056 = vsel %vm1030, %v986, %v1055
      %1057 = vst [vmem:[%s1028 + $0x20] sm:$0xf] %v1056
      %v1058 = vld [vmem:[%s1028 + $0x24] sm:$0x1]
      %v1059 = vsel %vm451, %v987, %v1058
      %1060 = vst [vmem:[%s1028 + $0x24] sm:$0x1] %v1059
      %v1061 = vld [vmem:[%s1028 + $0x28] sm:$0xf]
      %v1062 = vsel %vm1030, %v994, %v1061
      %1063 = vst [vmem:[%s1028 + $0x28] sm:$0xf] %v1062
      %v1064 = vld [vmem:[%s1028 + $0x2c] sm:$0x1]
      %v1065 = vsel %vm451, %v995, %v1064
      %1066 = vst [vmem:[%s1028 + $0x2c] sm:$0x1] %v1065
      %v1067 = vld [vmem:[%s1028 + $0x30] sm:$0xf]
      %v1068 = vsel %vm1030, %v1002, %v1067
      %1069 = vst [vmem:[%s1028 + $0x30] sm:$0xf] %v1068
      %v1070 = vld [vmem:[%s1028 + $0x34] sm:$0x1]
      %v1071 = vsel %vm451, %v1003, %v1070
      %1072 = vst [vmem:[%s1028 + $0x34] sm:$0x1] %v1071
      %v1073 = vld [vmem:[%s1028 + $0x38] sm:$0xf]
      %v1074 = vsel %vm1030, %v1010, %v1073
      %1075 = vst [vmem:[%s1028 + $0x38] sm:$0xf] %v1074
      %v1076 = vld [vmem:[%s1028 + $0x3c] sm:$0x1]
      %v1077 = vsel %vm451, %v1011, %v1076
      %1078 = vst [vmem:[%s1028 + $0x3c] sm:$0x1] %v1077
      %v1079 = vld [vmem:[#allocation2] sm:$0xf]
      %v1080 = vld [vmem:[#allocation2 + $0x8] sm:$0xf]
      %v1081 = vld [vmem:[#allocation2 + $0x10] sm:$0xf]
      %v1082 = vld [vmem:[#allocation2 + $0x18] sm:$0xf]
      %v1083 = vld [vmem:[#allocation2 + $0x20] sm:$0xf]
      %v1084 = vld [vmem:[#allocation2 + $0x28] sm:$0xf]
      %v1085 = vld [vmem:[#allocation2 + $0x30] sm:$0xf]
      %v1086 = vld [vmem:[#allocation2 + $0x38] sm:$0xf]
      %v1087 = vld [vmem:[%s3] sm:$0xf]
      %v1088 = vld [vmem:[%s3 + $0x4] sm:$0xf]
      %v1089 = vld [vmem:[#allocation2 + $0x4] sm:$0x1]
      %v1090 = vld [vmem:[#allocation2 + $0xc] sm:$0x1]
      %v1091 = vld [vmem:[#allocation2 + $0x14] sm:$0x1]
      %v1092 = vld [vmem:[#allocation2 + $0x1c] sm:$0x1]
      %v1093 = vld [vmem:[#allocation2 + $0x24] sm:$0x1]
      %v1094 = vld [vmem:[#allocation2 + $0x2c] sm:$0x1]
      %v1095 = vld [vmem:[#allocation2 + $0x34] sm:$0x1]
      %v1096 = vld [vmem:[#allocation2 + $0x3c] sm:$0x1]
      %vm1097 = vsmask.f32 3328
      %vm1098 = vsmask.f32 7440
      %vm1099 = vmor %vm1097, %vm1098
      %v1101 = vshrl.u32 %v1079, 16
      %v1103 = vrot.slane %v1101, 4
      %v1104 = vshll.u32 %v1079, 16
      %v1106 = vrot.slane %v1104, 5
      %v1107 = vor.u32 %v1103, %v1106
      %v1108 = vrot.slane %v1107, 4
      %v1110 = vshll.u32 %v1089, 16
      %v1112 = vrot.slane %v1110, 5
      %v1113 = vsel %vm1099, %v1108, %v1112
      %v1115 = vshrl.u32 %v1080, 16
      %v1117 = vrot.slane %v1115, 4
      %v1118 = vshll.u32 %v1080, 16
      %v1120 = vrot.slane %v1118, 5
      %v1121 = vor.u32 %v1117, %v1120
      %v1122 = vrot.slane %v1121, 4
      %v1124 = vshll.u32 %v1090, 16
      %v1126 = vrot.slane %v1124, 5
      %v1127 = vsel %vm1099, %v1122, %v1126
      %v1129 = vshrl.u32 %v1081, 16
      %v1131 = vrot.slane %v1129, 4
      %v1132 = vshll.u32 %v1081, 16
      %v1134 = vrot.slane %v1132, 5
      %v1135 = vor.u32 %v1131, %v1134
      %v1136 = vrot.slane %v1135, 4
      %v1138 = vshll.u32 %v1091, 16
      %v1140 = vrot.slane %v1138, 5
      %v1141 = vsel %vm1099, %v1136, %v1140
      %v1143 = vshrl.u32 %v1082, 16
      %v1145 = vrot.slane %v1143, 4
      %v1146 = vshll.u32 %v1082, 16
      %v1148 = vrot.slane %v1146, 5
      %v1149 = vor.u32 %v1145, %v1148
      %v1150 = vrot.slane %v1149, 4
      %v1152 = vshll.u32 %v1092, 16
      %v1154 = vrot.slane %v1152, 5
      %v1155 = vsel %vm1099, %v1150, %v1154
      %v1157 = vshrl.u32 %v1083, 16
      %v1159 = vrot.slane %v1157, 4
      %v1160 = vshll.u32 %v1083, 16
      %v1162 = vrot.slane %v1160, 5
      %v1163 = vor.u32 %v1159, %v1162
      %v1164 = vrot.slane %v1163, 4
      %v1166 = vshll.u32 %v1093, 16
      %v1168 = vrot.slane %v1166, 5
      %v1169 = vsel %vm1099, %v1164, %v1168
      %v1171 = vshrl.u32 %v1084, 16
      %v1173 = vrot.slane %v1171, 4
      %v1174 = vshll.u32 %v1084, 16
      %v1176 = vrot.slane %v1174, 5
      %v1177 = vor.u32 %v1173, %v1176
      %v1178 = vrot.slane %v1177, 4
      %v1180 = vshll.u32 %v1094, 16
      %v1182 = vrot.slane %v1180, 5
      %v1183 = vsel %vm1099, %v1178, %v1182
      %v1185 = vshrl.u32 %v1085, 16
      %v1187 = vrot.slane %v1185, 4
      %v1188 = vshll.u32 %v1085, 16
      %v1190 = vrot.slane %v1188, 5
      %v1191 = vor.u32 %v1187, %v1190
      %v1192 = vrot.slane %v1191, 4
      %v1194 = vshll.u32 %v1095, 16
      %v1196 = vrot.slane %v1194, 5
      %v1197 = vsel %vm1099, %v1192, %v1196
      %v1199 = vshrl.u32 %v1086, 16
      %v1201 = vrot.slane %v1199, 4
      %v1202 = vshll.u32 %v1086, 16
      %v1204 = vrot.slane %v1202, 5
      %v1205 = vor.u32 %v1201, %v1204
      %v1206 = vrot.slane %v1205, 4
      %v1208 = vshll.u32 %v1096, 16
      %v1210 = vrot.slane %v1208, 5
      %v1211 = vsel %vm1099, %v1206, %v1210
      %v1212 = vld [vmem:[%s3 + $0x8] sm:$0xf]
      %v1213 = vld [vmem:[%s3 + $0xc] sm:$0xf]
      %v1214 = vunpack.c.l.b16 %v1113
      %v1215 = vunpack.c.l.b16 %v1127
      %v1216 = vunpack.c.l.b16 %v1141
      %v1217 = vunpack.c.l.b16 %v1155
      %v1218 = vunpack.c.l.b16 %v1169
      %v1219 = vunpack.c.l.b16 %v1183
      %v1220 = vunpack.c.l.b16 %v1197
      %v1221 = vunpack.c.l.b16 %v1211
      %v1222 = vpack.c.b16 %v1215, %v1214
      %v1223 = vpack.c.b16 %v1217, %v1216
      %v1224 = vpack.c.b16 %v1219, %v1218
      %v1225 = vpack.c.b16 %v1221, %v1220
      %v1228 = vunpack.c.l.b16 %v1212
      %v1229 = vunpack.c.l.b16 %v1213
      %v1230 = vpack.c.b16 %v1229, %v1228
      %vm1232 = vcmask 130048
      %v1234 = vsel %vm1232, %v1222, 0
      %v1237 = vsel %vm1232, %v1223, 0
      %v1240 = vsel %vm1232, %v1224, 0
      %v1243 = vsel %vm1232, %v1225, 0
      %1245 = vmatprep.subr.bf16.mxu0 0
      %1246 = vmatpush1.bf16.msra.mxu0 %v1230
      %1247 = vmatprep.subr.bf16.mxu0 0
      %1248 = vmatpush1.bf16.msra.mxu0 0
      %1249 = vmatprep.subr.bf16.mxu0 0
      %1250 = vmatpush1.bf16.msra.mxu0 0
      %1251 = vmatprep.subr.bf16.mxu0 0
      %1252 = vmatpush1.bf16.msra.mxu0 0
      %1253 = vmatprep.subr.bf16.mxu0 0
      %1254 = vmatpush1.bf16.msra.mxu0 0
      %1255 = vmatprep.subr.bf16.mxu0 0
      %1256 = vmatpush1.bf16.msra.mxu0 0
      %1257 = vmatprep.subr.bf16.mxu0 0
      %1258 = vmatpush1.bf16.msra.mxu0 0
      %1259 = vmatprep.subr.bf16.mxu0 0
      %1260 = vmatpush1.bf16.msra.mxu0 0
      %1261 = vmatprep.subr.bf16.mxu0 0
      %1262 = vmatpush1.bf16.msra.mxu0 0
      %1263 = vmatprep.subr.bf16.mxu0 0
      %1264 = vmatpush1.bf16.msra.mxu0 0
      %1265 = vmatprep.subr.bf16.mxu0 0
      %1266 = vmatpush1.bf16.msra.mxu0 0
      %1267 = vmatprep.subr.bf16.mxu0 0
      %1268 = vmatpush1.bf16.msra.mxu0 0
      %1269 = vmatprep.subr.bf16.mxu0 0
      %1270 = vmatpush1.bf16.msra.mxu0 0
      %1271 = vmatprep.subr.bf16.mxu0 0
      %1272 = vmatpush1.bf16.msra.mxu0 0
      %1273 = vmatprep.subr.bf16.mxu0 0
      %1274 = vmatpush1.bf16.msra.mxu0 0
      %1275 = vmatprep.subr.bf16.mxu0 0
      %1276 = vmatpush1.bf16.msra.mxu0 0
      %1277 = vmatprep.mubr.bf16.mxu0 0
      %1278 = vmatmul.mubr.bf16.gmra.mrb[0].mxu0 %v1234
      %v1279 = vpop.f32.mrb[0].mxu0
      %v1280 = vadd.f32 0.0, %v1279
      %v1281 = vpop.f32.mrb[0].mxu0
      %v1282 = vpop.f32.mrb[0].mxu0
      %v1283 = vadd.f32 0.0, %v1282
      %v1284 = vpop.f32.mrb[0].mxu0
      %1285 = vmatprep.mubr.bf16.mxu0 0
      %1286 = vmatmul.mubr.bf16.gmra.mrb[0].mxu0 %v1237
      %v1287 = vpop.f32.mrb[0].mxu0
      %v1288 = vadd.f32 0.0, %v1287
      %v1289 = vpop.f32.mrb[0].mxu0
      %v1290 = vpop.f32.mrb[0].mxu0
      %v1291 = vadd.f32 0.0, %v1290
      %v1292 = vpop.f32.mrb[0].mxu0
      %1293 = vmatprep.mubr.bf16.mxu0 0
      %1294 = vmatmul.mubr.bf16.gmra.mrb[0].mxu0 %v1240
      %v1295 = vpop.f32.mrb[0].mxu0
      %v1296 = vadd.f32 0.0, %v1295
      %v1297 = vpop.f32.mrb[0].mxu0
      %v1298 = vpop.f32.mrb[0].mxu0
      %v1299 = vadd.f32 0.0, %v1298
      %v1300 = vpop.f32.mrb[0].mxu0
      %1301 = vmatprep.mubr.bf16.mxu0 0
      %1302 = vmatmul.mubr.bf16.gmra.mrb[0].mxu0 %v1243
      %v1303 = vpop.f32.mrb[0].mxu0
      %v1304 = vadd.f32 0.0, %v1303
      %v1305 = vpop.f32.mrb[0].mxu0
      %v1306 = vpop.f32.mrb[0].mxu0
      %v1307 = vadd.f32 0.0, %v1306
      %v1308 = vpop.f32.mrb[0].mxu0
      %1309 = vdwg.mxu0
      %v1318 = vunpack.c.l.b16 %v1079
      %v1319 = vunpack.c.l.b16 %v1080
      %v1320 = vunpack.c.l.b16 %v1081
      %v1321 = vunpack.c.l.b16 %v1082
      %v1322 = vunpack.c.l.b16 %v1083
      %v1323 = vunpack.c.l.b16 %v1084
      %v1324 = vunpack.c.l.b16 %v1085
      %v1325 = vunpack.c.l.b16 %v1086
      %v1326 = vpack.c.b16 %v1319, %v1318
      %v1327 = vpack.c.b16 %v1321, %v1320
      %v1328 = vpack.c.b16 %v1323, %v1322
      %v1329 = vpack.c.b16 %v1325, %v1324
      %v1332 = vunpack.c.l.b16 %v1087
      %v1333 = vunpack.c.l.b16 %v1088
      %v1334 = vpack.c.b16 %v1333, %v1332
      %v1337 = vsel %vm1232, %v1326, 0
      %v1340 = vsel %vm1232, %v1327, 0
      %v1343 = vsel %vm1232, %v1328, 0
      %v1346 = vsel %vm1232, %v1329, 0
      %1348 = vmatprep.subr.bf16.mxu0 0
      %1349 = vmatpush1.bf16.msra.mxu0 %v1334
      %1350 = vmatprep.subr.bf16.mxu0 0
      %1351 = vmatpush1.bf16.msra.mxu0 0
      %1352 = vmatprep.subr.bf16.mxu0 0
      %1353 = vmatpush1.bf16.msra.mxu0 0
      %1354 = vmatprep.subr.bf16.mxu0 0
      %1355 = vmatpush1.bf16.msra.mxu0 0
      %1356 = vmatprep.subr.bf16.mxu0 0
      %1357 = vmatpush1.bf16.msra.mxu0 0
      %1358 = vmatprep.subr.bf16.mxu0 0
      %1359 = vmatpush1.bf16.msra.mxu0 0
      %1360 = vmatprep.subr.bf16.mxu0 0
      %1361 = vmatpush1.bf16.msra.mxu0 0
      %1362 = vmatprep.subr.bf16.mxu0 0
      %1363 = vmatpush1.bf16.msra.mxu0 0
      %1364 = vmatprep.subr.bf16.mxu0 0
      %1365 = vmatpush1.bf16.msra.mxu0 0
      %1366 = vmatprep.subr.bf16.mxu0 0
      %1367 = vmatpush1.bf16.msra.mxu0 0
      %1368 = vmatprep.subr.bf16.mxu0 0
      %1369 = vmatpush1.bf16.msra.mxu0 0
      %1370 = vmatprep.subr.bf16.mxu0 0
      %1371 = vmatpush1.bf16.msra.mxu0 0
      %1372 = vmatprep.subr.bf16.mxu0 0
      %1373 = vmatpush1.bf16.msra.mxu0 0
      %1374 = vmatprep.subr.bf16.mxu0 0
      %1375 = vmatpush1.bf16.msra.mxu0 0
      %1376 = vmatprep.subr.bf16.mxu0 0
      %1377 = vmatpush1.bf16.msra.mxu0 0
      %1378 = vmatprep.subr.bf16.mxu0 0
      %1379 = vmatpush1.bf16.msra.mxu0 0
      %1380 = vmatprep.mubr.bf16.mxu0 0
      %1381 = vmatmul.mubr.bf16.gmra.mrb[0].mxu0 %v1337
      %v1382 = vpop.f32.mrb[0].mxu0
      %v1383 = vadd.f32 %v1280, %v1382
      %v1384 = vpop.f32.mrb[0].mxu0
      %v1385 = vpop.f32.mrb[0].mxu0
      %v1386 = vadd.f32 %v1283, %v1385
      %v1387 = vpop.f32.mrb[0].mxu0
      %1388 = vmatprep.mubr.bf16.mxu0 0
      %1389 = vmatmul.mubr.bf16.gmra.mrb[0].mxu0 %v1340
      %v1390 = vpop.f32.mrb[0].mxu0
      %v1391 = vadd.f32 %v1288, %v1390
      %v1392 = vpop.f32.mrb[0].mxu0
      %v1393 = vpop.f32.mrb[0].mxu0
      %v1394 = vadd.f32 %v1291, %v1393
      %v1395 = vpop.f32.mrb[0].mxu0
      %1396 = vmatprep.mubr.bf16.mxu0 0
      %1397 = vmatmul.mubr.bf16.gmra.mrb[0].mxu0 %v1343
      %v1398 = vpop.f32.mrb[0].mxu0
      %v1399 = vadd.f32 %v1296, %v1398
      %v1400 = vpop.f32.mrb[0].mxu0
      %v1401 = vpop.f32.mrb[0].mxu0
      %v1402 = vadd.f32 %v1299, %v1401
      %v1403 = vpop.f32.mrb[0].mxu0
      %1404 = vmatprep.mubr.bf16.mxu0 0
      %1405 = vmatmul.mubr.bf16.gmra.mrb[0].mxu0 %v1346
      %v1406 = vpop.f32.mrb[0].mxu0
      %v1407 = vadd.f32 %v1304, %v1406
      %v1408 = vpop.f32.mrb[0].mxu0
      %v1409 = vpop.f32.mrb[0].mxu0
      %v1410 = vadd.f32 %v1307, %v1409
      %v1411 = vpop.f32.mrb[0].mxu0
      %1412 = vdwg.mxu0
      %v1413 = vld [vmem:[#allocation2] sm:$0xe]
      %v1414 = vld [vmem:[#allocation2 + $0x8] sm:$0xe]
      %v1415 = vld [vmem:[#allocation2 + $0x10] sm:$0xe]
      %v1416 = vld [vmem:[#allocation2 + $0x18] sm:$0xe]
      %v1417 = vld [vmem:[#allocation2 + $0x20] sm:$0xe]
      %v1418 = vld [vmem:[#allocation2 + $0x28] sm:$0xe]
      %v1419 = vld [vmem:[#allocation2 + $0x30] sm:$0xe]
      %v1420 = vld [vmem:[#allocation2 + $0x38] sm:$0xe]
      %vm1437 = vcmask 1042432
      %vm1438 = vcmask 1046532
      %vm1439 = vmor %vm1437, %vm1438
      %v1440 = vrot.slane %v1413, 5
      %v1441 = vrot.slane %v1440, 4
      %v1442 = vrot.slane %v1089, 5
      %v1443 = vsel %vm1439, %v1441, %v1442
      %v1444 = vrot.slane %v1414, 5
      %v1445 = vrot.slane %v1444, 4
      %v1446 = vrot.slane %v1090, 5
      %v1447 = vsel %vm1439, %v1445, %v1446
      %v1448 = vrot.slane %v1415, 5
      %v1449 = vrot.slane %v1448, 4
      %v1450 = vrot.slane %v1091, 5
      %v1451 = vsel %vm1439, %v1449, %v1450
      %v1452 = vrot.slane %v1416, 5
      %v1453 = vrot.slane %v1452, 4
      %v1454 = vrot.slane %v1092, 5
      %v1455 = vsel %vm1439, %v1453, %v1454
      %v1456 = vrot.slane %v1417, 5
      %v1457 = vrot.slane %v1456, 4
      %v1458 = vrot.slane %v1093, 5
      %v1459 = vsel %vm1439, %v1457, %v1458
      %v1460 = vrot.slane %v1418, 5
      %v1461 = vrot.slane %v1460, 4
      %v1462 = vrot.slane %v1094, 5
      %v1463 = vsel %vm1439, %v1461, %v1462
      %v1464 = vrot.slane %v1419, 5
      %v1465 = vrot.slane %v1464, 4
      %v1466 = vrot.slane %v1095, 5
      %v1467 = vsel %vm1439, %v1465, %v1466
      %v1468 = vrot.slane %v1420, 5
      %v1469 = vrot.slane %v1468, 4
      %v1470 = vrot.slane %v1096, 5
      %v1471 = vsel %vm1439, %v1469, %v1470
      %v1472 = vld [vmem:[%s3 + $0x10] sm:$0xf]
      %v1473 = vld [vmem:[%s3 + $0x14] sm:$0xf]
      %v1474 = vunpack.c.l.b16 %v1443
      %v1475 = vunpack.c.l.b16 %v1447
      %v1476 = vunpack.c.l.b16 %v1451
      %v1477 = vunpack.c.l.b16 %v1455
      %v1478 = vunpack.c.l.b16 %v1459
      %v1479 = vunpack.c.l.b16 %v1463
      %v1480 = vunpack.c.l.b16 %v1467
      %v1481 = vunpack.c.l.b16 %v1471
      %v1482 = vpack.c.b16 %v1475, %v1474
      %v1483 = vpack.c.b16 %v1477, %v1476
      %v1484 = vpack.c.b16 %v1479, %v1478
      %v1485 = vpack.c.b16 %v1481, %v1480
      %v1488 = vunpack.c.l.b16 %v1472
      %v1489 = vunpack.c.l.b16 %v1473
      %v1490 = vpack.c.b16 %v1489, %v1488
      %v1493 = vsel %vm1232, %v1482, 0
      %v1496 = vsel %vm1232, %v1483, 0
      %v1499 = vsel %vm1232, %v1484, 0
      %v1502 = vsel %vm1232, %v1485, 0
      %1504 = vmatprep.subr.bf16.mxu0 0
      %1505 = vmatpush1.bf16.msra.mxu0 %v1490
      %1506 = vmatprep.subr.bf16.mxu0 0
      %1507 = vmatpush1.bf16.msra.mxu0 0
      %1508 = vmatprep.subr.bf16.mxu0 0
      %1509 = vmatpush1.bf16.msra.mxu0 0
      %1510 = vmatprep.subr.bf16.mxu0 0
      %1511 = vmatpush1.bf16.msra.mxu0 0
      %1512 = vmatprep.subr.bf16.mxu0 0
      %1513 = vmatpush1.bf16.msra.mxu0 0
      %1514 = vmatprep.subr.bf16.mxu0 0
      %1515 = vmatpush1.bf16.msra.mxu0 0
      %1516 = vmatprep.subr.bf16.mxu0 0
      %1517 = vmatpush1.bf16.msra.mxu0 0
      %1518 = vmatprep.subr.bf16.mxu0 0
      %1519 = vmatpush1.bf16.msra.mxu0 0
      %1520 = vmatprep.subr.bf16.mxu0 0
      %1521 = vmatpush1.bf16.msra.mxu0 0
      %1522 = vmatprep.subr.bf16.mxu0 0
      %1523 = vmatpush1.bf16.msra.mxu0 0
      %1524 = vmatprep.subr.bf16.mxu0 0
      %1525 = vmatpush1.bf16.msra.mxu0 0
      %1526 = vmatprep.subr.bf16.mxu0 0
      %1527 = vmatpush1.bf16.msra.mxu0 0
      %1528 = vmatprep.subr.bf16.mxu0 0
      %1529 = vmatpush1.bf16.msra.mxu0 0
      %1530 = vmatprep.subr.bf16.mxu0 0
      %1531 = vmatpush1.bf16.msra.mxu0 0
      %1532 = vmatprep.subr.bf16.mxu0 0
      %1533 = vmatpush1.bf16.msra.mxu0 0
      %1534 = vmatprep.subr.bf16.mxu0 0
      %1535 = vmatpush1.bf16.msra.mxu0 0
      %1536 = vmatprep.mubr.bf16.mxu0 0
      %1537 = vmatmul.mubr.bf16.gmra.mrb[0].mxu0 %v1493
      %v1538 = vpop.f32.mrb[0].mxu0
      %v1539 = vadd.f32 0.0, %v1538
      %v1540 = vpop.f32.mrb[0].mxu0
      %v1541 = vpop.f32.mrb[0].mxu0
      %v1542 = vadd.f32 0.0, %v1541
      %v1543 = vpop.f32.mrb[0].mxu0
      %1544 = vmatprep.mubr.bf16.mxu0 0
      %1545 = vmatmul.mubr.bf16.gmra.mrb[0].mxu0 %v1496
      %v1546 = vpop.f32.mrb[0].mxu0
      %v1547 = vadd.f32 0.0, %v1546
      %v1548 = vpop.f32.mrb[0].mxu0
      %v1549 = vpop.f32.mrb[0].mxu0
      %v1550 = vadd.f32 0.0, %v1549
      %v1551 = vpop.f32.mrb[0].mxu0
      %1552 = vmatprep.mubr.bf16.mxu0 0
      %1553 = vmatmul.mubr.bf16.gmra.mrb[0].mxu0 %v1499
      %v1554 = vpop.f32.mrb[0].mxu0
      %v1555 = vadd.f32 0.0, %v1554
      %v1556 = vpop.f32.mrb[0].mxu0
      %v1557 = vpop.f32.mrb[0].mxu0
      %v1558 = vadd.f32 0.0, %v1557
      %v1559 = vpop.f32.mrb[0].mxu0
      %1560 = vmatprep.mubr.bf16.mxu0 0
      %1561 = vmatmul.mubr.bf16.gmra.mrb[0].mxu0 %v1502
      %v1562 = vpop.f32.mrb[0].mxu0
      %v1563 = vadd.f32 0.0, %v1562
      %v1564 = vpop.f32.mrb[0].mxu0
      %v1565 = vpop.f32.mrb[0].mxu0
      %v1566 = vadd.f32 0.0, %v1565
      %v1567 = vpop.f32.mrb[0].mxu0
      %1568 = vdwg.mxu0
      %v1569 = vadd.f32 %v1383, %v1539
      %v1570 = vadd.f32 %v1386, %v1542
      %v1571 = vadd.f32 %v1391, %v1547
      %v1572 = vadd.f32 %v1394, %v1550
      %v1573 = vadd.f32 %v1399, %v1555
      %v1574 = vadd.f32 %v1402, %v1558
      %v1575 = vadd.f32 %v1407, %v1563
      %v1576 = vadd.f32 %v1410, %v1566
      %v1577 = vld [vmem:[%s1028] sm:$0xf]
      %v1578 = vld [vmem:[%s1028 + $0x8] sm:$0xf]
      %v1579 = vld [vmem:[%s1028 + $0x10] sm:$0xf]
      %v1580 = vld [vmem:[%s1028 + $0x18] sm:$0xf]
      %v1581 = vld [vmem:[%s1028 + $0x20] sm:$0xf]
      %v1582 = vld [vmem:[%s1028 + $0x28] sm:$0xf]
      %v1583 = vld [vmem:[%s1028 + $0x30] sm:$0xf]
      %v1584 = vld [vmem:[%s1028 + $0x38] sm:$0xf]
      %v1585 = vld [vmem:[%s3 + $0x18] sm:$0xf]
      %v1586 = vld [vmem:[%s3 + $0x1c] sm:$0xf]
      %v1595 = vunpack.c.l.b16 %v1577
      %v1596 = vunpack.c.l.b16 %v1578
      %v1597 = vunpack.c.l.b16 %v1579
      %v1598 = vunpack.c.l.b16 %v1580
      %v1599 = vunpack.c.l.b16 %v1581
      %v1600 = vunpack.c.l.b16 %v1582
      %v1601 = vunpack.c.l.b16 %v1583
      %v1602 = vunpack.c.l.b16 %v1584
      %v1603 = vpack.c.b16 %v1596, %v1595
      %v1604 = vpack.c.b16 %v1598, %v1597
      %v1605 = vpack.c.b16 %v1600, %v1599
      %v1606 = vpack.c.b16 %v1602, %v1601
      %v1609 = vunpack.c.l.b16 %v1585
      %v1610 = vunpack.c.l.b16 %v1586
      %v1611 = vpack.c.b16 %v1610, %v1609
      %v1614 = vsel %vm1232, %v1603, 0
      %v1617 = vsel %vm1232, %v1604, 0
      %v1620 = vsel %vm1232, %v1605, 0
      %v1623 = vsel %vm1232, %v1606, 0
      %1625 = vmatprep.subr.bf16.mxu0 0
      %1626 = vmatpush1.bf16.msra.mxu0 %v1611
      %1627 = vmatprep.subr.bf16.mxu0 0
      %1628 = vmatpush1.bf16.msra.mxu0 0
      %1629 = vmatprep.subr.bf16.mxu0 0
      %1630 = vmatpush1.bf16.msra.mxu0 0
      %1631 = vmatprep.subr.bf16.mxu0 0
      %1632 = vmatpush1.bf16.msra.mxu0 0
      %1633 = vmatprep.subr.bf16.mxu0 0
      %1634 = vmatpush1.bf16.msra.mxu0 0
      %1635 = vmatprep.subr.bf16.mxu0 0
      %1636 = vmatpush1.bf16.msra.mxu0 0
      %1637 = vmatprep.subr.bf16.mxu0 0
      %1638 = vmatpush1.bf16.msra.mxu0 0
      %1639 = vmatprep.subr.bf16.mxu0 0
      %1640 = vmatpush1.bf16.msra.mxu0 0
      %1641 = vmatprep.subr.bf16.mxu0 0
      %1642 = vmatpush1.bf16.msra.mxu0 0
      %1643 = vmatprep.subr.bf16.mxu0 0
      %1644 = vmatpush1.bf16.msra.mxu0 0
      %1645 = vmatprep.subr.bf16.mxu0 0
      %1646 = vmatpush1.bf16.msra.mxu0 0
      %1647 = vmatprep.subr.bf16.mxu0 0
      %1648 = vmatpush1.bf16.msra.mxu0 0
      %1649 = vmatprep.subr.bf16.mxu0 0
      %1650 = vmatpush1.bf16.msra.mxu0 0
      %1651 = vmatprep.subr.bf16.mxu0 0
      %1652 = vmatpush1.bf16.msra.mxu0 0
      %1653 = vmatprep.subr.bf16.mxu0 0
      %1654 = vmatpush1.bf16.msra.mxu0 0
      %1655 = vmatprep.subr.bf16.mxu0 0
      %1656 = vmatpush1.bf16.msra.mxu0 0
      %1657 = vmatprep.mubr.bf16.mxu0 0
      %1658 = vmatmul.mubr.bf16.gmra.mrb[0].mxu0 %v1614
      %v1659 = vpop.f32.mrb[0].mxu0
      %v1660 = vadd.f32 0.0, %v1659
      %v1661 = vpop.f32.mrb[0].mxu0
      %v1662 = vpop.f32.mrb[0].mxu0
      %v1663 = vadd.f32 0.0, %v1662
      %v1664 = vpop.f32.mrb[0].mxu0
      %1665 = vmatprep.mubr.bf16.mxu0 0
      %1666 = vmatmul.mubr.bf16.gmra.mrb[0].mxu0 %v1617
      %v1667 = vpop.f32.mrb[0].mxu0
      %v1668 = vadd.f32 0.0, %v1667
      %v1669 = vpop.f32.mrb[0].mxu0
      %v1670 = vpop.f32.mrb[0].mxu0
      %v1671 = vadd.f32 0.0, %v1670
      %v1672 = vpop.f32.mrb[0].mxu0
      %1673 = vmatprep.mubr.bf16.mxu0 0
      %1674 = vmatmul.mubr.bf16.gmra.mrb[0].mxu0 %v1620
      %v1675 = vpop.f32.mrb[0].mxu0
      %v1676 = vadd.f32 0.0, %v1675
      %v1677 = vpop.f32.mrb[0].mxu0
      %v1678 = vpop.f32.mrb[0].mxu0
      %v1679 = vadd.f32 0.0, %v1678
      %v1680 = vpop.f32.mrb[0].mxu0
      %1681 = vmatprep.mubr.bf16.mxu0 0
      %1682 = vmatmul.mubr.bf16.gmra.mrb[0].mxu0 %v1623
      %v1683 = vpop.f32.mrb[0].mxu0
      %v1684 = vadd.f32 0.0, %v1683
      %v1685 = vpop.f32.mrb[0].mxu0
      %v1686 = vpop.f32.mrb[0].mxu0
      %v1687 = vadd.f32 0.0, %v1686
      %v1688 = vpop.f32.mrb[0].mxu0
      %1689 = vdwg.mxu0
      %v1690 = vadd.f32 %v1569, %v1660
      %v1691 = vadd.f32 %v1570, %v1663
      %v1692 = vadd.f32 %v1571, %v1668
      %v1693 = vadd.f32 %v1572, %v1671
      %v1694 = vadd.f32 %v1573, %v1676
      %v1695 = vadd.f32 %v1574, %v1679
      %v1696 = vadd.f32 %v1575, %v1684
      %v1697 = vadd.f32 %v1576, %v1687
      %v1698 = vld [vmem:[%s1028] sm:$0xf]
      %v1699 = vld [vmem:[%s1028 + $0x4] sm:$0x1]
      %v1700 = vld [vmem:[%s1028 + $0x8] sm:$0xf]
      %v1701 = vld [vmem:[%s1028 + $0xc] sm:$0x1]
      %v1702 = vld [vmem:[%s1028 + $0x10] sm:$0xf]
      %v1703 = vld [vmem:[%s1028 + $0x14] sm:$0x1]
      %v1704 = vld [vmem:[%s1028 + $0x18] sm:$0xf]
      %v1705 = vld [vmem:[%s1028 + $0x1c] sm:$0x1]
      %v1706 = vld [vmem:[%s1028 + $0x20] sm:$0xf]
      %v1707 = vld [vmem:[%s1028 + $0x24] sm:$0x1]
      %v1708 = vld [vmem:[%s1028 + $0x28] sm:$0xf]
      %v1709 = vld [vmem:[%s1028 + $0x2c] sm:$0x1]
      %v1710 = vld [vmem:[%s1028 + $0x30] sm:$0xf]
      %v1711 = vld [vmem:[%s1028 + $0x34] sm:$0x1]
      %v1712 = vld [vmem:[%s1028 + $0x38] sm:$0xf]
      %v1713 = vld [vmem:[%s1028 + $0x3c] sm:$0x1]
      %v1715 = vshrl.u32 %v1698, 16
      %v1717 = vrot.slane %v1715, 4
      %v1718 = vshll.u32 %v1698, 16
      %v1720 = vrot.slane %v1718, 5
      %v1721 = vor.u32 %v1717, %v1720
      %v1722 = vrot.slane %v1721, 4
      %v1724 = vshll.u32 %v1699, 16
      %v1726 = vrot.slane %v1724, 5
      %v1727 = vsel %vm1099, %v1722, %v1726
      %v1729 = vshrl.u32 %v1700, 16
      %v1731 = vrot.slane %v1729, 4
      %v1732 = vshll.u32 %v1700, 16
      %v1734 = vrot.slane %v1732, 5
      %v1735 = vor.u32 %v1731, %v1734
      %v1736 = vrot.slane %v1735, 4
      %v1738 = vshll.u32 %v1701, 16
      %v1740 = vrot.slane %v1738, 5
      %v1741 = vsel %vm1099, %v1736, %v1740
      %v1743 = vshrl.u32 %v1702, 16
      %v1745 = vrot.slane %v1743, 4
      %v1746 = vshll.u32 %v1702, 16
      %v1748 = vrot.slane %v1746, 5
      %v1749 = vor.u32 %v1745, %v1748
      %v1750 = vrot.slane %v1749, 4
      %v1752 = vshll.u32 %v1703, 16
      %v1754 = vrot.slane %v1752, 5
      %v1755 = vsel %vm1099, %v1750, %v1754
      %v1757 = vshrl.u32 %v1704, 16
      %v1759 = vrot.slane %v1757, 4
      %v1760 = vshll.u32 %v1704, 16
      %v1762 = vrot.slane %v1760, 5
      %v1763 = vor.u32 %v1759, %v1762
      %v1764 = vrot.slane %v1763, 4
      %v1766 = vshll.u32 %v1705, 16
      %v1768 = vrot.slane %v1766, 5
      %v1769 = vsel %vm1099, %v1764, %v1768
      %v1771 = vshrl.u32 %v1706, 16
      %v1773 = vrot.slane %v1771, 4
      %v1774 = vshll.u32 %v1706, 16
      %v1776 = vrot.slane %v1774, 5
      %v1777 = vor.u32 %v1773, %v1776
      %v1778 = vrot.slane %v1777, 4
      %v1780 = vshll.u32 %v1707, 16
      %v1782 = vrot.slane %v1780, 5
      %v1783 = vsel %vm1099, %v1778, %v1782
      %v1785 = vshrl.u32 %v1708, 16
      %v1787 = vrot.slane %v1785, 4
      %v1788 = vshll.u32 %v1708, 16
      %v1790 = vrot.slane %v1788, 5
      %v1791 = vor.u32 %v1787, %v1790
      %v1792 = vrot.slane %v1791, 4
      %v1794 = vshll.u32 %v1709, 16
      %v1796 = vrot.slane %v1794, 5
      %v1797 = vsel %vm1099, %v1792, %v1796
      %v1799 = vshrl.u32 %v1710, 16
      %v1801 = vrot.slane %v1799, 4
      %v1802 = vshll.u32 %v1710, 16
      %v1804 = vrot.slane %v1802, 5
      %v1805 = vor.u32 %v1801, %v1804
      %v1806 = vrot.slane %v1805, 4
      %v1808 = vshll.u32 %v1711, 16
      %v1810 = vrot.slane %v1808, 5
      %v1811 = vsel %vm1099, %v1806, %v1810
      %v1813 = vshrl.u32 %v1712, 16
      %v1815 = vrot.slane %v1813, 4
      %v1816 = vshll.u32 %v1712, 16
      %v1818 = vrot.slane %v1816, 5
      %v1819 = vor.u32 %v1815, %v1818
      %v1820 = vrot.slane %v1819, 4
      %v1822 = vshll.u32 %v1713, 16
      %v1824 = vrot.slane %v1822, 5
      %v1825 = vsel %vm1099, %v1820, %v1824
      %v1826 = vld [vmem:[%s3 + $0x20] sm:$0xf]
      %v1827 = vld [vmem:[%s3 + $0x24] sm:$0xf]
      %v1828 = vunpack.c.l.b16 %v1727
      %v1829 = vunpack.c.l.b16 %v1741
      %v1830 = vunpack.c.l.b16 %v1755
      %v1831 = vunpack.c.l.b16 %v1769
      %v1832 = vunpack.c.l.b16 %v1783
      %v1833 = vunpack.c.l.b16 %v1797
      %v1834 = vunpack.c.l.b16 %v1811
      %v1835 = vunpack.c.l.b16 %v1825
      %v1836 = vpack.c.b16 %v1829, %v1828
      %v1837 = vpack.c.b16 %v1831, %v1830
      %v1838 = vpack.c.b16 %v1833, %v1832
      %v1839 = vpack.c.b16 %v1835, %v1834
      %v1842 = vunpack.c.l.b16 %v1826
      %v1843 = vunpack.c.l.b16 %v1827
      %v1844 = vpack.c.b16 %v1843, %v1842
      %v1847 = vsel %vm1232, %v1836, 0
      %v1850 = vsel %vm1232, %v1837, 0
      %v1853 = vsel %vm1232, %v1838, 0
      %v1856 = vsel %vm1232, %v1839, 0
      %1858 = vmatprep.subr.bf16.mxu0 0
      %1859 = vmatpush1.bf16.msra.mxu0 %v1844
      %1860 = vmatprep.subr.bf16.mxu0 0
      %1861 = vmatpush1.bf16.msra.mxu0 0
      %1862 = vmatprep.subr.bf16.mxu0 0
      %1863 = vmatpush1.bf16.msra.mxu0 0
      %1864 = vmatprep.subr.bf16.mxu0 0
      %1865 = vmatpush1.bf16.msra.mxu0 0
      %1866 = vmatprep.subr.bf16.mxu0 0
      %1867 = vmatpush1.bf16.msra.mxu0 0
      %1868 = vmatprep.subr.bf16.mxu0 0
      %1869 = vmatpush1.bf16.msra.mxu0 0
      %1870 = vmatprep.subr.bf16.mxu0 0
      %1871 = vmatpush1.bf16.msra.mxu0 0
      %1872 = vmatprep.subr.bf16.mxu0 0
      %1873 = vmatpush1.bf16.msra.mxu0 0
      %1874 = vmatprep.subr.bf16.mxu0 0
      %1875 = vmatpush1.bf16.msra.mxu0 0
      %1876 = vmatprep.subr.bf16.mxu0 0
      %1877 = vmatpush1.bf16.msra.mxu0 0
      %1878 = vmatprep.subr.bf16.mxu0 0
      %1879 = vmatpush1.bf16.msra.mxu0 0
      %1880 = vmatprep.subr.bf16.mxu0 0
      %1881 = vmatpush1.bf16.msra.mxu0 0
      %1882 = vmatprep.subr.bf16.mxu0 0
      %1883 = vmatpush1.bf16.msra.mxu0 0
      %1884 = vmatprep.subr.bf16.mxu0 0
      %1885 = vmatpush1.bf16.msra.mxu0 0
      %1886 = vmatprep.subr.bf16.mxu0 0
      %1887 = vmatpush1.bf16.msra.mxu0 0
      %1888 = vmatprep.subr.bf16.mxu0 0
      %1889 = vmatpush1.bf16.msra.mxu0 0
      %1890 = vmatprep.mubr.bf16.mxu0 0
      %1891 = vmatmul.mubr.bf16.gmra.mrb[0].mxu0 %v1847
      %v1892 = vpop.f32.mrb[0].mxu0
      %v1893 = vadd.f32 0.0, %v1892
      %v1894 = vpop.f32.mrb[0].mxu0
      %v1895 = vpop.f32.mrb[0].mxu0
      %v1896 = vadd.f32 0.0, %v1895
      %v1897 = vpop.f32.mrb[0].mxu0
      %1898 = vmatprep.mubr.bf16.mxu0 0
      %1899 = vmatmul.mubr.bf16.gmra.mrb[0].mxu0 %v1850
      %v1900 = vpop.f32.mrb[0].mxu0
      %v1901 = vadd.f32 0.0, %v1900
      %v1902 = vpop.f32.mrb[0].mxu0
      %v1903 = vpop.f32.mrb[0].mxu0
      %v1904 = vadd.f32 0.0, %v1903
      %v1905 = vpop.f32.mrb[0].mxu0
      %1906 = vmatprep.mubr.bf16.mxu0 0
      %1907 = vmatmul.mubr.bf16.gmra.mrb[0].mxu0 %v1853
      %v1908 = vpop.f32.mrb[0].mxu0
      %v1909 = vadd.f32 0.0, %v1908
      %v1910 = vpop.f32.mrb[0].mxu0
      %v1911 = vpop.f32.mrb[0].mxu0
      %v1912 = vadd.f32 0.0, %v1911
      %v1913 = vpop.f32.mrb[0].mxu0
      %1914 = vmatprep.mubr.bf16.mxu0 0
      %1915 = vmatmul.mubr.bf16.gmra.mrb[0].mxu0 %v1856
      %v1916 = vpop.f32.mrb[0].mxu0
      %v1917 = vadd.f32 0.0, %v1916
      %v1918 = vpop.f32.mrb[0].mxu0
      %v1919 = vpop.f32.mrb[0].mxu0
      %v1920 = vadd.f32 0.0, %v1919
      %v1921 = vpop.f32.mrb[0].mxu0
      %1922 = vdwg.mxu0
      %v1923 = vadd.f32 %v1690, %v1893
      %v1924 = vadd.f32 %v1691, %v1896
      %v1925 = vadd.f32 %v1692, %v1901
      %v1926 = vadd.f32 %v1693, %v1904
      %v1927 = vadd.f32 %v1694, %v1909
      %v1928 = vadd.f32 %v1695, %v1912
      %v1929 = vadd.f32 %v1696, %v1917
      %v1930 = vadd.f32 %v1697, %v1920
      %v1931 = vld [vmem:[%s1028] sm:$0xe]
      %v1932 = vld [vmem:[%s1028 + $0x8] sm:$0xe]
      %v1933 = vld [vmem:[%s1028 + $0x10] sm:$0xe]
      %v1934 = vld [vmem:[%s1028 + $0x18] sm:$0xe]
      %v1935 = vld [vmem:[%s1028 + $0x20] sm:$0xe]
      %v1936 = vld [vmem:[%s1028 + $0x28] sm:$0xe]
      %v1937 = vld [vmem:[%s1028 + $0x30] sm:$0xe]
      %v1938 = vld [vmem:[%s1028 + $0x38] sm:$0xe]
      %v1955 = vrot.slane %v1931, 5
      %v1956 = vrot.slane %v1955, 4
      %v1957 = vrot.slane %v1699, 5
      %v1958 = vsel %vm1439, %v1956, %v1957
      %v1959 = vrot.slane %v1932, 5
      %v1960 = vrot.slane %v1959, 4
      %v1961 = vrot.slane %v1701, 5
      %v1962 = vsel %vm1439, %v1960, %v1961
      %v1963 = vrot.slane %v1933, 5
      %v1964 = vrot.slane %v1963, 4
      %v1965 = vrot.slane %v1703, 5
      %v1966 = vsel %vm1439, %v1964, %v1965
      %v1967 = vrot.slane %v1934, 5
      %v1968 = vrot.slane %v1967, 4
      %v1969 = vrot.slane %v1705, 5
      %v1970 = vsel %vm1439, %v1968, %v1969
      %v1971 = vrot.slane %v1935, 5
      %v1972 = vrot.slane %v1971, 4
      %v1973 = vrot.slane %v1707, 5
      %v1974 = vsel %vm1439, %v1972, %v1973
      %v1975 = vrot.slane %v1936, 5
      %v1976 = vrot.slane %v1975, 4
      %v1977 = vrot.slane %v1709, 5
      %v1978 = vsel %vm1439, %v1976, %v1977
      %v1979 = vrot.slane %v1937, 5
      %v1980 = vrot.slane %v1979, 4
      %v1981 = vrot.slane %v1711, 5
      %v1982 = vsel %vm1439, %v1980, %v1981
      %v1983 = vrot.slane %v1938, 5
      %v1984 = vrot.slane %v1983, 4
      %v1985 = vrot.slane %v1713, 5
      %v1986 = vsel %vm1439, %v1984, %v1985
      %v1987 = vld [vmem:[%s3 + $0x28] sm:$0xf]
      %v1988 = vld [vmem:[%s3 + $0x2c] sm:$0xf]
      %v1989 = vunpack.c.l.b16 %v1958
      %v1990 = vunpack.c.l.b16 %v1962
      %v1991 = vunpack.c.l.b16 %v1966
      %v1992 = vunpack.c.l.b16 %v1970
      %v1993 = vunpack.c.l.b16 %v1974
      %v1994 = vunpack.c.l.b16 %v1978
      %v1995 = vunpack.c.l.b16 %v1982
      %v1996 = vunpack.c.l.b16 %v1986
      %v1997 = vpack.c.b16 %v1990, %v1989
      %v1998 = vpack.c.b16 %v1992, %v1991
      %v1999 = vpack.c.b16 %v1994, %v1993
      %v2000 = vpack.c.b16 %v1996, %v1995
      %v2003 = vunpack.c.l.b16 %v1987
      %v2004 = vunpack.c.l.b16 %v1988
      %v2005 = vpack.c.b16 %v2004, %v2003
      %v2008 = vsel %vm1232, %v1997, 0
      %v2011 = vsel %vm1232, %v1998, 0
      %v2014 = vsel %vm1232, %v1999, 0
      %v2017 = vsel %vm1232, %v2000, 0
      %2019 = vmatprep.subr.bf16.mxu0 0
      %2020 = vmatpush1.bf16.msra.mxu0 %v2005
      %2021 = vmatprep.subr.bf16.mxu0 0
      %2022 = vmatpush1.bf16.msra.mxu0 0
      %2023 = vmatprep.subr.bf16.mxu0 0
      %2024 = vmatpush1.bf16.msra.mxu0 0
      %2025 = vmatprep.subr.bf16.mxu0 0
      %2026 = vmatpush1.bf16.msra.mxu0 0
      %2027 = vmatprep.subr.bf16.mxu0 0
      %2028 = vmatpush1.bf16.msra.mxu0 0
      %2029 = vmatprep.subr.bf16.mxu0 0
      %2030 = vmatpush1.bf16.msra.mxu0 0
      %2031 = vmatprep.subr.bf16.mxu0 0
      %2032 = vmatpush1.bf16.msra.mxu0 0
      %2033 = vmatprep.subr.bf16.mxu0 0
      %2034 = vmatpush1.bf16.msra.mxu0 0
      %2035 = vmatprep.subr.bf16.mxu0 0
      %2036 = vmatpush1.bf16.msra.mxu0 0
      %2037 = vmatprep.subr.bf16.mxu0 0
      %2038 = vmatpush1.bf16.msra.mxu0 0
      %2039 = vmatprep.subr.bf16.mxu0 0
      %2040 = vmatpush1.bf16.msra.mxu0 0
      %2041 = vmatprep.subr.bf16.mxu0 0
      %2042 = vmatpush1.bf16.msra.mxu0 0
      %2043 = vmatprep.subr.bf16.mxu0 0
      %2044 = vmatpush1.bf16.msra.mxu0 0
      %2045 = vmatprep.subr.bf16.mxu0 0
      %2046 = vmatpush1.bf16.msra.mxu0 0
      %2047 = vmatprep.subr.bf16.mxu0 0
      %2048 = vmatpush1.bf16.msra.mxu0 0
      %2049 = vmatprep.subr.bf16.mxu0 0
      %2050 = vmatpush1.bf16.msra.mxu0 0
      %2051 = vmatprep.mubr.bf16.mxu0 0
      %2052 = vmatmul.mubr.bf16.gmra.mrb[0].mxu0 %v2008
      %v2053 = vpop.f32.mrb[0].mxu0
      %v2054 = vadd.f32 0.0, %v2053
      %v2055 = vpop.f32.mrb[0].mxu0
      %v2056 = vpop.f32.mrb[0].mxu0
      %v2057 = vadd.f32 0.0, %v2056
      %v2058 = vpop.f32.mrb[0].mxu0
      %2059 = vmatprep.mubr.bf16.mxu0 0
      %2060 = vmatmul.mubr.bf16.gmra.mrb[0].mxu0 %v2011
      %v2061 = vpop.f32.mrb[0].mxu0
      %v2062 = vadd.f32 0.0, %v2061
      %v2063 = vpop.f32.mrb[0].mxu0
      %v2064 = vpop.f32.mrb[0].mxu0
      %v2065 = vadd.f32 0.0, %v2064
      %v2066 = vpop.f32.mrb[0].mxu0
      %2067 = vmatprep.mubr.bf16.mxu0 0
      %2068 = vmatmul.mubr.bf16.gmra.mrb[0].mxu0 %v2014
      %v2069 = vpop.f32.mrb[0].mxu0
      %v2070 = vadd.f32 0.0, %v2069
      %v2071 = vpop.f32.mrb[0].mxu0
      %v2072 = vpop.f32.mrb[0].mxu0
      %v2073 = vadd.f32 0.0, %v2072
      %v2074 = vpop.f32.mrb[0].mxu0
      %2075 = vmatprep.mubr.bf16.mxu0 0
      %2076 = vmatmul.mubr.bf16.gmra.mrb[0].mxu0 %v2017
      %v2077 = vpop.f32.mrb[0].mxu0
      %v2078 = vadd.f32 0.0, %v2077
      %v2079 = vpop.f32.mrb[0].mxu0
      %v2080 = vpop.f32.mrb[0].mxu0
      %v2081 = vadd.f32 0.0, %v2080
      %v2082 = vpop.f32.mrb[0].mxu0
      %2083 = vdwg.mxu0
      %v2084 = vadd.f32 %v1923, %v2054
      %v2085 = vadd.f32 %v1924, %v2057
      %v2086 = vadd.f32 %v1925, %v2062
      %v2087 = vadd.f32 %v1926, %v2065
      %v2088 = vadd.f32 %v1927, %v2070
      %v2089 = vadd.f32 %v1928, %v2073
      %v2090 = vadd.f32 %v1929, %v2078
      %v2091 = vadd.f32 %v1930, %v2081
      %s2092 = scalar_lea.vmem [#allocation2], 16
      %v2093 = vld [vmem:[%s2092] sm:$0xf]
      %v2094 = vld [vmem:[%s2092 + $0x8] sm:$0xf]
      %v2095 = vld [vmem:[%s2092 + $0x10] sm:$0xf]
      %v2096 = vld [vmem:[%s2092 + $0x18] sm:$0xf]
      %v2097 = vld [vmem:[%s2092 + $0x20] sm:$0xf]
      %v2098 = vld [vmem:[%s2092 + $0x28] sm:$0xf]
      %v2099 = vld [vmem:[%s2092 + $0x30] sm:$0xf]
      %v2100 = vld [vmem:[%s2092 + $0x38] sm:$0xf]
      %v2101 = vld [vmem:[%s3 + $0x30] sm:$0xf]
      %v2102 = vld [vmem:[%s3 + $0x34] sm:$0xf]
      %v2111 = vunpack.c.l.b16 %v2093
      %v2112 = vunpack.c.l.b16 %v2094
      %v2113 = vunpack.c.l.b16 %v2095
      %v2114 = vunpack.c.l.b16 %v2096
      %v2115 = vunpack.c.l.b16 %v2097
      %v2116 = vunpack.c.l.b16 %v2098
      %v2117 = vunpack.c.l.b16 %v2099
      %v2118 = vunpack.c.l.b16 %v2100
      %v2119 = vpack.c.b16 %v2112, %v2111
      %v2120 = vpack.c.b16 %v2114, %v2113
      %v2121 = vpack.c.b16 %v2116, %v2115
      %v2122 = vpack.c.b16 %v2118, %v2117
      %v2125 = vunpack.c.l.b16 %v2101
      %v2126 = vunpack.c.l.b16 %v2102
      %v2127 = vpack.c.b16 %v2126, %v2125
      %v2130 = vsel %vm1232, %v2119, 0
      %v2133 = vsel %vm1232, %v2120, 0
      %v2136 = vsel %vm1232, %v2121, 0
      %v2139 = vsel %vm1232, %v2122, 0
      %2141 = vmatprep.subr.bf16.mxu0 0
      %2142 = vmatpush1.bf16.msra.mxu0 %v2127
      %2143 = vmatprep.subr.bf16.mxu0 0
      %2144 = vmatpush1.bf16.msra.mxu0 0
      %2145 = vmatprep.subr.bf16.mxu0 0
      %2146 = vmatpush1.bf16.msra.mxu0 0
      %2147 = vmatprep.subr.bf16.mxu0 0
      %2148 = vmatpush1.bf16.msra.mxu0 0
      %2149 = vmatprep.subr.bf16.mxu0 0
      %2150 = vmatpush1.bf16.msra.mxu0 0
      %2151 = vmatprep.subr.bf16.mxu0 0
      %2152 = vmatpush1.bf16.msra.mxu0 0
      %2153 = vmatprep.subr.bf16.mxu0 0
      %2154 = vmatpush1.bf16.msra.mxu0 0
      %2155 = vmatprep.subr.bf16.mxu0 0
      %2156 = vmatpush1.bf16.msra.mxu0 0
      %2157 = vmatprep.subr.bf16.mxu0 0
      %2158 = vmatpush1.bf16.msra.mxu0 0
      %2159 = vmatprep.subr.bf16.mxu0 0
      %2160 = vmatpush1.bf16.msra.mxu0 0
      %2161 = vmatprep.subr.bf16.mxu0 0
      %2162 = vmatpush1.bf16.msra.mxu0 0
      %2163 = vmatprep.subr.bf16.mxu0 0
      %2164 = vmatpush1.bf16.msra.mxu0 0
      %2165 = vmatprep.subr.bf16.mxu0 0
      %2166 = vmatpush1.bf16.msra.mxu0 0
      %2167 = vmatprep.subr.bf16.mxu0 0
      %2168 = vmatpush1.bf16.msra.mxu0 0
      %2169 = vmatprep.subr.bf16.mxu0 0
      %2170 = vmatpush1.bf16.msra.mxu0 0
      %2171 = vmatprep.subr.bf16.mxu0 0
      %2172 = vmatpush1.bf16.msra.mxu0 0
      %2173 = vmatprep.mubr.bf16.mxu0 0
      %2174 = vmatmul.mubr.bf16.gmra.mrb[0].mxu0 %v2130
      %v2175 = vpop.f32.mrb[0].mxu0
      %v2176 = vadd.f32 0.0, %v2175
      %v2177 = vpop.f32.mrb[0].mxu0
      %v2178 = vpop.f32.mrb[0].mxu0
      %v2179 = vadd.f32 0.0, %v2178
      %v2180 = vpop.f32.mrb[0].mxu0
      %2181 = vmatprep.mubr.bf16.mxu0 0
      %2182 = vmatmul.mubr.bf16.gmra.mrb[0].mxu0 %v2133
      %v2183 = vpop.f32.mrb[0].mxu0
      %v2184 = vadd.f32 0.0, %v2183
      %v2185 = vpop.f32.mrb[0].mxu0
      %v2186 = vpop.f32.mrb[0].mxu0
      %v2187 = vadd.f32 0.0, %v2186
      %v2188 = vpop.f32.mrb[0].mxu0
      %2189 = vmatprep.mubr.bf16.mxu0 0
      %2190 = vmatmul.mubr.bf16.gmra.mrb[0].mxu0 %v2136
      %v2191 = vpop.f32.mrb[0].mxu0
      %v2192 = vadd.f32 0.0, %v2191
      %v2193 = vpop.f32.mrb[0].mxu0
      %v2194 = vpop.f32.mrb[0].mxu0
      %v2195 = vadd.f32 0.0, %v2194
      %v2196 = vpop.f32.mrb[0].mxu0
      %2197 = vmatprep.mubr.bf16.mxu0 0
      %2198 = vmatmul.mubr.bf16.gmra.mrb[0].mxu0 %v2139
      %v2199 = vpop.f32.mrb[0].mxu0
      %v2200 = vadd.f32 0.0, %v2199
      %v2201 = vpop.f32.mrb[0].mxu0
      %v2202 = vpop.f32.mrb[0].mxu0
      %v2203 = vadd.f32 0.0, %v2202
      %v2204 = vpop.f32.mrb[0].mxu0
      %2205 = vdwg.mxu0
      %v2206 = vadd.f32 %v2084, %v2176
      %v2207 = vadd.f32 %v2085, %v2179
      %v2208 = vadd.f32 %v2086, %v2184
      %v2209 = vadd.f32 %v2087, %v2187
      %v2210 = vadd.f32 %v2088, %v2192
      %v2211 = vadd.f32 %v2089, %v2195
      %v2212 = vadd.f32 %v2090, %v2200
      %v2213 = vadd.f32 %v2091, %v2203
      %v2214 = vld [vmem:[%s2092] sm:$0xf]
      %v2215 = vld [vmem:[%s2092 + $0x4] sm:$0x1]
      %v2216 = vld [vmem:[%s2092 + $0x8] sm:$0xf]
      %v2217 = vld [vmem:[%s2092 + $0xc] sm:$0x1]
      %v2218 = vld [vmem:[%s2092 + $0x10] sm:$0xf]
      %v2219 = vld [vmem:[%s2092 + $0x14] sm:$0x1]
      %v2220 = vld [vmem:[%s2092 + $0x18] sm:$0xf]
      %v2221 = vld [vmem:[%s2092 + $0x1c] sm:$0x1]
      %v2222 = vld [vmem:[%s2092 + $0x20] sm:$0xf]
      %v2223 = vld [vmem:[%s2092 + $0x24] sm:$0x1]
      %v2224 = vld [vmem:[%s2092 + $0x28] sm:$0xf]
      %v2225 = vld [vmem:[%s2092 + $0x2c] sm:$0x1]
      %v2226 = vld [vmem:[%s2092 + $0x30] sm:$0xf]
      %v2227 = vld [vmem:[%s2092 + $0x34] sm:$0x1]
      %v2228 = vld [vmem:[%s2092 + $0x38] sm:$0xf]
      %v2229 = vld [vmem:[%s2092 + $0x3c] sm:$0x1]
      %v2231 = vshrl.u32 %v2214, 16
      %v2233 = vrot.slane %v2231, 4
      %v2234 = vshll.u32 %v2214, 16
      %v2236 = vrot.slane %v2234, 5
      %v2237 = vor.u32 %v2233, %v2236
      %v2238 = vrot.slane %v2237, 4
      %v2240 = vshll.u32 %v2215, 16
      %v2242 = vrot.slane %v2240, 5
      %v2243 = vsel %vm1099, %v2238, %v2242
      %v2245 = vshrl.u32 %v2216, 16
      %v2247 = vrot.slane %v2245, 4
      %v2248 = vshll.u32 %v2216, 16
      %v2250 = vrot.slane %v2248, 5
      %v2251 = vor.u32 %v2247, %v2250
      %v2252 = vrot.slane %v2251, 4
      %v2254 = vshll.u32 %v2217, 16
      %v2256 = vrot.slane %v2254, 5
      %v2257 = vsel %vm1099, %v2252, %v2256
      %v2259 = vshrl.u32 %v2218, 16
      %v2261 = vrot.slane %v2259, 4
      %v2262 = vshll.u32 %v2218, 16
      %v2264 = vrot.slane %v2262, 5
      %v2265 = vor.u32 %v2261, %v2264
      %v2266 = vrot.slane %v2265, 4
      %v2268 = vshll.u32 %v2219, 16
      %v2270 = vrot.slane %v2268, 5
      %v2271 = vsel %vm1099, %v2266, %v2270
      %v2273 = vshrl.u32 %v2220, 16
      %v2275 = vrot.slane %v2273, 4
      %v2276 = vshll.u32 %v2220, 16
      %v2278 = vrot.slane %v2276, 5
      %v2279 = vor.u32 %v2275, %v2278
      %v2280 = vrot.slane %v2279, 4
      %v2282 = vshll.u32 %v2221, 16
      %v2284 = vrot.slane %v2282, 5
      %v2285 = vsel %vm1099, %v2280, %v2284
      %v2287 = vshrl.u32 %v2222, 16
      %v2289 = vrot.slane %v2287, 4
      %v2290 = vshll.u32 %v2222, 16
      %v2292 = vrot.slane %v2290, 5
      %v2293 = vor.u32 %v2289, %v2292
      %v2294 = vrot.slane %v2293, 4
      %v2296 = vshll.u32 %v2223, 16
      %v2298 = vrot.slane %v2296, 5
      %v2299 = vsel %vm1099, %v2294, %v2298
      %v2301 = vshrl.u32 %v2224, 16
      %v2303 = vrot.slane %v2301, 4
      %v2304 = vshll.u32 %v2224, 16
      %v2306 = vrot.slane %v2304, 5
      %v2307 = vor.u32 %v2303, %v2306
      %v2308 = vrot.slane %v2307, 4
      %v2310 = vshll.u32 %v2225, 16
      %v2312 = vrot.slane %v2310, 5
      %v2313 = vsel %vm1099, %v2308, %v2312
      %v2315 = vshrl.u32 %v2226, 16
      %v2317 = vrot.slane %v2315, 4
      %v2318 = vshll.u32 %v2226, 16
      %v2320 = vrot.slane %v2318, 5
      %v2321 = vor.u32 %v2317, %v2320
      %v2322 = vrot.slane %v2321, 4
      %v2324 = vshll.u32 %v2227, 16
      %v2326 = vrot.slane %v2324, 5
      %v2327 = vsel %vm1099, %v2322, %v2326
      %v2329 = vshrl.u32 %v2228, 16
      %v2331 = vrot.slane %v2329, 4
      %v2332 = vshll.u32 %v2228, 16
      %v2334 = vrot.slane %v2332, 5
      %v2335 = vor.u32 %v2331, %v2334
      %v2336 = vrot.slane %v2335, 4
      %v2338 = vshll.u32 %v2229, 16
      %v2340 = vrot.slane %v2338, 5
      %v2341 = vsel %vm1099, %v2336, %v2340
      %v2342 = vld [vmem:[%s3 + $0x38] sm:$0xf]
      %v2343 = vld [vmem:[%s3 + $0x3c] sm:$0xf]
      %v2344 = vunpack.c.l.b16 %v2243
      %v2345 = vunpack.c.l.b16 %v2257
      %v2346 = vunpack.c.l.b16 %v2271
      %v2347 = vunpack.c.l.b16 %v2285
      %v2348 = vunpack.c.l.b16 %v2299
      %v2349 = vunpack.c.l.b16 %v2313
      %v2350 = vunpack.c.l.b16 %v2327
      %v2351 = vunpack.c.l.b16 %v2341
      %v2352 = vpack.c.b16 %v2345, %v2344
      %v2353 = vpack.c.b16 %v2347, %v2346
      %v2354 = vpack.c.b16 %v2349, %v2348
      %v2355 = vpack.c.b16 %v2351, %v2350
      %v2358 = vunpack.c.l.b16 %v2342
      %v2359 = vunpack.c.l.b16 %v2343
      %v2360 = vpack.c.b16 %v2359, %v2358
      %v2363 = vsel %vm1232, %v2352, 0
      %v2366 = vsel %vm1232, %v2353, 0
      %v2369 = vsel %vm1232, %v2354, 0
      %v2372 = vsel %vm1232, %v2355, 0
      %2374 = vmatprep.subr.bf16.mxu0 0
      %2375 = vmatpush1.bf16.msra.mxu0 %v2360
      %2376 = vmatprep.subr.bf16.mxu0 0
      %2377 = vmatpush1.bf16.msra.mxu0 0
      %2378 = vmatprep.subr.bf16.mxu0 0
      %2379 = vmatpush1.bf16.msra.mxu0 0
      %2380 = vmatprep.subr.bf16.mxu0 0
      %2381 = vmatpush1.bf16.msra.mxu0 0
      %2382 = vmatprep.subr.bf16.mxu0 0
      %2383 = vmatpush1.bf16.msra.mxu0 0
      %2384 = vmatprep.subr.bf16.mxu0 0
      %2385 = vmatpush1.bf16.msra.mxu0 0
      %2386 = vmatprep.subr.bf16.mxu0 0
      %2387 = vmatpush1.bf16.msra.mxu0 0
      %2388 = vmatprep.subr.bf16.mxu0 0
      %2389 = vmatpush1.bf16.msra.mxu0 0
      %2390 = vmatprep.subr.bf16.mxu0 0
      %2391 = vmatpush1.bf16.msra.mxu0 0
      %2392 = vmatprep.subr.bf16.mxu0 0
      %2393 = vmatpush1.bf16.msra.mxu0 0
      %2394 = vmatprep.subr.bf16.mxu0 0
      %2395 = vmatpush1.bf16.msra.mxu0 0
      %2396 = vmatprep.subr.bf16.mxu0 0
      %2397 = vmatpush1.bf16.msra.mxu0 0
      %2398 = vmatprep.subr.bf16.mxu0 0
      %2399 = vmatpush1.bf16.msra.mxu0 0
      %2400 = vmatprep.subr.bf16.mxu0 0
      %2401 = vmatpush1.bf16.msra.mxu0 0
      %2402 = vmatprep.subr.bf16.mxu0 0
      %2403 = vmatpush1.bf16.msra.mxu0 0
      %2404 = vmatprep.subr.bf16.mxu0 0
      %2405 = vmatpush1.bf16.msra.mxu0 0
      %2406 = vmatprep.mubr.bf16.mxu0 0
      %2407 = vmatmul.mubr.bf16.gmra.mrb[0].mxu0 %v2363
      %v2408 = vpop.f32.mrb[0].mxu0
      %v2409 = vadd.f32 0.0, %v2408
      %v2410 = vpop.f32.mrb[0].mxu0
      %v2411 = vpop.f32.mrb[0].mxu0
      %v2412 = vadd.f32 0.0, %v2411
      %v2413 = vpop.f32.mrb[0].mxu0
      %2414 = vmatprep.mubr.bf16.mxu0 0
      %2415 = vmatmul.mubr.bf16.gmra.mrb[0].mxu0 %v2366
      %v2416 = vpop.f32.mrb[0].mxu0
      %v2417 = vadd.f32 0.0, %v2416
      %v2418 = vpop.f32.mrb[0].mxu0
      %v2419 = vpop.f32.mrb[0].mxu0
      %v2420 = vadd.f32 0.0, %v2419
      %v2421 = vpop.f32.mrb[0].mxu0
      %2422 = vmatprep.mubr.bf16.mxu0 0
      %2423 = vmatmul.mubr.bf16.gmra.mrb[0].mxu0 %v2369
      %v2424 = vpop.f32.mrb[0].mxu0
      %v2425 = vadd.f32 0.0, %v2424
      %v2426 = vpop.f32.mrb[0].mxu0
      %v2427 = vpop.f32.mrb[0].mxu0
      %v2428 = vadd.f32 0.0, %v2427
      %v2429 = vpop.f32.mrb[0].mxu0
      %2430 = vmatprep.mubr.bf16.mxu0 0
      %2431 = vmatmul.mubr.bf16.gmra.mrb[0].mxu0 %v2372
      %v2432 = vpop.f32.mrb[0].mxu0
      %v2433 = vadd.f32 0.0, %v2432
      %v2434 = vpop.f32.mrb[0].mxu0
      %v2435 = vpop.f32.mrb[0].mxu0
      %v2436 = vadd.f32 0.0, %v2435
      %v2437 = vpop.f32.mrb[0].mxu0
      %2438 = vdwg.mxu0
      %v2439 = vadd.f32 %v2206, %v2409
      %v2440 = vadd.f32 %v2207, %v2412
      %v2441 = vadd.f32 %v2208, %v2417
      %v2442 = vadd.f32 %v2209, %v2420
      %v2443 = vadd.f32 %v2210, %v2425
      %v2444 = vadd.f32 %v2211, %v2428
      %v2445 = vadd.f32 %v2212, %v2433
      %v2446 = vadd.f32 %v2213, %v2436
      %v2447 = vld [vmem:[%s2092] sm:$0xe]
      %v2448 = vld [vmem:[%s2092 + $0x8] sm:$0xe]
      %v2449 = vld [vmem:[%s2092 + $0x10] sm:$0xe]
      %v2450 = vld [vmem:[%s2092 + $0x18] sm:$0xe]
      %v2451 = vld [vmem:[%s2092 + $0x20] sm:$0xe]
      %v2452 = vld [vmem:[%s2092 + $0x28] sm:$0xe]
      %v2453 = vld [vmem:[%s2092 + $0x30] sm:$0xe]
      %v2454 = vld [vmem:[%s2092 + $0x38] sm:$0xe]
      %v2471 = vrot.slane %v2447, 5
      %v2472 = vrot.slane %v2471, 4
      %v2473 = vrot.slane %v2215, 5
      %v2474 = vsel %vm1439, %v2472, %v2473
      %v2475 = vrot.slane %v2448, 5
      %v2476 = vrot.slane %v2475, 4
      %v2477 = vrot.slane %v2217, 5
      %v2478 = vsel %vm1439, %v2476, %v2477
      %v2479 = vrot.slane %v2449, 5
      %v2480 = vrot.slane %v2479, 4
      %v2481 = vrot.slane %v2219, 5
      %v2482 = vsel %vm1439, %v2480, %v2481
      %v2483 = vrot.slane %v2450, 5
      %v2484 = vrot.slane %v2483, 4
      %v2485 = vrot.slane %v2221, 5
      %v2486 = vsel %vm1439, %v2484, %v2485
      %v2487 = vrot.slane %v2451, 5
      %v2488 = vrot.slane %v2487, 4
      %v2489 = vrot.slane %v2223, 5
      %v2490 = vsel %vm1439, %v2488, %v2489
      %v2491 = vrot.slane %v2452, 5
      %v2492 = vrot.slane %v2491, 4
      %v2493 = vrot.slane %v2225, 5
      %v2494 = vsel %vm1439, %v2492, %v2493
      %v2495 = vrot.slane %v2453, 5
      %v2496 = vrot.slane %v2495, 4
      %v2497 = vrot.slane %v2227, 5
      %v2498 = vsel %vm1439, %v2496, %v2497
      %v2499 = vrot.slane %v2454, 5
      %v2500 = vrot.slane %v2499, 4
      %v2501 = vrot.slane %v2229, 5
      %v2502 = vsel %vm1439, %v2500, %v2501
      %v2503 = vld [vmem:[%s3 + $0x40] sm:$0xf]
      %v2504 = vld [vmem:[%s3 + $0x44] sm:$0xf]
      %v2505 = vunpack.c.l.b16 %v2474
      %v2506 = vunpack.c.l.b16 %v2478
      %v2507 = vunpack.c.l.b16 %v2482
      %v2508 = vunpack.c.l.b16 %v2486
      %v2509 = vunpack.c.l.b16 %v2490
      %v2510 = vunpack.c.l.b16 %v2494
      %v2511 = vunpack.c.l.b16 %v2498
      %v2512 = vunpack.c.l.b16 %v2502
      %v2513 = vpack.c.b16 %v2506, %v2505
      %v2514 = vpack.c.b16 %v2508, %v2507
      %v2515 = vpack.c.b16 %v2510, %v2509
      %v2516 = vpack.c.b16 %v2512, %v2511
      %v2519 = vunpack.c.l.b16 %v2503
      %v2520 = vunpack.c.l.b16 %v2504
      %v2521 = vpack.c.b16 %v2520, %v2519
      %v2524 = vsel %vm1232, %v2513, 0
      %v2527 = vsel %vm1232, %v2514, 0
      %v2530 = vsel %vm1232, %v2515, 0
      %v2533 = vsel %vm1232, %v2516, 0
      %2535 = vmatprep.subr.bf16.mxu0 0
      %2536 = vmatpush1.bf16.msra.mxu0 %v2521
      %2537 = vmatprep.subr.bf16.mxu0 0
      %2538 = vmatpush1.bf16.msra.mxu0 0
      %2539 = vmatprep.subr.bf16.mxu0 0
      %2540 = vmatpush1.bf16.msra.mxu0 0
      %2541 = vmatprep.subr.bf16.mxu0 0
      %2542 = vmatpush1.bf16.msra.mxu0 0
      %2543 = vmatprep.subr.bf16.mxu0 0
      %2544 = vmatpush1.bf16.msra.mxu0 0
      %2545 = vmatprep.subr.bf16.mxu0 0
      %2546 = vmatpush1.bf16.msra.mxu0 0
      %2547 = vmatprep.subr.bf16.mxu0 0
      %2548 = vmatpush1.bf16.msra.mxu0 0
      %2549 = vmatprep.subr.bf16.mxu0 0
      %2550 = vmatpush1.bf16.msra.mxu0 0
      %2551 = vmatprep.subr.bf16.mxu0 0
      %2552 = vmatpush1.bf16.msra.mxu0 0
      %2553 = vmatprep.subr.bf16.mxu0 0
      %2554 = vmatpush1.bf16.msra.mxu0 0
      %2555 = vmatprep.subr.bf16.mxu0 0
      %2556 = vmatpush1.bf16.msra.mxu0 0
      %2557 = vmatprep.subr.bf16.mxu0 0
      %2558 = vmatpush1.bf16.msra.mxu0 0
      %2559 = vmatprep.subr.bf16.mxu0 0
      %2560 = vmatpush1.bf16.msra.mxu0 0
      %2561 = vmatprep.subr.bf16.mxu0 0
      %2562 = vmatpush1.bf16.msra.mxu0 0
      %2563 = vmatprep.subr.bf16.mxu0 0
      %2564 = vmatpush1.bf16.msra.mxu0 0
      %2565 = vmatprep.subr.bf16.mxu0 0
      %2566 = vmatpush1.bf16.msra.mxu0 0
      %2567 = vmatprep.mubr.bf16.mxu0 0
      %2568 = vmatmul.mubr.bf16.gmra.mrb[0].mxu0 %v2524
      %v2569 = vpop.f32.mrb[0].mxu0
      %v2570 = vadd.f32 0.0, %v2569
      %v2571 = vpop.f32.mrb[0].mxu0
      %v2572 = vpop.f32.mrb[0].mxu0
      %v2573 = vadd.f32 0.0, %v2572
      %v2574 = vpop.f32.mrb[0].mxu0
      %2575 = vmatprep.mubr.bf16.mxu0 0
      %2576 = vmatmul.mubr.bf16.gmra.mrb[0].mxu0 %v2527
      %v2577 = vpop.f32.mrb[0].mxu0
      %v2578 = vadd.f32 0.0, %v2577
      %v2579 = vpop.f32.mrb[0].mxu0
      %v2580 = vpop.f32.mrb[0].mxu0
      %v2581 = vadd.f32 0.0, %v2580
      %v2582 = vpop.f32.mrb[0].mxu0
      %2583 = vmatprep.mubr.bf16.mxu0 0
      %2584 = vmatmul.mubr.bf16.gmra.mrb[0].mxu0 %v2530
      %v2585 = vpop.f32.mrb[0].mxu0
      %v2586 = vadd.f32 0.0, %v2585
      %v2587 = vpop.f32.mrb[0].mxu0
      %v2588 = vpop.f32.mrb[0].mxu0
      %v2589 = vadd.f32 0.0, %v2588
      %v2590 = vpop.f32.mrb[0].mxu0
      %2591 = vmatprep.mubr.bf16.mxu0 0
      %2592 = vmatmul.mubr.bf16.gmra.mrb[0].mxu0 %v2533
      %v2593 = vpop.f32.mrb[0].mxu0
      %v2594 = vadd.f32 0.0, %v2593
      %v2595 = vpop.f32.mrb[0].mxu0
      %v2596 = vpop.f32.mrb[0].mxu0
      %v2597 = vadd.f32 0.0, %v2596
      %v2598 = vpop.f32.mrb[0].mxu0
      %2599 = vdwg.mxu0
      %v2600 = vadd.f32 %v2439, %v2570
      %v2601 = vadd.f32 %v2440, %v2573
      %v2602 = vadd.f32 %v2441, %v2578
      %v2603 = vadd.f32 %v2442, %v2581
      %v2604 = vadd.f32 %v2443, %v2586
      %v2605 = vadd.f32 %v2444, %v2589
      %v2606 = vadd.f32 %v2445, %v2594
      %v2607 = vadd.f32 %v2446, %v2597
      %v2608 = vld [vmem:[%s4] sm:$0x1]
      %v2610 = vlaneseq
      %v2611 = vshrl.u32 %v2610, 7
      %v2612 = vsub.s32 0, %v2611
      %v2613 = vrot.slane %v2608, %v2612
      %v2615 = vadd.f32 %v2600, %v2613
      %v2616 = vadd.f32 %v2601, %v2613
      %v2617 = vadd.f32 %v2602, %v2613
      %v2618 = vadd.f32 %v2603, %v2613
      %v2619 = vadd.f32 %v2604, %v2613
      %v2620 = vadd.f32 %v2605, %v2613
      %v2621 = vadd.f32 %v2606, %v2613
      %v2622 = vadd.f32 %v2607, %v2613
      %v2623 = vmax.f32 %v2615, 0.0
      %v2624 = vmax.f32 %v2616, 0.0
      %v2625 = vmax.f32 %v2617, 0.0
      %v2626 = vmax.f32 %v2618, 0.0
      %v2627 = vmax.f32 %v2619, 0.0
      %v2628 = vmax.f32 %v2620, 0.0
      %v2629 = vmax.f32 %v2621, 0.0
      %v2630 = vmax.f32 %v2622, 0.0
      %v2631 = vpack.c.bf16 %v2623, %v2623
      %v2632 = vpack.c.bf16 %v2624, %v2624
      %v2633 = vpack.c.bf16 %v2625, %v2625
      %v2634 = vpack.c.bf16 %v2626, %v2626
      %v2635 = vpack.c.bf16 %v2627, %v2627
      %v2636 = vpack.c.bf16 %v2628, %v2628
      %v2637 = vpack.c.bf16 %v2629, %v2629
      %v2638 = vpack.c.bf16 %v2630, %v2630
      %v2647 = vunpack.c.l.b16 %v2631
      %v2648 = vunpack.c.l.b16 %v2632
      %v2649 = vunpack.c.l.b16 %v2633
      %v2650 = vunpack.c.l.b16 %v2634
      %v2651 = vunpack.c.l.b16 %v2635
      %v2652 = vunpack.c.l.b16 %v2636
      %v2653 = vunpack.c.l.b16 %v2637
      %v2654 = vunpack.c.l.b16 %v2638
      %v2655 = vpack.c.b16 %v2647, %v2647
      %v2656 = vpack.c.b16 %v2648, %v2648
      %v2657 = vpack.c.b16 %v2649, %v2649
      %v2658 = vpack.c.b16 %v2650, %v2650
      %v2659 = vpack.c.b16 %v2651, %v2651
      %v2660 = vpack.c.b16 %v2652, %v2652
      %v2661 = vpack.c.b16 %v2653, %v2653
      %v2662 = vpack.c.b16 %v2654, %v2654
      %v2664 = vshrl.u32 %v2655, 16
      %v2666 = vrot.slane %v2664, 7
      %v2667 = vshll.u32 %v2655, 16
      %v2669 = vor.u32 %v2666, %v2667
      %v2670 = vrot.slane %v2666, 4
      %v2672 = vshrl.u32 %v2656, 16
      %v2674 = vrot.slane %v2672, 7
      %v2675 = vshll.u32 %v2656, 16
      %v2677 = vor.u32 %v2674, %v2675
      %v2678 = vrot.slane %v2674, 4
      %v2680 = vshrl.u32 %v2657, 16
      %v2682 = vrot.slane %v2680, 7
      %v2683 = vshll.u32 %v2657, 16
      %v2685 = vor.u32 %v2682, %v2683
      %v2686 = vrot.slane %v2682, 4
      %v2688 = vshrl.u32 %v2658, 16
      %v2690 = vrot.slane %v2688, 7
      %v2691 = vshll.u32 %v2658, 16
      %v2693 = vor.u32 %v2690, %v2691
      %v2694 = vrot.slane %v2690, 4
      %v2696 = vshrl.u32 %v2659, 16
      %v2698 = vrot.slane %v2696, 7
      %v2699 = vshll.u32 %v2659, 16
      %v2701 = vor.u32 %v2698, %v2699
      %v2702 = vrot.slane %v2698, 4
      %v2704 = vshrl.u32 %v2660, 16
      %v2706 = vrot.slane %v2704, 7
      %v2707 = vshll.u32 %v2660, 16
      %v2709 = vor.u32 %v2706, %v2707
      %v2710 = vrot.slane %v2706, 4
      %v2712 = vshrl.u32 %v2661, 16
      %v2714 = vrot.slane %v2712, 7
      %v2715 = vshll.u32 %v2661, 16
      %v2717 = vor.u32 %v2714, %v2715
      %v2718 = vrot.slane %v2714, 4
      %v2720 = vshrl.u32 %v2662, 16
      %v2722 = vrot.slane %v2720, 7
      %v2723 = vshll.u32 %v2662, 16
      %v2725 = vor.u32 %v2722, %v2723
      %v2726 = vrot.slane %v2722, 4
      %s2743 = scalar_lea.vmem [#allocation3], 8
      %vm2744 = vcmask 257024
      %vm2745 = vmand %vm2744, %vm482
      %v2746 = vld [vmem:[%s2743] sm:$0xf]
      %v2747 = vsel %vm2745, %v2669, %v2746
      %2748 = vst [vmem:[%s2743] sm:$0xf] %v2747
      %v2749 = vld [vmem:[%s2743 + $0x4] sm:$0x1]
      %v2750 = vsel %vm522, %v2670, %v2749
      %2751 = vst [vmem:[%s2743 + $0x4] sm:$0x1] %v2750
      %v2752 = vld [vmem:[%s2743 + $0x8] sm:$0xf]
      %v2753 = vsel %vm2745, %v2677, %v2752
      %2754 = vst [vmem:[%s2743 + $0x8] sm:$0xf] %v2753
      %v2755 = vld [vmem:[%s2743 + $0xc] sm:$0x1]
      %v2756 = vsel %vm522, %v2678, %v2755
      %2757 = vst [vmem:[%s2743 + $0xc] sm:$0x1] %v2756
      %v2758 = vld [vmem:[%s2743 + $0x10] sm:$0xf]
      %v2759 = vsel %vm2745, %v2685, %v2758
      %2760 = vst [vmem:[%s2743 + $0x10] sm:$0xf] %v2759
      %v2761 = vld [vmem:[%s2743 + $0x14] sm:$0x1]
      %v2762 = vsel %vm522, %v2686, %v2761
      %2763 = vst [vmem:[%s2743 + $0x14] sm:$0x1] %v2762
      %v2764 = vld [vmem:[%s2743 + $0x18] sm:$0xf]
      %v2765 = vsel %vm2745, %v2693, %v2764
      %2766 = vst [vmem:[%s2743 + $0x18] sm:$0xf] %v2765
      %v2767 = vld [vmem:[%s2743 + $0x1c] sm:$0x1]
      %v2768 = vsel %vm522, %v2694, %v2767
      %2769 = vst [vmem:[%s2743 + $0x1c] sm:$0x1] %v2768
      %v2770 = vld [vmem:[%s2743 + $0x20] sm:$0xf]
      %v2771 = vsel %vm2745, %v2701, %v2770
      %2772 = vst [vmem:[%s2743 + $0x20] sm:$0xf] %v2771
      %v2773 = vld [vmem:[%s2743 + $0x24] sm:$0x1]
      %v2774 = vsel %vm522, %v2702, %v2773
      %2775 = vst [vmem:[%s2743 + $0x24] sm:$0x1] %v2774
      %v2776 = vld [vmem:[%s2743 + $0x28] sm:$0xf]
      %v2777 = vsel %vm2745, %v2709, %v2776
      %2778 = vst [vmem:[%s2743 + $0x28] sm:$0xf] %v2777
      %v2779 = vld [vmem:[%s2743 + $0x2c] sm:$0x1]
      %v2780 = vsel %vm522, %v2710, %v2779
      %2781 = vst [vmem:[%s2743 + $0x2c] sm:$0x1] %v2780
      %v2782 = vld [vmem:[%s2743 + $0x30] sm:$0xf]
      %v2783 = vsel %vm2745, %v2717, %v2782
      %2784 = vst [vmem:[%s2743 + $0x30] sm:$0xf] %v2783
      %v2785 = vld [vmem:[%s2743 + $0x34] sm:$0x1]
      %v2786 = vsel %vm522, %v2718, %v2785
      %2787 = vst [vmem:[%s2743 + $0x34] sm:$0x1] %v2786
      %v2788 = vld [vmem:[%s2743 + $0x38] sm:$0xf]
      %v2789 = vsel %vm2745, %v2725, %v2788
      %2790 = vst [vmem:[%s2743 + $0x38] sm:$0xf] %v2789
      %v2791 = vld [vmem:[%s2743 + $0x3c] sm:$0x1]
      %v2792 = vsel %vm522, %v2726, %v2791
      %2793 = vst [vmem:[%s2743 + $0x3c] sm:$0x1] %v2792
      %v2794 = vld [vmem:[#allocation3] sm:$0xf]
      %v2795 = vld [vmem:[#allocation3 + $0x8] sm:$0xf]
      %v2796 = vld [vmem:[#allocation3 + $0x10] sm:$0xf]
      %v2797 = vld [vmem:[#allocation3 + $0x18] sm:$0xf]
      %v2798 = vld [vmem:[#allocation3 + $0x20] sm:$0xf]
      %v2799 = vld [vmem:[#allocation3 + $0x28] sm:$0xf]
      %v2800 = vld [vmem:[#allocation3 + $0x30] sm:$0xf]
      %v2801 = vld [vmem:[#allocation3 + $0x38] sm:$0xf]
      %v2802 = vld [vmem:[%s5] sm:$0xf]
      %v2803 = vld [vmem:[%s5 + $0x4] sm:$0xf]
      %v2804 = vld [vmem:[%s5 + $0x8] sm:$0xf]
      %v2805 = vld [vmem:[%s5 + $0xc] sm:$0xf]
      %v2806 = vld [vmem:[#allocation3 + $0x4] sm:$0x1]
      %v2807 = vld [vmem:[#allocation3 + $0xc] sm:$0x1]
      %v2808 = vld [vmem:[#allocation3 + $0x14] sm:$0x1]
      %v2809 = vld [vmem:[#allocation3 + $0x1c] sm:$0x1]
      %v2810 = vld [vmem:[#allocation3 + $0x24] sm:$0x1]
      %v2811 = vld [vmem:[#allocation3 + $0x2c] sm:$0x1]
      %v2812 = vld [vmem:[#allocation3 + $0x34] sm:$0x1]
      %v2813 = vld [vmem:[#allocation3 + $0x3c] sm:$0x1]
      %v2815 = vshrl.u32 %v2794, 16
      %v2817 = vrot.slane %v2815, 4
      %v2818 = vshll.u32 %v2794, 16
      %v2820 = vrot.slane %v2818, 5
      %v2821 = vor.u32 %v2817, %v2820
      %v2822 = vrot.slane %v2821, 4
      %v2824 = vshll.u32 %v2806, 16
      %v2826 = vrot.slane %v2824, 5
      %v2827 = vsel %vm1099, %v2822, %v2826
      %v2829 = vshrl.u32 %v2795, 16
      %v2831 = vrot.slane %v2829, 4
      %v2832 = vshll.u32 %v2795, 16
      %v2834 = vrot.slane %v2832, 5
      %v2835 = vor.u32 %v2831, %v2834
      %v2836 = vrot.slane %v2835, 4
      %v2838 = vshll.u32 %v2807, 16
      %v2840 = vrot.slane %v2838, 5
      %v2841 = vsel %vm1099, %v2836, %v2840
      %v2843 = vshrl.u32 %v2796, 16
      %v2845 = vrot.slane %v2843, 4
      %v2846 = vshll.u32 %v2796, 16
      %v2848 = vrot.slane %v2846, 5
      %v2849 = vor.u32 %v2845, %v2848
      %v2850 = vrot.slane %v2849, 4
      %v2852 = vshll.u32 %v2808, 16
      %v2854 = vrot.slane %v2852, 5
      %v2855 = vsel %vm1099, %v2850, %v2854
      %v2857 = vshrl.u32 %v2797, 16
      %v2859 = vrot.slane %v2857, 4
      %v2860 = vshll.u32 %v2797, 16
      %v2862 = vrot.slane %v2860, 5
      %v2863 = vor.u32 %v2859, %v2862
      %v2864 = vrot.slane %v2863, 4
      %v2866 = vshll.u32 %v2809, 16
      %v2868 = vrot.slane %v2866, 5
      %v2869 = vsel %vm1099, %v2864, %v2868
      %v2871 = vshrl.u32 %v2798, 16
      %v2873 = vrot.slane %v2871, 4
      %v2874 = vshll.u32 %v2798, 16
      %v2876 = vrot.slane %v2874, 5
      %v2877 = vor.u32 %v2873, %v2876
      %v2878 = vrot.slane %v2877, 4
      %v2880 = vshll.u32 %v2810, 16
      %v2882 = vrot.slane %v2880, 5
      %v2883 = vsel %vm1099, %v2878, %v2882
      %v2885 = vshrl.u32 %v2799, 16
      %v2887 = vrot.slane %v2885, 4
      %v2888 = vshll.u32 %v2799, 16
      %v2890 = vrot.slane %v2888, 5
      %v2891 = vor.u32 %v2887, %v2890
      %v2892 = vrot.slane %v2891, 4
      %v2894 = vshll.u32 %v2811, 16
      %v2896 = vrot.slane %v2894, 5
      %v2897 = vsel %vm1099, %v2892, %v2896
      %v2899 = vshrl.u32 %v2800, 16
      %v2901 = vrot.slane %v2899, 4
      %v2902 = vshll.u32 %v2800, 16
      %v2904 = vrot.slane %v2902, 5
      %v2905 = vor.u32 %v2901, %v2904
      %v2906 = vrot.slane %v2905, 4
      %v2908 = vshll.u32 %v2812, 16
      %v2910 = vrot.slane %v2908, 5
      %v2911 = vsel %vm1099, %v2906, %v2910
      %v2913 = vshrl.u32 %v2801, 16
      %v2915 = vrot.slane %v2913, 4
      %v2916 = vshll.u32 %v2801, 16
      %v2918 = vrot.slane %v2916, 5
      %v2919 = vor.u32 %v2915, %v2918
      %v2920 = vrot.slane %v2919, 4
      %v2922 = vshll.u32 %v2813, 16
      %v2924 = vrot.slane %v2922, 5
      %v2925 = vsel %vm1099, %v2920, %v2924
      %v2926 = vld [vmem:[%s5 + $0x10] sm:$0xf]
      %v2927 = vld [vmem:[%s5 + $0x14] sm:$0xf]
      %v2928 = vld [vmem:[%s5 + $0x18] sm:$0xf]
      %v2929 = vld [vmem:[%s5 + $0x1c] sm:$0xf]
      %v2930 = vunpack.c.l.b16 %v2827
      %v2931 = vunpack.c.l.b16 %v2841
      %v2932 = vunpack.c.l.b16 %v2855
      %v2933 = vunpack.c.l.b16 %v2869
      %v2934 = vunpack.c.l.b16 %v2883
      %v2935 = vunpack.c.l.b16 %v2897
      %v2936 = vunpack.c.l.b16 %v2911
      %v2937 = vunpack.c.l.b16 %v2925
      %v2938 = vpack.c.b16 %v2931, %v2930
      %v2939 = vpack.c.b16 %v2933, %v2932
      %v2940 = vpack.c.b16 %v2935, %v2934
      %v2941 = vpack.c.b16 %v2937, %v2936
      %v2946 = vunpack.c.l.b16 %v2926
      %v2947 = vunpack.c.l.b16 %v2927
      %v2948 = vunpack.c.l.b16 %v2928
      %v2949 = vunpack.c.l.b16 %v2929
      %v2950 = vpack.c.b16 %v2947, %v2946
      %v2951 = vpack.c.b16 %v2949, %v2948
      %v2955 = vsel %vm830, %v2938, 0
      %v2958 = vsel %vm830, %v2939, 0
      %v2961 = vsel %vm830, %v2940, 0
      %v2964 = vsel %vm830, %v2941, 0
      %2966 = vmatprep.subr.bf16.mxu0 0
      %2967 = vmatpush1.bf16.msra.mxu0 %v2950
      %2968 = vmatprep.subr.bf16.mxu0 0
      %2969 = vmatpush1.bf16.msra.mxu0 %v2951
      %2970 = vmatprep.subr.bf16.mxu0 0
      %2971 = vmatpush1.bf16.msra.mxu0 0
      %2972 = vmatprep.subr.bf16.mxu0 0
      %2973 = vmatpush1.bf16.msra.mxu0 0
      %2974 = vmatprep.subr.bf16.mxu0 0
      %2975 = vmatpush1.bf16.msra.mxu0 0
      %2976 = vmatprep.subr.bf16.mxu0 0
      %2977 = vmatpush1.bf16.msra.mxu0 0
      %2978 = vmatprep.subr.bf16.mxu0 0
      %2979 = vmatpush1.bf16.msra.mxu0 0
      %2980 = vmatprep.subr.bf16.mxu0 0
      %2981 = vmatpush1.bf16.msra.mxu0 0
      %2982 = vmatprep.subr.bf16.mxu0 0
      %2983 = vmatpush1.bf16.msra.mxu0 0
      %2984 = vmatprep.subr.bf16.mxu0 0
      %2985 = vmatpush1.bf16.msra.mxu0 0
      %2986 = vmatprep.subr.bf16.mxu0 0
      %2987 = vmatpush1.bf16.msra.mxu0 0
      %2988 = vmatprep.subr.bf16.mxu0 0
      %2989 = vmatpush1.bf16.msra.mxu0 0
      %2990 = vmatprep.subr.bf16.mxu0 0
      %2991 = vmatpush1.bf16.msra.mxu0 0
      %2992 = vmatprep.subr.bf16.mxu0 0
      %2993 = vmatpush1.bf16.msra.mxu0 0
      %2994 = vmatprep.subr.bf16.mxu0 0
      %2995 = vmatpush1.bf16.msra.mxu0 0
      %2996 = vmatprep.subr.bf16.mxu0 0
      %2997 = vmatpush1.bf16.msra.mxu0 0
      %2998 = vmatprep.mubr.bf16.mxu0 0
      %2999 = vmatmul.mubr.bf16.gmra.mrb[0].mxu0 %v2955
      %v3000 = vpop.f32.mrb[0].mxu0
      %v3001 = vadd.f32 0.0, %v3000
      %v3002 = vpop.f32.mrb[0].mxu0
      %v3003 = vpop.f32.mrb[0].mxu0
      %v3004 = vadd.f32 0.0, %v3003
      %v3005 = vpop.f32.mrb[0].mxu0
      %3006 = vmatprep.mubr.bf16.mxu0 0
      %3007 = vmatmul.mubr.bf16.gmra.mrb[0].mxu0 %v2958
      %v3008 = vpop.f32.mrb[0].mxu0
      %v3009 = vadd.f32 0.0, %v3008
      %v3010 = vpop.f32.mrb[0].mxu0
      %v3011 = vpop.f32.mrb[0].mxu0
      %v3012 = vadd.f32 0.0, %v3011
      %v3013 = vpop.f32.mrb[0].mxu0
      %3014 = vmatprep.mubr.bf16.mxu0 0
      %3015 = vmatmul.mubr.bf16.gmra.mrb[0].mxu0 %v2961
      %v3016 = vpop.f32.mrb[0].mxu0
      %v3017 = vadd.f32 0.0, %v3016
      %v3018 = vpop.f32.mrb[0].mxu0
      %v3019 = vpop.f32.mrb[0].mxu0
      %v3020 = vadd.f32 0.0, %v3019
      %v3021 = vpop.f32.mrb[0].mxu0
      %3022 = vmatprep.mubr.bf16.mxu0 0
      %3023 = vmatmul.mubr.bf16.gmra.mrb[0].mxu0 %v2964
      %v3024 = vpop.f32.mrb[0].mxu0
      %v3025 = vadd.f32 0.0, %v3024
      %v3026 = vpop.f32.mrb[0].mxu0
      %v3027 = vpop.f32.mrb[0].mxu0
      %v3028 = vadd.f32 0.0, %v3027
      %v3029 = vpop.f32.mrb[0].mxu0
      %3030 = vdwg.mxu0
      %v3039 = vunpack.c.l.b16 %v2794
      %v3040 = vunpack.c.l.b16 %v2795
      %v3041 = vunpack.c.l.b16 %v2796
      %v3042 = vunpack.c.l.b16 %v2797
      %v3043 = vunpack.c.l.b16 %v2798
      %v3044 = vunpack.c.l.b16 %v2799
      %v3045 = vunpack.c.l.b16 %v2800
      %v3046 = vunpack.c.l.b16 %v2801
      %v3047 = vpack.c.b16 %v3040, %v3039
      %v3048 = vpack.c.b16 %v3042, %v3041
      %v3049 = vpack.c.b16 %v3044, %v3043
      %v3050 = vpack.c.b16 %v3046, %v3045
      %v3055 = vunpack.c.l.b16 %v2802
      %v3056 = vunpack.c.l.b16 %v2803
      %v3057 = vunpack.c.l.b16 %v2804
      %v3058 = vunpack.c.l.b16 %v2805
      %v3059 = vpack.c.b16 %v3056, %v3055
      %v3060 = vpack.c.b16 %v3058, %v3057
      %v3064 = vsel %vm830, %v3047, 0
      %v3067 = vsel %vm830, %v3048, 0
      %v3070 = vsel %vm830, %v3049, 0
      %v3073 = vsel %vm830, %v3050, 0
      %3075 = vmatprep.subr.bf16.mxu0 0
      %3076 = vmatpush1.bf16.msra.mxu0 %v3059
      %3077 = vmatprep.subr.bf16.mxu0 0
      %3078 = vmatpush1.bf16.msra.mxu0 %v3060
      %3079 = vmatprep.subr.bf16.mxu0 0
      %3080 = vmatpush1.bf16.msra.mxu0 0
      %3081 = vmatprep.subr.bf16.mxu0 0
      %3082 = vmatpush1.bf16.msra.mxu0 0
      %3083 = vmatprep.subr.bf16.mxu0 0
      %3084 = vmatpush1.bf16.msra.mxu0 0
      %3085 = vmatprep.subr.bf16.mxu0 0
      %3086 = vmatpush1.bf16.msra.mxu0 0
      %3087 = vmatprep.subr.bf16.mxu0 0
      %3088 = vmatpush1.bf16.msra.mxu0 0
      %3089 = vmatprep.subr.bf16.mxu0 0
      %3090 = vmatpush1.bf16.msra.mxu0 0
      %3091 = vmatprep.subr.bf16.mxu0 0
      %3092 = vmatpush1.bf16.msra.mxu0 0
      %3093 = vmatprep.subr.bf16.mxu0 0
      %3094 = vmatpush1.bf16.msra.mxu0 0
      %3095 = vmatprep.subr.bf16.mxu0 0
      %3096 = vmatpush1.bf16.msra.mxu0 0
      %3097 = vmatprep.subr.bf16.mxu0 0
      %3098 = vmatpush1.bf16.msra.mxu0 0
      %3099 = vmatprep.subr.bf16.mxu0 0
      %3100 = vmatpush1.bf16.msra.mxu0 0
      %3101 = vmatprep.subr.bf16.mxu0 0
      %3102 = vmatpush1.bf16.msra.mxu0 0
      %3103 = vmatprep.subr.bf16.mxu0 0
      %3104 = vmatpush1.bf16.msra.mxu0 0
      %3105 = vmatprep.subr.bf16.mxu0 0
      %3106 = vmatpush1.bf16.msra.mxu0 0
      %3107 = vmatprep.mubr.bf16.mxu0 0
      %3108 = vmatmul.mubr.bf16.gmra.mrb[0].mxu0 %v3064
      %v3109 = vpop.f32.mrb[0].mxu0
      %v3110 = vadd.f32 %v3001, %v3109
      %v3111 = vpop.f32.mrb[0].mxu0
      %v3112 = vpop.f32.mrb[0].mxu0
      %v3113 = vadd.f32 %v3004, %v3112
      %v3114 = vpop.f32.mrb[0].mxu0
      %3115 = vmatprep.mubr.bf16.mxu0 0
      %3116 = vmatmul.mubr.bf16.gmra.mrb[0].mxu0 %v3067
      %v3117 = vpop.f32.mrb[0].mxu0
      %v3118 = vadd.f32 %v3009, %v3117
      %v3119 = vpop.f32.mrb[0].mxu0
      %v3120 = vpop.f32.mrb[0].mxu0
      %v3121 = vadd.f32 %v3012, %v3120
      %v3122 = vpop.f32.mrb[0].mxu0
      %3123 = vmatprep.mubr.bf16.mxu0 0
      %3124 = vmatmul.mubr.bf16.gmra.mrb[0].mxu0 %v3070
      %v3125 = vpop.f32.mrb[0].mxu0
      %v3126 = vadd.f32 %v3017, %v3125
      %v3127 = vpop.f32.mrb[0].mxu0
      %v3128 = vpop.f32.mrb[0].mxu0
      %v3129 = vadd.f32 %v3020, %v3128
      %v3130 = vpop.f32.mrb[0].mxu0
      %3131 = vmatprep.mubr.bf16.mxu0 0
      %3132 = vmatmul.mubr.bf16.gmra.mrb[0].mxu0 %v3073
      %v3133 = vpop.f32.mrb[0].mxu0
      %v3134 = vadd.f32 %v3025, %v3133
      %v3135 = vpop.f32.mrb[0].mxu0
      %v3136 = vpop.f32.mrb[0].mxu0
      %v3137 = vadd.f32 %v3028, %v3136
      %v3138 = vpop.f32.mrb[0].mxu0
      %3139 = vdwg.mxu0
      %v3140 = vld [vmem:[#allocation3] sm:$0xe]
      %v3141 = vld [vmem:[#allocation3 + $0x8] sm:$0xe]
      %v3142 = vld [vmem:[#allocation3 + $0x10] sm:$0xe]
      %v3143 = vld [vmem:[#allocation3 + $0x18] sm:$0xe]
      %v3144 = vld [vmem:[#allocation3 + $0x20] sm:$0xe]
      %v3145 = vld [vmem:[#allocation3 + $0x28] sm:$0xe]
      %v3146 = vld [vmem:[#allocation3 + $0x30] sm:$0xe]
      %v3147 = vld [vmem:[#allocation3 + $0x38] sm:$0xe]
      %v3164 = vrot.slane %v3140, 5
      %v3165 = vrot.slane %v3164, 4
      %v3166 = vrot.slane %v2806, 5
      %v3167 = vsel %vm1439, %v3165, %v3166
      %v3168 = vrot.slane %v3141, 5
      %v3169 = vrot.slane %v3168, 4
      %v3170 = vrot.slane %v2807, 5
      %v3171 = vsel %vm1439, %v3169, %v3170
      %v3172 = vrot.slane %v3142, 5
      %v3173 = vrot.slane %v3172, 4
      %v3174 = vrot.slane %v2808, 5
      %v3175 = vsel %vm1439, %v3173, %v3174
      %v3176 = vrot.slane %v3143, 5
      %v3177 = vrot.slane %v3176, 4
      %v3178 = vrot.slane %v2809, 5
      %v3179 = vsel %vm1439, %v3177, %v3178
      %v3180 = vrot.slane %v3144, 5
      %v3181 = vrot.slane %v3180, 4
      %v3182 = vrot.slane %v2810, 5
      %v3183 = vsel %vm1439, %v3181, %v3182
      %v3184 = vrot.slane %v3145, 5
      %v3185 = vrot.slane %v3184, 4
      %v3186 = vrot.slane %v2811, 5
      %v3187 = vsel %vm1439, %v3185, %v3186
      %v3188 = vrot.slane %v3146, 5
      %v3189 = vrot.slane %v3188, 4
      %v3190 = vrot.slane %v2812, 5
      %v3191 = vsel %vm1439, %v3189, %v3190
      %v3192 = vrot.slane %v3147, 5
      %v3193 = vrot.slane %v3192, 4
      %v3194 = vrot.slane %v2813, 5
      %v3195 = vsel %vm1439, %v3193, %v3194
      %v3196 = vld [vmem:[%s5 + $0x20] sm:$0xf]
      %v3197 = vld [vmem:[%s5 + $0x24] sm:$0xf]
      %v3198 = vld [vmem:[%s5 + $0x28] sm:$0xf]
      %v3199 = vld [vmem:[%s5 + $0x2c] sm:$0xf]
      %v3200 = vunpack.c.l.b16 %v3167
      %v3201 = vunpack.c.l.b16 %v3171
      %v3202 = vunpack.c.l.b16 %v3175
      %v3203 = vunpack.c.l.b16 %v3179
      %v3204 = vunpack.c.l.b16 %v3183
      %v3205 = vunpack.c.l.b16 %v3187
      %v3206 = vunpack.c.l.b16 %v3191
      %v3207 = vunpack.c.l.b16 %v3195
      %v3208 = vpack.c.b16 %v3201, %v3200
      %v3209 = vpack.c.b16 %v3203, %v3202
      %v3210 = vpack.c.b16 %v3205, %v3204
      %v3211 = vpack.c.b16 %v3207, %v3206
      %v3216 = vunpack.c.l.b16 %v3196
      %v3217 = vunpack.c.l.b16 %v3197
      %v3218 = vunpack.c.l.b16 %v3198
      %v3219 = vunpack.c.l.b16 %v3199
      %v3220 = vpack.c.b16 %v3217, %v3216
      %v3221 = vpack.c.b16 %v3219, %v3218
      %v3225 = vsel %vm830, %v3208, 0
      %v3228 = vsel %vm830, %v3209, 0
      %v3231 = vsel %vm830, %v3210, 0
      %v3234 = vsel %vm830, %v3211, 0
      %3236 = vmatprep.subr.bf16.mxu0 0
      %3237 = vmatpush1.bf16.msra.mxu0 %v3220
      %3238 = vmatprep.subr.bf16.mxu0 0
      %3239 = vmatpush1.bf16.msra.mxu0 %v3221
      %3240 = vmatprep.subr.bf16.mxu0 0
      %3241 = vmatpush1.bf16.msra.mxu0 0
      %3242 = vmatprep.subr.bf16.mxu0 0
      %3243 = vmatpush1.bf16.msra.mxu0 0
      %3244 = vmatprep.subr.bf16.mxu0 0
      %3245 = vmatpush1.bf16.msra.mxu0 0
      %3246 = vmatprep.subr.bf16.mxu0 0
      %3247 = vmatpush1.bf16.msra.mxu0 0
      %3248 = vmatprep.subr.bf16.mxu0 0
      %3249 = vmatpush1.bf16.msra.mxu0 0
      %3250 = vmatprep.subr.bf16.mxu0 0
      %3251 = vmatpush1.bf16.msra.mxu0 0
      %3252 = vmatprep.subr.bf16.mxu0 0
      %3253 = vmatpush1.bf16.msra.mxu0 0
      %3254 = vmatprep.subr.bf16.mxu0 0
      %3255 = vmatpush1.bf16.msra.mxu0 0
      %3256 = vmatprep.subr.bf16.mxu0 0
      %3257 = vmatpush1.bf16.msra.mxu0 0
      %3258 = vmatprep.subr.bf16.mxu0 0
      %3259 = vmatpush1.bf16.msra.mxu0 0
      %3260 = vmatprep.subr.bf16.mxu0 0
      %3261 = vmatpush1.bf16.msra.mxu0 0
      %3262 = vmatprep.subr.bf16.mxu0 0
      %3263 = vmatpush1.bf16.msra.mxu0 0
      %3264 = vmatprep.subr.bf16.mxu0 0
      %3265 = vmatpush1.bf16.msra.mxu0 0
      %3266 = vmatprep.subr.bf16.mxu0 0
      %3267 = vmatpush1.bf16.msra.mxu0 0
      %3268 = vmatprep.mubr.bf16.mxu0 0
      %3269 = vmatmul.mubr.bf16.gmra.mrb[0].mxu0 %v3225
      %v3270 = vpop.f32.mrb[0].mxu0
      %v3271 = vadd.f32 0.0, %v3270
      %v3272 = vpop.f32.mrb[0].mxu0
      %v3273 = vpop.f32.mrb[0].mxu0
      %v3274 = vadd.f32 0.0, %v3273
      %v3275 = vpop.f32.mrb[0].mxu0
      %3276 = vmatprep.mubr.bf16.mxu0 0
      %3277 = vmatmul.mubr.bf16.gmra.mrb[0].mxu0 %v3228
      %v3278 = vpop.f32.mrb[0].mxu0
      %v3279 = vadd.f32 0.0, %v3278
      %v3280 = vpop.f32.mrb[0].mxu0
      %v3281 = vpop.f32.mrb[0].mxu0
      %v3282 = vadd.f32 0.0, %v3281
      %v3283 = vpop.f32.mrb[0].mxu0
      %3284 = vmatprep.mubr.bf16.mxu0 0
      %3285 = vmatmul.mubr.bf16.gmra.mrb[0].mxu0 %v3231
      %v3286 = vpop.f32.mrb[0].mxu0
      %v3287 = vadd.f32 0.0, %v3286
      %v3288 = vpop.f32.mrb[0].mxu0
      %v3289 = vpop.f32.mrb[0].mxu0
      %v3290 = vadd.f32 0.0, %v3289
      %v3291 = vpop.f32.mrb[0].mxu0
      %3292 = vmatprep.mubr.bf16.mxu0 0
      %3293 = vmatmul.mubr.bf16.gmra.mrb[0].mxu0 %v3234
      %v3294 = vpop.f32.mrb[0].mxu0
      %v3295 = vadd.f32 0.0, %v3294
      %v3296 = vpop.f32.mrb[0].mxu0
      %v3297 = vpop.f32.mrb[0].mxu0
      %v3298 = vadd.f32 0.0, %v3297
      %v3299 = vpop.f32.mrb[0].mxu0
      %3300 = vdwg.mxu0
      %v3301 = vadd.f32 %v3110, %v3271
      %v3302 = vadd.f32 %v3113, %v3274
      %v3303 = vadd.f32 %v3118, %v3279
      %v3304 = vadd.f32 %v3121, %v3282
      %v3305 = vadd.f32 %v3126, %v3287
      %v3306 = vadd.f32 %v3129, %v3290
      %v3307 = vadd.f32 %v3134, %v3295
      %v3308 = vadd.f32 %v3137, %v3298
      %v3309 = vld [vmem:[%s2743] sm:$0xf]
      %v3310 = vld [vmem:[%s2743 + $0x8] sm:$0xf]
      %v3311 = vld [vmem:[%s2743 + $0x10] sm:$0xf]
      %v3312 = vld [vmem:[%s2743 + $0x18] sm:$0xf]
      %v3313 = vld [vmem:[%s2743 + $0x20] sm:$0xf]
      %v3314 = vld [vmem:[%s2743 + $0x28] sm:$0xf]
      %v3315 = vld [vmem:[%s2743 + $0x30] sm:$0xf]
      %v3316 = vld [vmem:[%s2743 + $0x38] sm:$0xf]
      %v3317 = vld [vmem:[%s5 + $0x30] sm:$0xf]
      %v3318 = vld [vmem:[%s5 + $0x34] sm:$0xf]
      %v3319 = vld [vmem:[%s5 + $0x38] sm:$0xf]
      %v3320 = vld [vmem:[%s5 + $0x3c] sm:$0xf]
      %v3329 = vunpack.c.l.b16 %v3309
      %v3330 = vunpack.c.l.b16 %v3310
      %v3331 = vunpack.c.l.b16 %v3311
      %v3332 = vunpack.c.l.b16 %v3312
      %v3333 = vunpack.c.l.b16 %v3313
      %v3334 = vunpack.c.l.b16 %v3314
      %v3335 = vunpack.c.l.b16 %v3315
      %v3336 = vunpack.c.l.b16 %v3316
      %v3337 = vpack.c.b16 %v3330, %v3329
      %v3338 = vpack.c.b16 %v3332, %v3331
      %v3339 = vpack.c.b16 %v3334, %v3333
      %v3340 = vpack.c.b16 %v3336, %v3335
      %v3345 = vunpack.c.l.b16 %v3317
      %v3346 = vunpack.c.l.b16 %v3318
      %v3347 = vunpack.c.l.b16 %v3319
      %v3348 = vunpack.c.l.b16 %v3320
      %v3349 = vpack.c.b16 %v3346, %v3345
      %v3350 = vpack.c.b16 %v3348, %v3347
      %v3354 = vsel %vm830, %v3337, 0
      %v3357 = vsel %vm830, %v3338, 0
      %v3360 = vsel %vm830, %v3339, 0
      %v3363 = vsel %vm830, %v3340, 0
      %3365 = vmatprep.subr.bf16.mxu0 0
      %3366 = vmatpush1.bf16.msra.mxu0 %v3349
      %3367 = vmatprep.subr.bf16.mxu0 0
      %3368 = vmatpush1.bf16.msra.mxu0 %v3350
      %3369 = vmatprep.subr.bf16.mxu0 0
      %3370 = vmatpush1.bf16.msra.mxu0 0
      %3371 = vmatprep.subr.bf16.mxu0 0
      %3372 = vmatpush1.bf16.msra.mxu0 0
      %3373 = vmatprep.subr.bf16.mxu0 0
      %3374 = vmatpush1.bf16.msra.mxu0 0
      %3375 = vmatprep.subr.bf16.mxu0 0
      %3376 = vmatpush1.bf16.msra.mxu0 0
      %3377 = vmatprep.subr.bf16.mxu0 0
      %3378 = vmatpush1.bf16.msra.mxu0 0
      %3379 = vmatprep.subr.bf16.mxu0 0
      %3380 = vmatpush1.bf16.msra.mxu0 0
      %3381 = vmatprep.subr.bf16.mxu0 0
      %3382 = vmatpush1.bf16.msra.mxu0 0
      %3383 = vmatprep.subr.bf16.mxu0 0
      %3384 = vmatpush1.bf16.msra.mxu0 0
      %3385 = vmatprep.subr.bf16.mxu0 0
      %3386 = vmatpush1.bf16.msra.mxu0 0
      %3387 = vmatprep.subr.bf16.mxu0 0
      %3388 = vmatpush1.bf16.msra.mxu0 0
      %3389 = vmatprep.subr.bf16.mxu0 0
      %3390 = vmatpush1.bf16.msra.mxu0 0
      %3391 = vmatprep.subr.bf16.mxu0 0
      %3392 = vmatpush1.bf16.msra.mxu0 0
      %3393 = vmatprep.subr.bf16.mxu0 0
      %3394 = vmatpush1.bf16.msra.mxu0 0
      %3395 = vmatprep.subr.bf16.mxu0 0
      %3396 = vmatpush1.bf16.msra.mxu0 0
      %3397 = vmatprep.mubr.bf16.mxu0 0
      %3398 = vmatmul.mubr.bf16.gmra.mrb[0].mxu0 %v3354
      %v3399 = vpop.f32.mrb[0].mxu0
      %v3400 = vadd.f32 0.0, %v3399
      %v3401 = vpop.f32.mrb[0].mxu0
      %v3402 = vpop.f32.mrb[0].mxu0
      %v3403 = vadd.f32 0.0, %v3402
      %v3404 = vpop.f32.mrb[0].mxu0
      %3405 = vmatprep.mubr.bf16.mxu0 0
      %3406 = vmatmul.mubr.bf16.gmra.mrb[0].mxu0 %v3357
      %v3407 = vpop.f32.mrb[0].mxu0
      %v3408 = vadd.f32 0.0, %v3407
      %v3409 = vpop.f32.mrb[0].mxu0
      %v3410 = vpop.f32.mrb[0].mxu0
      %v3411 = vadd.f32 0.0, %v3410
      %v3412 = vpop.f32.mrb[0].mxu0
      %3413 = vmatprep.mubr.bf16.mxu0 0
      %3414 = vmatmul.mubr.bf16.gmra.mrb[0].mxu0 %v3360
      %v3415 = vpop.f32.mrb[0].mxu0
      %v3416 = vadd.f32 0.0, %v3415
      %v3417 = vpop.f32.mrb[0].mxu0
      %v3418 = vpop.f32.mrb[0].mxu0
      %v3419 = vadd.f32 0.0, %v3418
      %v3420 = vpop.f32.mrb[0].mxu0
      %3421 = vmatprep.mubr.bf16.mxu0 0
      %3422 = vmatmul.mubr.bf16.gmra.mrb[0].mxu0 %v3363
      %v3423 = vpop.f32.mrb[0].mxu0
      %v3424 = vadd.f32 0.0, %v3423
      %v3425 = vpop.f32.mrb[0].mxu0
      %v3426 = vpop.f32.mrb[0].mxu0
      %v3427 = vadd.f32 0.0, %v3426
      %v3428 = vpop.f32.mrb[0].mxu0
      %3429 = vdwg.mxu0
      %v3430 = vadd.f32 %v3301, %v3400
      %v3431 = vadd.f32 %v3302, %v3403
      %v3432 = vadd.f32 %v3303, %v3408
      %v3433 = vadd.f32 %v3304, %v3411
      %v3434 = vadd.f32 %v3305, %v3416
      %v3435 = vadd.f32 %v3306, %v3419
      %v3436 = vadd.f32 %v3307, %v3424
      %v3437 = vadd.f32 %v3308, %v3427
      %v3438 = vld [vmem:[%s2743] sm:$0xf]
      %v3439 = vld [vmem:[%s2743 + $0x4] sm:$0x1]
      %v3440 = vld [vmem:[%s2743 + $0x8] sm:$0xf]
      %v3441 = vld [vmem:[%s2743 + $0xc] sm:$0x1]
      %v3442 = vld [vmem:[%s2743 + $0x10] sm:$0xf]
      %v3443 = vld [vmem:[%s2743 + $0x14] sm:$0x1]
      %v3444 = vld [vmem:[%s2743 + $0x18] sm:$0xf]
      %v3445 = vld [vmem:[%s2743 + $0x1c] sm:$0x1]
      %v3446 = vld [vmem:[%s2743 + $0x20] sm:$0xf]
      %v3447 = vld [vmem:[%s2743 + $0x24] sm:$0x1]
      %v3448 = vld [vmem:[%s2743 + $0x28] sm:$0xf]
      %v3449 = vld [vmem:[%s2743 + $0x2c] sm:$0x1]
      %v3450 = vld [vmem:[%s2743 + $0x30] sm:$0xf]
      %v3451 = vld [vmem:[%s2743 + $0x34] sm:$0x1]
      %v3452 = vld [vmem:[%s2743 + $0x38] sm:$0xf]
      %v3453 = vld [vmem:[%s2743 + $0x3c] sm:$0x1]
      %v3455 = vshrl.u32 %v3438, 16
      %v3457 = vrot.slane %v3455, 4
      %v3458 = vshll.u32 %v3438, 16
      %v3460 = vrot.slane %v3458, 5
      %v3461 = vor.u32 %v3457, %v3460
      %v3462 = vrot.slane %v3461, 4
      %v3464 = vshll.u32 %v3439, 16
      %v3466 = vrot.slane %v3464, 5
      %v3467 = vsel %vm1099, %v3462, %v3466
      %v3469 = vshrl.u32 %v3440, 16
      %v3471 = vrot.slane %v3469, 4
      %v3472 = vshll.u32 %v3440, 16
      %v3474 = vrot.slane %v3472, 5
      %v3475 = vor.u32 %v3471, %v3474
      %v3476 = vrot.slane %v3475, 4
      %v3478 = vshll.u32 %v3441, 16
      %v3480 = vrot.slane %v3478, 5
      %v3481 = vsel %vm1099, %v3476, %v3480
      %v3483 = vshrl.u32 %v3442, 16
      %v3485 = vrot.slane %v3483, 4
      %v3486 = vshll.u32 %v3442, 16
      %v3488 = vrot.slane %v3486, 5
      %v3489 = vor.u32 %v3485, %v3488
      %v3490 = vrot.slane %v3489, 4
      %v3492 = vshll.u32 %v3443, 16
      %v3494 = vrot.slane %v3492, 5
      %v3495 = vsel %vm1099, %v3490, %v3494
      %v3497 = vshrl.u32 %v3444, 16
      %v3499 = vrot.slane %v3497, 4
      %v3500 = vshll.u32 %v3444, 16
      %v3502 = vrot.slane %v3500, 5
      %v3503 = vor.u32 %v3499, %v3502
      %v3504 = vrot.slane %v3503, 4
      %v3506 = vshll.u32 %v3445, 16
      %v3508 = vrot.slane %v3506, 5
      %v3509 = vsel %vm1099, %v3504, %v3508
      %v3511 = vshrl.u32 %v3446, 16
      %v3513 = vrot.slane %v3511, 4
      %v3514 = vshll.u32 %v3446, 16
      %v3516 = vrot.slane %v3514, 5
      %v3517 = vor.u32 %v3513, %v3516
      %v3518 = vrot.slane %v3517, 4
      %v3520 = vshll.u32 %v3447, 16
      %v3522 = vrot.slane %v3520, 5
      %v3523 = vsel %vm1099, %v3518, %v3522
      %v3525 = vshrl.u32 %v3448, 16
      %v3527 = vrot.slane %v3525, 4
      %v3528 = vshll.u32 %v3448, 16
      %v3530 = vrot.slane %v3528, 5
      %v3531 = vor.u32 %v3527, %v3530
      %v3532 = vrot.slane %v3531, 4
      %v3534 = vshll.u32 %v3449, 16
      %v3536 = vrot.slane %v3534, 5
      %v3537 = vsel %vm1099, %v3532, %v3536
      %v3539 = vshrl.u32 %v3450, 16
      %v3541 = vrot.slane %v3539, 4
      %v3542 = vshll.u32 %v3450, 16
      %v3544 = vrot.slane %v3542, 5
      %v3545 = vor.u32 %v3541, %v3544
      %v3546 = vrot.slane %v3545, 4
      %v3548 = vshll.u32 %v3451, 16
      %v3550 = vrot.slane %v3548, 5
      %v3551 = vsel %vm1099, %v3546, %v3550
      %v3553 = vshrl.u32 %v3452, 16
      %v3555 = vrot.slane %v3553, 4
      %v3556 = vshll.u32 %v3452, 16
      %v3558 = vrot.slane %v3556, 5
      %v3559 = vor.u32 %v3555, %v3558
      %v3560 = vrot.slane %v3559, 4
      %v3562 = vshll.u32 %v3453, 16
      %v3564 = vrot.slane %v3562, 5
      %v3565 = vsel %vm1099, %v3560, %v3564
      %v3566 = vld [vmem:[%s5 + $0x40] sm:$0xf]
      %v3567 = vld [vmem:[%s5 + $0x44] sm:$0xf]
      %v3568 = vld [vmem:[%s5 + $0x48] sm:$0xf]
      %v3569 = vld [vmem:[%s5 + $0x4c] sm:$0xf]
      %v3570 = vunpack.c.l.b16 %v3467
      %v3571 = vunpack.c.l.b16 %v3481
      %v3572 = vunpack.c.l.b16 %v3495
      %v3573 = vunpack.c.l.b16 %v3509
      %v3574 = vunpack.c.l.b16 %v3523
      %v3575 = vunpack.c.l.b16 %v3537
      %v3576 = vunpack.c.l.b16 %v3551
      %v3577 = vunpack.c.l.b16 %v3565
      %v3578 = vpack.c.b16 %v3571, %v3570
      %v3579 = vpack.c.b16 %v3573, %v3572
      %v3580 = vpack.c.b16 %v3575, %v3574
      %v3581 = vpack.c.b16 %v3577, %v3576
      %v3586 = vunpack.c.l.b16 %v3566
      %v3587 = vunpack.c.l.b16 %v3567
      %v3588 = vunpack.c.l.b16 %v3568
      %v3589 = vunpack.c.l.b16 %v3569
      %v3590 = vpack.c.b16 %v3587, %v3586
      %v3591 = vpack.c.b16 %v3589, %v3588
      %v3595 = vsel %vm830, %v3578, 0
      %v3598 = vsel %vm830, %v3579, 0
      %v3601 = vsel %vm830, %v3580, 0
      %v3604 = vsel %vm830, %v3581, 0
      %3606 = vmatprep.subr.bf16.mxu0 0
      %3607 = vmatpush1.bf16.msra.mxu0 %v3590
      %3608 = vmatprep.subr.bf16.mxu0 0
      %3609 = vmatpush1.bf16.msra.mxu0 %v3591
      %3610 = vmatprep.subr.bf16.mxu0 0
      %3611 = vmatpush1.bf16.msra.mxu0 0
      %3612 = vmatprep.subr.bf16.mxu0 0
      %3613 = vmatpush1.bf16.msra.mxu0 0
      %3614 = vmatprep.subr.bf16.mxu0 0
      %3615 = vmatpush1.bf16.msra.mxu0 0
      %3616 = vmatprep.subr.bf16.mxu0 0
      %3617 = vmatpush1.bf16.msra.mxu0 0
      %3618 = vmatprep.subr.bf16.mxu0 0
      %3619 = vmatpush1.bf16.msra.mxu0 0
      %3620 = vmatprep.subr.bf16.mxu0 0
      %3621 = vmatpush1.bf16.msra.mxu0 0
      %3622 = vmatprep.subr.bf16.mxu0 0
      %3623 = vmatpush1.bf16.msra.mxu0 0
      %3624 = vmatprep.subr.bf16.mxu0 0
      %3625 = vmatpush1.bf16.msra.mxu0 0
      %3626 = vmatprep.subr.bf16.mxu0 0
      %3627 = vmatpush1.bf16.msra.mxu0 0
      %3628 = vmatprep.subr.bf16.mxu0 0
      %3629 = vmatpush1.bf16.msra.mxu0 0
      %3630 = vmatprep.subr.bf16.mxu0 0
      %3631 = vmatpush1.bf16.msra.mxu0 0
      %3632 = vmatprep.subr.bf16.mxu0 0
      %3633 = vmatpush1.bf16.msra.mxu0 0
      %3634 = vmatprep.subr.bf16.mxu0 0
      %3635 = vmatpush1.bf16.msra.mxu0 0
      %3636 = vmatprep.subr.bf16.mxu0 0
      %3637 = vmatpush1.bf16.msra.mxu0 0
      %3638 = vmatprep.mubr.bf16.mxu0 0
      %3639 = vmatmul.mubr.bf16.gmra.mrb[0].mxu0 %v3595
      %v3640 = vpop.f32.mrb[0].mxu0
      %v3641 = vadd.f32 0.0, %v3640
      %v3642 = vpop.f32.mrb[0].mxu0
      %v3643 = vpop.f32.mrb[0].mxu0
      %v3644 = vadd.f32 0.0, %v3643
      %v3645 = vpop.f32.mrb[0].mxu0
      %3646 = vmatprep.mubr.bf16.mxu0 0
      %3647 = vmatmul.mubr.bf16.gmra.mrb[0].mxu0 %v3598
      %v3648 = vpop.f32.mrb[0].mxu0
      %v3649 = vadd.f32 0.0, %v3648
      %v3650 = vpop.f32.mrb[0].mxu0
      %v3651 = vpop.f32.mrb[0].mxu0
      %v3652 = vadd.f32 0.0, %v3651
      %v3653 = vpop.f32.mrb[0].mxu0
      %3654 = vmatprep.mubr.bf16.mxu0 0
      %3655 = vmatmul.mubr.bf16.gmra.mrb[0].mxu0 %v3601
      %v3656 = vpop.f32.mrb[0].mxu0
      %v3657 = vadd.f32 0.0, %v3656
      %v3658 = vpop.f32.mrb[0].mxu0
      %v3659 = vpop.f32.mrb[0].mxu0
      %v3660 = vadd.f32 0.0, %v3659
      %v3661 = vpop.f32.mrb[0].mxu0
      %3662 = vmatprep.mubr.bf16.mxu0 0
      %3663 = vmatmul.mubr.bf16.gmra.mrb[0].mxu0 %v3604
      %v3664 = vpop.f32.mrb[0].mxu0
      %v3665 = vadd.f32 0.0, %v3664
      %v3666 = vpop.f32.mrb[0].mxu0
      %v3667 = vpop.f32.mrb[0].mxu0
      %v3668 = vadd.f32 0.0, %v3667
      %v3669 = vpop.f32.mrb[0].mxu0
      %3670 = vdwg.mxu0
      %v3671 = vadd.f32 %v3430, %v3641
      %v3672 = vadd.f32 %v3431, %v3644
      %v3673 = vadd.f32 %v3432, %v3649
      %v3674 = vadd.f32 %v3433, %v3652
      %v3675 = vadd.f32 %v3434, %v3657
      %v3676 = vadd.f32 %v3435, %v3660
      %v3677 = vadd.f32 %v3436, %v3665
      %v3678 = vadd.f32 %v3437, %v3668
      %v3679 = vld [vmem:[%s2743] sm:$0xe]
      %v3680 = vld [vmem:[%s2743 + $0x8] sm:$0xe]
      %v3681 = vld [vmem:[%s2743 + $0x10] sm:$0xe]
      %v3682 = vld [vmem:[%s2743 + $0x18] sm:$0xe]
      %v3683 = vld [vmem:[%s2743 + $0x20] sm:$0xe]
      %v3684 = vld [vmem:[%s2743 + $0x28] sm:$0xe]
      %v3685 = vld [vmem:[%s2743 + $0x30] sm:$0xe]
      %v3686 = vld [vmem:[%s2743 + $0x38] sm:$0xe]
      %v3703 = vrot.slane %v3679, 5
      %v3704 = vrot.slane %v3703, 4
      %v3705 = vrot.slane %v3439, 5
      %v3706 = vsel %vm1439, %v3704, %v3705
      %v3707 = vrot.slane %v3680, 5
      %v3708 = vrot.slane %v3707, 4
      %v3709 = vrot.slane %v3441, 5
      %v3710 = vsel %vm1439, %v3708, %v3709
      %v3711 = vrot.slane %v3681, 5
      %v3712 = vrot.slane %v3711, 4
      %v3713 = vrot.slane %v3443, 5
      %v3714 = vsel %vm1439, %v3712, %v3713
      %v3715 = vrot.slane %v3682, 5
      %v3716 = vrot.slane %v3715, 4
      %v3717 = vrot.slane %v3445, 5
      %v3718 = vsel %vm1439, %v3716, %v3717
      %v3719 = vrot.slane %v3683, 5
      %v3720 = vrot.slane %v3719, 4
      %v3721 = vrot.slane %v3447, 5
      %v3722 = vsel %vm1439, %v3720, %v3721
      %v3723 = vrot.slane %v3684, 5
      %v3724 = vrot.slane %v3723, 4
      %v3725 = vrot.slane %v3449, 5
      %v3726 = vsel %vm1439, %v3724, %v3725
      %v3727 = vrot.slane %v3685, 5
      %v3728 = vrot.slane %v3727, 4
      %v3729 = vrot.slane %v3451, 5
      %v3730 = vsel %vm1439, %v3728, %v3729
      %v3731 = vrot.slane %v3686, 5
      %v3732 = vrot.slane %v3731, 4
      %v3733 = vrot.slane %v3453, 5
      %v3734 = vsel %vm1439, %v3732, %v3733
      %v3735 = vld [vmem:[%s5 + $0x50] sm:$0xf]
      %v3736 = vld [vmem:[%s5 + $0x54] sm:$0xf]
      %v3737 = vld [vmem:[%s5 + $0x58] sm:$0xf]
      %v3738 = vld [vmem:[%s5 + $0x5c] sm:$0xf]
      %v3739 = vunpack.c.l.b16 %v3706
      %v3740 = vunpack.c.l.b16 %v3710
      %v3741 = vunpack.c.l.b16 %v3714
      %v3742 = vunpack.c.l.b16 %v3718
      %v3743 = vunpack.c.l.b16 %v3722
      %v3744 = vunpack.c.l.b16 %v3726
      %v3745 = vunpack.c.l.b16 %v3730
      %v3746 = vunpack.c.l.b16 %v3734
      %v3747 = vpack.c.b16 %v3740, %v3739
      %v3748 = vpack.c.b16 %v3742, %v3741
      %v3749 = vpack.c.b16 %v3744, %v3743
      %v3750 = vpack.c.b16 %v3746, %v3745
      %v3755 = vunpack.c.l.b16 %v3735
      %v3756 = vunpack.c.l.b16 %v3736
      %v3757 = vunpack.c.l.b16 %v3737
      %v3758 = vunpack.c.l.b16 %v3738
      %v3759 = vpack.c.b16 %v3756, %v3755
      %v3760 = vpack.c.b16 %v3758, %v3757
      %v3764 = vsel %vm830, %v3747, 0
      %v3767 = vsel %vm830, %v3748, 0
      %v3770 = vsel %vm830, %v3749, 0
      %v3773 = vsel %vm830, %v3750, 0
      %3775 = vmatprep.subr.bf16.mxu0 0
      %3776 = vmatpush1.bf16.msra.mxu0 %v3759
      %3777 = vmatprep.subr.bf16.mxu0 0
      %3778 = vmatpush1.bf16.msra.mxu0 %v3760
      %3779 = vmatprep.subr.bf16.mxu0 0
      %3780 = vmatpush1.bf16.msra.mxu0 0
      %3781 = vmatprep.subr.bf16.mxu0 0
      %3782 = vmatpush1.bf16.msra.mxu0 0
      %3783 = vmatprep.subr.bf16.mxu0 0
      %3784 = vmatpush1.bf16.msra.mxu0 0
      %3785 = vmatprep.subr.bf16.mxu0 0
      %3786 = vmatpush1.bf16.msra.mxu0 0
      %3787 = vmatprep.subr.bf16.mxu0 0
      %3788 = vmatpush1.bf16.msra.mxu0 0
      %3789 = vmatprep.subr.bf16.mxu0 0
      %3790 = vmatpush1.bf16.msra.mxu0 0
      %3791 = vmatprep.subr.bf16.mxu0 0
      %3792 = vmatpush1.bf16.msra.mxu0 0
      %3793 = vmatprep.subr.bf16.mxu0 0
      %3794 = vmatpush1.bf16.msra.mxu0 0
      %3795 = vmatprep.subr.bf16.mxu0 0
      %3796 = vmatpush1.bf16.msra.mxu0 0
      %3797 = vmatprep.subr.bf16.mxu0 0
      %3798 = vmatpush1.bf16.msra.mxu0 0
      %3799 = vmatprep.subr.bf16.mxu0 0
      %3800 = vmatpush1.bf16.msra.mxu0 0
      %3801 = vmatprep.subr.bf16.mxu0 0
      %3802 = vmatpush1.bf16.msra.mxu0 0
      %3803 = vmatprep.subr.bf16.mxu0 0
      %3804 = vmatpush1.bf16.msra.mxu0 0
      %3805 = vmatprep.subr.bf16.mxu0 0
      %3806 = vmatpush1.bf16.msra.mxu0 0
      %3807 = vmatprep.mubr.bf16.mxu0 0
      %3808 = vmatmul.mubr.bf16.gmra.mrb[0].mxu0 %v3764
      %v3809 = vpop.f32.mrb[0].mxu0
      %v3810 = vadd.f32 0.0, %v3809
      %v3811 = vpop.f32.mrb[0].mxu0
      %v3812 = vpop.f32.mrb[0].mxu0
      %v3813 = vadd.f32 0.0, %v3812
      %v3814 = vpop.f32.mrb[0].mxu0
      %3815 = vmatprep.mubr.bf16.mxu0 0
      %3816 = vmatmul.mubr.bf16.gmra.mrb[0].mxu0 %v3767
      %v3817 = vpop.f32.mrb[0].mxu0
      %v3818 = vadd.f32 0.0, %v3817
      %v3819 = vpop.f32.mrb[0].mxu0
      %v3820 = vpop.f32.mrb[0].mxu0
      %v3821 = vadd.f32 0.0, %v3820
      %v3822 = vpop.f32.mrb[0].mxu0
      %3823 = vmatprep.mubr.bf16.mxu0 0
      %3824 = vmatmul.mubr.bf16.gmra.mrb[0].mxu0 %v3770
      %v3825 = vpop.f32.mrb[0].mxu0
      %v3826 = vadd.f32 0.0, %v3825
      %v3827 = vpop.f32.mrb[0].mxu0
      %v3828 = vpop.f32.mrb[0].mxu0
      %v3829 = vadd.f32 0.0, %v3828
      %v3830 = vpop.f32.mrb[0].mxu0
      %3831 = vmatprep.mubr.bf16.mxu0 0
      %3832 = vmatmul.mubr.bf16.gmra.mrb[0].mxu0 %v3773
      %v3833 = vpop.f32.mrb[0].mxu0
      %v3834 = vadd.f32 0.0, %v3833
      %v3835 = vpop.f32.mrb[0].mxu0
      %v3836 = vpop.f32.mrb[0].mxu0
      %v3837 = vadd.f32 0.0, %v3836
      %v3838 = vpop.f32.mrb[0].mxu0
      %3839 = vdwg.mxu0
      %v3840 = vadd.f32 %v3671, %v3810
      %v3841 = vadd.f32 %v3672, %v3813
      %v3842 = vadd.f32 %v3673, %v3818
      %v3843 = vadd.f32 %v3674, %v3821
      %v3844 = vadd.f32 %v3675, %v3826
      %v3845 = vadd.f32 %v3676, %v3829
      %v3846 = vadd.f32 %v3677, %v3834
      %v3847 = vadd.f32 %v3678, %v3837
      %s3848 = scalar_lea.vmem [#allocation3], 16
      %v3849 = vld [vmem:[%s3848] sm:$0xf]
      %v3850 = vld [vmem:[%s3848 + $0x8] sm:$0xf]
      %v3851 = vld [vmem:[%s3848 + $0x10] sm:$0xf]
      %v3852 = vld [vmem:[%s3848 + $0x18] sm:$0xf]
      %v3853 = vld [vmem:[%s3848 + $0x20] sm:$0xf]
      %v3854 = vld [vmem:[%s3848 + $0x28] sm:$0xf]
      %v3855 = vld [vmem:[%s3848 + $0x30] sm:$0xf]
      %v3856 = vld [vmem:[%s3848 + $0x38] sm:$0xf]
      %v3857 = vld [vmem:[%s5 + $0x60] sm:$0xf]
      %v3858 = vld [vmem:[%s5 + $0x64] sm:$0xf]
      %v3859 = vld [vmem:[%s5 + $0x68] sm:$0xf]
      %v3860 = vld [vmem:[%s5 + $0x6c] sm:$0xf]
      %v3869 = vunpack.c.l.b16 %v3849
      %v3870 = vunpack.c.l.b16 %v3850
      %v3871 = vunpack.c.l.b16 %v3851
      %v3872 = vunpack.c.l.b16 %v3852
      %v3873 = vunpack.c.l.b16 %v3853
      %v3874 = vunpack.c.l.b16 %v3854
      %v3875 = vunpack.c.l.b16 %v3855
      %v3876 = vunpack.c.l.b16 %v3856
      %v3877 = vpack.c.b16 %v3870, %v3869
      %v3878 = vpack.c.b16 %v3872, %v3871
      %v3879 = vpack.c.b16 %v3874, %v3873
      %v3880 = vpack.c.b16 %v3876, %v3875
      %v3885 = vunpack.c.l.b16 %v3857
      %v3886 = vunpack.c.l.b16 %v3858
      %v3887 = vunpack.c.l.b16 %v3859
      %v3888 = vunpack.c.l.b16 %v3860
      %v3889 = vpack.c.b16 %v3886, %v3885
      %v3890 = vpack.c.b16 %v3888, %v3887
      %v3894 = vsel %vm830, %v3877, 0
      %v3897 = vsel %vm830, %v3878, 0
      %v3900 = vsel %vm830, %v3879, 0
      %v3903 = vsel %vm830, %v3880, 0
      %3905 = vmatprep.subr.bf16.mxu0 0
      %3906 = vmatpush1.bf16.msra.mxu0 %v3889
      %3907 = vmatprep.subr.bf16.mxu0 0
      %3908 = vmatpush1.bf16.msra.mxu0 %v3890
      %3909 = vmatprep.subr.bf16.mxu0 0
      %3910 = vmatpush1.bf16.msra.mxu0 0
      %3911 = vmatprep.subr.bf16.mxu0 0
      %3912 = vmatpush1.bf16.msra.mxu0 0
      %3913 = vmatprep.subr.bf16.mxu0 0
      %3914 = vmatpush1.bf16.msra.mxu0 0
      %3915 = vmatprep.subr.bf16.mxu0 0
      %3916 = vmatpush1.bf16.msra.mxu0 0
      %3917 = vmatprep.subr.bf16.mxu0 0
      %3918 = vmatpush1.bf16.msra.mxu0 0
      %3919 = vmatprep.subr.bf16.mxu0 0
      %3920 = vmatpush1.bf16.msra.mxu0 0
      %3921 = vmatprep.subr.bf16.mxu0 0
      %3922 = vmatpush1.bf16.msra.mxu0 0
      %3923 = vmatprep.subr.bf16.mxu0 0
      %3924 = vmatpush1.bf16.msra.mxu0 0
      %3925 = vmatprep.subr.bf16.mxu0 0
      %3926 = vmatpush1.bf16.msra.mxu0 0
      %3927 = vmatprep.subr.bf16.mxu0 0
      %3928 = vmatpush1.bf16.msra.mxu0 0
      %3929 = vmatprep.subr.bf16.mxu0 0
      %3930 = vmatpush1.bf16.msra.mxu0 0
      %3931 = vmatprep.subr.bf16.mxu0 0
      %3932 = vmatpush1.bf16.msra.mxu0 0
      %3933 = vmatprep.subr.bf16.mxu0 0
      %3934 = vmatpush1.bf16.msra.mxu0 0
      %3935 = vmatprep.subr.bf16.mxu0 0
      %3936 = vmatpush1.bf16.msra.mxu0 0
      %3937 = vmatprep.mubr.bf16.mxu0 0
      %3938 = vmatmul.mubr.bf16.gmra.mrb[0].mxu0 %v3894
      %v3939 = vpop.f32.mrb[0].mxu0
      %v3940 = vadd.f32 0.0, %v3939
      %v3941 = vpop.f32.mrb[0].mxu0
      %v3942 = vpop.f32.mrb[0].mxu0
      %v3943 = vadd.f32 0.0, %v3942
      %v3944 = vpop.f32.mrb[0].mxu0
      %3945 = vmatprep.mubr.bf16.mxu0 0
      %3946 = vmatmul.mubr.bf16.gmra.mrb[0].mxu0 %v3897
      %v3947 = vpop.f32.mrb[0].mxu0
      %v3948 = vadd.f32 0.0, %v3947
      %v3949 = vpop.f32.mrb[0].mxu0
      %v3950 = vpop.f32.mrb[0].mxu0
      %v3951 = vadd.f32 0.0, %v3950
      %v3952 = vpop.f32.mrb[0].mxu0
      %3953 = vmatprep.mubr.bf16.mxu0 0
      %3954 = vmatmul.mubr.bf16.gmra.mrb[0].mxu0 %v3900
      %v3955 = vpop.f32.mrb[0].mxu0
      %v3956 = vadd.f32 0.0, %v3955
      %v3957 = vpop.f32.mrb[0].mxu0
      %v3958 = vpop.f32.mrb[0].mxu0
      %v3959 = vadd.f32 0.0, %v3958
      %v3960 = vpop.f32.mrb[0].mxu0
      %3961 = vmatprep.mubr.bf16.mxu0 0
      %3962 = vmatmul.mubr.bf16.gmra.mrb[0].mxu0 %v3903
      %v3963 = vpop.f32.mrb[0].mxu0
      %v3964 = vadd.f32 0.0, %v3963
      %v3965 = vpop.f32.mrb[0].mxu0
      %v3966 = vpop.f32.mrb[0].mxu0
      %v3967 = vadd.f32 0.0, %v3966
      %v3968 = vpop.f32.mrb[0].mxu0
      %3969 = vdwg.mxu0
      %v3970 = vadd.f32 %v3840, %v3940
      %v3971 = vadd.f32 %v3841, %v3943
      %v3972 = vadd.f32 %v3842, %v3948
      %v3973 = vadd.f32 %v3843, %v3951
      %v3974 = vadd.f32 %v3844, %v3956
      %v3975 = vadd.f32 %v3845, %v3959
      %v3976 = vadd.f32 %v3846, %v3964
      %v3977 = vadd.f32 %v3847, %v3967
      %v3978 = vld [vmem:[%s3848] sm:$0xf]
      %v3979 = vld [vmem:[%s3848 + $0x4] sm:$0x1]
      %v3980 = vld [vmem:[%s3848 + $0x8] sm:$0xf]
      %v3981 = vld [vmem:[%s3848 + $0xc] sm:$0x1]
      %v3982 = vld [vmem:[%s3848 + $0x10] sm:$0xf]
      %v3983 = vld [vmem:[%s3848 + $0x14] sm:$0x1]
      %v3984 = vld [vmem:[%s3848 + $0x18] sm:$0xf]
      %v3985 = vld [vmem:[%s3848 + $0x1c] sm:$0x1]
      %v3986 = vld [vmem:[%s3848 + $0x20] sm:$0xf]
      %v3987 = vld [vmem:[%s3848 + $0x24] sm:$0x1]
      %v3988 = vld [vmem:[%s3848 + $0x28] sm:$0xf]
      %v3989 = vld [vmem:[%s3848 + $0x2c] sm:$0x1]
      %v3990 = vld [vmem:[%s3848 + $0x30] sm:$0xf]
      %v3991 = vld [vmem:[%s3848 + $0x34] sm:$0x1]
      %v3992 = vld [vmem:[%s3848 + $0x38] sm:$0xf]
      %v3993 = vld [vmem:[%s3848 + $0x3c] sm:$0x1]
      %v3995 = vshrl.u32 %v3978, 16
      %v3997 = vrot.slane %v3995, 4
      %v3998 = vshll.u32 %v3978, 16
      %v4000 = vrot.slane %v3998, 5
      %v4001 = vor.u32 %v3997, %v4000
      %v4002 = vrot.slane %v4001, 4
      %v4004 = vshll.u32 %v3979, 16
      %v4006 = vrot.slane %v4004, 5
      %v4007 = vsel %vm1099, %v4002, %v4006
      %v4009 = vshrl.u32 %v3980, 16
      %v4011 = vrot.slane %v4009, 4
      %v4012 = vshll.u32 %v3980, 16
      %v4014 = vrot.slane %v4012, 5
      %v4015 = vor.u32 %v4011, %v4014
      %v4016 = vrot.slane %v4015, 4
      %v4018 = vshll.u32 %v3981, 16
      %v4020 = vrot.slane %v4018, 5
      %v4021 = vsel %vm1099, %v4016, %v4020
      %v4023 = vshrl.u32 %v3982, 16
      %v4025 = vrot.slane %v4023, 4
      %v4026 = vshll.u32 %v3982, 16
      %v4028 = vrot.slane %v4026, 5
      %v4029 = vor.u32 %v4025, %v4028
      %v4030 = vrot.slane %v4029, 4
      %v4032 = vshll.u32 %v3983, 16
      %v4034 = vrot.slane %v4032, 5
      %v4035 = vsel %vm1099, %v4030, %v4034
      %v4037 = vshrl.u32 %v3984, 16
      %v4039 = vrot.slane %v4037, 4
      %v4040 = vshll.u32 %v3984, 16
      %v4042 = vrot.slane %v4040, 5
      %v4043 = vor.u32 %v4039, %v4042
      %v4044 = vrot.slane %v4043, 4
      %v4046 = vshll.u32 %v3985, 16
      %v4048 = vrot.slane %v4046, 5
      %v4049 = vsel %vm1099, %v4044, %v4048
      %v4051 = vshrl.u32 %v3986, 16
      %v4053 = vrot.slane %v4051, 4
      %v4054 = vshll.u32 %v3986, 16
      %v4056 = vrot.slane %v4054, 5
      %v4057 = vor.u32 %v4053, %v4056
      %v4058 = vrot.slane %v4057, 4
      %v4060 = vshll.u32 %v3987, 16
      %v4062 = vrot.slane %v4060, 5
      %v4063 = vsel %vm1099, %v4058, %v4062
      %v4065 = vshrl.u32 %v3988, 16
      %v4067 = vrot.slane %v4065, 4
      %v4068 = vshll.u32 %v3988, 16
      %v4070 = vrot.slane %v4068, 5
      %v4071 = vor.u32 %v4067, %v4070
      %v4072 = vrot.slane %v4071, 4
      %v4074 = vshll.u32 %v3989, 16
      %v4076 = vrot.slane %v4074, 5
      %v4077 = vsel %vm1099, %v4072, %v4076
      %v4079 = vshrl.u32 %v3990, 16
      %v4081 = vrot.slane %v4079, 4
      %v4082 = vshll.u32 %v3990, 16
      %v4084 = vrot.slane %v4082, 5
      %v4085 = vor.u32 %v4081, %v4084
      %v4086 = vrot.slane %v4085, 4
      %v4088 = vshll.u32 %v3991, 16
      %v4090 = vrot.slane %v4088, 5
      %v4091 = vsel %vm1099, %v4086, %v4090
      %v4093 = vshrl.u32 %v3992, 16
      %v4095 = vrot.slane %v4093, 4
      %v4096 = vshll.u32 %v3992, 16
      %v4098 = vrot.slane %v4096, 5
      %v4099 = vor.u32 %v4095, %v4098
      %v4100 = vrot.slane %v4099, 4
      %v4102 = vshll.u32 %v3993, 16
      %v4104 = vrot.slane %v4102, 5
      %v4105 = vsel %vm1099, %v4100, %v4104
      %v4106 = vld [vmem:[%s5 + $0x70] sm:$0xf]
      %v4107 = vld [vmem:[%s5 + $0x74] sm:$0xf]
      %v4108 = vld [vmem:[%s5 + $0x78] sm:$0xf]
      %v4109 = vld [vmem:[%s5 + $0x7c] sm:$0xf]
      %v4110 = vunpack.c.l.b16 %v4007
      %v4111 = vunpack.c.l.b16 %v4021
      %v4112 = vunpack.c.l.b16 %v4035
      %v4113 = vunpack.c.l.b16 %v4049
      %v4114 = vunpack.c.l.b16 %v4063
      %v4115 = vunpack.c.l.b16 %v4077
      %v4116 = vunpack.c.l.b16 %v4091
      %v4117 = vunpack.c.l.b16 %v4105
      %v4118 = vpack.c.b16 %v4111, %v4110
      %v4119 = vpack.c.b16 %v4113, %v4112
      %v4120 = vpack.c.b16 %v4115, %v4114
      %v4121 = vpack.c.b16 %v4117, %v4116
      %v4126 = vunpack.c.l.b16 %v4106
      %v4127 = vunpack.c.l.b16 %v4107
      %v4128 = vunpack.c.l.b16 %v4108
      %v4129 = vunpack.c.l.b16 %v4109
      %v4130 = vpack.c.b16 %v4127, %v4126
      %v4131 = vpack.c.b16 %v4129, %v4128
      %v4135 = vsel %vm830, %v4118, 0
      %v4138 = vsel %vm830, %v4119, 0
      %v4141 = vsel %vm830, %v4120, 0
      %v4144 = vsel %vm830, %v4121, 0
      %4146 = vmatprep.subr.bf16.mxu0 0
      %4147 = vmatpush1.bf16.msra.mxu0 %v4130
      %4148 = vmatprep.subr.bf16.mxu0 0
      %4149 = vmatpush1.bf16.msra.mxu0 %v4131
      %4150 = vmatprep.subr.bf16.mxu0 0
      %4151 = vmatpush1.bf16.msra.mxu0 0
      %4152 = vmatprep.subr.bf16.mxu0 0
      %4153 = vmatpush1.bf16.msra.mxu0 0
      %4154 = vmatprep.subr.bf16.mxu0 0
      %4155 = vmatpush1.bf16.msra.mxu0 0
      %4156 = vmatprep.subr.bf16.mxu0 0
      %4157 = vmatpush1.bf16.msra.mxu0 0
      %4158 = vmatprep.subr.bf16.mxu0 0
      %4159 = vmatpush1.bf16.msra.mxu0 0
      %4160 = vmatprep.subr.bf16.mxu0 0
      %4161 = vmatpush1.bf16.msra.mxu0 0
      %4162 = vmatprep.subr.bf16.mxu0 0
      %4163 = vmatpush1.bf16.msra.mxu0 0
      %4164 = vmatprep.subr.bf16.mxu0 0
      %4165 = vmatpush1.bf16.msra.mxu0 0
      %4166 = vmatprep.subr.bf16.mxu0 0
      %4167 = vmatpush1.bf16.msra.mxu0 0
      %4168 = vmatprep.subr.bf16.mxu0 0
      %4169 = vmatpush1.bf16.msra.mxu0 0
      %4170 = vmatprep.subr.bf16.mxu0 0
      %4171 = vmatpush1.bf16.msra.mxu0 0
      %4172 = vmatprep.subr.bf16.mxu0 0
      %4173 = vmatpush1.bf16.msra.mxu0 0
      %4174 = vmatprep.subr.bf16.mxu0 0
      %4175 = vmatpush1.bf16.msra.mxu0 0
      %4176 = vmatprep.subr.bf16.mxu0 0
      %4177 = vmatpush1.bf16.msra.mxu0 0
      %4178 = vmatprep.mubr.bf16.mxu0 0
      %4179 = vmatmul.mubr.bf16.gmra.mrb[0].mxu0 %v4135
      %v4180 = vpop.f32.mrb[0].mxu0
      %v4181 = vadd.f32 0.0, %v4180
      %v4182 = vpop.f32.mrb[0].mxu0
      %v4183 = vpop.f32.mrb[0].mxu0
      %v4184 = vadd.f32 0.0, %v4183
      %v4185 = vpop.f32.mrb[0].mxu0
      %4186 = vmatprep.mubr.bf16.mxu0 0
      %4187 = vmatmul.mubr.bf16.gmra.mrb[0].mxu0 %v4138
      %v4188 = vpop.f32.mrb[0].mxu0
      %v4189 = vadd.f32 0.0, %v4188
      %v4190 = vpop.f32.mrb[0].mxu0
      %v4191 = vpop.f32.mrb[0].mxu0
      %v4192 = vadd.f32 0.0, %v4191
      %v4193 = vpop.f32.mrb[0].mxu0
      %4194 = vmatprep.mubr.bf16.mxu0 0
      %4195 = vmatmul.mubr.bf16.gmra.mrb[0].mxu0 %v4141
      %v4196 = vpop.f32.mrb[0].mxu0
      %v4197 = vadd.f32 0.0, %v4196
      %v4198 = vpop.f32.mrb[0].mxu0
      %v4199 = vpop.f32.mrb[0].mxu0
      %v4200 = vadd.f32 0.0, %v4199
      %v4201 = vpop.f32.mrb[0].mxu0
      %4202 = vmatprep.mubr.bf16.mxu0 0
      %4203 = vmatmul.mubr.bf16.gmra.mrb[0].mxu0 %v4144
      %v4204 = vpop.f32.mrb[0].mxu0
      %v4205 = vadd.f32 0.0, %v4204
      %v4206 = vpop.f32.mrb[0].mxu0
      %v4207 = vpop.f32.mrb[0].mxu0
      %v4208 = vadd.f32 0.0, %v4207
      %v4209 = vpop.f32.mrb[0].mxu0
      %4210 = vdwg.mxu0
      %v4211 = vadd.f32 %v3970, %v4181
      %v4212 = vadd.f32 %v3971, %v4184
      %v4213 = vadd.f32 %v3972, %v4189
      %v4214 = vadd.f32 %v3973, %v4192
      %v4215 = vadd.f32 %v3974, %v4197
      %v4216 = vadd.f32 %v3975, %v4200
      %v4217 = vadd.f32 %v3976, %v4205
      %v4218 = vadd.f32 %v3977, %v4208
      %v4219 = vld [vmem:[%s3848] sm:$0xe]
      %v4220 = vld [vmem:[%s3848 + $0x8] sm:$0xe]
      %v4221 = vld [vmem:[%s3848 + $0x10] sm:$0xe]
      %v4222 = vld [vmem:[%s3848 + $0x18] sm:$0xe]
      %v4223 = vld [vmem:[%s3848 + $0x20] sm:$0xe]
      %v4224 = vld [vmem:[%s3848 + $0x28] sm:$0xe]
      %v4225 = vld [vmem:[%s3848 + $0x30] sm:$0xe]
      %v4226 = vld [vmem:[%s3848 + $0x38] sm:$0xe]
      %v4243 = vrot.slane %v4219, 5
      %v4244 = vrot.slane %v4243, 4
      %v4245 = vrot.slane %v3979, 5
      %v4246 = vsel %vm1439, %v4244, %v4245
      %v4247 = vrot.slane %v4220, 5
      %v4248 = vrot.slane %v4247, 4
      %v4249 = vrot.slane %v3981, 5
      %v4250 = vsel %vm1439, %v4248, %v4249
      %v4251 = vrot.slane %v4221, 5
      %v4252 = vrot.slane %v4251, 4
      %v4253 = vrot.slane %v3983, 5
      %v4254 = vsel %vm1439, %v4252, %v4253
      %v4255 = vrot.slane %v4222, 5
      %v4256 = vrot.slane %v4255, 4
      %v4257 = vrot.slane %v3985, 5
      %v4258 = vsel %vm1439, %v4256, %v4257
      %v4259 = vrot.slane %v4223, 5
      %v4260 = vrot.slane %v4259, 4
      %v4261 = vrot.slane %v3987, 5
      %v4262 = vsel %vm1439, %v4260, %v4261
      %v4263 = vrot.slane %v4224, 5
      %v4264 = vrot.slane %v4263, 4
      %v4265 = vrot.slane %v3989, 5
      %v4266 = vsel %vm1439, %v4264, %v4265
      %v4267 = vrot.slane %v4225, 5
      %v4268 = vrot.slane %v4267, 4
      %v4269 = vrot.slane %v3991, 5
      %v4270 = vsel %vm1439, %v4268, %v4269
      %v4271 = vrot.slane %v4226, 5
      %v4272 = vrot.slane %v4271, 4
      %v4273 = vrot.slane %v3993, 5
      %v4274 = vsel %vm1439, %v4272, %v4273
      %v4275 = vld [vmem:[%s5 + $0x80] sm:$0xf]
      %v4276 = vld [vmem:[%s5 + $0x84] sm:$0xf]
      %v4277 = vld [vmem:[%s5 + $0x88] sm:$0xf]
      %v4278 = vld [vmem:[%s5 + $0x8c] sm:$0xf]
      %v4279 = vunpack.c.l.b16 %v4246
      %v4280 = vunpack.c.l.b16 %v4250
      %v4281 = vunpack.c.l.b16 %v4254
      %v4282 = vunpack.c.l.b16 %v4258
      %v4283 = vunpack.c.l.b16 %v4262
      %v4284 = vunpack.c.l.b16 %v4266
      %v4285 = vunpack.c.l.b16 %v4270
      %v4286 = vunpack.c.l.b16 %v4274
      %v4287 = vpack.c.b16 %v4280, %v4279
      %v4288 = vpack.c.b16 %v4282, %v4281
      %v4289 = vpack.c.b16 %v4284, %v4283
      %v4290 = vpack.c.b16 %v4286, %v4285
      %v4295 = vunpack.c.l.b16 %v4275
      %v4296 = vunpack.c.l.b16 %v4276
      %v4297 = vunpack.c.l.b16 %v4277
      %v4298 = vunpack.c.l.b16 %v4278
      %v4299 = vpack.c.b16 %v4296, %v4295
      %v4300 = vpack.c.b16 %v4298, %v4297
      %v4304 = vsel %vm830, %v4287, 0
      %v4307 = vsel %vm830, %v4288, 0
      %v4310 = vsel %vm830, %v4289, 0
      %v4313 = vsel %vm830, %v4290, 0
      %4315 = vmatprep.subr.bf16.mxu0 0
      %4316 = vmatpush1.bf16.msra.mxu0 %v4299
      %4317 = vmatprep.subr.bf16.mxu0 0
      %4318 = vmatpush1.bf16.msra.mxu0 %v4300
      %4319 = vmatprep.subr.bf16.mxu0 0
      %4320 = vmatpush1.bf16.msra.mxu0 0
      %4321 = vmatprep.subr.bf16.mxu0 0
      %4322 = vmatpush1.bf16.msra.mxu0 0
      %4323 = vmatprep.subr.bf16.mxu0 0
      %4324 = vmatpush1.bf16.msra.mxu0 0
      %4325 = vmatprep.subr.bf16.mxu0 0
      %4326 = vmatpush1.bf16.msra.mxu0 0
      %4327 = vmatprep.subr.bf16.mxu0 0
      %4328 = vmatpush1.bf16.msra.mxu0 0
      %4329 = vmatprep.subr.bf16.mxu0 0
      %4330 = vmatpush1.bf16.msra.mxu0 0
      %4331 = vmatprep.subr.bf16.mxu0 0
      %4332 = vmatpush1.bf16.msra.mxu0 0
      %4333 = vmatprep.subr.bf16.mxu0 0
      %4334 = vmatpush1.bf16.msra.mxu0 0
      %4335 = vmatprep.subr.bf16.mxu0 0
      %4336 = vmatpush1.bf16.msra.mxu0 0
      %4337 = vmatprep.subr.bf16.mxu0 0
      %4338 = vmatpush1.bf16.msra.mxu0 0
      %4339 = vmatprep.subr.bf16.mxu0 0
      %4340 = vmatpush1.bf16.msra.mxu0 0
      %4341 = vmatprep.subr.bf16.mxu0 0
      %4342 = vmatpush1.bf16.msra.mxu0 0
      %4343 = vmatprep.subr.bf16.mxu0 0
      %4344 = vmatpush1.bf16.msra.mxu0 0
      %4345 = vmatprep.subr.bf16.mxu0 0
      %4346 = vmatpush1.bf16.msra.mxu0 0
      %4347 = vmatprep.mubr.bf16.mxu0 0
      %4348 = vmatmul.mubr.bf16.gmra.mrb[0].mxu0 %v4304
      %v4349 = vpop.f32.mrb[0].mxu0
      %v4350 = vadd.f32 0.0, %v4349
      %v4351 = vpop.f32.mrb[0].mxu0
      %v4352 = vpop.f32.mrb[0].mxu0
      %v4353 = vadd.f32 0.0, %v4352
      %v4354 = vpop.f32.mrb[0].mxu0
      %4355 = vmatprep.mubr.bf16.mxu0 0
      %4356 = vmatmul.mubr.bf16.gmra.mrb[0].mxu0 %v4307
      %v4357 = vpop.f32.mrb[0].mxu0
      %v4358 = vadd.f32 0.0, %v4357
      %v4359 = vpop.f32.mrb[0].mxu0
      %v4360 = vpop.f32.mrb[0].mxu0
      %v4361 = vadd.f32 0.0, %v4360
      %v4362 = vpop.f32.mrb[0].mxu0
      %4363 = vmatprep.mubr.bf16.mxu0 0
      %4364 = vmatmul.mubr.bf16.gmra.mrb[0].mxu0 %v4310
      %v4365 = vpop.f32.mrb[0].mxu0
      %v4366 = vadd.f32 0.0, %v4365
      %v4367 = vpop.f32.mrb[0].mxu0
      %v4368 = vpop.f32.mrb[0].mxu0
      %v4369 = vadd.f32 0.0, %v4368
      %v4370 = vpop.f32.mrb[0].mxu0
      %4371 = vmatprep.mubr.bf16.mxu0 0
      %4372 = vmatmul.mubr.bf16.gmra.mrb[0].mxu0 %v4313
      %v4373 = vpop.f32.mrb[0].mxu0
      %v4374 = vadd.f32 0.0, %v4373
      %v4375 = vpop.f32.mrb[0].mxu0
      %v4376 = vpop.f32.mrb[0].mxu0
      %v4377 = vadd.f32 0.0, %v4376
      %v4378 = vpop.f32.mrb[0].mxu0
      %4379 = vdwg.mxu0
      %v4380 = vadd.f32 %v4211, %v4350
      %v4381 = vadd.f32 %v4212, %v4353
      %v4382 = vadd.f32 %v4213, %v4358
      %v4383 = vadd.f32 %v4214, %v4361
      %v4384 = vadd.f32 %v4215, %v4366
      %v4385 = vadd.f32 %v4216, %v4369
      %v4386 = vadd.f32 %v4217, %v4374
      %v4387 = vadd.f32 %v4218, %v4377
      %v4388 = vld [vmem:[%s6] sm:$0x1]
      %v4390 = vlaneseq
      %v4391 = vshrl.u32 %v4390, 7
      %v4392 = vsub.s32 0, %v4391
      %v4393 = vrot.slane %v4388, %v4392
      %v4395 = vadd.f32 %v4380, %v4393
      %v4396 = vadd.f32 %v4381, %v4393
      %v4397 = vadd.f32 %v4382, %v4393
      %v4398 = vadd.f32 %v4383, %v4393
      %v4399 = vadd.f32 %v4384, %v4393
      %v4400 = vadd.f32 %v4385, %v4393
      %v4401 = vadd.f32 %v4386, %v4393
      %v4402 = vadd.f32 %v4387, %v4393
      %v4403 = vmax.f32 %v4395, 0.0
      %v4404 = vmax.f32 %v4396, 0.0
      %v4405 = vmax.f32 %v4397, 0.0
      %v4406 = vmax.f32 %v4398, 0.0
      %v4407 = vmax.f32 %v4399, 0.0
      %v4408 = vmax.f32 %v4400, 0.0
      %v4409 = vmax.f32 %v4401, 0.0
      %v4410 = vmax.f32 %v4402, 0.0
      %v4411 = vpack.c.bf16 %v4403, %v4403
      %v4412 = vpack.c.bf16 %v4404, %v4404
      %v4413 = vpack.c.bf16 %v4405, %v4405
      %v4414 = vpack.c.bf16 %v4406, %v4406
      %v4415 = vpack.c.bf16 %v4407, %v4407
      %v4416 = vpack.c.bf16 %v4408, %v4408
      %v4417 = vpack.c.bf16 %v4409, %v4409
      %v4418 = vpack.c.bf16 %v4410, %v4410
      %v4427 = vunpack.c.l.b16 %v4411
      %v4428 = vunpack.c.l.b16 %v4412
      %v4429 = vunpack.c.l.b16 %v4413
      %v4430 = vunpack.c.l.b16 %v4414
      %v4431 = vunpack.c.l.b16 %v4415
      %v4432 = vunpack.c.l.b16 %v4416
      %v4433 = vunpack.c.l.b16 %v4417
      %v4434 = vunpack.c.l.b16 %v4418
      %v4435 = vpack.c.b16 %v4427, %v4427
      %v4436 = vpack.c.b16 %v4428, %v4428
      %v4437 = vpack.c.b16 %v4429, %v4429
      %v4438 = vpack.c.b16 %v4430, %v4430
      %v4439 = vpack.c.b16 %v4431, %v4431
      %v4440 = vpack.c.b16 %v4432, %v4432
      %v4441 = vpack.c.b16 %v4433, %v4433
      %v4442 = vpack.c.b16 %v4434, %v4434
      %v4444 = vshrl.u32 %v4435, 16
      %v4446 = vrot.slane %v4444, 7
      %v4447 = vshll.u32 %v4435, 16
      %v4449 = vor.u32 %v4446, %v4447
      %v4450 = vrot.slane %v4446, 4
      %v4452 = vshrl.u32 %v4436, 16
      %v4454 = vrot.slane %v4452, 7
      %v4455 = vshll.u32 %v4436, 16
      %v4457 = vor.u32 %v4454, %v4455
      %v4458 = vrot.slane %v4454, 4
      %v4460 = vshrl.u32 %v4437, 16
      %v4462 = vrot.slane %v4460, 7
      %v4463 = vshll.u32 %v4437, 16
      %v4465 = vor.u32 %v4462, %v4463
      %v4466 = vrot.slane %v4462, 4
      %v4468 = vshrl.u32 %v4438, 16
      %v4470 = vrot.slane %v4468, 7
      %v4471 = vshll.u32 %v4438, 16
      %v4473 = vor.u32 %v4470, %v4471
      %v4474 = vrot.slane %v4470, 4
      %v4476 = vshrl.u32 %v4439, 16
      %v4478 = vrot.slane %v4476, 7
      %v4479 = vshll.u32 %v4439, 16
      %v4481 = vor.u32 %v4478, %v4479
      %v4482 = vrot.slane %v4478, 4
      %v4484 = vshrl.u32 %v4440, 16
      %v4486 = vrot.slane %v4484, 7
      %v4487 = vshll.u32 %v4440, 16
      %v4489 = vor.u32 %v4486, %v4487
      %v4490 = vrot.slane %v4486, 4
      %v4492 = vshrl.u32 %v4441, 16
      %v4494 = vrot.slane %v4492, 7
      %v4495 = vshll.u32 %v4441, 16
      %v4497 = vor.u32 %v4494, %v4495
      %v4498 = vrot.slane %v4494, 4
      %v4500 = vshrl.u32 %v4442, 16
      %v4502 = vrot.slane %v4500, 7
      %v4503 = vshll.u32 %v4442, 16
      %v4505 = vor.u32 %v4502, %v4503
      %v4506 = vrot.slane %v4502, 4
      %s4523 = scalar_lea.vmem [#allocation4], 8
      %v4524 = vld [vmem:[%s4523] sm:$0xf]
      %v4525 = vsel %vm2745, %v4449, %v4524
      %4526 = vst [vmem:[%s4523] sm:$0xf] %v4525
      %v4527 = vld [vmem:[%s4523 + $0x4] sm:$0x1]
      %v4528 = vsel %vm522, %v4450, %v4527
      %4529 = vst [vmem:[%s4523 + $0x4] sm:$0x1] %v4528
      %v4530 = vld [vmem:[%s4523 + $0x8] sm:$0xf]
      %v4531 = vsel %vm2745, %v4457, %v4530
      %4532 = vst [vmem:[%s4523 + $0x8] sm:$0xf] %v4531
      %v4533 = vld [vmem:[%s4523 + $0xc] sm:$0x1]
      %v4534 = vsel %vm522, %v4458, %v4533
      %4535 = vst [vmem:[%s4523 + $0xc] sm:$0x1] %v4534
      %v4536 = vld [vmem:[%s4523 + $0x10] sm:$0xf]
      %v4537 = vsel %vm2745, %v4465, %v4536
      %4538 = vst [vmem:[%s4523 + $0x10] sm:$0xf] %v4537
      %v4539 = vld [vmem:[%s4523 + $0x14] sm:$0x1]
      %v4540 = vsel %vm522, %v4466, %v4539
      %4541 = vst [vmem:[%s4523 + $0x14] sm:$0x1] %v4540
      %v4542 = vld [vmem:[%s4523 + $0x18] sm:$0xf]
      %v4543 = vsel %vm2745, %v4473, %v4542
      %4544 = vst [vmem:[%s4523 + $0x18] sm:$0xf] %v4543
      %v4545 = vld [vmem:[%s4523 + $0x1c] sm:$0x1]
      %v4546 = vsel %vm522, %v4474, %v4545
      %4547 = vst [vmem:[%s4523 + $0x1c] sm:$0x1] %v4546
      %v4548 = vld [vmem:[%s4523 + $0x20] sm:$0xf]
      %v4549 = vsel %vm2745, %v4481, %v4548
      %4550 = vst [vmem:[%s4523 + $0x20] sm:$0xf] %v4549
      %v4551 = vld [vmem:[%s4523 + $0x24] sm:$0x1]
      %v4552 = vsel %vm522, %v4482, %v4551
      %4553 = vst [vmem:[%s4523 + $0x24] sm:$0x1] %v4552
      %v4554 = vld [vmem:[%s4523 + $0x28] sm:$0xf]
      %v4555 = vsel %vm2745, %v4489, %v4554
      %4556 = vst [vmem:[%s4523 + $0x28] sm:$0xf] %v4555
      %v4557 = vld [vmem:[%s4523 + $0x2c] sm:$0x1]
      %v4558 = vsel %vm522, %v4490, %v4557
      %4559 = vst [vmem:[%s4523 + $0x2c] sm:$0x1] %v4558
      %v4560 = vld [vmem:[%s4523 + $0x30] sm:$0xf]
      %v4561 = vsel %vm2745, %v4497, %v4560
      %4562 = vst [vmem:[%s4523 + $0x30] sm:$0xf] %v4561
      %v4563 = vld [vmem:[%s4523 + $0x34] sm:$0x1]
      %v4564 = vsel %vm522, %v4498, %v4563
      %4565 = vst [vmem:[%s4523 + $0x34] sm:$0x1] %v4564
      %v4566 = vld [vmem:[%s4523 + $0x38] sm:$0xf]
      %v4567 = vsel %vm2745, %v4505, %v4566
      %4568 = vst [vmem:[%s4523 + $0x38] sm:$0xf] %v4567
      %v4569 = vld [vmem:[%s4523 + $0x3c] sm:$0x1]
      %v4570 = vsel %vm522, %v4506, %v4569
      %4571 = vst [vmem:[%s4523 + $0x3c] sm:$0x1] %v4570
      %v4572 = vld [vmem:[#allocation4] sm:$0xf]
      %v4573 = vld [vmem:[#allocation4 + $0x8] sm:$0xf]
      %v4574 = vld [vmem:[#allocation4 + $0x10] sm:$0xf]
      %v4575 = vld [vmem:[#allocation4 + $0x18] sm:$0xf]
      %v4576 = vld [vmem:[#allocation4 + $0x20] sm:$0xf]
      %v4577 = vld [vmem:[#allocation4 + $0x28] sm:$0xf]
      %v4578 = vld [vmem:[#allocation4 + $0x30] sm:$0xf]
      %v4579 = vld [vmem:[#allocation4 + $0x38] sm:$0xf]
      %v4580 = vld [vmem:[%s7] sm:$0xf]
      %v4581 = vld [vmem:[%s7 + $0x4] sm:$0xf]
      %v4582 = vld [vmem:[%s7 + $0x8] sm:$0xf]
      %v4583 = vld [vmem:[%s7 + $0xc] sm:$0xf]
      %v4584 = vld [vmem:[#allocation4 + $0x4] sm:$0x1]
      %v4585 = vld [vmem:[#allocation4 + $0xc] sm:$0x1]
      %v4586 = vld [vmem:[#allocation4 + $0x14] sm:$0x1]
      %v4587 = vld [vmem:[#allocation4 + $0x1c] sm:$0x1]
      %v4588 = vld [vmem:[#allocation4 + $0x24] sm:$0x1]
      %v4589 = vld [vmem:[#allocation4 + $0x2c] sm:$0x1]
      %v4590 = vld [vmem:[#allocation4 + $0x34] sm:$0x1]
      %v4591 = vld [vmem:[#allocation4 + $0x3c] sm:$0x1]
      %v4593 = vshrl.u32 %v4572, 16
      %v4595 = vrot.slane %v4593, 4
      %v4596 = vshll.u32 %v4572, 16
      %v4598 = vrot.slane %v4596, 5
      %v4599 = vor.u32 %v4595, %v4598
      %v4600 = vrot.slane %v4599, 4
      %v4602 = vshll.u32 %v4584, 16
      %v4604 = vrot.slane %v4602, 5
      %v4605 = vsel %vm1099, %v4600, %v4604
      %v4607 = vshrl.u32 %v4573, 16
      %v4609 = vrot.slane %v4607, 4
      %v4610 = vshll.u32 %v4573, 16
      %v4612 = vrot.slane %v4610, 5
      %v4613 = vor.u32 %v4609, %v4612
      %v4614 = vrot.slane %v4613, 4
      %v4616 = vshll.u32 %v4585, 16
      %v4618 = vrot.slane %v4616, 5
      %v4619 = vsel %vm1099, %v4614, %v4618
      %v4621 = vshrl.u32 %v4574, 16
      %v4623 = vrot.slane %v4621, 4
      %v4624 = vshll.u32 %v4574, 16
      %v4626 = vrot.slane %v4624, 5
      %v4627 = vor.u32 %v4623, %v4626
      %v4628 = vrot.slane %v4627, 4
      %v4630 = vshll.u32 %v4586, 16
      %v4632 = vrot.slane %v4630, 5
      %v4633 = vsel %vm1099, %v4628, %v4632
      %v4635 = vshrl.u32 %v4575, 16
      %v4637 = vrot.slane %v4635, 4
      %v4638 = vshll.u32 %v4575, 16
      %v4640 = vrot.slane %v4638, 5
      %v4641 = vor.u32 %v4637, %v4640
      %v4642 = vrot.slane %v4641, 4
      %v4644 = vshll.u32 %v4587, 16
      %v4646 = vrot.slane %v4644, 5
      %v4647 = vsel %vm1099, %v4642, %v4646
      %v4649 = vshrl.u32 %v4576, 16
      %v4651 = vrot.slane %v4649, 4
      %v4652 = vshll.u32 %v4576, 16
      %v4654 = vrot.slane %v4652, 5
      %v4655 = vor.u32 %v4651, %v4654
      %v4656 = vrot.slane %v4655, 4
      %v4658 = vshll.u32 %v4588, 16
      %v4660 = vrot.slane %v4658, 5
      %v4661 = vsel %vm1099, %v4656, %v4660
      %v4663 = vshrl.u32 %v4577, 16
      %v4665 = vrot.slane %v4663, 4
      %v4666 = vshll.u32 %v4577, 16
      %v4668 = vrot.slane %v4666, 5
      %v4669 = vor.u32 %v4665, %v4668
      %v4670 = vrot.slane %v4669, 4
      %v4672 = vshll.u32 %v4589, 16
      %v4674 = vrot.slane %v4672, 5
      %v4675 = vsel %vm1099, %v4670, %v4674
      %v4677 = vshrl.u32 %v4578, 16
      %v4679 = vrot.slane %v4677, 4
      %v4680 = vshll.u32 %v4578, 16
      %v4682 = vrot.slane %v4680, 5
      %v4683 = vor.u32 %v4679, %v4682
      %v4684 = vrot.slane %v4683, 4
      %v4686 = vshll.u32 %v4590, 16
      %v4688 = vrot.slane %v4686, 5
      %v4689 = vsel %vm1099, %v4684, %v4688
      %v4691 = vshrl.u32 %v4579, 16
      %v4693 = vrot.slane %v4691, 4
      %v4694 = vshll.u32 %v4579, 16
      %v4696 = vrot.slane %v4694, 5
      %v4697 = vor.u32 %v4693, %v4696
      %v4698 = vrot.slane %v4697, 4
      %v4700 = vshll.u32 %v4591, 16
      %v4702 = vrot.slane %v4700, 5
      %v4703 = vsel %vm1099, %v4698, %v4702
      %v4704 = vld [vmem:[%s7 + $0x10] sm:$0xf]
      %v4705 = vld [vmem:[%s7 + $0x14] sm:$0xf]
      %v4706 = vld [vmem:[%s7 + $0x18] sm:$0xf]
      %v4707 = vld [vmem:[%s7 + $0x1c] sm:$0xf]
      %v4708 = vunpack.c.l.b16 %v4605
      %v4709 = vunpack.c.l.b16 %v4619
      %v4710 = vunpack.c.l.b16 %v4633
      %v4711 = vunpack.c.l.b16 %v4647
      %v4712 = vunpack.c.l.b16 %v4661
      %v4713 = vunpack.c.l.b16 %v4675
      %v4714 = vunpack.c.l.b16 %v4689
      %v4715 = vunpack.c.l.b16 %v4703
      %v4716 = vpack.c.b16 %v4709, %v4708
      %v4717 = vpack.c.b16 %v4711, %v4710
      %v4718 = vpack.c.b16 %v4713, %v4712
      %v4719 = vpack.c.b16 %v4715, %v4714
      %v4724 = vunpack.c.l.b16 %v4704
      %v4725 = vunpack.c.l.b16 %v4705
      %v4726 = vunpack.c.l.b16 %v4706
      %v4727 = vunpack.c.l.b16 %v4707
      %v4728 = vpack.c.b16 %v4725, %v4724
      %v4729 = vpack.c.b16 %v4727, %v4726
      %v4733 = vsel %vm830, %v4716, 0
      %v4736 = vsel %vm830, %v4717, 0
      %v4739 = vsel %vm830, %v4718, 0
      %v4742 = vsel %vm830, %v4719, 0
      %4744 = vmatprep.subr.bf16.mxu0 0
      %4745 = vmatpush1.bf16.msra.mxu0 %v4728
      %4746 = vmatprep.subr.bf16.mxu0 0
      %4747 = vmatpush1.bf16.msra.mxu0 %v4729
      %4748 = vmatprep.subr.bf16.mxu0 0
      %4749 = vmatpush1.bf16.msra.mxu0 0
      %4750 = vmatprep.subr.bf16.mxu0 0
      %4751 = vmatpush1.bf16.msra.mxu0 0
      %4752 = vmatprep.subr.bf16.mxu0 0
      %4753 = vmatpush1.bf16.msra.mxu0 0
      %4754 = vmatprep.subr.bf16.mxu0 0
      %4755 = vmatpush1.bf16.msra.mxu0 0
      %4756 = vmatprep.subr.bf16.mxu0 0
      %4757 = vmatpush1.bf16.msra.mxu0 0
      %4758 = vmatprep.subr.bf16.mxu0 0
      %4759 = vmatpush1.bf16.msra.mxu0 0
      %4760 = vmatprep.subr.bf16.mxu0 0
      %4761 = vmatpush1.bf16.msra.mxu0 0
      %4762 = vmatprep.subr.bf16.mxu0 0
      %4763 = vmatpush1.bf16.msra.mxu0 0
      %4764 = vmatprep.subr.bf16.mxu0 0
      %4765 = vmatpush1.bf16.msra.mxu0 0
      %4766 = vmatprep.subr.bf16.mxu0 0
      %4767 = vmatpush1.bf16.msra.mxu0 0
      %4768 = vmatprep.subr.bf16.mxu0 0
      %4769 = vmatpush1.bf16.msra.mxu0 0
      %4770 = vmatprep.subr.bf16.mxu0 0
      %4771 = vmatpush1.bf16.msra.mxu0 0
      %4772 = vmatprep.subr.bf16.mxu0 0
      %4773 = vmatpush1.bf16.msra.mxu0 0
      %4774 = vmatprep.subr.bf16.mxu0 0
      %4775 = vmatpush1.bf16.msra.mxu0 0
      %4776 = vmatprep.mubr.bf16.mxu0 0
      %4777 = vmatmul.mubr.bf16.gmra.mrb[0].mxu0 %v4733
      %v4778 = vpop.f32.mrb[0].mxu0
      %v4779 = vadd.f32 0.0, %v4778
      %v4780 = vpop.f32.mrb[0].mxu0
      %v4781 = vpop.f32.mrb[0].mxu0
      %v4782 = vadd.f32 0.0, %v4781
      %v4783 = vpop.f32.mrb[0].mxu0
      %4784 = vmatprep.mubr.bf16.mxu0 0
      %4785 = vmatmul.mubr.bf16.gmra.mrb[0].mxu0 %v4736
      %v4786 = vpop.f32.mrb[0].mxu0
      %v4787 = vadd.f32 0.0, %v4786
      %v4788 = vpop.f32.mrb[0].mxu0
      %v4789 = vpop.f32.mrb[0].mxu0
      %v4790 = vadd.f32 0.0, %v4789
      %v4791 = vpop.f32.mrb[0].mxu0
      %4792 = vmatprep.mubr.bf16.mxu0 0
      %4793 = vmatmul.mubr.bf16.gmra.mrb[0].mxu0 %v4739
      %v4794 = vpop.f32.mrb[0].mxu0
      %v4795 = vadd.f32 0.0, %v4794
      %v4796 = vpop.f32.mrb[0].mxu0
      %v4797 = vpop.f32.mrb[0].mxu0
      %v4798 = vadd.f32 0.0, %v4797
      %v4799 = vpop.f32.mrb[0].mxu0
      %4800 = vmatprep.mubr.bf16.mxu0 0
      %4801 = vmatmul.mubr.bf16.gmra.mrb[0].mxu0 %v4742
      %v4802 = vpop.f32.mrb[0].mxu0
      %v4803 = vadd.f32 0.0, %v4802
      %v4804 = vpop.f32.mrb[0].mxu0
      %v4805 = vpop.f32.mrb[0].mxu0
      %v4806 = vadd.f32 0.0, %v4805
      %v4807 = vpop.f32.mrb[0].mxu0
      %4808 = vdwg.mxu0
      %v4817 = vunpack.c.l.b16 %v4572
      %v4818 = vunpack.c.l.b16 %v4573
      %v4819 = vunpack.c.l.b16 %v4574
      %v4820 = vunpack.c.l.b16 %v4575
      %v4821 = vunpack.c.l.b16 %v4576
      %v4822 = vunpack.c.l.b16 %v4577
      %v4823 = vunpack.c.l.b16 %v4578
      %v4824 = vunpack.c.l.b16 %v4579
      %v4825 = vpack.c.b16 %v4818, %v4817
      %v4826 = vpack.c.b16 %v4820, %v4819
      %v4827 = vpack.c.b16 %v4822, %v4821
      %v4828 = vpack.c.b16 %v4824, %v4823
      %v4833 = vunpack.c.l.b16 %v4580
      %v4834 = vunpack.c.l.b16 %v4581
      %v4835 = vunpack.c.l.b16 %v4582
      %v4836 = vunpack.c.l.b16 %v4583
      %v4837 = vpack.c.b16 %v4834, %v4833
      %v4838 = vpack.c.b16 %v4836, %v4835
      %v4842 = vsel %vm830, %v4825, 0
      %v4845 = vsel %vm830, %v4826, 0
      %v4848 = vsel %vm830, %v4827, 0
      %v4851 = vsel %vm830, %v4828, 0
      %4853 = vmatprep.subr.bf16.mxu0 0
      %4854 = vmatpush1.bf16.msra.mxu0 %v4837
      %4855 = vmatprep.subr.bf16.mxu0 0
      %4856 = vmatpush1.bf16.msra.mxu0 %v4838
      %4857 = vmatprep.subr.bf16.mxu0 0
      %4858 = vmatpush1.bf16.msra.mxu0 0
      %4859 = vmatprep.subr.bf16.mxu0 0
      %4860 = vmatpush1.bf16.msra.mxu0 0
      %4861 = vmatprep.subr.bf16.mxu0 0
      %4862 = vmatpush1.bf16.msra.mxu0 0
      %4863 = vmatprep.subr.bf16.mxu0 0
      %4864 = vmatpush1.bf16.msra.mxu0 0
      %4865 = vmatprep.subr.bf16.mxu0 0
      %4866 = vmatpush1.bf16.msra.mxu0 0
      %4867 = vmatprep.subr.bf16.mxu0 0
      %4868 = vmatpush1.bf16.msra.mxu0 0
      %4869 = vmatprep.subr.bf16.mxu0 0
      %4870 = vmatpush1.bf16.msra.mxu0 0
      %4871 = vmatprep.subr.bf16.mxu0 0
      %4872 = vmatpush1.bf16.msra.mxu0 0
      %4873 = vmatprep.subr.bf16.mxu0 0
      %4874 = vmatpush1.bf16.msra.mxu0 0
      %4875 = vmatprep.subr.bf16.mxu0 0
      %4876 = vmatpush1.bf16.msra.mxu0 0
      %4877 = vmatprep.subr.bf16.mxu0 0
      %4878 = vmatpush1.bf16.msra.mxu0 0
      %4879 = vmatprep.subr.bf16.mxu0 0
      %4880 = vmatpush1.bf16.msra.mxu0 0
      %4881 = vmatprep.subr.bf16.mxu0 0
      %4882 = vmatpush1.bf16.msra.mxu0 0
      %4883 = vmatprep.subr.bf16.mxu0 0
      %4884 = vmatpush1.bf16.msra.mxu0 0
      %4885 = vmatprep.mubr.bf16.mxu0 0
      %4886 = vmatmul.mubr.bf16.gmra.mrb[0].mxu0 %v4842
      %v4887 = vpop.f32.mrb[0].mxu0
      %v4888 = vadd.f32 %v4779, %v4887
      %v4889 = vpop.f32.mrb[0].mxu0
      %v4890 = vpop.f32.mrb[0].mxu0
      %v4891 = vadd.f32 %v4782, %v4890
      %v4892 = vpop.f32.mrb[0].mxu0
      %4893 = vmatprep.mubr.bf16.mxu0 0
      %4894 = vmatmul.mubr.bf16.gmra.mrb[0].mxu0 %v4845
      %v4895 = vpop.f32.mrb[0].mxu0
      %v4896 = vadd.f32 %v4787, %v4895
      %v4897 = vpop.f32.mrb[0].mxu0
      %v4898 = vpop.f32.mrb[0].mxu0
      %v4899 = vadd.f32 %v4790, %v4898
      %v4900 = vpop.f32.mrb[0].mxu0
      %4901 = vmatprep.mubr.bf16.mxu0 0
      %4902 = vmatmul.mubr.bf16.gmra.mrb[0].mxu0 %v4848
      %v4903 = vpop.f32.mrb[0].mxu0
      %v4904 = vadd.f32 %v4795, %v4903
      %v4905 = vpop.f32.mrb[0].mxu0
      %v4906 = vpop.f32.mrb[0].mxu0
      %v4907 = vadd.f32 %v4798, %v4906
      %v4908 = vpop.f32.mrb[0].mxu0
      %4909 = vmatprep.mubr.bf16.mxu0 0
      %4910 = vmatmul.mubr.bf16.gmra.mrb[0].mxu0 %v4851
      %v4911 = vpop.f32.mrb[0].mxu0
      %v4912 = vadd.f32 %v4803, %v4911
      %v4913 = vpop.f32.mrb[0].mxu0
      %v4914 = vpop.f32.mrb[0].mxu0
      %v4915 = vadd.f32 %v4806, %v4914
      %v4916 = vpop.f32.mrb[0].mxu0
      %4917 = vdwg.mxu0
      %v4918 = vld [vmem:[#allocation4] sm:$0xe]
      %v4919 = vld [vmem:[#allocation4 + $0x8] sm:$0xe]
      %v4920 = vld [vmem:[#allocation4 + $0x10] sm:$0xe]
      %v4921 = vld [vmem:[#allocation4 + $0x18] sm:$0xe]
      %v4922 = vld [vmem:[#allocation4 + $0x20] sm:$0xe]
      %v4923 = vld [vmem:[#allocation4 + $0x28] sm:$0xe]
      %v4924 = vld [vmem:[#allocation4 + $0x30] sm:$0xe]
      %v4925 = vld [vmem:[#allocation4 + $0x38] sm:$0xe]
      %v4942 = vrot.slane %v4918, 5
      %v4943 = vrot.slane %v4942, 4
      %v4944 = vrot.slane %v4584, 5
      %v4945 = vsel %vm1439, %v4943, %v4944
      %v4946 = vrot.slane %v4919, 5
      %v4947 = vrot.slane %v4946, 4
      %v4948 = vrot.slane %v4585, 5
      %v4949 = vsel %vm1439, %v4947, %v4948
      %v4950 = vrot.slane %v4920, 5
      %v4951 = vrot.slane %v4950, 4
      %v4952 = vrot.slane %v4586, 5
      %v4953 = vsel %vm1439, %v4951, %v4952
      %v4954 = vrot.slane %v4921, 5
      %v4955 = vrot.slane %v4954, 4
      %v4956 = vrot.slane %v4587, 5
      %v4957 = vsel %vm1439, %v4955, %v4956
      %v4958 = vrot.slane %v4922, 5
      %v4959 = vrot.slane %v4958, 4
      %v4960 = vrot.slane %v4588, 5
      %v4961 = vsel %vm1439, %v4959, %v4960
      %v4962 = vrot.slane %v4923, 5
      %v4963 = vrot.slane %v4962, 4
      %v4964 = vrot.slane %v4589, 5
      %v4965 = vsel %vm1439, %v4963, %v4964
      %v4966 = vrot.slane %v4924, 5
      %v4967 = vrot.slane %v4966, 4
      %v4968 = vrot.slane %v4590, 5
      %v4969 = vsel %vm1439, %v4967, %v4968
      %v4970 = vrot.slane %v4925, 5
      %v4971 = vrot.slane %v4970, 4
      %v4972 = vrot.slane %v4591, 5
      %v4973 = vsel %vm1439, %v4971, %v4972
      %v4974 = vld [vmem:[%s7 + $0x20] sm:$0xf]
      %v4975 = vld [vmem:[%s7 + $0x24] sm:$0xf]
      %v4976 = vld [vmem:[%s7 + $0x28] sm:$0xf]
      %v4977 = vld [vmem:[%s7 + $0x2c] sm:$0xf]
      %v4978 = vunpack.c.l.b16 %v4945
      %v4979 = vunpack.c.l.b16 %v4949
      %v4980 = vunpack.c.l.b16 %v4953
      %v4981 = vunpack.c.l.b16 %v4957
      %v4982 = vunpack.c.l.b16 %v4961
      %v4983 = vunpack.c.l.b16 %v4965
      %v4984 = vunpack.c.l.b16 %v4969
      %v4985 = vunpack.c.l.b16 %v4973
      %v4986 = vpack.c.b16 %v4979, %v4978
      %v4987 = vpack.c.b16 %v4981, %v4980
      %v4988 = vpack.c.b16 %v4983, %v4982
      %v4989 = vpack.c.b16 %v4985, %v4984
      %v4994 = vunpack.c.l.b16 %v4974
      %v4995 = vunpack.c.l.b16 %v4975
      %v4996 = vunpack.c.l.b16 %v4976
      %v4997 = vunpack.c.l.b16 %v4977
      %v4998 = vpack.c.b16 %v4995, %v4994
      %v4999 = vpack.c.b16 %v4997, %v4996
      %v5003 = vsel %vm830, %v4986, 0
      %v5006 = vsel %vm830, %v4987, 0
      %v5009 = vsel %vm830, %v4988, 0
      %v5012 = vsel %vm830, %v4989, 0
      %5014 = vmatprep.subr.bf16.mxu0 0
      %5015 = vmatpush1.bf16.msra.mxu0 %v4998
      %5016 = vmatprep.subr.bf16.mxu0 0
      %5017 = vmatpush1.bf16.msra.mxu0 %v4999
      %5018 = vmatprep.subr.bf16.mxu0 0
      %5019 = vmatpush1.bf16.msra.mxu0 0
      %5020 = vmatprep.subr.bf16.mxu0 0
      %5021 = vmatpush1.bf16.msra.mxu0 0
      %5022 = vmatprep.subr.bf16.mxu0 0
      %5023 = vmatpush1.bf16.msra.mxu0 0
      %5024 = vmatprep.subr.bf16.mxu0 0
      %5025 = vmatpush1.bf16.msra.mxu0 0
      %5026 = vmatprep.subr.bf16.mxu0 0
      %5027 = vmatpush1.bf16.msra.mxu0 0
      %5028 = vmatprep.subr.bf16.mxu0 0
      %5029 = vmatpush1.bf16.msra.mxu0 0
      %5030 = vmatprep.subr.bf16.mxu0 0
      %5031 = vmatpush1.bf16.msra.mxu0 0
      %5032 = vmatprep.subr.bf16.mxu0 0
      %5033 = vmatpush1.bf16.msra.mxu0 0
      %5034 = vmatprep.subr.bf16.mxu0 0
      %5035 = vmatpush1.bf16.msra.mxu0 0
      %5036 = vmatprep.subr.bf16.mxu0 0
      %5037 = vmatpush1.bf16.msra.mxu0 0
      %5038 = vmatprep.subr.bf16.mxu0 0
      %5039 = vmatpush1.bf16.msra.mxu0 0
      %5040 = vmatprep.subr.bf16.mxu0 0
      %5041 = vmatpush1.bf16.msra.mxu0 0
      %5042 = vmatprep.subr.bf16.mxu0 0
      %5043 = vmatpush1.bf16.msra.mxu0 0
      %5044 = vmatprep.subr.bf16.mxu0 0
      %5045 = vmatpush1.bf16.msra.mxu0 0
      %5046 = vmatprep.mubr.bf16.mxu0 0
      %5047 = vmatmul.mubr.bf16.gmra.mrb[0].mxu0 %v5003
      %v5048 = vpop.f32.mrb[0].mxu0
      %v5049 = vadd.f32 0.0, %v5048
      %v5050 = vpop.f32.mrb[0].mxu0
      %v5051 = vpop.f32.mrb[0].mxu0
      %v5052 = vadd.f32 0.0, %v5051
      %v5053 = vpop.f32.mrb[0].mxu0
      %5054 = vmatprep.mubr.bf16.mxu0 0
      %5055 = vmatmul.mubr.bf16.gmra.mrb[0].mxu0 %v5006
      %v5056 = vpop.f32.mrb[0].mxu0
      %v5057 = vadd.f32 0.0, %v5056
      %v5058 = vpop.f32.mrb[0].mxu0
      %v5059 = vpop.f32.mrb[0].mxu0
      %v5060 = vadd.f32 0.0, %v5059
      %v5061 = vpop.f32.mrb[0].mxu0
      %5062 = vmatprep.mubr.bf16.mxu0 0
      %5063 = vmatmul.mubr.bf16.gmra.mrb[0].mxu0 %v5009
      %v5064 = vpop.f32.mrb[0].mxu0
      %v5065 = vadd.f32 0.0, %v5064
      %v5066 = vpop.f32.mrb[0].mxu0
      %v5067 = vpop.f32.mrb[0].mxu0
      %v5068 = vadd.f32 0.0, %v5067
      %v5069 = vpop.f32.mrb[0].mxu0
      %5070 = vmatprep.mubr.bf16.mxu0 0
      %5071 = vmatmul.mubr.bf16.gmra.mrb[0].mxu0 %v5012
      %v5072 = vpop.f32.mrb[0].mxu0
      %v5073 = vadd.f32 0.0, %v5072
      %v5074 = vpop.f32.mrb[0].mxu0
      %v5075 = vpop.f32.mrb[0].mxu0
      %v5076 = vadd.f32 0.0, %v5075
      %v5077 = vpop.f32.mrb[0].mxu0
      %5078 = vdwg.mxu0
      %v5079 = vadd.f32 %v4888, %v5049
      %v5080 = vadd.f32 %v4891, %v5052
      %v5081 = vadd.f32 %v4896, %v5057
      %v5082 = vadd.f32 %v4899, %v5060
      %v5083 = vadd.f32 %v4904, %v5065
      %v5084 = vadd.f32 %v4907, %v5068
      %v5085 = vadd.f32 %v4912, %v5073
      %v5086 = vadd.f32 %v4915, %v5076
      %v5087 = vld [vmem:[%s4523] sm:$0xf]
      %v5088 = vld [vmem:[%s4523 + $0x8] sm:$0xf]
      %v5089 = vld [vmem:[%s4523 + $0x10] sm:$0xf]
      %v5090 = vld [vmem:[%s4523 + $0x18] sm:$0xf]
      %v5091 = vld [vmem:[%s4523 + $0x20] sm:$0xf]
      %v5092 = vld [vmem:[%s4523 + $0x28] sm:$0xf]
      %v5093 = vld [vmem:[%s4523 + $0x30] sm:$0xf]
      %v5094 = vld [vmem:[%s4523 + $0x38] sm:$0xf]
      %v5095 = vld [vmem:[%s7 + $0x30] sm:$0xf]
      %v5096 = vld [vmem:[%s7 + $0x34] sm:$0xf]
      %v5097 = vld [vmem:[%s7 + $0x38] sm:$0xf]
      %v5098 = vld [vmem:[%s7 + $0x3c] sm:$0xf]
      %v5107 = vunpack.c.l.b16 %v5087
      %v5108 = vunpack.c.l.b16 %v5088
      %v5109 = vunpack.c.l.b16 %v5089
      %v5110 = vunpack.c.l.b16 %v5090
      %v5111 = vunpack.c.l.b16 %v5091
      %v5112 = vunpack.c.l.b16 %v5092
      %v5113 = vunpack.c.l.b16 %v5093
      %v5114 = vunpack.c.l.b16 %v5094
      %v5115 = vpack.c.b16 %v5108, %v5107
      %v5116 = vpack.c.b16 %v5110, %v5109
      %v5117 = vpack.c.b16 %v5112, %v5111
      %v5118 = vpack.c.b16 %v5114, %v5113
      %v5123 = vunpack.c.l.b16 %v5095
      %v5124 = vunpack.c.l.b16 %v5096
      %v5125 = vunpack.c.l.b16 %v5097
      %v5126 = vunpack.c.l.b16 %v5098
      %v5127 = vpack.c.b16 %v5124, %v5123
      %v5128 = vpack.c.b16 %v5126, %v5125
      %v5132 = vsel %vm830, %v5115, 0
      %v5135 = vsel %vm830, %v5116, 0
      %v5138 = vsel %vm830, %v5117, 0
      %v5141 = vsel %vm830, %v5118, 0
      %5143 = vmatprep.subr.bf16.mxu0 0
      %5144 = vmatpush1.bf16.msra.mxu0 %v5127
      %5145 = vmatprep.subr.bf16.mxu0 0
      %5146 = vmatpush1.bf16.msra.mxu0 %v5128
      %5147 = vmatprep.subr.bf16.mxu0 0
      %5148 = vmatpush1.bf16.msra.mxu0 0
      %5149 = vmatprep.subr.bf16.mxu0 0
      %5150 = vmatpush1.bf16.msra.mxu0 0
      %5151 = vmatprep.subr.bf16.mxu0 0
      %5152 = vmatpush1.bf16.msra.mxu0 0
      %5153 = vmatprep.subr.bf16.mxu0 0
      %5154 = vmatpush1.bf16.msra.mxu0 0
      %5155 = vmatprep.subr.bf16.mxu0 0
      %5156 = vmatpush1.bf16.msra.mxu0 0
      %5157 = vmatprep.subr.bf16.mxu0 0
      %5158 = vmatpush1.bf16.msra.mxu0 0
      %5159 = vmatprep.subr.bf16.mxu0 0
      %5160 = vmatpush1.bf16.msra.mxu0 0
      %5161 = vmatprep.subr.bf16.mxu0 0
      %5162 = vmatpush1.bf16.msra.mxu0 0
      %5163 = vmatprep.subr.bf16.mxu0 0
      %5164 = vmatpush1.bf16.msra.mxu0 0
      %5165 = vmatprep.subr.bf16.mxu0 0
      %5166 = vmatpush1.bf16.msra.mxu0 0
      %5167 = vmatprep.subr.bf16.mxu0 0
      %5168 = vmatpush1.bf16.msra.mxu0 0
      %5169 = vmatprep.subr.bf16.mxu0 0
      %5170 = vmatpush1.bf16.msra.mxu0 0
      %5171 = vmatprep.subr.bf16.mxu0 0
      %5172 = vmatpush1.bf16.msra.mxu0 0
      %5173 = vmatprep.subr.bf16.mxu0 0
      %5174 = vmatpush1.bf16.msra.mxu0 0
      %5175 = vmatprep.mubr.bf16.mxu0 0
      %5176 = vmatmul.mubr.bf16.gmra.mrb[0].mxu0 %v5132
      %v5177 = vpop.f32.mrb[0].mxu0
      %v5178 = vadd.f32 0.0, %v5177
      %v5179 = vpop.f32.mrb[0].mxu0
      %v5180 = vpop.f32.mrb[0].mxu0
      %v5181 = vadd.f32 0.0, %v5180
      %v5182 = vpop.f32.mrb[0].mxu0
      %5183 = vmatprep.mubr.bf16.mxu0 0
      %5184 = vmatmul.mubr.bf16.gmra.mrb[0].mxu0 %v5135
      %v5185 = vpop.f32.mrb[0].mxu0
      %v5186 = vadd.f32 0.0, %v5185
      %v5187 = vpop.f32.mrb[0].mxu0
      %v5188 = vpop.f32.mrb[0].mxu0
      %v5189 = vadd.f32 0.0, %v5188
      %v5190 = vpop.f32.mrb[0].mxu0
      %5191 = vmatprep.mubr.bf16.mxu0 0
      %5192 = vmatmul.mubr.bf16.gmra.mrb[0].mxu0 %v5138
      %v5193 = vpop.f32.mrb[0].mxu0
      %v5194 = vadd.f32 0.0, %v5193
      %v5195 = vpop.f32.mrb[0].mxu0
      %v5196 = vpop.f32.mrb[0].mxu0
      %v5197 = vadd.f32 0.0, %v5196
      %v5198 = vpop.f32.mrb[0].mxu0
      %5199 = vmatprep.mubr.bf16.mxu0 0
      %5200 = vmatmul.mubr.bf16.gmra.mrb[0].mxu0 %v5141
      %v5201 = vpop.f32.mrb[0].mxu0
      %v5202 = vadd.f32 0.0, %v5201
      %v5203 = vpop.f32.mrb[0].mxu0
      %v5204 = vpop.f32.mrb[0].mxu0
      %v5205 = vadd.f32 0.0, %v5204
      %v5206 = vpop.f32.mrb[0].mxu0
      %5207 = vdwg.mxu0
      %v5208 = vadd.f32 %v5079, %v5178
      %v5209 = vadd.f32 %v5080, %v5181
      %v5210 = vadd.f32 %v5081, %v5186
      %v5211 = vadd.f32 %v5082, %v5189
      %v5212 = vadd.f32 %v5083, %v5194
      %v5213 = vadd.f32 %v5084, %v5197
      %v5214 = vadd.f32 %v5085, %v5202
      %v5215 = vadd.f32 %v5086, %v5205
      %v5216 = vld [vmem:[%s4523] sm:$0xf]
      %v5217 = vld [vmem:[%s4523 + $0x4] sm:$0x1]
      %v5218 = vld [vmem:[%s4523 + $0x8] sm:$0xf]
      %v5219 = vld [vmem:[%s4523 + $0xc] sm:$0x1]
      %v5220 = vld [vmem:[%s4523 + $0x10] sm:$0xf]
      %v5221 = vld [vmem:[%s4523 + $0x14] sm:$0x1]
      %v5222 = vld [vmem:[%s4523 + $0x18] sm:$0xf]
      %v5223 = vld [vmem:[%s4523 + $0x1c] sm:$0x1]
      %v5224 = vld [vmem:[%s4523 + $0x20] sm:$0xf]
      %v5225 = vld [vmem:[%s4523 + $0x24] sm:$0x1]
      %v5226 = vld [vmem:[%s4523 + $0x28] sm:$0xf]
      %v5227 = vld [vmem:[%s4523 + $0x2c] sm:$0x1]
      %v5228 = vld [vmem:[%s4523 + $0x30] sm:$0xf]
      %v5229 = vld [vmem:[%s4523 + $0x34] sm:$0x1]
      %v5230 = vld [vmem:[%s4523 + $0x38] sm:$0xf]
      %v5231 = vld [vmem:[%s4523 + $0x3c] sm:$0x1]
      %v5233 = vshrl.u32 %v5216, 16
      %v5235 = vrot.slane %v5233, 4
      %v5236 = vshll.u32 %v5216, 16
      %v5238 = vrot.slane %v5236, 5
      %v5239 = vor.u32 %v5235, %v5238
      %v5240 = vrot.slane %v5239, 4
      %v5242 = vshll.u32 %v5217, 16
      %v5244 = vrot.slane %v5242, 5
      %v5245 = vsel %vm1099, %v5240, %v5244
      %v5247 = vshrl.u32 %v5218, 16
      %v5249 = vrot.slane %v5247, 4
      %v5250 = vshll.u32 %v5218, 16
      %v5252 = vrot.slane %v5250, 5
      %v5253 = vor.u32 %v5249, %v5252
      %v5254 = vrot.slane %v5253, 4
      %v5256 = vshll.u32 %v5219, 16
      %v5258 = vrot.slane %v5256, 5
      %v5259 = vsel %vm1099, %v5254, %v5258
      %v5261 = vshrl.u32 %v5220, 16
      %v5263 = vrot.slane %v5261, 4
      %v5264 = vshll.u32 %v5220, 16
      %v5266 = vrot.slane %v5264, 5
      %v5267 = vor.u32 %v5263, %v5266
      %v5268 = vrot.slane %v5267, 4
      %v5270 = vshll.u32 %v5221, 16
      %v5272 = vrot.slane %v5270, 5
      %v5273 = vsel %vm1099, %v5268, %v5272
      %v5275 = vshrl.u32 %v5222, 16
      %v5277 = vrot.slane %v5275, 4
      %v5278 = vshll.u32 %v5222, 16
      %v5280 = vrot.slane %v5278, 5
      %v5281 = vor.u32 %v5277, %v5280
      %v5282 = vrot.slane %v5281, 4
      %v5284 = vshll.u32 %v5223, 16
      %v5286 = vrot.slane %v5284, 5
      %v5287 = vsel %vm1099, %v5282, %v5286
      %v5289 = vshrl.u32 %v5224, 16
      %v5291 = vrot.slane %v5289, 4
      %v5292 = vshll.u32 %v5224, 16
      %v5294 = vrot.slane %v5292, 5
      %v5295 = vor.u32 %v5291, %v5294
      %v5296 = vrot.slane %v5295, 4
      %v5298 = vshll.u32 %v5225, 16
      %v5300 = vrot.slane %v5298, 5
      %v5301 = vsel %vm1099, %v5296, %v5300
      %v5303 = vshrl.u32 %v5226, 16
      %v5305 = vrot.slane %v5303, 4
      %v5306 = vshll.u32 %v5226, 16
      %v5308 = vrot.slane %v5306, 5
      %v5309 = vor.u32 %v5305, %v5308
      %v5310 = vrot.slane %v5309, 4
      %v5312 = vshll.u32 %v5227, 16
      %v5314 = vrot.slane %v5312, 5
      %v5315 = vsel %vm1099, %v5310, %v5314
      %v5317 = vshrl.u32 %v5228, 16
      %v5319 = vrot.slane %v5317, 4
      %v5320 = vshll.u32 %v5228, 16
      %v5322 = vrot.slane %v5320, 5
      %v5323 = vor.u32 %v5319, %v5322
      %v5324 = vrot.slane %v5323, 4
      %v5326 = vshll.u32 %v5229, 16
      %v5328 = vrot.slane %v5326, 5
      %v5329 = vsel %vm1099, %v5324, %v5328
      %v5331 = vshrl.u32 %v5230, 16
      %v5333 = vrot.slane %v5331, 4
      %v5334 = vshll.u32 %v5230, 16
      %v5336 = vrot.slane %v5334, 5
      %v5337 = vor.u32 %v5333, %v5336
      %v5338 = vrot.slane %v5337, 4
      %v5340 = vshll.u32 %v5231, 16
      %v5342 = vrot.slane %v5340, 5
      %v5343 = vsel %vm1099, %v5338, %v5342
      %v5344 = vld [vmem:[%s7 + $0x40] sm:$0xf]
      %v5345 = vld [vmem:[%s7 + $0x44] sm:$0xf]
      %v5346 = vld [vmem:[%s7 + $0x48] sm:$0xf]
      %v5347 = vld [vmem:[%s7 + $0x4c] sm:$0xf]
      %v5348 = vunpack.c.l.b16 %v5245
      %v5349 = vunpack.c.l.b16 %v5259
      %v5350 = vunpack.c.l.b16 %v5273
      %v5351 = vunpack.c.l.b16 %v5287
      %v5352 = vunpack.c.l.b16 %v5301
      %v5353 = vunpack.c.l.b16 %v5315
      %v5354 = vunpack.c.l.b16 %v5329
      %v5355 = vunpack.c.l.b16 %v5343
      %v5356 = vpack.c.b16 %v5349, %v5348
      %v5357 = vpack.c.b16 %v5351, %v5350
      %v5358 = vpack.c.b16 %v5353, %v5352
      %v5359 = vpack.c.b16 %v5355, %v5354
      %v5364 = vunpack.c.l.b16 %v5344
      %v5365 = vunpack.c.l.b16 %v5345
      %v5366 = vunpack.c.l.b16 %v5346
      %v5367 = vunpack.c.l.b16 %v5347
      %v5368 = vpack.c.b16 %v5365, %v5364
      %v5369 = vpack.c.b16 %v5367, %v5366
      %v5373 = vsel %vm830, %v5356, 0
      %v5376 = vsel %vm830, %v5357, 0
      %v5379 = vsel %vm830, %v5358, 0
      %v5382 = vsel %vm830, %v5359, 0
      %5384 = vmatprep.subr.bf16.mxu0 0
      %5385 = vmatpush1.bf16.msra.mxu0 %v5368
      %5386 = vmatprep.subr.bf16.mxu0 0
      %5387 = vmatpush1.bf16.msra.mxu0 %v5369
      %5388 = vmatprep.subr.bf16.mxu0 0
      %5389 = vmatpush1.bf16.msra.mxu0 0
      %5390 = vmatprep.subr.bf16.mxu0 0
      %5391 = vmatpush1.bf16.msra.mxu0 0
      %5392 = vmatprep.subr.bf16.mxu0 0
      %5393 = vmatpush1.bf16.msra.mxu0 0
      %5394 = vmatprep.subr.bf16.mxu0 0
      %5395 = vmatpush1.bf16.msra.mxu0 0
      %5396 = vmatprep.subr.bf16.mxu0 0
      %5397 = vmatpush1.bf16.msra.mxu0 0
      %5398 = vmatprep.subr.bf16.mxu0 0
      %5399 = vmatpush1.bf16.msra.mxu0 0
      %5400 = vmatprep.subr.bf16.mxu0 0
      %5401 = vmatpush1.bf16.msra.mxu0 0
      %5402 = vmatprep.subr.bf16.mxu0 0
      %5403 = vmatpush1.bf16.msra.mxu0 0
      %5404 = vmatprep.subr.bf16.mxu0 0
      %5405 = vmatpush1.bf16.msra.mxu0 0
      %5406 = vmatprep.subr.bf16.mxu0 0
      %5407 = vmatpush1.bf16.msra.mxu0 0
      %5408 = vmatprep.subr.bf16.mxu0 0
      %5409 = vmatpush1.bf16.msra.mxu0 0
      %5410 = vmatprep.subr.bf16.mxu0 0
      %5411 = vmatpush1.bf16.msra.mxu0 0
      %5412 = vmatprep.subr.bf16.mxu0 0
      %5413 = vmatpush1.bf16.msra.mxu0 0
      %5414 = vmatprep.subr.bf16.mxu0 0
      %5415 = vmatpush1.bf16.msra.mxu0 0
      %5416 = vmatprep.mubr.bf16.mxu0 0
      %5417 = vmatmul.mubr.bf16.gmra.mrb[0].mxu0 %v5373
      %v5418 = vpop.f32.mrb[0].mxu0
      %v5419 = vadd.f32 0.0, %v5418
      %v5420 = vpop.f32.mrb[0].mxu0
      %v5421 = vpop.f32.mrb[0].mxu0
      %v5422 = vadd.f32 0.0, %v5421
      %v5423 = vpop.f32.mrb[0].mxu0
      %5424 = vmatprep.mubr.bf16.mxu0 0
      %5425 = vmatmul.mubr.bf16.gmra.mrb[0].mxu0 %v5376
      %v5426 = vpop.f32.mrb[0].mxu0
      %v5427 = vadd.f32 0.0, %v5426
      %v5428 = vpop.f32.mrb[0].mxu0
      %v5429 = vpop.f32.mrb[0].mxu0
      %v5430 = vadd.f32 0.0, %v5429
      %v5431 = vpop.f32.mrb[0].mxu0
      %5432 = vmatprep.mubr.bf16.mxu0 0
      %5433 = vmatmul.mubr.bf16.gmra.mrb[0].mxu0 %v5379
      %v5434 = vpop.f32.mrb[0].mxu0
      %v5435 = vadd.f32 0.0, %v5434
      %v5436 = vpop.f32.mrb[0].mxu0
      %v5437 = vpop.f32.mrb[0].mxu0
      %v5438 = vadd.f32 0.0, %v5437
      %v5439 = vpop.f32.mrb[0].mxu0
      %5440 = vmatprep.mubr.bf16.mxu0 0
      %5441 = vmatmul.mubr.bf16.gmra.mrb[0].mxu0 %v5382
      %v5442 = vpop.f32.mrb[0].mxu0
      %v5443 = vadd.f32 0.0, %v5442
      %v5444 = vpop.f32.mrb[0].mxu0
      %v5445 = vpop.f32.mrb[0].mxu0
      %v5446 = vadd.f32 0.0, %v5445
      %v5447 = vpop.f32.mrb[0].mxu0
      %5448 = vdwg.mxu0
      %v5449 = vadd.f32 %v5208, %v5419
      %v5450 = vadd.f32 %v5209, %v5422
      %v5451 = vadd.f32 %v5210, %v5427
      %v5452 = vadd.f32 %v5211, %v5430
      %v5453 = vadd.f32 %v5212, %v5435
      %v5454 = vadd.f32 %v5213, %v5438
      %v5455 = vadd.f32 %v5214, %v5443
      %v5456 = vadd.f32 %v5215, %v5446
      %v5457 = vld [vmem:[%s4523] sm:$0xe]
      %v5458 = vld [vmem:[%s4523 + $0x8] sm:$0xe]
      %v5459 = vld [vmem:[%s4523 + $0x10] sm:$0xe]
      %v5460 = vld [vmem:[%s4523 + $0x18] sm:$0xe]
      %v5461 = vld [vmem:[%s4523 + $0x20] sm:$0xe]
      %v5462 = vld [vmem:[%s4523 + $0x28] sm:$0xe]
      %v5463 = vld [vmem:[%s4523 + $0x30] sm:$0xe]
      %v5464 = vld [vmem:[%s4523 + $0x38] sm:$0xe]
      %v5481 = vrot.slane %v5457, 5
      %v5482 = vrot.slane %v5481, 4
      %v5483 = vrot.slane %v5217, 5
      %v5484 = vsel %vm1439, %v5482, %v5483
      %v5485 = vrot.slane %v5458, 5
      %v5486 = vrot.slane %v5485, 4
      %v5487 = vrot.slane %v5219, 5
      %v5488 = vsel %vm1439, %v5486, %v5487
      %v5489 = vrot.slane %v5459, 5
      %v5490 = vrot.slane %v5489, 4
      %v5491 = vrot.slane %v5221, 5
      %v5492 = vsel %vm1439, %v5490, %v5491
      %v5493 = vrot.slane %v5460, 5
      %v5494 = vrot.slane %v5493, 4
      %v5495 = vrot.slane %v5223, 5
      %v5496 = vsel %vm1439, %v5494, %v5495
      %v5497 = vrot.slane %v5461, 5
      %v5498 = vrot.slane %v5497, 4
      %v5499 = vrot.slane %v5225, 5
      %v5500 = vsel %vm1439, %v5498, %v5499
      %v5501 = vrot.slane %v5462, 5
      %v5502 = vrot.slane %v5501, 4
      %v5503 = vrot.slane %v5227, 5
      %v5504 = vsel %vm1439, %v5502, %v5503
      %v5505 = vrot.slane %v5463, 5
      %v5506 = vrot.slane %v5505, 4
      %v5507 = vrot.slane %v5229, 5
      %v5508 = vsel %vm1439, %v5506, %v5507
      %v5509 = vrot.slane %v5464, 5
      %v5510 = vrot.slane %v5509, 4
      %v5511 = vrot.slane %v5231, 5
      %v5512 = vsel %vm1439, %v5510, %v5511
      %v5513 = vld [vmem:[%s7 + $0x50] sm:$0xf]
      %v5514 = vld [vmem:[%s7 + $0x54] sm:$0xf]
      %v5515 = vld [vmem:[%s7 + $0x58] sm:$0xf]
      %v5516 = vld [vmem:[%s7 + $0x5c] sm:$0xf]
      %v5517 = vunpack.c.l.b16 %v5484
      %v5518 = vunpack.c.l.b16 %v5488
      %v5519 = vunpack.c.l.b16 %v5492
      %v5520 = vunpack.c.l.b16 %v5496
      %v5521 = vunpack.c.l.b16 %v5500
      %v5522 = vunpack.c.l.b16 %v5504
      %v5523 = vunpack.c.l.b16 %v5508
      %v5524 = vunpack.c.l.b16 %v5512
      %v5525 = vpack.c.b16 %v5518, %v5517
      %v5526 = vpack.c.b16 %v5520, %v5519
      %v5527 = vpack.c.b16 %v5522, %v5521
      %v5528 = vpack.c.b16 %v5524, %v5523
      %v5533 = vunpack.c.l.b16 %v5513
      %v5534 = vunpack.c.l.b16 %v5514
      %v5535 = vunpack.c.l.b16 %v5515
      %v5536 = vunpack.c.l.b16 %v5516
      %v5537 = vpack.c.b16 %v5534, %v5533
      %v5538 = vpack.c.b16 %v5536, %v5535
      %v5542 = vsel %vm830, %v5525, 0
      %v5545 = vsel %vm830, %v5526, 0
      %v5548 = vsel %vm830, %v5527, 0
      %v5551 = vsel %vm830, %v5528, 0
      %5553 = vmatprep.subr.bf16.mxu0 0
      %5554 = vmatpush1.bf16.msra.mxu0 %v5537
      %5555 = vmatprep.subr.bf16.mxu0 0
      %5556 = vmatpush1.bf16.msra.mxu0 %v5538
      %5557 = vmatprep.subr.bf16.mxu0 0
      %5558 = vmatpush1.bf16.msra.mxu0 0
      %5559 = vmatprep.subr.bf16.mxu0 0
      %5560 = vmatpush1.bf16.msra.mxu0 0
      %5561 = vmatprep.subr.bf16.mxu0 0
      %5562 = vmatpush1.bf16.msra.mxu0 0
      %5563 = vmatprep.subr.bf16.mxu0 0
      %5564 = vmatpush1.bf16.msra.mxu0 0
      %5565 = vmatprep.subr.bf16.mxu0 0
      %5566 = vmatpush1.bf16.msra.mxu0 0
      %5567 = vmatprep.subr.bf16.mxu0 0
      %5568 = vmatpush1.bf16.msra.mxu0 0
      %5569 = vmatprep.subr.bf16.mxu0 0
      %5570 = vmatpush1.bf16.msra.mxu0 0
      %5571 = vmatprep.subr.bf16.mxu0 0
      %5572 = vmatpush1.bf16.msra.mxu0 0
      %5573 = vmatprep.subr.bf16.mxu0 0
      %5574 = vmatpush1.bf16.msra.mxu0 0
      %5575 = vmatprep.subr.bf16.mxu0 0
      %5576 = vmatpush1.bf16.msra.mxu0 0
      %5577 = vmatprep.subr.bf16.mxu0 0
      %5578 = vmatpush1.bf16.msra.mxu0 0
      %5579 = vmatprep.subr.bf16.mxu0 0
      %5580 = vmatpush1.bf16.msra.mxu0 0
      %5581 = vmatprep.subr.bf16.mxu0 0
      %5582 = vmatpush1.bf16.msra.mxu0 0
      %5583 = vmatprep.subr.bf16.mxu0 0
      %5584 = vmatpush1.bf16.msra.mxu0 0
      %5585 = vmatprep.mubr.bf16.mxu0 0
      %5586 = vmatmul.mubr.bf16.gmra.mrb[0].mxu0 %v5542
      %v5587 = vpop.f32.mrb[0].mxu0
      %v5588 = vadd.f32 0.0, %v5587
      %v5589 = vpop.f32.mrb[0].mxu0
      %v5590 = vpop.f32.mrb[0].mxu0
      %v5591 = vadd.f32 0.0, %v5590
      %v5592 = vpop.f32.mrb[0].mxu0
      %5593 = vmatprep.mubr.bf16.mxu0 0
      %5594 = vmatmul.mubr.bf16.gmra.mrb[0].mxu0 %v5545
      %v5595 = vpop.f32.mrb[0].mxu0
      %v5596 = vadd.f32 0.0, %v5595
      %v5597 = vpop.f32.mrb[0].mxu0
      %v5598 = vpop.f32.mrb[0].mxu0
      %v5599 = vadd.f32 0.0, %v5598
      %v5600 = vpop.f32.mrb[0].mxu0
      %5601 = vmatprep.mubr.bf16.mxu0 0
      %5602 = vmatmul.mubr.bf16.gmra.mrb[0].mxu0 %v5548
      %v5603 = vpop.f32.mrb[0].mxu0
      %v5604 = vadd.f32 0.0, %v5603
      %v5605 = vpop.f32.mrb[0].mxu0
      %v5606 = vpop.f32.mrb[0].mxu0
      %v5607 = vadd.f32 0.0, %v5606
      %v5608 = vpop.f32.mrb[0].mxu0
      %5609 = vmatprep.mubr.bf16.mxu0 0
      %5610 = vmatmul.mubr.bf16.gmra.mrb[0].mxu0 %v5551
      %v5611 = vpop.f32.mrb[0].mxu0
      %v5612 = vadd.f32 0.0, %v5611
      %v5613 = vpop.f32.mrb[0].mxu0
      %v5614 = vpop.f32.mrb[0].mxu0
      %v5615 = vadd.f32 0.0, %v5614
      %v5616 = vpop.f32.mrb[0].mxu0
      %5617 = vdwg.mxu0
      %v5618 = vadd.f32 %v5449, %v5588
      %v5619 = vadd.f32 %v5450, %v5591
      %v5620 = vadd.f32 %v5451, %v5596
      %v5621 = vadd.f32 %v5452, %v5599
      %v5622 = vadd.f32 %v5453, %v5604
      %v5623 = vadd.f32 %v5454, %v5607
      %v5624 = vadd.f32 %v5455, %v5612
      %v5625 = vadd.f32 %v5456, %v5615
      %s5626 = scalar_lea.vmem [#allocation4], 16
      %v5627 = vld [vmem:[%s5626] sm:$0xf]
      %v5628 = vld [vmem:[%s5626 + $0x8] sm:$0xf]
      %v5629 = vld [vmem:[%s5626 + $0x10] sm:$0xf]
      %v5630 = vld [vmem:[%s5626 + $0x18] sm:$0xf]
      %v5631 = vld [vmem:[%s5626 + $0x20] sm:$0xf]
      %v5632 = vld [vmem:[%s5626 + $0x28] sm:$0xf]
      %v5633 = vld [vmem:[%s5626 + $0x30] sm:$0xf]
      %v5634 = vld [vmem:[%s5626 + $0x38] sm:$0xf]
      %v5635 = vld [vmem:[%s7 + $0x60] sm:$0xf]
      %v5636 = vld [vmem:[%s7 + $0x64] sm:$0xf]
      %v5637 = vld [vmem:[%s7 + $0x68] sm:$0xf]
      %v5638 = vld [vmem:[%s7 + $0x6c] sm:$0xf]
      %v5647 = vunpack.c.l.b16 %v5627
      %v5648 = vunpack.c.l.b16 %v5628
      %v5649 = vunpack.c.l.b16 %v5629
      %v5650 = vunpack.c.l.b16 %v5630
      %v5651 = vunpack.c.l.b16 %v5631
      %v5652 = vunpack.c.l.b16 %v5632
      %v5653 = vunpack.c.l.b16 %v5633
      %v5654 = vunpack.c.l.b16 %v5634
      %v5655 = vpack.c.b16 %v5648, %v5647
      %v5656 = vpack.c.b16 %v5650, %v5649
      %v5657 = vpack.c.b16 %v5652, %v5651
      %v5658 = vpack.c.b16 %v5654, %v5653
      %v5663 = vunpack.c.l.b16 %v5635
      %v5664 = vunpack.c.l.b16 %v5636
      %v5665 = vunpack.c.l.b16 %v5637
      %v5666 = vunpack.c.l.b16 %v5638
      %v5667 = vpack.c.b16 %v5664, %v5663
      %v5668 = vpack.c.b16 %v5666, %v5665
      %v5672 = vsel %vm830, %v5655, 0
      %v5675 = vsel %vm830, %v5656, 0
      %v5678 = vsel %vm830, %v5657, 0
      %v5681 = vsel %vm830, %v5658, 0
      %5683 = vmatprep.subr.bf16.mxu0 0
      %5684 = vmatpush1.bf16.msra.mxu0 %v5667
      %5685 = vmatprep.subr.bf16.mxu0 0
      %5686 = vmatpush1.bf16.msra.mxu0 %v5668
      %5687 = vmatprep.subr.bf16.mxu0 0
      %5688 = vmatpush1.bf16.msra.mxu0 0
      %5689 = vmatprep.subr.bf16.mxu0 0
      %5690 = vmatpush1.bf16.msra.mxu0 0
      %5691 = vmatprep.subr.bf16.mxu0 0
      %5692 = vmatpush1.bf16.msra.mxu0 0
      %5693 = vmatprep.subr.bf16.mxu0 0
      %5694 = vmatpush1.bf16.msra.mxu0 0
      %5695 = vmatprep.subr.bf16.mxu0 0
      %5696 = vmatpush1.bf16.msra.mxu0 0
      %5697 = vmatprep.subr.bf16.mxu0 0
      %5698 = vmatpush1.bf16.msra.mxu0 0
      %5699 = vmatprep.subr.bf16.mxu0 0
      %5700 = vmatpush1.bf16.msra.mxu0 0
      %5701 = vmatprep.subr.bf16.mxu0 0
      %5702 = vmatpush1.bf16.msra.mxu0 0
      %5703 = vmatprep.subr.bf16.mxu0 0
      %5704 = vmatpush1.bf16.msra.mxu0 0
      %5705 = vmatprep.subr.bf16.mxu0 0
      %5706 = vmatpush1.bf16.msra.mxu0 0
      %5707 = vmatprep.subr.bf16.mxu0 0
      %5708 = vmatpush1.bf16.msra.mxu0 0
      %5709 = vmatprep.subr.bf16.mxu0 0
      %5710 = vmatpush1.bf16.msra.mxu0 0
      %5711 = vmatprep.subr.bf16.mxu0 0
      %5712 = vmatpush1.bf16.msra.mxu0 0
      %5713 = vmatprep.subr.bf16.mxu0 0
      %5714 = vmatpush1.bf16.msra.mxu0 0
      %5715 = vmatprep.mubr.bf16.mxu0 0
      %5716 = vmatmul.mubr.bf16.gmra.mrb[0].mxu0 %v5672
      %v5717 = vpop.f32.mrb[0].mxu0
      %v5718 = vadd.f32 0.0, %v5717
      %v5719 = vpop.f32.mrb[0].mxu0
      %v5720 = vpop.f32.mrb[0].mxu0
      %v5721 = vadd.f32 0.0, %v5720
      %v5722 = vpop.f32.mrb[0].mxu0
      %5723 = vmatprep.mubr.bf16.mxu0 0
      %5724 = vmatmul.mubr.bf16.gmra.mrb[0].mxu0 %v5675
      %v5725 = vpop.f32.mrb[0].mxu0
      %v5726 = vadd.f32 0.0, %v5725
      %v5727 = vpop.f32.mrb[0].mxu0
      %v5728 = vpop.f32.mrb[0].mxu0
      %v5729 = vadd.f32 0.0, %v5728
      %v5730 = vpop.f32.mrb[0].mxu0
      %5731 = vmatprep.mubr.bf16.mxu0 0
      %5732 = vmatmul.mubr.bf16.gmra.mrb[0].mxu0 %v5678
      %v5733 = vpop.f32.mrb[0].mxu0
      %v5734 = vadd.f32 0.0, %v5733
      %v5735 = vpop.f32.mrb[0].mxu0
      %v5736 = vpop.f32.mrb[0].mxu0
      %v5737 = vadd.f32 0.0, %v5736
      %v5738 = vpop.f32.mrb[0].mxu0
      %5739 = vmatprep.mubr.bf16.mxu0 0
      %5740 = vmatmul.mubr.bf16.gmra.mrb[0].mxu0 %v5681
      %v5741 = vpop.f32.mrb[0].mxu0
      %v5742 = vadd.f32 0.0, %v5741
      %v5743 = vpop.f32.mrb[0].mxu0
      %v5744 = vpop.f32.mrb[0].mxu0
      %v5745 = vadd.f32 0.0, %v5744
      %v5746 = vpop.f32.mrb[0].mxu0
      %5747 = vdwg.mxu0
      %v5748 = vadd.f32 %v5618, %v5718
      %v5749 = vadd.f32 %v5619, %v5721
      %v5750 = vadd.f32 %v5620, %v5726
      %v5751 = vadd.f32 %v5621, %v5729
      %v5752 = vadd.f32 %v5622, %v5734
      %v5753 = vadd.f32 %v5623, %v5737
      %v5754 = vadd.f32 %v5624, %v5742
      %v5755 = vadd.f32 %v5625, %v5745
      %v5756 = vld [vmem:[%s5626] sm:$0xf]
      %v5757 = vld [vmem:[%s5626 + $0x4] sm:$0x1]
      %v5758 = vld [vmem:[%s5626 + $0x8] sm:$0xf]
      %v5759 = vld [vmem:[%s5626 + $0xc] sm:$0x1]
      %v5760 = vld [vmem:[%s5626 + $0x10] sm:$0xf]
      %v5761 = vld [vmem:[%s5626 + $0x14] sm:$0x1]
      %v5762 = vld [vmem:[%s5626 + $0x18] sm:$0xf]
      %v5763 = vld [vmem:[%s5626 + $0x1c] sm:$0x1]
      %v5764 = vld [vmem:[%s5626 + $0x20] sm:$0xf]
      %v5765 = vld [vmem:[%s5626 + $0x24] sm:$0x1]
      %v5766 = vld [vmem:[%s5626 + $0x28] sm:$0xf]
      %v5767 = vld [vmem:[%s5626 + $0x2c] sm:$0x1]
      %v5768 = vld [vmem:[%s5626 + $0x30] sm:$0xf]
      %v5769 = vld [vmem:[%s5626 + $0x34] sm:$0x1]
      %v5770 = vld [vmem:[%s5626 + $0x38] sm:$0xf]
      %v5771 = vld [vmem:[%s5626 + $0x3c] sm:$0x1]
      %v5773 = vshrl.u32 %v5756, 16
      %v5775 = vrot.slane %v5773, 4
      %v5776 = vshll.u32 %v5756, 16
      %v5778 = vrot.slane %v5776, 5
      %v5779 = vor.u32 %v5775, %v5778
      %v5780 = vrot.slane %v5779, 4
      %v5782 = vshll.u32 %v5757, 16
      %v5784 = vrot.slane %v5782, 5
      %v5785 = vsel %vm1099, %v5780, %v5784
      %v5787 = vshrl.u32 %v5758, 16
      %v5789 = vrot.slane %v5787, 4
      %v5790 = vshll.u32 %v5758, 16
      %v5792 = vrot.slane %v5790, 5
      %v5793 = vor.u32 %v5789, %v5792
      %v5794 = vrot.slane %v5793, 4
      %v5796 = vshll.u32 %v5759, 16
      %v5798 = vrot.slane %v5796, 5
      %v5799 = vsel %vm1099, %v5794, %v5798
      %v5801 = vshrl.u32 %v5760, 16
      %v5803 = vrot.slane %v5801, 4
      %v5804 = vshll.u32 %v5760, 16
      %v5806 = vrot.slane %v5804, 5
      %v5807 = vor.u32 %v5803, %v5806
      %v5808 = vrot.slane %v5807, 4
      %v5810 = vshll.u32 %v5761, 16
      %v5812 = vrot.slane %v5810, 5
      %v5813 = vsel %vm1099, %v5808, %v5812
      %v5815 = vshrl.u32 %v5762, 16
      %v5817 = vrot.slane %v5815, 4
      %v5818 = vshll.u32 %v5762, 16
      %v5820 = vrot.slane %v5818, 5
      %v5821 = vor.u32 %v5817, %v5820
      %v5822 = vrot.slane %v5821, 4
      %v5824 = vshll.u32 %v5763, 16
      %v5826 = vrot.slane %v5824, 5
      %v5827 = vsel %vm1099, %v5822, %v5826
      %v5829 = vshrl.u32 %v5764, 16
      %v5831 = vrot.slane %v5829, 4
      %v5832 = vshll.u32 %v5764, 16
      %v5834 = vrot.slane %v5832, 5
      %v5835 = vor.u32 %v5831, %v5834
      %v5836 = vrot.slane %v5835, 4
      %v5838 = vshll.u32 %v5765, 16
      %v5840 = vrot.slane %v5838, 5
      %v5841 = vsel %vm1099, %v5836, %v5840
      %v5843 = vshrl.u32 %v5766, 16
      %v5845 = vrot.slane %v5843, 4
      %v5846 = vshll.u32 %v5766, 16
      %v5848 = vrot.slane %v5846, 5
      %v5849 = vor.u32 %v5845, %v5848
      %v5850 = vrot.slane %v5849, 4
      %v5852 = vshll.u32 %v5767, 16
      %v5854 = vrot.slane %v5852, 5
      %v5855 = vsel %vm1099, %v5850, %v5854
      %v5857 = vshrl.u32 %v5768, 16
      %v5859 = vrot.slane %v5857, 4
      %v5860 = vshll.u32 %v5768, 16
      %v5862 = vrot.slane %v5860, 5
      %v5863 = vor.u32 %v5859, %v5862
      %v5864 = vrot.slane %v5863, 4
      %v5866 = vshll.u32 %v5769, 16
      %v5868 = vrot.slane %v5866, 5
      %v5869 = vsel %vm1099, %v5864, %v5868
      %v5871 = vshrl.u32 %v5770, 16
      %v5873 = vrot.slane %v5871, 4
      %v5874 = vshll.u32 %v5770, 16
      %v5876 = vrot.slane %v5874, 5
      %v5877 = vor.u32 %v5873, %v5876
      %v5878 = vrot.slane %v5877, 4
      %v5880 = vshll.u32 %v5771, 16
      %v5882 = vrot.slane %v5880, 5
      %v5883 = vsel %vm1099, %v5878, %v5882
      %v5884 = vld [vmem:[%s7 + $0x70] sm:$0xf]
      %v5885 = vld [vmem:[%s7 + $0x74] sm:$0xf]
      %v5886 = vld [vmem:[%s7 + $0x78] sm:$0xf]
      %v5887 = vld [vmem:[%s7 + $0x7c] sm:$0xf]
      %v5888 = vunpack.c.l.b16 %v5785
      %v5889 = vunpack.c.l.b16 %v5799
      %v5890 = vunpack.c.l.b16 %v5813
      %v5891 = vunpack.c.l.b16 %v5827
      %v5892 = vunpack.c.l.b16 %v5841
      %v5893 = vunpack.c.l.b16 %v5855
      %v5894 = vunpack.c.l.b16 %v5869
      %v5895 = vunpack.c.l.b16 %v5883
      %v5896 = vpack.c.b16 %v5889, %v5888
      %v5897 = vpack.c.b16 %v5891, %v5890
      %v5898 = vpack.c.b16 %v5893, %v5892
      %v5899 = vpack.c.b16 %v5895, %v5894
      %v5904 = vunpack.c.l.b16 %v5884
      %v5905 = vunpack.c.l.b16 %v5885
      %v5906 = vunpack.c.l.b16 %v5886
      %v5907 = vunpack.c.l.b16 %v5887
      %v5908 = vpack.c.b16 %v5905, %v5904
      %v5909 = vpack.c.b16 %v5907, %v5906
      %v5913 = vsel %vm830, %v5896, 0
      %v5916 = vsel %vm830, %v5897, 0
      %v5919 = vsel %vm830, %v5898, 0
      %v5922 = vsel %vm830, %v5899, 0
      %5924 = vmatprep.subr.bf16.mxu0 0
      %5925 = vmatpush1.bf16.msra.mxu0 %v5908
      %5926 = vmatprep.subr.bf16.mxu0 0
      %5927 = vmatpush1.bf16.msra.mxu0 %v5909
      %5928 = vmatprep.subr.bf16.mxu0 0
      %5929 = vmatpush1.bf16.msra.mxu0 0
      %5930 = vmatprep.subr.bf16.mxu0 0
      %5931 = vmatpush1.bf16.msra.mxu0 0
      %5932 = vmatprep.subr.bf16.mxu0 0
      %5933 = vmatpush1.bf16.msra.mxu0 0
      %5934 = vmatprep.subr.bf16.mxu0 0
      %5935 = vmatpush1.bf16.msra.mxu0 0
      %5936 = vmatprep.subr.bf16.mxu0 0
      %5937 = vmatpush1.bf16.msra.mxu0 0
      %5938 = vmatprep.subr.bf16.mxu0 0
      %5939 = vmatpush1.bf16.msra.mxu0 0
      %5940 = vmatprep.subr.bf16.mxu0 0
      %5941 = vmatpush1.bf16.msra.mxu0 0
      %5942 = vmatprep.subr.bf16.mxu0 0
      %5943 = vmatpush1.bf16.msra.mxu0 0
      %5944 = vmatprep.subr.bf16.mxu0 0
      %5945 = vmatpush1.bf16.msra.mxu0 0
      %5946 = vmatprep.subr.bf16.mxu0 0
      %5947 = vmatpush1.bf16.msra.mxu0 0
      %5948 = vmatprep.subr.bf16.mxu0 0
      %5949 = vmatpush1.bf16.msra.mxu0 0
      %5950 = vmatprep.subr.bf16.mxu0 0
      %5951 = vmatpush1.bf16.msra.mxu0 0
      %5952 = vmatprep.subr.bf16.mxu0 0
      %5953 = vmatpush1.bf16.msra.mxu0 0
      %5954 = vmatprep.subr.bf16.mxu0 0
      %5955 = vmatpush1.bf16.msra.mxu0 0
      %5956 = vmatprep.mubr.bf16.mxu0 0
      %5957 = vmatmul.mubr.bf16.gmra.mrb[0].mxu0 %v5913
      %v5958 = vpop.f32.mrb[0].mxu0
      %v5959 = vadd.f32 0.0, %v5958
      %v5960 = vpop.f32.mrb[0].mxu0
      %v5961 = vpop.f32.mrb[0].mxu0
      %v5962 = vadd.f32 0.0, %v5961
      %v5963 = vpop.f32.mrb[0].mxu0
      %5964 = vmatprep.mubr.bf16.mxu0 0
      %5965 = vmatmul.mubr.bf16.gmra.mrb[0].mxu0 %v5916
      %v5966 = vpop.f32.mrb[0].mxu0
      %v5967 = vadd.f32 0.0, %v5966
      %v5968 = vpop.f32.mrb[0].mxu0
      %v5969 = vpop.f32.mrb[0].mxu0
      %v5970 = vadd.f32 0.0, %v5969
      %v5971 = vpop.f32.mrb[0].mxu0
      %5972 = vmatprep.mubr.bf16.mxu0 0
      %5973 = vmatmul.mubr.bf16.gmra.mrb[0].mxu0 %v5919
      %v5974 = vpop.f32.mrb[0].mxu0
      %v5975 = vadd.f32 0.0, %v5974
      %v5976 = vpop.f32.mrb[0].mxu0
      %v5977 = vpop.f32.mrb[0].mxu0
      %v5978 = vadd.f32 0.0, %v5977
      %v5979 = vpop.f32.mrb[0].mxu0
      %5980 = vmatprep.mubr.bf16.mxu0 0
      %5981 = vmatmul.mubr.bf16.gmra.mrb[0].mxu0 %v5922
      %v5982 = vpop.f32.mrb[0].mxu0
      %v5983 = vadd.f32 0.0, %v5982
      %v5984 = vpop.f32.mrb[0].mxu0
      %v5985 = vpop.f32.mrb[0].mxu0
      %v5986 = vadd.f32 0.0, %v5985
      %v5987 = vpop.f32.mrb[0].mxu0
      %5988 = vdwg.mxu0
      %v5989 = vadd.f32 %v5748, %v5959
      %v5990 = vadd.f32 %v5749, %v5962
      %v5991 = vadd.f32 %v5750, %v5967
      %v5992 = vadd.f32 %v5751, %v5970
      %v5993 = vadd.f32 %v5752, %v5975
      %v5994 = vadd.f32 %v5753, %v5978
      %v5995 = vadd.f32 %v5754, %v5983
      %v5996 = vadd.f32 %v5755, %v5986
      %v5997 = vld [vmem:[%s5626] sm:$0xe]
      %v5998 = vld [vmem:[%s5626 + $0x8] sm:$0xe]
      %v5999 = vld [vmem:[%s5626 + $0x10] sm:$0xe]
      %v6000 = vld [vmem:[%s5626 + $0x18] sm:$0xe]
      %v6001 = vld [vmem:[%s5626 + $0x20] sm:$0xe]
      %v6002 = vld [vmem:[%s5626 + $0x28] sm:$0xe]
      %v6003 = vld [vmem:[%s5626 + $0x30] sm:$0xe]
      %v6004 = vld [vmem:[%s5626 + $0x38] sm:$0xe]
      %v6021 = vrot.slane %v5997, 5
      %v6022 = vrot.slane %v6021, 4
      %v6023 = vrot.slane %v5757, 5
      %v6024 = vsel %vm1439, %v6022, %v6023
      %v6025 = vrot.slane %v5998, 5
      %v6026 = vrot.slane %v6025, 4
      %v6027 = vrot.slane %v5759, 5
      %v6028 = vsel %vm1439, %v6026, %v6027
      %v6029 = vrot.slane %v5999, 5
      %v6030 = vrot.slane %v6029, 4
      %v6031 = vrot.slane %v5761, 5
      %v6032 = vsel %vm1439, %v6030, %v6031
      %v6033 = vrot.slane %v6000, 5
      %v6034 = vrot.slane %v6033, 4
      %v6035 = vrot.slane %v5763, 5
      %v6036 = vsel %vm1439, %v6034, %v6035
      %v6037 = vrot.slane %v6001, 5
      %v6038 = vrot.slane %v6037, 4
      %v6039 = vrot.slane %v5765, 5
      %v6040 = vsel %vm1439, %v6038, %v6039
      %v6041 = vrot.slane %v6002, 5
      %v6042 = vrot.slane %v6041, 4
      %v6043 = vrot.slane %v5767, 5
      %v6044 = vsel %vm1439, %v6042, %v6043
      %v6045 = vrot.slane %v6003, 5
      %v6046 = vrot.slane %v6045, 4
      %v6047 = vrot.slane %v5769, 5
      %v6048 = vsel %vm1439, %v6046, %v6047
      %v6049 = vrot.slane %v6004, 5
      %v6050 = vrot.slane %v6049, 4
      %v6051 = vrot.slane %v5771, 5
      %v6052 = vsel %vm1439, %v6050, %v6051
      %v6053 = vld [vmem:[%s7 + $0x80] sm:$0xf]
      %v6054 = vld [vmem:[%s7 + $0x84] sm:$0xf]
      %v6055 = vld [vmem:[%s7 + $0x88] sm:$0xf]
      %v6056 = vld [vmem:[%s7 + $0x8c] sm:$0xf]
      %v6057 = vunpack.c.l.b16 %v6024
      %v6058 = vunpack.c.l.b16 %v6028
      %v6059 = vunpack.c.l.b16 %v6032
      %v6060 = vunpack.c.l.b16 %v6036
      %v6061 = vunpack.c.l.b16 %v6040
      %v6062 = vunpack.c.l.b16 %v6044
      %v6063 = vunpack.c.l.b16 %v6048
      %v6064 = vunpack.c.l.b16 %v6052
      %v6065 = vpack.c.b16 %v6058, %v6057
      %v6066 = vpack.c.b16 %v6060, %v6059
      %v6067 = vpack.c.b16 %v6062, %v6061
      %v6068 = vpack.c.b16 %v6064, %v6063
      %v6073 = vunpack.c.l.b16 %v6053
      %v6074 = vunpack.c.l.b16 %v6054
      %v6075 = vunpack.c.l.b16 %v6055
      %v6076 = vunpack.c.l.b16 %v6056
      %v6077 = vpack.c.b16 %v6074, %v6073
      %v6078 = vpack.c.b16 %v6076, %v6075
      %v6082 = vsel %vm830, %v6065, 0
      %v6085 = vsel %vm830, %v6066, 0
      %v6088 = vsel %vm830, %v6067, 0
      %v6091 = vsel %vm830, %v6068, 0
      %6093 = vmatprep.subr.bf16.mxu0 0
      %6094 = vmatpush1.bf16.msra.mxu0 %v6077
      %6095 = vmatprep.subr.bf16.mxu0 0
      %6096 = vmatpush1.bf16.msra.mxu0 %v6078
      %6097 = vmatprep.subr.bf16.mxu0 0
      %6098 = vmatpush1.bf16.msra.mxu0 0
      %6099 = vmatprep.subr.bf16.mxu0 0
      %6100 = vmatpush1.bf16.msra.mxu0 0
      %6101 = vmatprep.subr.bf16.mxu0 0
      %6102 = vmatpush1.bf16.msra.mxu0 0
      %6103 = vmatprep.subr.bf16.mxu0 0
      %6104 = vmatpush1.bf16.msra.mxu0 0
      %6105 = vmatprep.subr.bf16.mxu0 0
      %6106 = vmatpush1.bf16.msra.mxu0 0
      %6107 = vmatprep.subr.bf16.mxu0 0
      %6108 = vmatpush1.bf16.msra.mxu0 0
      %6109 = vmatprep.subr.bf16.mxu0 0
      %6110 = vmatpush1.bf16.msra.mxu0 0
      %6111 = vmatprep.subr.bf16.mxu0 0
      %6112 = vmatpush1.bf16.msra.mxu0 0
      %6113 = vmatprep.subr.bf16.mxu0 0
      %6114 = vmatpush1.bf16.msra.mxu0 0
      %6115 = vmatprep.subr.bf16.mxu0 0
      %6116 = vmatpush1.bf16.msra.mxu0 0
      %6117 = vmatprep.subr.bf16.mxu0 0
      %6118 = vmatpush1.bf16.msra.mxu0 0
      %6119 = vmatprep.subr.bf16.mxu0 0
      %6120 = vmatpush1.bf16.msra.mxu0 0
      %6121 = vmatprep.subr.bf16.mxu0 0
      %6122 = vmatpush1.bf16.msra.mxu0 0
      %6123 = vmatprep.subr.bf16.mxu0 0
      %6124 = vmatpush1.bf16.msra.mxu0 0
      %6125 = vmatprep.mubr.bf16.mxu0 0
      %6126 = vmatmul.mubr.bf16.gmra.mrb[0].mxu0 %v6082
      %v6127 = vpop.f32.mrb[0].mxu0
      %v6128 = vadd.f32 0.0, %v6127
      %v6129 = vpop.f32.mrb[0].mxu0
      %v6130 = vpop.f32.mrb[0].mxu0
      %v6131 = vadd.f32 0.0, %v6130
      %v6132 = vpop.f32.mrb[0].mxu0
      %6133 = vmatprep.mubr.bf16.mxu0 0
      %6134 = vmatmul.mubr.bf16.gmra.mrb[0].mxu0 %v6085
      %v6135 = vpop.f32.mrb[0].mxu0
      %v6136 = vadd.f32 0.0, %v6135
      %v6137 = vpop.f32.mrb[0].mxu0
      %v6138 = vpop.f32.mrb[0].mxu0
      %v6139 = vadd.f32 0.0, %v6138
      %v6140 = vpop.f32.mrb[0].mxu0
      %6141 = vmatprep.mubr.bf16.mxu0 0
      %6142 = vmatmul.mubr.bf16.gmra.mrb[0].mxu0 %v6088
      %v6143 = vpop.f32.mrb[0].mxu0
      %v6144 = vadd.f32 0.0, %v6143
      %v6145 = vpop.f32.mrb[0].mxu0
      %v6146 = vpop.f32.mrb[0].mxu0
      %v6147 = vadd.f32 0.0, %v6146
      %v6148 = vpop.f32.mrb[0].mxu0
      %6149 = vmatprep.mubr.bf16.mxu0 0
      %6150 = vmatmul.mubr.bf16.gmra.mrb[0].mxu0 %v6091
      %v6151 = vpop.f32.mrb[0].mxu0
      %v6152 = vadd.f32 0.0, %v6151
      %v6153 = vpop.f32.mrb[0].mxu0
      %v6154 = vpop.f32.mrb[0].mxu0
      %v6155 = vadd.f32 0.0, %v6154
      %v6156 = vpop.f32.mrb[0].mxu0
      %6157 = vdwg.mxu0
      %v6158 = vadd.f32 %v5989, %v6128
      %v6159 = vadd.f32 %v5990, %v6131
      %v6160 = vadd.f32 %v5991, %v6136
      %v6161 = vadd.f32 %v5992, %v6139
      %v6162 = vadd.f32 %v5993, %v6144
      %v6163 = vadd.f32 %v5994, %v6147
      %v6164 = vadd.f32 %v5995, %v6152
      %v6165 = vadd.f32 %v5996, %v6155
      %v6166 = vld [vmem:[%s8] sm:$0x1]
      %v6168 = vlaneseq
      %v6169 = vshrl.u32 %v6168, 7
      %v6170 = vsub.s32 0, %v6169
      %v6171 = vrot.slane %v6166, %v6170
      %v6173 = vadd.f32 %v6158, %v6171
      %v6174 = vadd.f32 %v6159, %v6171
      %v6175 = vadd.f32 %v6160, %v6171
      %v6176 = vadd.f32 %v6161, %v6171
      %v6177 = vadd.f32 %v6162, %v6171
      %v6178 = vadd.f32 %v6163, %v6171
      %v6179 = vadd.f32 %v6164, %v6171
      %v6180 = vadd.f32 %v6165, %v6171
      %v6181 = vmax.f32 %v6173, 0.0
      %v6182 = vmax.f32 %v6174, 0.0
      %v6183 = vmax.f32 %v6175, 0.0
      %v6184 = vmax.f32 %v6176, 0.0
      %v6185 = vmax.f32 %v6177, 0.0
      %v6186 = vmax.f32 %v6178, 0.0
      %v6187 = vmax.f32 %v6179, 0.0
      %v6188 = vmax.f32 %v6180, 0.0
      %v6189 = vpack.c.bf16 %v6181, %v6181
      %v6190 = vpack.c.bf16 %v6182, %v6182
      %v6191 = vpack.c.bf16 %v6183, %v6183
      %v6192 = vpack.c.bf16 %v6184, %v6184
      %v6193 = vpack.c.bf16 %v6185, %v6185
      %v6194 = vpack.c.bf16 %v6186, %v6186
      %v6195 = vpack.c.bf16 %v6187, %v6187
      %v6196 = vpack.c.bf16 %v6188, %v6188
      %v6205 = vunpack.c.l.b16 %v6189
      %v6206 = vunpack.c.l.b16 %v6190
      %v6207 = vunpack.c.l.b16 %v6191
      %v6208 = vunpack.c.l.b16 %v6192
      %v6209 = vunpack.c.l.b16 %v6193
      %v6210 = vunpack.c.l.b16 %v6194
      %v6211 = vunpack.c.l.b16 %v6195
      %v6212 = vunpack.c.l.b16 %v6196
      %v6213 = vpack.c.b16 %v6205, %v6205
      %v6214 = vpack.c.b16 %v6206, %v6206
      %v6215 = vpack.c.b16 %v6207, %v6207
      %v6216 = vpack.c.b16 %v6208, %v6208
      %v6217 = vpack.c.b16 %v6209, %v6209
      %v6218 = vpack.c.b16 %v6210, %v6210
      %v6219 = vpack.c.b16 %v6211, %v6211
      %v6220 = vpack.c.b16 %v6212, %v6212
      %v6222 = vshrl.u32 %v6213, 16
      %v6224 = vrot.slane %v6222, 7
      %v6225 = vshll.u32 %v6213, 16
      %v6227 = vor.u32 %v6224, %v6225
      %v6228 = vrot.slane %v6224, 4
      %v6230 = vshrl.u32 %v6214, 16
      %v6232 = vrot.slane %v6230, 7
      %v6233 = vshll.u32 %v6214, 16
      %v6235 = vor.u32 %v6232, %v6233
      %v6236 = vrot.slane %v6232, 4
      %v6238 = vshrl.u32 %v6215, 16
      %v6240 = vrot.slane %v6238, 7
      %v6241 = vshll.u32 %v6215, 16
      %v6243 = vor.u32 %v6240, %v6241
      %v6244 = vrot.slane %v6240, 4
      %v6246 = vshrl.u32 %v6216, 16
      %v6248 = vrot.slane %v6246, 7
      %v6249 = vshll.u32 %v6216, 16
      %v6251 = vor.u32 %v6248, %v6249
      %v6252 = vrot.slane %v6248, 4
      %v6254 = vshrl.u32 %v6217, 16
      %v6256 = vrot.slane %v6254, 7
      %v6257 = vshll.u32 %v6217, 16
      %v6259 = vor.u32 %v6256, %v6257
      %v6260 = vrot.slane %v6256, 4
      %v6262 = vshrl.u32 %v6218, 16
      %v6264 = vrot.slane %v6262, 7
      %v6265 = vshll.u32 %v6218, 16
      %v6267 = vor.u32 %v6264, %v6265
      %v6268 = vrot.slane %v6264, 4
      %v6270 = vshrl.u32 %v6219, 16
      %v6272 = vrot.slane %v6270, 7
      %v6273 = vshll.u32 %v6219, 16
      %v6275 = vor.u32 %v6272, %v6273
      %v6276 = vrot.slane %v6272, 4
      %v6278 = vshrl.u32 %v6220, 16
      %v6280 = vrot.slane %v6278, 7
      %v6281 = vshll.u32 %v6220, 16
      %v6283 = vor.u32 %v6280, %v6281
      %v6284 = vrot.slane %v6280, 4
      %s6301 = scalar_lea.vmem [#allocation5], 8
      %v6302 = vld [vmem:[%s6301] sm:$0xf]
      %v6303 = vsel %vm2745, %v6227, %v6302
      %6304 = vst [vmem:[%s6301] sm:$0xf] %v6303
      %v6305 = vld [vmem:[%s6301 + $0x4] sm:$0x1]
      %v6306 = vsel %vm522, %v6228, %v6305
      %6307 = vst [vmem:[%s6301 + $0x4] sm:$0x1] %v6306
      %v6308 = vld [vmem:[%s6301 + $0x8] sm:$0xf]
      %v6309 = vsel %vm2745, %v6235, %v6308
      %6310 = vst [vmem:[%s6301 + $0x8] sm:$0xf] %v6309
      %v6311 = vld [vmem:[%s6301 + $0xc] sm:$0x1]
      %v6312 = vsel %vm522, %v6236, %v6311
      %6313 = vst [vmem:[%s6301 + $0xc] sm:$0x1] %v6312
      %v6314 = vld [vmem:[%s6301 + $0x10] sm:$0xf]
      %v6315 = vsel %vm2745, %v6243, %v6314
      %6316 = vst [vmem:[%s6301 + $0x10] sm:$0xf] %v6315
      %v6317 = vld [vmem:[%s6301 + $0x14] sm:$0x1]
      %v6318 = vsel %vm522, %v6244, %v6317
      %6319 = vst [vmem:[%s6301 + $0x14] sm:$0x1] %v6318
      %v6320 = vld [vmem:[%s6301 + $0x18] sm:$0xf]
      %v6321 = vsel %vm2745, %v6251, %v6320
      %6322 = vst [vmem:[%s6301 + $0x18] sm:$0xf] %v6321
      %v6323 = vld [vmem:[%s6301 + $0x1c] sm:$0x1]
      %v6324 = vsel %vm522, %v6252, %v6323
      %6325 = vst [vmem:[%s6301 + $0x1c] sm:$0x1] %v6324
      %v6326 = vld [vmem:[%s6301 + $0x20] sm:$0xf]
      %v6327 = vsel %vm2745, %v6259, %v6326
      %6328 = vst [vmem:[%s6301 + $0x20] sm:$0xf] %v6327
      %v6329 = vld [vmem:[%s6301 + $0x24] sm:$0x1]
      %v6330 = vsel %vm522, %v6260, %v6329
      %6331 = vst [vmem:[%s6301 + $0x24] sm:$0x1] %v6330
      %v6332 = vld [vmem:[%s6301 + $0x28] sm:$0xf]
      %v6333 = vsel %vm2745, %v6267, %v6332
      %6334 = vst [vmem:[%s6301 + $0x28] sm:$0xf] %v6333
      %v6335 = vld [vmem:[%s6301 + $0x2c] sm:$0x1]
      %v6336 = vsel %vm522, %v6268, %v6335
      %6337 = vst [vmem:[%s6301 + $0x2c] sm:$0x1] %v6336
      %v6338 = vld [vmem:[%s6301 + $0x30] sm:$0xf]
      %v6339 = vsel %vm2745, %v6275, %v6338
      %6340 = vst [vmem:[%s6301 + $0x30] sm:$0xf] %v6339
      %v6341 = vld [vmem:[%s6301 + $0x34] sm:$0x1]
      %v6342 = vsel %vm522, %v6276, %v6341
      %6343 = vst [vmem:[%s6301 + $0x34] sm:$0x1] %v6342
      %v6344 = vld [vmem:[%s6301 + $0x38] sm:$0xf]
      %v6345 = vsel %vm2745, %v6283, %v6344
      %6346 = vst [vmem:[%s6301 + $0x38] sm:$0xf] %v6345
      %v6347 = vld [vmem:[%s6301 + $0x3c] sm:$0x1]
      %v6348 = vsel %vm522, %v6284, %v6347
      %6349 = vst [vmem:[%s6301 + $0x3c] sm:$0x1] %v6348
      %v6350 = vld [vmem:[#allocation5] sm:$0xf]
      %v6351 = vld [vmem:[#allocation5 + $0x8] sm:$0xf]
      %v6352 = vld [vmem:[#allocation5 + $0x10] sm:$0xf]
      %v6353 = vld [vmem:[#allocation5 + $0x18] sm:$0xf]
      %v6354 = vld [vmem:[#allocation5 + $0x20] sm:$0xf]
      %v6355 = vld [vmem:[#allocation5 + $0x28] sm:$0xf]
      %v6356 = vld [vmem:[#allocation5 + $0x30] sm:$0xf]
      %v6357 = vld [vmem:[#allocation5 + $0x38] sm:$0xf]
      %v6358 = vld [vmem:[%s9] sm:$0xf]
      %v6359 = vld [vmem:[%s9 + $0x4] sm:$0xf]
      %v6360 = vld [vmem:[%s9 + $0x8] sm:$0xf]
      %v6361 = vld [vmem:[%s9 + $0xc] sm:$0xf]
      %v6362 = vld [vmem:[#allocation3] sm:$0xf]
      %v6363 = vld [vmem:[#allocation3 + $0x8] sm:$0xf]
      %v6364 = vld [vmem:[#allocation3 + $0x10] sm:$0xf]
      %v6365 = vld [vmem:[#allocation3 + $0x18] sm:$0xf]
      %v6366 = vld [vmem:[#allocation3 + $0x20] sm:$0xf]
      %v6367 = vld [vmem:[#allocation3 + $0x28] sm:$0xf]
      %v6368 = vld [vmem:[#allocation3 + $0x30] sm:$0xf]
      %v6369 = vld [vmem:[#allocation3 + $0x38] sm:$0xf]
      %v6370 = vld [vmem:[%s9 + $0x10] sm:$0xf]
      %v6371 = vld [vmem:[%s9 + $0x14] sm:$0xf]
      %v6372 = vld [vmem:[%s9 + $0x18] sm:$0xf]
      %v6373 = vld [vmem:[%s9 + $0x1c] sm:$0xf]
      %v6382 = vunpack.c.l.b16 %v6362
      %v6383 = vunpack.c.l.b16 %v6363
      %v6384 = vunpack.c.l.b16 %v6364
      %v6385 = vunpack.c.l.b16 %v6365
      %v6386 = vunpack.c.l.b16 %v6366
      %v6387 = vunpack.c.l.b16 %v6367
      %v6388 = vunpack.c.l.b16 %v6368
      %v6389 = vunpack.c.l.b16 %v6369
      %v6390 = vpack.c.b16 %v6383, %v6382
      %v6391 = vpack.c.b16 %v6385, %v6384
      %v6392 = vpack.c.b16 %v6387, %v6386
      %v6393 = vpack.c.b16 %v6389, %v6388
      %v6398 = vunpack.c.l.b16 %v6370
      %v6399 = vunpack.c.l.b16 %v6371
      %v6400 = vunpack.c.l.b16 %v6372
      %v6401 = vunpack.c.l.b16 %v6373
      %v6402 = vpack.c.b16 %v6399, %v6398
      %v6403 = vpack.c.b16 %v6401, %v6400
      %v6407 = vsel %vm830, %v6390, 0
      %v6410 = vsel %vm830, %v6391, 0
      %v6413 = vsel %vm830, %v6392, 0
      %v6416 = vsel %vm830, %v6393, 0
      %6418 = vmatprep.subr.bf16.mxu0 0
      %6419 = vmatpush1.bf16.msra.mxu0 %v6402
      %6420 = vmatprep.subr.bf16.mxu0 0
      %6421 = vmatpush1.bf16.msra.mxu0 %v6403
      %6422 = vmatprep.subr.bf16.mxu0 0
      %6423 = vmatpush1.bf16.msra.mxu0 0
      %6424 = vmatprep.subr.bf16.mxu0 0
      %6425 = vmatpush1.bf16.msra.mxu0 0
      %6426 = vmatprep.subr.bf16.mxu0 0
      %6427 = vmatpush1.bf16.msra.mxu0 0
      %6428 = vmatprep.subr.bf16.mxu0 0
      %6429 = vmatpush1.bf16.msra.mxu0 0
      %6430 = vmatprep.subr.bf16.mxu0 0
      %6431 = vmatpush1.bf16.msra.mxu0 0
      %6432 = vmatprep.subr.bf16.mxu0 0
      %6433 = vmatpush1.bf16.msra.mxu0 0
      %6434 = vmatprep.subr.bf16.mxu0 0
      %6435 = vmatpush1.bf16.msra.mxu0 0
      %6436 = vmatprep.subr.bf16.mxu0 0
      %6437 = vmatpush1.bf16.msra.mxu0 0
      %6438 = vmatprep.subr.bf16.mxu0 0
      %6439 = vmatpush1.bf16.msra.mxu0 0
      %6440 = vmatprep.subr.bf16.mxu0 0
      %6441 = vmatpush1.bf16.msra.mxu0 0
      %6442 = vmatprep.subr.bf16.mxu0 0
      %6443 = vmatpush1.bf16.msra.mxu0 0
      %6444 = vmatprep.subr.bf16.mxu0 0
      %6445 = vmatpush1.bf16.msra.mxu0 0
      %6446 = vmatprep.subr.bf16.mxu0 0
      %6447 = vmatpush1.bf16.msra.mxu0 0
      %6448 = vmatprep.subr.bf16.mxu0 0
      %6449 = vmatpush1.bf16.msra.mxu0 0
      %6450 = vmatprep.mubr.bf16.mxu0 0
      %6451 = vmatmul.mubr.bf16.gmra.mrb[0].mxu0 %v6407
      %v6452 = vpop.f32.mrb[0].mxu0
      %v6453 = vadd.f32 0.0, %v6452
      %v6454 = vpop.f32.mrb[0].mxu0
      %v6455 = vpop.f32.mrb[0].mxu0
      %v6456 = vadd.f32 0.0, %v6455
      %v6457 = vpop.f32.mrb[0].mxu0
      %6458 = vmatprep.mubr.bf16.mxu0 0
      %6459 = vmatmul.mubr.bf16.gmra.mrb[0].mxu0 %v6410
      %v6460 = vpop.f32.mrb[0].mxu0
      %v6461 = vadd.f32 0.0, %v6460
      %v6462 = vpop.f32.mrb[0].mxu0
      %v6463 = vpop.f32.mrb[0].mxu0
      %v6464 = vadd.f32 0.0, %v6463
      %v6465 = vpop.f32.mrb[0].mxu0
      %6466 = vmatprep.mubr.bf16.mxu0 0
      %6467 = vmatmul.mubr.bf16.gmra.mrb[0].mxu0 %v6413
      %v6468 = vpop.f32.mrb[0].mxu0
      %v6469 = vadd.f32 0.0, %v6468
      %v6470 = vpop.f32.mrb[0].mxu0
      %v6471 = vpop.f32.mrb[0].mxu0
      %v6472 = vadd.f32 0.0, %v6471
      %v6473 = vpop.f32.mrb[0].mxu0
      %6474 = vmatprep.mubr.bf16.mxu0 0
      %6475 = vmatmul.mubr.bf16.gmra.mrb[0].mxu0 %v6416
      %v6476 = vpop.f32.mrb[0].mxu0
      %v6477 = vadd.f32 0.0, %v6476
      %v6478 = vpop.f32.mrb[0].mxu0
      %v6479 = vpop.f32.mrb[0].mxu0
      %v6480 = vadd.f32 0.0, %v6479
      %v6481 = vpop.f32.mrb[0].mxu0
      %6482 = vdwg.mxu0
      %v6491 = vunpack.c.l.b16 %v6350
      %v6492 = vunpack.c.l.b16 %v6351
      %v6493 = vunpack.c.l.b16 %v6352
      %v6494 = vunpack.c.l.b16 %v6353
      %v6495 = vunpack.c.l.b16 %v6354
      %v6496 = vunpack.c.l.b16 %v6355
      %v6497 = vunpack.c.l.b16 %v6356
      %v6498 = vunpack.c.l.b16 %v6357
      %v6499 = vpack.c.b16 %v6492, %v6491
      %v6500 = vpack.c.b16 %v6494, %v6493
      %v6501 = vpack.c.b16 %v6496, %v6495
      %v6502 = vpack.c.b16 %v6498, %v6497
      %v6507 = vunpack.c.l.b16 %v6358
      %v6508 = vunpack.c.l.b16 %v6359
      %v6509 = vunpack.c.l.b16 %v6360
      %v6510 = vunpack.c.l.b16 %v6361
      %v6511 = vpack.c.b16 %v6508, %v6507
      %v6512 = vpack.c.b16 %v6510, %v6509
      %v6516 = vsel %vm830, %v6499, 0
      %v6519 = vsel %vm830, %v6500, 0
      %v6522 = vsel %vm830, %v6501, 0
      %v6525 = vsel %vm830, %v6502, 0
      %6527 = vmatprep.subr.bf16.mxu0 0
      %6528 = vmatpush1.bf16.msra.mxu0 %v6511
      %6529 = vmatprep.subr.bf16.mxu0 0
      %6530 = vmatpush1.bf16.msra.mxu0 %v6512
      %6531 = vmatprep.subr.bf16.mxu0 0
      %6532 = vmatpush1.bf16.msra.mxu0 0
      %6533 = vmatprep.subr.bf16.mxu0 0
      %6534 = vmatpush1.bf16.msra.mxu0 0
      %6535 = vmatprep.subr.bf16.mxu0 0
      %6536 = vmatpush1.bf16.msra.mxu0 0
      %6537 = vmatprep.subr.bf16.mxu0 0
      %6538 = vmatpush1.bf16.msra.mxu0 0
      %6539 = vmatprep.subr.bf16.mxu0 0
      %6540 = vmatpush1.bf16.msra.mxu0 0
      %6541 = vmatprep.subr.bf16.mxu0 0
      %6542 = vmatpush1.bf16.msra.mxu0 0
      %6543 = vmatprep.subr.bf16.mxu0 0
      %6544 = vmatpush1.bf16.msra.mxu0 0
      %6545 = vmatprep.subr.bf16.mxu0 0
      %6546 = vmatpush1.bf16.msra.mxu0 0
      %6547 = vmatprep.subr.bf16.mxu0 0
      %6548 = vmatpush1.bf16.msra.mxu0 0
      %6549 = vmatprep.subr.bf16.mxu0 0
      %6550 = vmatpush1.bf16.msra.mxu0 0
      %6551 = vmatprep.subr.bf16.mxu0 0
      %6552 = vmatpush1.bf16.msra.mxu0 0
      %6553 = vmatprep.subr.bf16.mxu0 0
      %6554 = vmatpush1.bf16.msra.mxu0 0
      %6555 = vmatprep.subr.bf16.mxu0 0
      %6556 = vmatpush1.bf16.msra.mxu0 0
      %6557 = vmatprep.subr.bf16.mxu0 0
      %6558 = vmatpush1.bf16.msra.mxu0 0
      %6559 = vmatprep.mubr.bf16.mxu0 0
      %6560 = vmatmul.mubr.bf16.gmra.mrb[0].mxu0 %v6516
      %v6561 = vpop.f32.mrb[0].mxu0
      %v6562 = vadd.f32 %v6453, %v6561
      %v6563 = vpop.f32.mrb[0].mxu0
      %v6564 = vpop.f32.mrb[0].mxu0
      %v6565 = vadd.f32 %v6456, %v6564
      %v6566 = vpop.f32.mrb[0].mxu0
      %6567 = vmatprep.mubr.bf16.mxu0 0
      %6568 = vmatmul.mubr.bf16.gmra.mrb[0].mxu0 %v6519
      %v6569 = vpop.f32.mrb[0].mxu0
      %v6570 = vadd.f32 %v6461, %v6569
      %v6571 = vpop.f32.mrb[0].mxu0
      %v6572 = vpop.f32.mrb[0].mxu0
      %v6573 = vadd.f32 %v6464, %v6572
      %v6574 = vpop.f32.mrb[0].mxu0
      %6575 = vmatprep.mubr.bf16.mxu0 0
      %6576 = vmatmul.mubr.bf16.gmra.mrb[0].mxu0 %v6522
      %v6577 = vpop.f32.mrb[0].mxu0
      %v6578 = vadd.f32 %v6469, %v6577
      %v6579 = vpop.f32.mrb[0].mxu0
      %v6580 = vpop.f32.mrb[0].mxu0
      %v6581 = vadd.f32 %v6472, %v6580
      %v6582 = vpop.f32.mrb[0].mxu0
      %6583 = vmatprep.mubr.bf16.mxu0 0
      %6584 = vmatmul.mubr.bf16.gmra.mrb[0].mxu0 %v6525
      %v6585 = vpop.f32.mrb[0].mxu0
      %v6586 = vadd.f32 %v6477, %v6585
      %v6587 = vpop.f32.mrb[0].mxu0
      %v6588 = vpop.f32.mrb[0].mxu0
      %v6589 = vadd.f32 %v6480, %v6588
      %v6590 = vpop.f32.mrb[0].mxu0
      %6591 = vdwg.mxu0
      %v6592 = vld [vmem:[#allocation5] sm:$0xf]
      %v6593 = vld [vmem:[#allocation5 + $0x4] sm:$0x1]
      %v6594 = vld [vmem:[#allocation5 + $0x8] sm:$0xf]
      %v6595 = vld [vmem:[#allocation5 + $0xc] sm:$0x1]
      %v6596 = vld [vmem:[#allocation5 + $0x10] sm:$0xf]
      %v6597 = vld [vmem:[#allocation5 + $0x14] sm:$0x1]
      %v6598 = vld [vmem:[#allocation5 + $0x18] sm:$0xf]
      %v6599 = vld [vmem:[#allocation5 + $0x1c] sm:$0x1]
      %v6600 = vld [vmem:[#allocation5 + $0x20] sm:$0xf]
      %v6601 = vld [vmem:[#allocation5 + $0x24] sm:$0x1]
      %v6602 = vld [vmem:[#allocation5 + $0x28] sm:$0xf]
      %v6603 = vld [vmem:[#allocation5 + $0x2c] sm:$0x1]
      %v6604 = vld [vmem:[#allocation5 + $0x30] sm:$0xf]
      %v6605 = vld [vmem:[#allocation5 + $0x34] sm:$0x1]
      %v6606 = vld [vmem:[#allocation5 + $0x38] sm:$0xf]
      %v6607 = vld [vmem:[#allocation5 + $0x3c] sm:$0x1]
      %v6609 = vshrl.u32 %v6592, 16
      %v6611 = vrot.slane %v6609, 4
      %v6612 = vshll.u32 %v6592, 16
      %v6614 = vrot.slane %v6612, 5
      %v6615 = vor.u32 %v6611, %v6614
      %v6616 = vrot.slane %v6615, 4
      %v6618 = vshll.u32 %v6593, 16
      %v6620 = vrot.slane %v6618, 5
      %v6621 = vsel %vm1099, %v6616, %v6620
      %v6623 = vshrl.u32 %v6594, 16
      %v6625 = vrot.slane %v6623, 4
      %v6626 = vshll.u32 %v6594, 16
      %v6628 = vrot.slane %v6626, 5
      %v6629 = vor.u32 %v6625, %v6628
      %v6630 = vrot.slane %v6629, 4
      %v6632 = vshll.u32 %v6595, 16
      %v6634 = vrot.slane %v6632, 5
      %v6635 = vsel %vm1099, %v6630, %v6634
      %v6637 = vshrl.u32 %v6596, 16
      %v6639 = vrot.slane %v6637, 4
      %v6640 = vshll.u32 %v6596, 16
      %v6642 = vrot.slane %v6640, 5
      %v6643 = vor.u32 %v6639, %v6642
      %v6644 = vrot.slane %v6643, 4
      %v6646 = vshll.u32 %v6597, 16
      %v6648 = vrot.slane %v6646, 5
      %v6649 = vsel %vm1099, %v6644, %v6648
      %v6651 = vshrl.u32 %v6598, 16
      %v6653 = vrot.slane %v6651, 4
      %v6654 = vshll.u32 %v6598, 16
      %v6656 = vrot.slane %v6654, 5
      %v6657 = vor.u32 %v6653, %v6656
      %v6658 = vrot.slane %v6657, 4
      %v6660 = vshll.u32 %v6599, 16
      %v6662 = vrot.slane %v6660, 5
      %v6663 = vsel %vm1099, %v6658, %v6662
      %v6665 = vshrl.u32 %v6600, 16
      %v6667 = vrot.slane %v6665, 4
      %v6668 = vshll.u32 %v6600, 16
      %v6670 = vrot.slane %v6668, 5
      %v6671 = vor.u32 %v6667, %v6670
      %v6672 = vrot.slane %v6671, 4
      %v6674 = vshll.u32 %v6601, 16
      %v6676 = vrot.slane %v6674, 5
      %v6677 = vsel %vm1099, %v6672, %v6676
      %v6679 = vshrl.u32 %v6602, 16
      %v6681 = vrot.slane %v6679, 4
      %v6682 = vshll.u32 %v6602, 16
      %v6684 = vrot.slane %v6682, 5
      %v6685 = vor.u32 %v6681, %v6684
      %v6686 = vrot.slane %v6685, 4
      %v6688 = vshll.u32 %v6603, 16
      %v6690 = vrot.slane %v6688, 5
      %v6691 = vsel %vm1099, %v6686, %v6690
      %v6693 = vshrl.u32 %v6604, 16
      %v6695 = vrot.slane %v6693, 4
      %v6696 = vshll.u32 %v6604, 16
      %v6698 = vrot.slane %v6696, 5
      %v6699 = vor.u32 %v6695, %v6698
      %v6700 = vrot.slane %v6699, 4
      %v6702 = vshll.u32 %v6605, 16
      %v6704 = vrot.slane %v6702, 5
      %v6705 = vsel %vm1099, %v6700, %v6704
      %v6707 = vshrl.u32 %v6606, 16
      %v6709 = vrot.slane %v6707, 4
      %v6710 = vshll.u32 %v6606, 16
      %v6712 = vrot.slane %v6710, 5
      %v6713 = vor.u32 %v6709, %v6712
      %v6714 = vrot.slane %v6713, 4
      %v6716 = vshll.u32 %v6607, 16
      %v6718 = vrot.slane %v6716, 5
      %v6719 = vsel %vm1099, %v6714, %v6718
      %v6720 = vld [vmem:[%s9 + $0x20] sm:$0xf]
      %v6721 = vld [vmem:[%s9 + $0x24] sm:$0xf]
      %v6722 = vld [vmem:[%s9 + $0x28] sm:$0xf]
      %v6723 = vld [vmem:[%s9 + $0x2c] sm:$0xf]
      %v6724 = vunpack.c.l.b16 %v6621
      %v6725 = vunpack.c.l.b16 %v6635
      %v6726 = vunpack.c.l.b16 %v6649
      %v6727 = vunpack.c.l.b16 %v6663
      %v6728 = vunpack.c.l.b16 %v6677
      %v6729 = vunpack.c.l.b16 %v6691
      %v6730 = vunpack.c.l.b16 %v6705
      %v6731 = vunpack.c.l.b16 %v6719
      %v6732 = vpack.c.b16 %v6725, %v6724
      %v6733 = vpack.c.b16 %v6727, %v6726
      %v6734 = vpack.c.b16 %v6729, %v6728
      %v6735 = vpack.c.b16 %v6731, %v6730
      %v6740 = vunpack.c.l.b16 %v6720
      %v6741 = vunpack.c.l.b16 %v6721
      %v6742 = vunpack.c.l.b16 %v6722
      %v6743 = vunpack.c.l.b16 %v6723
      %v6744 = vpack.c.b16 %v6741, %v6740
      %v6745 = vpack.c.b16 %v6743, %v6742
      %v6749 = vsel %vm830, %v6732, 0
      %v6752 = vsel %vm830, %v6733, 0
      %v6755 = vsel %vm830, %v6734, 0
      %v6758 = vsel %vm830, %v6735, 0
      %6760 = vmatprep.subr.bf16.mxu0 0
      %6761 = vmatpush1.bf16.msra.mxu0 %v6744
      %6762 = vmatprep.subr.bf16.mxu0 0
      %6763 = vmatpush1.bf16.msra.mxu0 %v6745
      %6764 = vmatprep.subr.bf16.mxu0 0
      %6765 = vmatpush1.bf16.msra.mxu0 0
      %6766 = vmatprep.subr.bf16.mxu0 0
      %6767 = vmatpush1.bf16.msra.mxu0 0
      %6768 = vmatprep.subr.bf16.mxu0 0
      %6769 = vmatpush1.bf16.msra.mxu0 0
      %6770 = vmatprep.subr.bf16.mxu0 0
      %6771 = vmatpush1.bf16.msra.mxu0 0
      %6772 = vmatprep.subr.bf16.mxu0 0
      %6773 = vmatpush1.bf16.msra.mxu0 0
      %6774 = vmatprep.subr.bf16.mxu0 0
      %6775 = vmatpush1.bf16.msra.mxu0 0
      %6776 = vmatprep.subr.bf16.mxu0 0
      %6777 = vmatpush1.bf16.msra.mxu0 0
      %6778 = vmatprep.subr.bf16.mxu0 0
      %6779 = vmatpush1.bf16.msra.mxu0 0
      %6780 = vmatprep.subr.bf16.mxu0 0
      %6781 = vmatpush1.bf16.msra.mxu0 0
      %6782 = vmatprep.subr.bf16.mxu0 0
      %6783 = vmatpush1.bf16.msra.mxu0 0
      %6784 = vmatprep.subr.bf16.mxu0 0
      %6785 = vmatpush1.bf16.msra.mxu0 0
      %6786 = vmatprep.subr.bf16.mxu0 0
      %6787 = vmatpush1.bf16.msra.mxu0 0
      %6788 = vmatprep.subr.bf16.mxu0 0
      %6789 = vmatpush1.bf16.msra.mxu0 0
      %6790 = vmatprep.subr.bf16.mxu0 0
      %6791 = vmatpush1.bf16.msra.mxu0 0
      %6792 = vmatprep.mubr.bf16.mxu0 0
      %6793 = vmatmul.mubr.bf16.gmra.mrb[0].mxu0 %v6749
      %v6794 = vpop.f32.mrb[0].mxu0
      %v6795 = vadd.f32 0.0, %v6794
      %v6796 = vpop.f32.mrb[0].mxu0
      %v6797 = vpop.f32.mrb[0].mxu0
      %v6798 = vadd.f32 0.0, %v6797
      %v6799 = vpop.f32.mrb[0].mxu0
      %6800 = vmatprep.mubr.bf16.mxu0 0
      %6801 = vmatmul.mubr.bf16.gmra.mrb[0].mxu0 %v6752
      %v6802 = vpop.f32.mrb[0].mxu0
      %v6803 = vadd.f32 0.0, %v6802
      %v6804 = vpop.f32.mrb[0].mxu0
      %v6805 = vpop.f32.mrb[0].mxu0
      %v6806 = vadd.f32 0.0, %v6805
      %v6807 = vpop.f32.mrb[0].mxu0
      %6808 = vmatprep.mubr.bf16.mxu0 0
      %6809 = vmatmul.mubr.bf16.gmra.mrb[0].mxu0 %v6755
      %v6810 = vpop.f32.mrb[0].mxu0
      %v6811 = vadd.f32 0.0, %v6810
      %v6812 = vpop.f32.mrb[0].mxu0
      %v6813 = vpop.f32.mrb[0].mxu0
      %v6814 = vadd.f32 0.0, %v6813
      %v6815 = vpop.f32.mrb[0].mxu0
      %6816 = vmatprep.mubr.bf16.mxu0 0
      %6817 = vmatmul.mubr.bf16.gmra.mrb[0].mxu0 %v6758
      %v6818 = vpop.f32.mrb[0].mxu0
      %v6819 = vadd.f32 0.0, %v6818
      %v6820 = vpop.f32.mrb[0].mxu0
      %v6821 = vpop.f32.mrb[0].mxu0
      %v6822 = vadd.f32 0.0, %v6821
      %v6823 = vpop.f32.mrb[0].mxu0
      %6824 = vdwg.mxu0
      %v6825 = vadd.f32 %v6562, %v6795
      %v6826 = vadd.f32 %v6565, %v6798
      %v6827 = vadd.f32 %v6570, %v6803
      %v6828 = vadd.f32 %v6573, %v6806
      %v6829 = vadd.f32 %v6578, %v6811
      %v6830 = vadd.f32 %v6581, %v6814
      %v6831 = vadd.f32 %v6586, %v6819
      %v6832 = vadd.f32 %v6589, %v6822
      %v6833 = vld [vmem:[#allocation3] sm:$0xf]
      %v6834 = vld [vmem:[#allocation3 + $0x4] sm:$0x1]
      %v6835 = vld [vmem:[#allocation3 + $0x8] sm:$0xf]
      %v6836 = vld [vmem:[#allocation3 + $0xc] sm:$0x1]
      %v6837 = vld [vmem:[#allocation3 + $0x10] sm:$0xf]
      %v6838 = vld [vmem:[#allocation3 + $0x14] sm:$0x1]
      %v6839 = vld [vmem:[#allocation3 + $0x18] sm:$0xf]
      %v6840 = vld [vmem:[#allocation3 + $0x1c] sm:$0x1]
      %v6841 = vld [vmem:[#allocation3 + $0x20] sm:$0xf]
      %v6842 = vld [vmem:[#allocation3 + $0x24] sm:$0x1]
      %v6843 = vld [vmem:[#allocation3 + $0x28] sm:$0xf]
      %v6844 = vld [vmem:[#allocation3 + $0x2c] sm:$0x1]
      %v6845 = vld [vmem:[#allocation3 + $0x30] sm:$0xf]
      %v6846 = vld [vmem:[#allocation3 + $0x34] sm:$0x1]
      %v6847 = vld [vmem:[#allocation3 + $0x38] sm:$0xf]
      %v6848 = vld [vmem:[#allocation3 + $0x3c] sm:$0x1]
      %v6850 = vshrl.u32 %v6833, 16
      %v6852 = vrot.slane %v6850, 4
      %v6853 = vshll.u32 %v6833, 16
      %v6855 = vrot.slane %v6853, 5
      %v6856 = vor.u32 %v6852, %v6855
      %v6857 = vrot.slane %v6856, 4
      %v6859 = vshll.u32 %v6834, 16
      %v6861 = vrot.slane %v6859, 5
      %v6862 = vsel %vm1099, %v6857, %v6861
      %v6864 = vshrl.u32 %v6835, 16
      %v6866 = vrot.slane %v6864, 4
      %v6867 = vshll.u32 %v6835, 16
      %v6869 = vrot.slane %v6867, 5
      %v6870 = vor.u32 %v6866, %v6869
      %v6871 = vrot.slane %v6870, 4
      %v6873 = vshll.u32 %v6836, 16
      %v6875 = vrot.slane %v6873, 5
      %v6876 = vsel %vm1099, %v6871, %v6875
      %v6878 = vshrl.u32 %v6837, 16
      %v6880 = vrot.slane %v6878, 4
      %v6881 = vshll.u32 %v6837, 16
      %v6883 = vrot.slane %v6881, 5
      %v6884 = vor.u32 %v6880, %v6883
      %v6885 = vrot.slane %v6884, 4
      %v6887 = vshll.u32 %v6838, 16
      %v6889 = vrot.slane %v6887, 5
      %v6890 = vsel %vm1099, %v6885, %v6889
      %v6892 = vshrl.u32 %v6839, 16
      %v6894 = vrot.slane %v6892, 4
      %v6895 = vshll.u32 %v6839, 16
      %v6897 = vrot.slane %v6895, 5
      %v6898 = vor.u32 %v6894, %v6897
      %v6899 = vrot.slane %v6898, 4
      %v6901 = vshll.u32 %v6840, 16
      %v6903 = vrot.slane %v6901, 5
      %v6904 = vsel %vm1099, %v6899, %v6903
      %v6906 = vshrl.u32 %v6841, 16
      %v6908 = vrot.slane %v6906, 4
      %v6909 = vshll.u32 %v6841, 16
      %v6911 = vrot.slane %v6909, 5
      %v6912 = vor.u32 %v6908, %v6911
      %v6913 = vrot.slane %v6912, 4
      %v6915 = vshll.u32 %v6842, 16
      %v6917 = vrot.slane %v6915, 5
      %v6918 = vsel %vm1099, %v6913, %v6917
      %v6920 = vshrl.u32 %v6843, 16
      %v6922 = vrot.slane %v6920, 4
      %v6923 = vshll.u32 %v6843, 16
      %v6925 = vrot.slane %v6923, 5
      %v6926 = vor.u32 %v6922, %v6925
      %v6927 = vrot.slane %v6926, 4
      %v6929 = vshll.u32 %v6844, 16
      %v6931 = vrot.slane %v6929, 5
      %v6932 = vsel %vm1099, %v6927, %v6931
      %v6934 = vshrl.u32 %v6845, 16
      %v6936 = vrot.slane %v6934, 4
      %v6937 = vshll.u32 %v6845, 16
      %v6939 = vrot.slane %v6937, 5
      %v6940 = vor.u32 %v6936, %v6939
      %v6941 = vrot.slane %v6940, 4
      %v6943 = vshll.u32 %v6846, 16
      %v6945 = vrot.slane %v6943, 5
      %v6946 = vsel %vm1099, %v6941, %v6945
      %v6948 = vshrl.u32 %v6847, 16
      %v6950 = vrot.slane %v6948, 4
      %v6951 = vshll.u32 %v6847, 16
      %v6953 = vrot.slane %v6951, 5
      %v6954 = vor.u32 %v6950, %v6953
      %v6955 = vrot.slane %v6954, 4
      %v6957 = vshll.u32 %v6848, 16
      %v6959 = vrot.slane %v6957, 5
      %v6960 = vsel %vm1099, %v6955, %v6959
      %v6961 = vld [vmem:[%s9 + $0x30] sm:$0xf]
      %v6962 = vld [vmem:[%s9 + $0x34] sm:$0xf]
      %v6963 = vld [vmem:[%s9 + $0x38] sm:$0xf]
      %v6964 = vld [vmem:[%s9 + $0x3c] sm:$0xf]
      %v6965 = vunpack.c.l.b16 %v6862
      %v6966 = vunpack.c.l.b16 %v6876
      %v6967 = vunpack.c.l.b16 %v6890
      %v6968 = vunpack.c.l.b16 %v6904
      %v6969 = vunpack.c.l.b16 %v6918
      %v6970 = vunpack.c.l.b16 %v6932
      %v6971 = vunpack.c.l.b16 %v6946
      %v6972 = vunpack.c.l.b16 %v6960
      %v6973 = vpack.c.b16 %v6966, %v6965
      %v6974 = vpack.c.b16 %v6968, %v6967
      %v6975 = vpack.c.b16 %v6970, %v6969
      %v6976 = vpack.c.b16 %v6972, %v6971
      %v6981 = vunpack.c.l.b16 %v6961
      %v6982 = vunpack.c.l.b16 %v6962
      %v6983 = vunpack.c.l.b16 %v6963
      %v6984 = vunpack.c.l.b16 %v6964
      %v6985 = vpack.c.b16 %v6982, %v6981
      %v6986 = vpack.c.b16 %v6984, %v6983
      %v6990 = vsel %vm830, %v6973, 0
      %v6993 = vsel %vm830, %v6974, 0
      %v6996 = vsel %vm830, %v6975, 0
      %v6999 = vsel %vm830, %v6976, 0
      %7001 = vmatprep.subr.bf16.mxu0 0
      %7002 = vmatpush1.bf16.msra.mxu0 %v6985
      %7003 = vmatprep.subr.bf16.mxu0 0
      %7004 = vmatpush1.bf16.msra.mxu0 %v6986
      %7005 = vmatprep.subr.bf16.mxu0 0
      %7006 = vmatpush1.bf16.msra.mxu0 0
      %7007 = vmatprep.subr.bf16.mxu0 0
      %7008 = vmatpush1.bf16.msra.mxu0 0
      %7009 = vmatprep.subr.bf16.mxu0 0
      %7010 = vmatpush1.bf16.msra.mxu0 0
      %7011 = vmatprep.subr.bf16.mxu0 0
      %7012 = vmatpush1.bf16.msra.mxu0 0
      %7013 = vmatprep.subr.bf16.mxu0 0
      %7014 = vmatpush1.bf16.msra.mxu0 0
      %7015 = vmatprep.subr.bf16.mxu0 0
      %7016 = vmatpush1.bf16.msra.mxu0 0
      %7017 = vmatprep.subr.bf16.mxu0 0
      %7018 = vmatpush1.bf16.msra.mxu0 0
      %7019 = vmatprep.subr.bf16.mxu0 0
      %7020 = vmatpush1.bf16.msra.mxu0 0
      %7021 = vmatprep.subr.bf16.mxu0 0
      %7022 = vmatpush1.bf16.msra.mxu0 0
      %7023 = vmatprep.subr.bf16.mxu0 0
      %7024 = vmatpush1.bf16.msra.mxu0 0
      %7025 = vmatprep.subr.bf16.mxu0 0
      %7026 = vmatpush1.bf16.msra.mxu0 0
      %7027 = vmatprep.subr.bf16.mxu0 0
      %7028 = vmatpush1.bf16.msra.mxu0 0
      %7029 = vmatprep.subr.bf16.mxu0 0
      %7030 = vmatpush1.bf16.msra.mxu0 0
      %7031 = vmatprep.subr.bf16.mxu0 0
      %7032 = vmatpush1.bf16.msra.mxu0 0
      %7033 = vmatprep.mubr.bf16.mxu0 0
      %7034 = vmatmul.mubr.bf16.gmra.mrb[0].mxu0 %v6990
      %v7035 = vpop.f32.mrb[0].mxu0
      %v7036 = vadd.f32 0.0, %v7035
      %v7037 = vpop.f32.mrb[0].mxu0
      %v7038 = vpop.f32.mrb[0].mxu0
      %v7039 = vadd.f32 0.0, %v7038
      %v7040 = vpop.f32.mrb[0].mxu0
      %7041 = vmatprep.mubr.bf16.mxu0 0
      %7042 = vmatmul.mubr.bf16.gmra.mrb[0].mxu0 %v6993
      %v7043 = vpop.f32.mrb[0].mxu0
      %v7044 = vadd.f32 0.0, %v7043
      %v7045 = vpop.f32.mrb[0].mxu0
      %v7046 = vpop.f32.mrb[0].mxu0
      %v7047 = vadd.f32 0.0, %v7046
      %v7048 = vpop.f32.mrb[0].mxu0
      %7049 = vmatprep.mubr.bf16.mxu0 0
      %7050 = vmatmul.mubr.bf16.gmra.mrb[0].mxu0 %v6996
      %v7051 = vpop.f32.mrb[0].mxu0
      %v7052 = vadd.f32 0.0, %v7051
      %v7053 = vpop.f32.mrb[0].mxu0
      %v7054 = vpop.f32.mrb[0].mxu0
      %v7055 = vadd.f32 0.0, %v7054
      %v7056 = vpop.f32.mrb[0].mxu0
      %7057 = vmatprep.mubr.bf16.mxu0 0
      %7058 = vmatmul.mubr.bf16.gmra.mrb[0].mxu0 %v6999
      %v7059 = vpop.f32.mrb[0].mxu0
      %v7060 = vadd.f32 0.0, %v7059
      %v7061 = vpop.f32.mrb[0].mxu0
      %v7062 = vpop.f32.mrb[0].mxu0
      %v7063 = vadd.f32 0.0, %v7062
      %v7064 = vpop.f32.mrb[0].mxu0
      %7065 = vdwg.mxu0
      %v7066 = vadd.f32 %v6825, %v7036
      %v7067 = vadd.f32 %v6826, %v7039
      %v7068 = vadd.f32 %v6827, %v7044
      %v7069 = vadd.f32 %v6828, %v7047
      %v7070 = vadd.f32 %v6829, %v7052
      %v7071 = vadd.f32 %v6830, %v7055
      %v7072 = vadd.f32 %v6831, %v7060
      %v7073 = vadd.f32 %v6832, %v7063
      %v7074 = vld [vmem:[#allocation5] sm:$0xe]
      %v7075 = vld [vmem:[#allocation5 + $0x8] sm:$0xe]
      %v7076 = vld [vmem:[#allocation5 + $0x10] sm:$0xe]
      %v7077 = vld [vmem:[#allocation5 + $0x18] sm:$0xe]
      %v7078 = vld [vmem:[#allocation5 + $0x20] sm:$0xe]
      %v7079 = vld [vmem:[#allocation5 + $0x28] sm:$0xe]
      %v7080 = vld [vmem:[#allocation5 + $0x30] sm:$0xe]
      %v7081 = vld [vmem:[#allocation5 + $0x38] sm:$0xe]
      %v7098 = vrot.slane %v7074, 5
      %v7099 = vrot.slane %v7098, 4
      %v7100 = vrot.slane %v6593, 5
      %v7101 = vsel %vm1439, %v7099, %v7100
      %v7102 = vrot.slane %v7075, 5
      %v7103 = vrot.slane %v7102, 4
      %v7104 = vrot.slane %v6595, 5
      %v7105 = vsel %vm1439, %v7103, %v7104
      %v7106 = vrot.slane %v7076, 5
      %v7107 = vrot.slane %v7106, 4
      %v7108 = vrot.slane %v6597, 5
      %v7109 = vsel %vm1439, %v7107, %v7108
      %v7110 = vrot.slane %v7077, 5
      %v7111 = vrot.slane %v7110, 4
      %v7112 = vrot.slane %v6599, 5
      %v7113 = vsel %vm1439, %v7111, %v7112
      %v7114 = vrot.slane %v7078, 5
      %v7115 = vrot.slane %v7114, 4
      %v7116 = vrot.slane %v6601, 5
      %v7117 = vsel %vm1439, %v7115, %v7116
      %v7118 = vrot.slane %v7079, 5
      %v7119 = vrot.slane %v7118, 4
      %v7120 = vrot.slane %v6603, 5
      %v7121 = vsel %vm1439, %v7119, %v7120
      %v7122 = vrot.slane %v7080, 5
      %v7123 = vrot.slane %v7122, 4
      %v7124 = vrot.slane %v6605, 5
      %v7125 = vsel %vm1439, %v7123, %v7124
      %v7126 = vrot.slane %v7081, 5
      %v7127 = vrot.slane %v7126, 4
      %v7128 = vrot.slane %v6607, 5
      %v7129 = vsel %vm1439, %v7127, %v7128
      %v7130 = vld [vmem:[%s9 + $0x40] sm:$0xf]
      %v7131 = vld [vmem:[%s9 + $0x44] sm:$0xf]
      %v7132 = vld [vmem:[%s9 + $0x48] sm:$0xf]
      %v7133 = vld [vmem:[%s9 + $0x4c] sm:$0xf]
      %v7134 = vunpack.c.l.b16 %v7101
      %v7135 = vunpack.c.l.b16 %v7105
      %v7136 = vunpack.c.l.b16 %v7109
      %v7137 = vunpack.c.l.b16 %v7113
      %v7138 = vunpack.c.l.b16 %v7117
      %v7139 = vunpack.c.l.b16 %v7121
      %v7140 = vunpack.c.l.b16 %v7125
      %v7141 = vunpack.c.l.b16 %v7129
      %v7142 = vpack.c.b16 %v7135, %v7134
      %v7143 = vpack.c.b16 %v7137, %v7136
      %v7144 = vpack.c.b16 %v7139, %v7138
      %v7145 = vpack.c.b16 %v7141, %v7140
      %v7150 = vunpack.c.l.b16 %v7130
      %v7151 = vunpack.c.l.b16 %v7131
      %v7152 = vunpack.c.l.b16 %v7132
      %v7153 = vunpack.c.l.b16 %v7133
      %v7154 = vpack.c.b16 %v7151, %v7150
      %v7155 = vpack.c.b16 %v7153, %v7152
      %v7159 = vsel %vm830, %v7142, 0
      %v7162 = vsel %vm830, %v7143, 0
      %v7165 = vsel %vm830, %v7144, 0
      %v7168 = vsel %vm830, %v7145, 0
      %7170 = vmatprep.subr.bf16.mxu0 0
      %7171 = vmatpush1.bf16.msra.mxu0 %v7154
      %7172 = vmatprep.subr.bf16.mxu0 0
      %7173 = vmatpush1.bf16.msra.mxu0 %v7155
      %7174 = vmatprep.subr.bf16.mxu0 0
      %7175 = vmatpush1.bf16.msra.mxu0 0
      %7176 = vmatprep.subr.bf16.mxu0 0
      %7177 = vmatpush1.bf16.msra.mxu0 0
      %7178 = vmatprep.subr.bf16.mxu0 0
      %7179 = vmatpush1.bf16.msra.mxu0 0
      %7180 = vmatprep.subr.bf16.mxu0 0
      %7181 = vmatpush1.bf16.msra.mxu0 0
      %7182 = vmatprep.subr.bf16.mxu0 0
      %7183 = vmatpush1.bf16.msra.mxu0 0
      %7184 = vmatprep.subr.bf16.mxu0 0
      %7185 = vmatpush1.bf16.msra.mxu0 0
      %7186 = vmatprep.subr.bf16.mxu0 0
      %7187 = vmatpush1.bf16.msra.mxu0 0
      %7188 = vmatprep.subr.bf16.mxu0 0
      %7189 = vmatpush1.bf16.msra.mxu0 0
      %7190 = vmatprep.subr.bf16.mxu0 0
      %7191 = vmatpush1.bf16.msra.mxu0 0
      %7192 = vmatprep.subr.bf16.mxu0 0
      %7193 = vmatpush1.bf16.msra.mxu0 0
      %7194 = vmatprep.subr.bf16.mxu0 0
      %7195 = vmatpush1.bf16.msra.mxu0 0
      %7196 = vmatprep.subr.bf16.mxu0 0
      %7197 = vmatpush1.bf16.msra.mxu0 0
      %7198 = vmatprep.subr.bf16.mxu0 0
      %7199 = vmatpush1.bf16.msra.mxu0 0
      %7200 = vmatprep.subr.bf16.mxu0 0
      %7201 = vmatpush1.bf16.msra.mxu0 0
      %7202 = vmatprep.mubr.bf16.mxu0 0
      %7203 = vmatmul.mubr.bf16.gmra.mrb[0].mxu0 %v7159
      %v7204 = vpop.f32.mrb[0].mxu0
      %v7205 = vadd.f32 0.0, %v7204
      %v7206 = vpop.f32.mrb[0].mxu0
      %v7207 = vpop.f32.mrb[0].mxu0
      %v7208 = vadd.f32 0.0, %v7207
      %v7209 = vpop.f32.mrb[0].mxu0
      %7210 = vmatprep.mubr.bf16.mxu0 0
      %7211 = vmatmul.mubr.bf16.gmra.mrb[0].mxu0 %v7162
      %v7212 = vpop.f32.mrb[0].mxu0
      %v7213 = vadd.f32 0.0, %v7212
      %v7214 = vpop.f32.mrb[0].mxu0
      %v7215 = vpop.f32.mrb[0].mxu0
      %v7216 = vadd.f32 0.0, %v7215
      %v7217 = vpop.f32.mrb[0].mxu0
      %7218 = vmatprep.mubr.bf16.mxu0 0
      %7219 = vmatmul.mubr.bf16.gmra.mrb[0].mxu0 %v7165
      %v7220 = vpop.f32.mrb[0].mxu0
      %v7221 = vadd.f32 0.0, %v7220
      %v7222 = vpop.f32.mrb[0].mxu0
      %v7223 = vpop.f32.mrb[0].mxu0
      %v7224 = vadd.f32 0.0, %v7223
      %v7225 = vpop.f32.mrb[0].mxu0
      %7226 = vmatprep.mubr.bf16.mxu0 0
      %7227 = vmatmul.mubr.bf16.gmra.mrb[0].mxu0 %v7168
      %v7228 = vpop.f32.mrb[0].mxu0
      %v7229 = vadd.f32 0.0, %v7228
      %v7230 = vpop.f32.mrb[0].mxu0
      %v7231 = vpop.f32.mrb[0].mxu0
      %v7232 = vadd.f32 0.0, %v7231
      %v7233 = vpop.f32.mrb[0].mxu0
      %7234 = vdwg.mxu0
      %v7235 = vadd.f32 %v7066, %v7205
      %v7236 = vadd.f32 %v7067, %v7208
      %v7237 = vadd.f32 %v7068, %v7213
      %v7238 = vadd.f32 %v7069, %v7216
      %v7239 = vadd.f32 %v7070, %v7221
      %v7240 = vadd.f32 %v7071, %v7224
      %v7241 = vadd.f32 %v7072, %v7229
      %v7242 = vadd.f32 %v7073, %v7232
      %v7243 = vld [vmem:[#allocation3] sm:$0xe]
      %v7244 = vld [vmem:[#allocation3 + $0x8] sm:$0xe]
      %v7245 = vld [vmem:[#allocation3 + $0x10] sm:$0xe]
      %v7246 = vld [vmem:[#allocation3 + $0x18] sm:$0xe]
      %v7247 = vld [vmem:[#allocation3 + $0x20] sm:$0xe]
      %v7248 = vld [vmem:[#allocation3 + $0x28] sm:$0xe]
      %v7249 = vld [vmem:[#allocation3 + $0x30] sm:$0xe]
      %v7250 = vld [vmem:[#allocation3 + $0x38] sm:$0xe]
      %v7267 = vrot.slane %v7243, 5
      %v7268 = vrot.slane %v7267, 4
      %v7269 = vrot.slane %v6834, 5
      %v7270 = vsel %vm1439, %v7268, %v7269
      %v7271 = vrot.slane %v7244, 5
      %v7272 = vrot.slane %v7271, 4
      %v7273 = vrot.slane %v6836, 5
      %v7274 = vsel %vm1439, %v7272, %v7273
      %v7275 = vrot.slane %v7245, 5
      %v7276 = vrot.slane %v7275, 4
      %v7277 = vrot.slane %v6838, 5
      %v7278 = vsel %vm1439, %v7276, %v7277
      %v7279 = vrot.slane %v7246, 5
      %v7280 = vrot.slane %v7279, 4
      %v7281 = vrot.slane %v6840, 5
      %v7282 = vsel %vm1439, %v7280, %v7281
      %v7283 = vrot.slane %v7247, 5
      %v7284 = vrot.slane %v7283, 4
      %v7285 = vrot.slane %v6842, 5
      %v7286 = vsel %vm1439, %v7284, %v7285
      %v7287 = vrot.slane %v7248, 5
      %v7288 = vrot.slane %v7287, 4
      %v7289 = vrot.slane %v6844, 5
      %v7290 = vsel %vm1439, %v7288, %v7289
      %v7291 = vrot.slane %v7249, 5
      %v7292 = vrot.slane %v7291, 4
      %v7293 = vrot.slane %v6846, 5
      %v7294 = vsel %vm1439, %v7292, %v7293
      %v7295 = vrot.slane %v7250, 5
      %v7296 = vrot.slane %v7295, 4
      %v7297 = vrot.slane %v6848, 5
      %v7298 = vsel %vm1439, %v7296, %v7297
      %v7299 = vld [vmem:[%s9 + $0x50] sm:$0xf]
      %v7300 = vld [vmem:[%s9 + $0x54] sm:$0xf]
      %v7301 = vld [vmem:[%s9 + $0x58] sm:$0xf]
      %v7302 = vld [vmem:[%s9 + $0x5c] sm:$0xf]
      %v7303 = vunpack.c.l.b16 %v7270
      %v7304 = vunpack.c.l.b16 %v7274
      %v7305 = vunpack.c.l.b16 %v7278
      %v7306 = vunpack.c.l.b16 %v7282
      %v7307 = vunpack.c.l.b16 %v7286
      %v7308 = vunpack.c.l.b16 %v7290
      %v7309 = vunpack.c.l.b16 %v7294
      %v7310 = vunpack.c.l.b16 %v7298
      %v7311 = vpack.c.b16 %v7304, %v7303
      %v7312 = vpack.c.b16 %v7306, %v7305
      %v7313 = vpack.c.b16 %v7308, %v7307
      %v7314 = vpack.c.b16 %v7310, %v7309
      %v7319 = vunpack.c.l.b16 %v7299
      %v7320 = vunpack.c.l.b16 %v7300
      %v7321 = vunpack.c.l.b16 %v7301
      %v7322 = vunpack.c.l.b16 %v7302
      %v7323 = vpack.c.b16 %v7320, %v7319
      %v7324 = vpack.c.b16 %v7322, %v7321
      %v7328 = vsel %vm830, %v7311, 0
      %v7331 = vsel %vm830, %v7312, 0
      %v7334 = vsel %vm830, %v7313, 0
      %v7337 = vsel %vm830, %v7314, 0
      %7339 = vmatprep.subr.bf16.mxu0 0
      %7340 = vmatpush1.bf16.msra.mxu0 %v7323
      %7341 = vmatprep.subr.bf16.mxu0 0
      %7342 = vmatpush1.bf16.msra.mxu0 %v7324
      %7343 = vmatprep.subr.bf16.mxu0 0
      %7344 = vmatpush1.bf16.msra.mxu0 0
      %7345 = vmatprep.subr.bf16.mxu0 0
      %7346 = vmatpush1.bf16.msra.mxu0 0
      %7347 = vmatprep.subr.bf16.mxu0 0
      %7348 = vmatpush1.bf16.msra.mxu0 0
      %7349 = vmatprep.subr.bf16.mxu0 0
      %7350 = vmatpush1.bf16.msra.mxu0 0
      %7351 = vmatprep.subr.bf16.mxu0 0
      %7352 = vmatpush1.bf16.msra.mxu0 0
      %7353 = vmatprep.subr.bf16.mxu0 0
      %7354 = vmatpush1.bf16.msra.mxu0 0
      %7355 = vmatprep.subr.bf16.mxu0 0
      %7356 = vmatpush1.bf16.msra.mxu0 0
      %7357 = vmatprep.subr.bf16.mxu0 0
      %7358 = vmatpush1.bf16.msra.mxu0 0
      %7359 = vmatprep.subr.bf16.mxu0 0
      %7360 = vmatpush1.bf16.msra.mxu0 0
      %7361 = vmatprep.subr.bf16.mxu0 0
      %7362 = vmatpush1.bf16.msra.mxu0 0
      %7363 = vmatprep.subr.bf16.mxu0 0
      %7364 = vmatpush1.bf16.msra.mxu0 0
      %7365 = vmatprep.subr.bf16.mxu0 0
      %7366 = vmatpush1.bf16.msra.mxu0 0
      %7367 = vmatprep.subr.bf16.mxu0 0
      %7368 = vmatpush1.bf16.msra.mxu0 0
      %7369 = vmatprep.subr.bf16.mxu0 0
      %7370 = vmatpush1.bf16.msra.mxu0 0
      %7371 = vmatprep.mubr.bf16.mxu0 0
      %7372 = vmatmul.mubr.bf16.gmra.mrb[0].mxu0 %v7328
      %v7373 = vpop.f32.mrb[0].mxu0
      %v7374 = vadd.f32 0.0, %v7373
      %v7375 = vpop.f32.mrb[0].mxu0
      %v7376 = vpop.f32.mrb[0].mxu0
      %v7377 = vadd.f32 0.0, %v7376
      %v7378 = vpop.f32.mrb[0].mxu0
      %7379 = vmatprep.mubr.bf16.mxu0 0
      %7380 = vmatmul.mubr.bf16.gmra.mrb[0].mxu0 %v7331
      %v7381 = vpop.f32.mrb[0].mxu0
      %v7382 = vadd.f32 0.0, %v7381
      %v7383 = vpop.f32.mrb[0].mxu0
      %v7384 = vpop.f32.mrb[0].mxu0
      %v7385 = vadd.f32 0.0, %v7384
      %v7386 = vpop.f32.mrb[0].mxu0
      %7387 = vmatprep.mubr.bf16.mxu0 0
      %7388 = vmatmul.mubr.bf16.gmra.mrb[0].mxu0 %v7334
      %v7389 = vpop.f32.mrb[0].mxu0
      %v7390 = vadd.f32 0.0, %v7389
      %v7391 = vpop.f32.mrb[0].mxu0
      %v7392 = vpop.f32.mrb[0].mxu0
      %v7393 = vadd.f32 0.0, %v7392
      %v7394 = vpop.f32.mrb[0].mxu0
      %7395 = vmatprep.mubr.bf16.mxu0 0
      %7396 = vmatmul.mubr.bf16.gmra.mrb[0].mxu0 %v7337
      %v7397 = vpop.f32.mrb[0].mxu0
      %v7398 = vadd.f32 0.0, %v7397
      %v7399 = vpop.f32.mrb[0].mxu0
      %v7400 = vpop.f32.mrb[0].mxu0
      %v7401 = vadd.f32 0.0, %v7400
      %v7402 = vpop.f32.mrb[0].mxu0
      %7403 = vdwg.mxu0
      %v7404 = vadd.f32 %v7235, %v7374
      %v7405 = vadd.f32 %v7236, %v7377
      %v7406 = vadd.f32 %v7237, %v7382
      %v7407 = vadd.f32 %v7238, %v7385
      %v7408 = vadd.f32 %v7239, %v7390
      %v7409 = vadd.f32 %v7240, %v7393
      %v7410 = vadd.f32 %v7241, %v7398
      %v7411 = vadd.f32 %v7242, %v7401
      %v7412 = vld [vmem:[%s6301] sm:$0xf]
      %v7413 = vld [vmem:[%s6301 + $0x8] sm:$0xf]
      %v7414 = vld [vmem:[%s6301 + $0x10] sm:$0xf]
      %v7415 = vld [vmem:[%s6301 + $0x18] sm:$0xf]
      %v7416 = vld [vmem:[%s6301 + $0x20] sm:$0xf]
      %v7417 = vld [vmem:[%s6301 + $0x28] sm:$0xf]
      %v7418 = vld [vmem:[%s6301 + $0x30] sm:$0xf]
      %v7419 = vld [vmem:[%s6301 + $0x38] sm:$0xf]
      %v7420 = vld [vmem:[%s9 + $0x60] sm:$0xf]
      %v7421 = vld [vmem:[%s9 + $0x64] sm:$0xf]
      %v7422 = vld [vmem:[%s9 + $0x68] sm:$0xf]
      %v7423 = vld [vmem:[%s9 + $0x6c] sm:$0xf]
      %v7432 = vunpack.c.l.b16 %v7412
      %v7433 = vunpack.c.l.b16 %v7413
      %v7434 = vunpack.c.l.b16 %v7414
      %v7435 = vunpack.c.l.b16 %v7415
      %v7436 = vunpack.c.l.b16 %v7416
      %v7437 = vunpack.c.l.b16 %v7417
      %v7438 = vunpack.c.l.b16 %v7418
      %v7439 = vunpack.c.l.b16 %v7419
      %v7440 = vpack.c.b16 %v7433, %v7432
      %v7441 = vpack.c.b16 %v7435, %v7434
      %v7442 = vpack.c.b16 %v7437, %v7436
      %v7443 = vpack.c.b16 %v7439, %v7438
      %v7448 = vunpack.c.l.b16 %v7420
      %v7449 = vunpack.c.l.b16 %v7421
      %v7450 = vunpack.c.l.b16 %v7422
      %v7451 = vunpack.c.l.b16 %v7423
      %v7452 = vpack.c.b16 %v7449, %v7448
      %v7453 = vpack.c.b16 %v7451, %v7450
      %v7457 = vsel %vm830, %v7440, 0
      %v7460 = vsel %vm830, %v7441, 0
      %v7463 = vsel %vm830, %v7442, 0
      %v7466 = vsel %vm830, %v7443, 0
      %7468 = vmatprep.subr.bf16.mxu0 0
      %7469 = vmatpush1.bf16.msra.mxu0 %v7452
      %7470 = vmatprep.subr.bf16.mxu0 0
      %7471 = vmatpush1.bf16.msra.mxu0 %v7453
      %7472 = vmatprep.subr.bf16.mxu0 0
      %7473 = vmatpush1.bf16.msra.mxu0 0
      %7474 = vmatprep.subr.bf16.mxu0 0
      %7475 = vmatpush1.bf16.msra.mxu0 0
      %7476 = vmatprep.subr.bf16.mxu0 0
      %7477 = vmatpush1.bf16.msra.mxu0 0
      %7478 = vmatprep.subr.bf16.mxu0 0
      %7479 = vmatpush1.bf16.msra.mxu0 0
      %7480 = vmatprep.subr.bf16.mxu0 0
      %7481 = vmatpush1.bf16.msra.mxu0 0
      %7482 = vmatprep.subr.bf16.mxu0 0
      %7483 = vmatpush1.bf16.msra.mxu0 0
      %7484 = vmatprep.subr.bf16.mxu0 0
      %7485 = vmatpush1.bf16.msra.mxu0 0
      %7486 = vmatprep.subr.bf16.mxu0 0
      %7487 = vmatpush1.bf16.msra.mxu0 0
      %7488 = vmatprep.subr.bf16.mxu0 0
      %7489 = vmatpush1.bf16.msra.mxu0 0
      %7490 = vmatprep.subr.bf16.mxu0 0
      %7491 = vmatpush1.bf16.msra.mxu0 0
      %7492 = vmatprep.subr.bf16.mxu0 0
      %7493 = vmatpush1.bf16.msra.mxu0 0
      %7494 = vmatprep.subr.bf16.mxu0 0
      %7495 = vmatpush1.bf16.msra.mxu0 0
      %7496 = vmatprep.subr.bf16.mxu0 0
      %7497 = vmatpush1.bf16.msra.mxu0 0
      %7498 = vmatprep.subr.bf16.mxu0 0
      %7499 = vmatpush1.bf16.msra.mxu0 0
      %7500 = vmatprep.mubr.bf16.mxu0 0
      %7501 = vmatmul.mubr.bf16.gmra.mrb[0].mxu0 %v7457
      %v7502 = vpop.f32.mrb[0].mxu0
      %v7503 = vadd.f32 0.0, %v7502
      %v7504 = vpop.f32.mrb[0].mxu0
      %v7505 = vpop.f32.mrb[0].mxu0
      %v7506 = vadd.f32 0.0, %v7505
      %v7507 = vpop.f32.mrb[0].mxu0
      %7508 = vmatprep.mubr.bf16.mxu0 0
      %7509 = vmatmul.mubr.bf16.gmra.mrb[0].mxu0 %v7460
      %v7510 = vpop.f32.mrb[0].mxu0
      %v7511 = vadd.f32 0.0, %v7510
      %v7512 = vpop.f32.mrb[0].mxu0
      %v7513 = vpop.f32.mrb[0].mxu0
      %v7514 = vadd.f32 0.0, %v7513
      %v7515 = vpop.f32.mrb[0].mxu0
      %7516 = vmatprep.mubr.bf16.mxu0 0
      %7517 = vmatmul.mubr.bf16.gmra.mrb[0].mxu0 %v7463
      %v7518 = vpop.f32.mrb[0].mxu0
      %v7519 = vadd.f32 0.0, %v7518
      %v7520 = vpop.f32.mrb[0].mxu0
      %v7521 = vpop.f32.mrb[0].mxu0
      %v7522 = vadd.f32 0.0, %v7521
      %v7523 = vpop.f32.mrb[0].mxu0
      %7524 = vmatprep.mubr.bf16.mxu0 0
      %7525 = vmatmul.mubr.bf16.gmra.mrb[0].mxu0 %v7466
      %v7526 = vpop.f32.mrb[0].mxu0
      %v7527 = vadd.f32 0.0, %v7526
      %v7528 = vpop.f32.mrb[0].mxu0
      %v7529 = vpop.f32.mrb[0].mxu0
      %v7530 = vadd.f32 0.0, %v7529
      %v7531 = vpop.f32.mrb[0].mxu0
      %7532 = vdwg.mxu0
      %v7533 = vadd.f32 %v7404, %v7503
      %v7534 = vadd.f32 %v7405, %v7506
      %v7535 = vadd.f32 %v7406, %v7511
      %v7536 = vadd.f32 %v7407, %v7514
      %v7537 = vadd.f32 %v7408, %v7519
      %v7538 = vadd.f32 %v7409, %v7522
      %v7539 = vadd.f32 %v7410, %v7527
      %v7540 = vadd.f32 %v7411, %v7530
      %v7541 = vld [vmem:[%s2743] sm:$0xf]
      %v7542 = vld [vmem:[%s2743 + $0x8] sm:$0xf]
      %v7543 = vld [vmem:[%s2743 + $0x10] sm:$0xf]
      %v7544 = vld [vmem:[%s2743 + $0x18] sm:$0xf]
      %v7545 = vld [vmem:[%s2743 + $0x20] sm:$0xf]
      %v7546 = vld [vmem:[%s2743 + $0x28] sm:$0xf]
      %v7547 = vld [vmem:[%s2743 + $0x30] sm:$0xf]
      %v7548 = vld [vmem:[%s2743 + $0x38] sm:$0xf]
      %v7549 = vld [vmem:[%s9 + $0x70] sm:$0xf]
      %v7550 = vld [vmem:[%s9 + $0x74] sm:$0xf]
      %v7551 = vld [vmem:[%s9 + $0x78] sm:$0xf]
      %v7552 = vld [vmem:[%s9 + $0x7c] sm:$0xf]
      %v7561 = vunpack.c.l.b16 %v7541
      %v7562 = vunpack.c.l.b16 %v7542
      %v7563 = vunpack.c.l.b16 %v7543
      %v7564 = vunpack.c.l.b16 %v7544
      %v7565 = vunpack.c.l.b16 %v7545
      %v7566 = vunpack.c.l.b16 %v7546
      %v7567 = vunpack.c.l.b16 %v7547
      %v7568 = vunpack.c.l.b16 %v7548
      %v7569 = vpack.c.b16 %v7562, %v7561
      %v7570 = vpack.c.b16 %v7564, %v7563
      %v7571 = vpack.c.b16 %v7566, %v7565
      %v7572 = vpack.c.b16 %v7568, %v7567
      %v7577 = vunpack.c.l.b16 %v7549
      %v7578 = vunpack.c.l.b16 %v7550
      %v7579 = vunpack.c.l.b16 %v7551
      %v7580 = vunpack.c.l.b16 %v7552
      %v7581 = vpack.c.b16 %v7578, %v7577
      %v7582 = vpack.c.b16 %v7580, %v7579
      %v7586 = vsel %vm830, %v7569, 0
      %v7589 = vsel %vm830, %v7570, 0
      %v7592 = vsel %vm830, %v7571, 0
      %v7595 = vsel %vm830, %v7572, 0
      %7597 = vmatprep.subr.bf16.mxu0 0
      %7598 = vmatpush1.bf16.msra.mxu0 %v7581
      %7599 = vmatprep.subr.bf16.mxu0 0
      %7600 = vmatpush1.bf16.msra.mxu0 %v7582
      %7601 = vmatprep.subr.bf16.mxu0 0
      %7602 = vmatpush1.bf16.msra.mxu0 0
      %7603 = vmatprep.subr.bf16.mxu0 0
      %7604 = vmatpush1.bf16.msra.mxu0 0
      %7605 = vmatprep.subr.bf16.mxu0 0
      %7606 = vmatpush1.bf16.msra.mxu0 0
      %7607 = vmatprep.subr.bf16.mxu0 0
      %7608 = vmatpush1.bf16.msra.mxu0 0
      %7609 = vmatprep.subr.bf16.mxu0 0
      %7610 = vmatpush1.bf16.msra.mxu0 0
      %7611 = vmatprep.subr.bf16.mxu0 0
      %7612 = vmatpush1.bf16.msra.mxu0 0
      %7613 = vmatprep.subr.bf16.mxu0 0
      %7614 = vmatpush1.bf16.msra.mxu0 0
      %7615 = vmatprep.subr.bf16.mxu0 0
      %7616 = vmatpush1.bf16.msra.mxu0 0
      %7617 = vmatprep.subr.bf16.mxu0 0
      %7618 = vmatpush1.bf16.msra.mxu0 0
      %7619 = vmatprep.subr.bf16.mxu0 0
      %7620 = vmatpush1.bf16.msra.mxu0 0
      %7621 = vmatprep.subr.bf16.mxu0 0
      %7622 = vmatpush1.bf16.msra.mxu0 0
      %7623 = vmatprep.subr.bf16.mxu0 0
      %7624 = vmatpush1.bf16.msra.mxu0 0
      %7625 = vmatprep.subr.bf16.mxu0 0
      %7626 = vmatpush1.bf16.msra.mxu0 0
      %7627 = vmatprep.subr.bf16.mxu0 0
      %7628 = vmatpush1.bf16.msra.mxu0 0
      %7629 = vmatprep.mubr.bf16.mxu0 0
      %7630 = vmatmul.mubr.bf16.gmra.mrb[0].mxu0 %v7586
      %v7631 = vpop.f32.mrb[0].mxu0
      %v7632 = vadd.f32 0.0, %v7631
      %v7633 = vpop.f32.mrb[0].mxu0
      %v7634 = vpop.f32.mrb[0].mxu0
      %v7635 = vadd.f32 0.0, %v7634
      %v7636 = vpop.f32.mrb[0].mxu0
      %7637 = vmatprep.mubr.bf16.mxu0 0
      %7638 = vmatmul.mubr.bf16.gmra.mrb[0].mxu0 %v7589
      %v7639 = vpop.f32.mrb[0].mxu0
      %v7640 = vadd.f32 0.0, %v7639
      %v7641 = vpop.f32.mrb[0].mxu0
      %v7642 = vpop.f32.mrb[0].mxu0
      %v7643 = vadd.f32 0.0, %v7642
      %v7644 = vpop.f32.mrb[0].mxu0
      %7645 = vmatprep.mubr.bf16.mxu0 0
      %7646 = vmatmul.mubr.bf16.gmra.mrb[0].mxu0 %v7592
      %v7647 = vpop.f32.mrb[0].mxu0
      %v7648 = vadd.f32 0.0, %v7647
      %v7649 = vpop.f32.mrb[0].mxu0
      %v7650 = vpop.f32.mrb[0].mxu0
      %v7651 = vadd.f32 0.0, %v7650
      %v7652 = vpop.f32.mrb[0].mxu0
      %7653 = vmatprep.mubr.bf16.mxu0 0
      %7654 = vmatmul.mubr.bf16.gmra.mrb[0].mxu0 %v7595
      %v7655 = vpop.f32.mrb[0].mxu0
      %v7656 = vadd.f32 0.0, %v7655
      %v7657 = vpop.f32.mrb[0].mxu0
      %v7658 = vpop.f32.mrb[0].mxu0
      %v7659 = vadd.f32 0.0, %v7658
      %v7660 = vpop.f32.mrb[0].mxu0
      %7661 = vdwg.mxu0
      %v7662 = vadd.f32 %v7533, %v7632
      %v7663 = vadd.f32 %v7534, %v7635
      %v7664 = vadd.f32 %v7535, %v7640
      %v7665 = vadd.f32 %v7536, %v7643
      %v7666 = vadd.f32 %v7537, %v7648
      %v7667 = vadd.f32 %v7538, %v7651
      %v7668 = vadd.f32 %v7539, %v7656
      %v7669 = vadd.f32 %v7540, %v7659
      %v7670 = vld [vmem:[%s6301] sm:$0xf]
      %v7671 = vld [vmem:[%s6301 + $0x4] sm:$0x1]
      %v7672 = vld [vmem:[%s6301 + $0x8] sm:$0xf]
      %v7673 = vld [vmem:[%s6301 + $0xc] sm:$0x1]
      %v7674 = vld [vmem:[%s6301 + $0x10] sm:$0xf]
      %v7675 = vld [vmem:[%s6301 + $0x14] sm:$0x1]
      %v7676 = vld [vmem:[%s6301 + $0x18] sm:$0xf]
      %v7677 = vld [vmem:[%s6301 + $0x1c] sm:$0x1]
      %v7678 = vld [vmem:[%s6301 + $0x20] sm:$0xf]
      %v7679 = vld [vmem:[%s6301 + $0x24] sm:$0x1]
      %v7680 = vld [vmem:[%s6301 + $0x28] sm:$0xf]
      %v7681 = vld [vmem:[%s6301 + $0x2c] sm:$0x1]
      %v7682 = vld [vmem:[%s6301 + $0x30] sm:$0xf]
      %v7683 = vld [vmem:[%s6301 + $0x34] sm:$0x1]
      %v7684 = vld [vmem:[%s6301 + $0x38] sm:$0xf]
      %v7685 = vld [vmem:[%s6301 + $0x3c] sm:$0x1]
      %v7687 = vshrl.u32 %v7670, 16
      %v7689 = vrot.slane %v7687, 4
      %v7690 = vshll.u32 %v7670, 16
      %v7692 = vrot.slane %v7690, 5
      %v7693 = vor.u32 %v7689, %v7692
      %v7694 = vrot.slane %v7693, 4
      %v7696 = vshll.u32 %v7671, 16
      %v7698 = vrot.slane %v7696, 5
      %v7699 = vsel %vm1099, %v7694, %v7698
      %v7701 = vshrl.u32 %v7672, 16
      %v7703 = vrot.slane %v7701, 4
      %v7704 = vshll.u32 %v7672, 16
      %v7706 = vrot.slane %v7704, 5
      %v7707 = vor.u32 %v7703, %v7706
      %v7708 = vrot.slane %v7707, 4
      %v7710 = vshll.u32 %v7673, 16
      %v7712 = vrot.slane %v7710, 5
      %v7713 = vsel %vm1099, %v7708, %v7712
      %v7715 = vshrl.u32 %v7674, 16
      %v7717 = vrot.slane %v7715, 4
      %v7718 = vshll.u32 %v7674, 16
      %v7720 = vrot.slane %v7718, 5
      %v7721 = vor.u32 %v7717, %v7720
      %v7722 = vrot.slane %v7721, 4
      %v7724 = vshll.u32 %v7675, 16
      %v7726 = vrot.slane %v7724, 5
      %v7727 = vsel %vm1099, %v7722, %v7726
      %v7729 = vshrl.u32 %v7676, 16
      %v7731 = vrot.slane %v7729, 4
      %v7732 = vshll.u32 %v7676, 16
      %v7734 = vrot.slane %v7732, 5
      %v7735 = vor.u32 %v7731, %v7734
      %v7736 = vrot.slane %v7735, 4
      %v7738 = vshll.u32 %v7677, 16
      %v7740 = vrot.slane %v7738, 5
      %v7741 = vsel %vm1099, %v7736, %v7740
      %v7743 = vshrl.u32 %v7678, 16
      %v7745 = vrot.slane %v7743, 4
      %v7746 = vshll.u32 %v7678, 16
      %v7748 = vrot.slane %v7746, 5
      %v7749 = vor.u32 %v7745, %v7748
      %v7750 = vrot.slane %v7749, 4
      %v7752 = vshll.u32 %v7679, 16
      %v7754 = vrot.slane %v7752, 5
      %v7755 = vsel %vm1099, %v7750, %v7754
      %v7757 = vshrl.u32 %v7680, 16
      %v7759 = vrot.slane %v7757, 4
      %v7760 = vshll.u32 %v7680, 16
      %v7762 = vrot.slane %v7760, 5
      %v7763 = vor.u32 %v7759, %v7762
      %v7764 = vrot.slane %v7763, 4
      %v7766 = vshll.u32 %v7681, 16
      %v7768 = vrot.slane %v7766, 5
      %v7769 = vsel %vm1099, %v7764, %v7768
      %v7771 = vshrl.u32 %v7682, 16
      %v7773 = vrot.slane %v7771, 4
      %v7774 = vshll.u32 %v7682, 16
      %v7776 = vrot.slane %v7774, 5
      %v7777 = vor.u32 %v7773, %v7776
      %v7778 = vrot.slane %v7777, 4
      %v7780 = vshll.u32 %v7683, 16
      %v7782 = vrot.slane %v7780, 5
      %v7783 = vsel %vm1099, %v7778, %v7782
      %v7785 = vshrl.u32 %v7684, 16
      %v7787 = vrot.slane %v7785, 4
      %v7788 = vshll.u32 %v7684, 16
      %v7790 = vrot.slane %v7788, 5
      %v7791 = vor.u32 %v7787, %v7790
      %v7792 = vrot.slane %v7791, 4
      %v7794 = vshll.u32 %v7685, 16
      %v7796 = vrot.slane %v7794, 5
      %v7797 = vsel %vm1099, %v7792, %v7796
      %v7798 = vld [vmem:[%s9 + $0x80] sm:$0xf]
      %v7799 = vld [vmem:[%s9 + $0x84] sm:$0xf]
      %v7800 = vld [vmem:[%s9 + $0x88] sm:$0xf]
      %v7801 = vld [vmem:[%s9 + $0x8c] sm:$0xf]
      %v7802 = vunpack.c.l.b16 %v7699
      %v7803 = vunpack.c.l.b16 %v7713
      %v7804 = vunpack.c.l.b16 %v7727
      %v7805 = vunpack.c.l.b16 %v7741
      %v7806 = vunpack.c.l.b16 %v7755
      %v7807 = vunpack.c.l.b16 %v7769
      %v7808 = vunpack.c.l.b16 %v7783
      %v7809 = vunpack.c.l.b16 %v7797
      %v7810 = vpack.c.b16 %v7803, %v7802
      %v7811 = vpack.c.b16 %v7805, %v7804
      %v7812 = vpack.c.b16 %v7807, %v7806
      %v7813 = vpack.c.b16 %v7809, %v7808
      %v7818 = vunpack.c.l.b16 %v7798
      %v7819 = vunpack.c.l.b16 %v7799
      %v7820 = vunpack.c.l.b16 %v7800
      %v7821 = vunpack.c.l.b16 %v7801
      %v7822 = vpack.c.b16 %v7819, %v7818
      %v7823 = vpack.c.b16 %v7821, %v7820
      %v7827 = vsel %vm830, %v7810, 0
      %v7830 = vsel %vm830, %v7811, 0
      %v7833 = vsel %vm830, %v7812, 0
      %v7836 = vsel %vm830, %v7813, 0
      %7838 = vmatprep.subr.bf16.mxu0 0
      %7839 = vmatpush1.bf16.msra.mxu0 %v7822
      %7840 = vmatprep.subr.bf16.mxu0 0
      %7841 = vmatpush1.bf16.msra.mxu0 %v7823
      %7842 = vmatprep.subr.bf16.mxu0 0
      %7843 = vmatpush1.bf16.msra.mxu0 0
      %7844 = vmatprep.subr.bf16.mxu0 0
      %7845 = vmatpush1.bf16.msra.mxu0 0
      %7846 = vmatprep.subr.bf16.mxu0 0
      %7847 = vmatpush1.bf16.msra.mxu0 0
      %7848 = vmatprep.subr.bf16.mxu0 0
      %7849 = vmatpush1.bf16.msra.mxu0 0
      %7850 = vmatprep.subr.bf16.mxu0 0
      %7851 = vmatpush1.bf16.msra.mxu0 0
      %7852 = vmatprep.subr.bf16.mxu0 0
      %7853 = vmatpush1.bf16.msra.mxu0 0
      %7854 = vmatprep.subr.bf16.mxu0 0
      %7855 = vmatpush1.bf16.msra.mxu0 0
      %7856 = vmatprep.subr.bf16.mxu0 0
      %7857 = vmatpush1.bf16.msra.mxu0 0
      %7858 = vmatprep.subr.bf16.mxu0 0
      %7859 = vmatpush1.bf16.msra.mxu0 0
      %7860 = vmatprep.subr.bf16.mxu0 0
      %7861 = vmatpush1.bf16.msra.mxu0 0
      %7862 = vmatprep.subr.bf16.mxu0 0
      %7863 = vmatpush1.bf16.msra.mxu0 0
      %7864 = vmatprep.subr.bf16.mxu0 0
      %7865 = vmatpush1.bf16.msra.mxu0 0
      %7866 = vmatprep.subr.bf16.mxu0 0
      %7867 = vmatpush1.bf16.msra.mxu0 0
      %7868 = vmatprep.subr.bf16.mxu0 0
      %7869 = vmatpush1.bf16.msra.mxu0 0
      %7870 = vmatprep.mubr.bf16.mxu0 0
      %7871 = vmatmul.mubr.bf16.gmra.mrb[0].mxu0 %v7827
      %v7872 = vpop.f32.mrb[0].mxu0
      %v7873 = vadd.f32 0.0, %v7872
      %v7874 = vpop.f32.mrb[0].mxu0
      %v7875 = vpop.f32.mrb[0].mxu0
      %v7876 = vadd.f32 0.0, %v7875
      %v7877 = vpop.f32.mrb[0].mxu0
      %7878 = vmatprep.mubr.bf16.mxu0 0
      %7879 = vmatmul.mubr.bf16.gmra.mrb[0].mxu0 %v7830
      %v7880 = vpop.f32.mrb[0].mxu0
      %v7881 = vadd.f32 0.0, %v7880
      %v7882 = vpop.f32.mrb[0].mxu0
      %v7883 = vpop.f32.mrb[0].mxu0
      %v7884 = vadd.f32 0.0, %v7883
      %v7885 = vpop.f32.mrb[0].mxu0
      %7886 = vmatprep.mubr.bf16.mxu0 0
      %7887 = vmatmul.mubr.bf16.gmra.mrb[0].mxu0 %v7833
      %v7888 = vpop.f32.mrb[0].mxu0
      %v7889 = vadd.f32 0.0, %v7888
      %v7890 = vpop.f32.mrb[0].mxu0
      %v7891 = vpop.f32.mrb[0].mxu0
      %v7892 = vadd.f32 0.0, %v7891
      %v7893 = vpop.f32.mrb[0].mxu0
      %7894 = vmatprep.mubr.bf16.mxu0 0
      %7895 = vmatmul.mubr.bf16.gmra.mrb[0].mxu0 %v7836
      %v7896 = vpop.f32.mrb[0].mxu0
      %v7897 = vadd.f32 0.0, %v7896
      %v7898 = vpop.f32.mrb[0].mxu0
      %v7899 = vpop.f32.mrb[0].mxu0
      %v7900 = vadd.f32 0.0, %v7899
      %v7901 = vpop.f32.mrb[0].mxu0
      %7902 = vdwg.mxu0
      %v7903 = vadd.f32 %v7662, %v7873
      %v7904 = vadd.f32 %v7663, %v7876
      %v7905 = vadd.f32 %v7664, %v7881
      %v7906 = vadd.f32 %v7665, %v7884
      %v7907 = vadd.f32 %v7666, %v7889
      %v7908 = vadd.f32 %v7667, %v7892
      %v7909 = vadd.f32 %v7668, %v7897
      %v7910 = vadd.f32 %v7669, %v7900
      %v7911 = vld [vmem:[%s2743] sm:$0xf]
      %v7912 = vld [vmem:[%s2743 + $0x4] sm:$0x1]
      %v7913 = vld [vmem:[%s2743 + $0x8] sm:$0xf]
      %v7914 = vld [vmem:[%s2743 + $0xc] sm:$0x1]
      %v7915 = vld [vmem:[%s2743 + $0x10] sm:$0xf]
      %v7916 = vld [vmem:[%s2743 + $0x14] sm:$0x1]
      %v7917 = vld [vmem:[%s2743 + $0x18] sm:$0xf]
      %v7918 = vld [vmem:[%s2743 + $0x1c] sm:$0x1]
      %v7919 = vld [vmem:[%s2743 + $0x20] sm:$0xf]
      %v7920 = vld [vmem:[%s2743 + $0x24] sm:$0x1]
      %v7921 = vld [vmem:[%s2743 + $0x28] sm:$0xf]
      %v7922 = vld [vmem:[%s2743 + $0x2c] sm:$0x1]
      %v7923 = vld [vmem:[%s2743 + $0x30] sm:$0xf]
      %v7924 = vld [vmem:[%s2743 + $0x34] sm:$0x1]
      %v7925 = vld [vmem:[%s2743 + $0x38] sm:$0xf]
      %v7926 = vld [vmem:[%s2743 + $0x3c] sm:$0x1]
      %v7928 = vshrl.u32 %v7911, 16
      %v7930 = vrot.slane %v7928, 4
      %v7931 = vshll.u32 %v7911, 16
      %v7933 = vrot.slane %v7931, 5
      %v7934 = vor.u32 %v7930, %v7933
      %v7935 = vrot.slane %v7934, 4
      %v7937 = vshll.u32 %v7912, 16
      %v7939 = vrot.slane %v7937, 5
      %v7940 = vsel %vm1099, %v7935, %v7939
      %v7942 = vshrl.u32 %v7913, 16
      %v7944 = vrot.slane %v7942, 4
      %v7945 = vshll.u32 %v7913, 16
      %v7947 = vrot.slane %v7945, 5
      %v7948 = vor.u32 %v7944, %v7947
      %v7949 = vrot.slane %v7948, 4
      %v7951 = vshll.u32 %v7914, 16
      %v7953 = vrot.slane %v7951, 5
      %v7954 = vsel %vm1099, %v7949, %v7953
      %v7956 = vshrl.u32 %v7915, 16
      %v7958 = vrot.slane %v7956, 4
      %v7959 = vshll.u32 %v7915, 16
      %v7961 = vrot.slane %v7959, 5
      %v7962 = vor.u32 %v7958, %v7961
      %v7963 = vrot.slane %v7962, 4
      %v7965 = vshll.u32 %v7916, 16
      %v7967 = vrot.slane %v7965, 5
      %v7968 = vsel %vm1099, %v7963, %v7967
      %v7970 = vshrl.u32 %v7917, 16
      %v7972 = vrot.slane %v7970, 4
      %v7973 = vshll.u32 %v7917, 16
      %v7975 = vrot.slane %v7973, 5
      %v7976 = vor.u32 %v7972, %v7975
      %v7977 = vrot.slane %v7976, 4
      %v7979 = vshll.u32 %v7918, 16
      %v7981 = vrot.slane %v7979, 5
      %v7982 = vsel %vm1099, %v7977, %v7981
      %v7984 = vshrl.u32 %v7919, 16
      %v7986 = vrot.slane %v7984, 4
      %v7987 = vshll.u32 %v7919, 16
      %v7989 = vrot.slane %v7987, 5
      %v7990 = vor.u32 %v7986, %v7989
      %v7991 = vrot.slane %v7990, 4
      %v7993 = vshll.u32 %v7920, 16
      %v7995 = vrot.slane %v7993, 5
      %v7996 = vsel %vm1099, %v7991, %v7995
      %v7998 = vshrl.u32 %v7921, 16
      %v8000 = vrot.slane %v7998, 4
      %v8001 = vshll.u32 %v7921, 16
      %v8003 = vrot.slane %v8001, 5
      %v8004 = vor.u32 %v8000, %v8003
      %v8005 = vrot.slane %v8004, 4
      %v8007 = vshll.u32 %v7922, 16
      %v8009 = vrot.slane %v8007, 5
      %v8010 = vsel %vm1099, %v8005, %v8009
      %v8012 = vshrl.u32 %v7923, 16
      %v8014 = vrot.slane %v8012, 4
      %v8015 = vshll.u32 %v7923, 16
      %v8017 = vrot.slane %v8015, 5
      %v8018 = vor.u32 %v8014, %v8017
      %v8019 = vrot.slane %v8018, 4
      %v8021 = vshll.u32 %v7924, 16
      %v8023 = vrot.slane %v8021, 5
      %v8024 = vsel %vm1099, %v8019, %v8023
      %v8026 = vshrl.u32 %v7925, 16
      %v8028 = vrot.slane %v8026, 4
      %v8029 = vshll.u32 %v7925, 16
      %v8031 = vrot.slane %v8029, 5
      %v8032 = vor.u32 %v8028, %v8031
      %v8033 = vrot.slane %v8032, 4
      %v8035 = vshll.u32 %v7926, 16
      %v8037 = vrot.slane %v8035, 5
      %v8038 = vsel %vm1099, %v8033, %v8037
      %v8039 = vld [vmem:[%s9 + $0x90] sm:$0xf]
      %v8040 = vld [vmem:[%s9 + $0x94] sm:$0xf]
      %v8041 = vld [vmem:[%s9 + $0x98] sm:$0xf]
      %v8042 = vld [vmem:[%s9 + $0x9c] sm:$0xf]
      %v8043 = vunpack.c.l.b16 %v7940
      %v8044 = vunpack.c.l.b16 %v7954
      %v8045 = vunpack.c.l.b16 %v7968
      %v8046 = vunpack.c.l.b16 %v7982
      %v8047 = vunpack.c.l.b16 %v7996
      %v8048 = vunpack.c.l.b16 %v8010
      %v8049 = vunpack.c.l.b16 %v8024
      %v8050 = vunpack.c.l.b16 %v8038
      %v8051 = vpack.c.b16 %v8044, %v8043
      %v8052 = vpack.c.b16 %v8046, %v8045
      %v8053 = vpack.c.b16 %v8048, %v8047
      %v8054 = vpack.c.b16 %v8050, %v8049
      %v8059 = vunpack.c.l.b16 %v8039
      %v8060 = vunpack.c.l.b16 %v8040
      %v8061 = vunpack.c.l.b16 %v8041
      %v8062 = vunpack.c.l.b16 %v8042
      %v8063 = vpack.c.b16 %v8060, %v8059
      %v8064 = vpack.c.b16 %v8062, %v8061
      %v8068 = vsel %vm830, %v8051, 0
      %v8071 = vsel %vm830, %v8052, 0
      %v8074 = vsel %vm830, %v8053, 0
      %v8077 = vsel %vm830, %v8054, 0
      %8079 = vmatprep.subr.bf16.mxu0 0
      %8080 = vmatpush1.bf16.msra.mxu0 %v8063
      %8081 = vmatprep.subr.bf16.mxu0 0
      %8082 = vmatpush1.bf16.msra.mxu0 %v8064
      %8083 = vmatprep.subr.bf16.mxu0 0
      %8084 = vmatpush1.bf16.msra.mxu0 0
      %8085 = vmatprep.subr.bf16.mxu0 0
      %8086 = vmatpush1.bf16.msra.mxu0 0
      %8087 = vmatprep.subr.bf16.mxu0 0
      %8088 = vmatpush1.bf16.msra.mxu0 0
      %8089 = vmatprep.subr.bf16.mxu0 0
      %8090 = vmatpush1.bf16.msra.mxu0 0
      %8091 = vmatprep.subr.bf16.mxu0 0
      %8092 = vmatpush1.bf16.msra.mxu0 0
      %8093 = vmatprep.subr.bf16.mxu0 0
      %8094 = vmatpush1.bf16.msra.mxu0 0
      %8095 = vmatprep.subr.bf16.mxu0 0
      %8096 = vmatpush1.bf16.msra.mxu0 0
      %8097 = vmatprep.subr.bf16.mxu0 0
      %8098 = vmatpush1.bf16.msra.mxu0 0
      %8099 = vmatprep.subr.bf16.mxu0 0
      %8100 = vmatpush1.bf16.msra.mxu0 0
      %8101 = vmatprep.subr.bf16.mxu0 0
      %8102 = vmatpush1.bf16.msra.mxu0 0
      %8103 = vmatprep.subr.bf16.mxu0 0
      %8104 = vmatpush1.bf16.msra.mxu0 0
      %8105 = vmatprep.subr.bf16.mxu0 0
      %8106 = vmatpush1.bf16.msra.mxu0 0
      %8107 = vmatprep.subr.bf16.mxu0 0
      %8108 = vmatpush1.bf16.msra.mxu0 0
      %8109 = vmatprep.subr.bf16.mxu0 0
      %8110 = vmatpush1.bf16.msra.mxu0 0
      %8111 = vmatprep.mubr.bf16.mxu0 0
      %8112 = vmatmul.mubr.bf16.gmra.mrb[0].mxu0 %v8068
      %v8113 = vpop.f32.mrb[0].mxu0
      %v8114 = vadd.f32 0.0, %v8113
      %v8115 = vpop.f32.mrb[0].mxu0
      %v8116 = vpop.f32.mrb[0].mxu0
      %v8117 = vadd.f32 0.0, %v8116
      %v8118 = vpop.f32.mrb[0].mxu0
      %8119 = vmatprep.mubr.bf16.mxu0 0
      %8120 = vmatmul.mubr.bf16.gmra.mrb[0].mxu0 %v8071
      %v8121 = vpop.f32.mrb[0].mxu0
      %v8122 = vadd.f32 0.0, %v8121
      %v8123 = vpop.f32.mrb[0].mxu0
      %v8124 = vpop.f32.mrb[0].mxu0
      %v8125 = vadd.f32 0.0, %v8124
      %v8126 = vpop.f32.mrb[0].mxu0
      %8127 = vmatprep.mubr.bf16.mxu0 0
      %8128 = vmatmul.mubr.bf16.gmra.mrb[0].mxu0 %v8074
      %v8129 = vpop.f32.mrb[0].mxu0
      %v8130 = vadd.f32 0.0, %v8129
      %v8131 = vpop.f32.mrb[0].mxu0
      %v8132 = vpop.f32.mrb[0].mxu0
      %v8133 = vadd.f32 0.0, %v8132
      %v8134 = vpop.f32.mrb[0].mxu0
      %8135 = vmatprep.mubr.bf16.mxu0 0
      %8136 = vmatmul.mubr.bf16.gmra.mrb[0].mxu0 %v8077
      %v8137 = vpop.f32.mrb[0].mxu0
      %v8138 = vadd.f32 0.0, %v8137
      %v8139 = vpop.f32.mrb[0].mxu0
      %v8140 = vpop.f32.mrb[0].mxu0
      %v8141 = vadd.f32 0.0, %v8140
      %v8142 = vpop.f32.mrb[0].mxu0
      %8143 = vdwg.mxu0
      %v8144 = vadd.f32 %v7903, %v8114
      %v8145 = vadd.f32 %v7904, %v8117
      %v8146 = vadd.f32 %v7905, %v8122
      %v8147 = vadd.f32 %v7906, %v8125
      %v8148 = vadd.f32 %v7907, %v8130
      %v8149 = vadd.f32 %v7908, %v8133
      %v8150 = vadd.f32 %v7909, %v8138
      %v8151 = vadd.f32 %v7910, %v8141
      %v8152 = vld [vmem:[%s6301] sm:$0xe]
      %v8153 = vld [vmem:[%s6301 + $0x8] sm:$0xe]
      %v8154 = vld [vmem:[%s6301 + $0x10] sm:$0xe]
      %v8155 = vld [vmem:[%s6301 + $0x18] sm:$0xe]
      %v8156 = vld [vmem:[%s6301 + $0x20] sm:$0xe]
      %v8157 = vld [vmem:[%s6301 + $0x28] sm:$0xe]
      %v8158 = vld [vmem:[%s6301 + $0x30] sm:$0xe]
      %v8159 = vld [vmem:[%s6301 + $0x38] sm:$0xe]
      %v8176 = vrot.slane %v8152, 5
      %v8177 = vrot.slane %v8176, 4
      %v8178 = vrot.slane %v7671, 5
      %v8179 = vsel %vm1439, %v8177, %v8178
      %v8180 = vrot.slane %v8153, 5
      %v8181 = vrot.slane %v8180, 4
      %v8182 = vrot.slane %v7673, 5
      %v8183 = vsel %vm1439, %v8181, %v8182
      %v8184 = vrot.slane %v8154, 5
      %v8185 = vrot.slane %v8184, 4
      %v8186 = vrot.slane %v7675, 5
      %v8187 = vsel %vm1439, %v8185, %v8186
      %v8188 = vrot.slane %v8155, 5
      %v8189 = vrot.slane %v8188, 4
      %v8190 = vrot.slane %v7677, 5
      %v8191 = vsel %vm1439, %v8189, %v8190
      %v8192 = vrot.slane %v8156, 5
      %v8193 = vrot.slane %v8192, 4
      %v8194 = vrot.slane %v7679, 5
      %v8195 = vsel %vm1439, %v8193, %v8194
      %v8196 = vrot.slane %v8157, 5
      %v8197 = vrot.slane %v8196, 4
      %v8198 = vrot.slane %v7681, 5
      %v8199 = vsel %vm1439, %v8197, %v8198
      %v8200 = vrot.slane %v8158, 5
      %v8201 = vrot.slane %v8200, 4
      %v8202 = vrot.slane %v7683, 5
      %v8203 = vsel %vm1439, %v8201, %v8202
      %v8204 = vrot.slane %v8159, 5
      %v8205 = vrot.slane %v8204, 4
      %v8206 = vrot.slane %v7685, 5
      %v8207 = vsel %vm1439, %v8205, %v8206
      %v8208 = vld [vmem:[%s9 + $0xa0] sm:$0xf]
      %v8209 = vld [vmem:[%s9 + $0xa4] sm:$0xf]
      %v8210 = vld [vmem:[%s9 + $0xa8] sm:$0xf]
      %v8211 = vld [vmem:[%s9 + $0xac] sm:$0xf]
      %v8212 = vunpack.c.l.b16 %v8179
      %v8213 = vunpack.c.l.b16 %v8183
      %v8214 = vunpack.c.l.b16 %v8187
      %v8215 = vunpack.c.l.b16 %v8191
      %v8216 = vunpack.c.l.b16 %v8195
      %v8217 = vunpack.c.l.b16 %v8199
      %v8218 = vunpack.c.l.b16 %v8203
      %v8219 = vunpack.c.l.b16 %v8207
      %v8220 = vpack.c.b16 %v8213, %v8212
      %v8221 = vpack.c.b16 %v8215, %v8214
      %v8222 = vpack.c.b16 %v8217, %v8216
      %v8223 = vpack.c.b16 %v8219, %v8218
      %v8228 = vunpack.c.l.b16 %v8208
      %v8229 = vunpack.c.l.b16 %v8209
      %v8230 = vunpack.c.l.b16 %v8210
      %v8231 = vunpack.c.l.b16 %v8211
      %v8232 = vpack.c.b16 %v8229, %v8228
      %v8233 = vpack.c.b16 %v8231, %v8230
      %v8237 = vsel %vm830, %v8220, 0
      %v8240 = vsel %vm830, %v8221, 0
      %v8243 = vsel %vm830, %v8222, 0
      %v8246 = vsel %vm830, %v8223, 0
      %8248 = vmatprep.subr.bf16.mxu0 0
      %8249 = vmatpush1.bf16.msra.mxu0 %v8232
      %8250 = vmatprep.subr.bf16.mxu0 0
      %8251 = vmatpush1.bf16.msra.mxu0 %v8233
      %8252 = vmatprep.subr.bf16.mxu0 0
      %8253 = vmatpush1.bf16.msra.mxu0 0
      %8254 = vmatprep.subr.bf16.mxu0 0
      %8255 = vmatpush1.bf16.msra.mxu0 0
      %8256 = vmatprep.subr.bf16.mxu0 0
      %8257 = vmatpush1.bf16.msra.mxu0 0
      %8258 = vmatprep.subr.bf16.mxu0 0
      %8259 = vmatpush1.bf16.msra.mxu0 0
      %8260 = vmatprep.subr.bf16.mxu0 0
      %8261 = vmatpush1.bf16.msra.mxu0 0
      %8262 = vmatprep.subr.bf16.mxu0 0
      %8263 = vmatpush1.bf16.msra.mxu0 0
      %8264 = vmatprep.subr.bf16.mxu0 0
      %8265 = vmatpush1.bf16.msra.mxu0 0
      %8266 = vmatprep.subr.bf16.mxu0 0
      %8267 = vmatpush1.bf16.msra.mxu0 0
      %8268 = vmatprep.subr.bf16.mxu0 0
      %8269 = vmatpush1.bf16.msra.mxu0 0
      %8270 = vmatprep.subr.bf16.mxu0 0
      %8271 = vmatpush1.bf16.msra.mxu0 0
      %8272 = vmatprep.subr.bf16.mxu0 0
      %8273 = vmatpush1.bf16.msra.mxu0 0
      %8274 = vmatprep.subr.bf16.mxu0 0
      %8275 = vmatpush1.bf16.msra.mxu0 0
      %8276 = vmatprep.subr.bf16.mxu0 0
      %8277 = vmatpush1.bf16.msra.mxu0 0
      %8278 = vmatprep.subr.bf16.mxu0 0
      %8279 = vmatpush1.bf16.msra.mxu0 0
      %8280 = vmatprep.mubr.bf16.mxu0 0
      %8281 = vmatmul.mubr.bf16.gmra.mrb[0].mxu0 %v8237
      %v8282 = vpop.f32.mrb[0].mxu0
      %v8283 = vadd.f32 0.0, %v8282
      %v8284 = vpop.f32.mrb[0].mxu0
      %v8285 = vpop.f32.mrb[0].mxu0
      %v8286 = vadd.f32 0.0, %v8285
      %v8287 = vpop.f32.mrb[0].mxu0
      %8288 = vmatprep.mubr.bf16.mxu0 0
      %8289 = vmatmul.mubr.bf16.gmra.mrb[0].mxu0 %v8240
      %v8290 = vpop.f32.mrb[0].mxu0
      %v8291 = vadd.f32 0.0, %v8290
      %v8292 = vpop.f32.mrb[0].mxu0
      %v8293 = vpop.f32.mrb[0].mxu0
      %v8294 = vadd.f32 0.0, %v8293
      %v8295 = vpop.f32.mrb[0].mxu0
      %8296 = vmatprep.mubr.bf16.mxu0 0
      %8297 = vmatmul.mubr.bf16.gmra.mrb[0].mxu0 %v8243
      %v8298 = vpop.f32.mrb[0].mxu0
      %v8299 = vadd.f32 0.0, %v8298
      %v8300 = vpop.f32.mrb[0].mxu0
      %v8301 = vpop.f32.mrb[0].mxu0
      %v8302 = vadd.f32 0.0, %v8301
      %v8303 = vpop.f32.mrb[0].mxu0
      %8304 = vmatprep.mubr.bf16.mxu0 0
      %8305 = vmatmul.mubr.bf16.gmra.mrb[0].mxu0 %v8246
      %v8306 = vpop.f32.mrb[0].mxu0
      %v8307 = vadd.f32 0.0, %v8306
      %v8308 = vpop.f32.mrb[0].mxu0
      %v8309 = vpop.f32.mrb[0].mxu0
      %v8310 = vadd.f32 0.0, %v8309
      %v8311 = vpop.f32.mrb[0].mxu0
      %8312 = vdwg.mxu0
      %v8313 = vadd.f32 %v8144, %v8283
      %v8314 = vadd.f32 %v8145, %v8286
      %v8315 = vadd.f32 %v8146, %v8291
      %v8316 = vadd.f32 %v8147, %v8294
      %v8317 = vadd.f32 %v8148, %v8299
      %v8318 = vadd.f32 %v8149, %v8302
      %v8319 = vadd.f32 %v8150, %v8307
      %v8320 = vadd.f32 %v8151, %v8310
      %v8321 = vld [vmem:[%s2743] sm:$0xe]
      %v8322 = vld [vmem:[%s2743 + $0x8] sm:$0xe]
      %v8323 = vld [vmem:[%s2743 + $0x10] sm:$0xe]
      %v8324 = vld [vmem:[%s2743 + $0x18] sm:$0xe]
      %v8325 = vld [vmem:[%s2743 + $0x20] sm:$0xe]
      %v8326 = vld [vmem:[%s2743 + $0x28] sm:$0xe]
      %v8327 = vld [vmem:[%s2743 + $0x30] sm:$0xe]
      %v8328 = vld [vmem:[%s2743 + $0x38] sm:$0xe]
      %v8345 = vrot.slane %v8321, 5
      %v8346 = vrot.slane %v8345, 4
      %v8347 = vrot.slane %v7912, 5
      %v8348 = vsel %vm1439, %v8346, %v8347
      %v8349 = vrot.slane %v8322, 5
      %v8350 = vrot.slane %v8349, 4
      %v8351 = vrot.slane %v7914, 5
      %v8352 = vsel %vm1439, %v8350, %v8351
      %v8353 = vrot.slane %v8323, 5
      %v8354 = vrot.slane %v8353, 4
      %v8355 = vrot.slane %v7916, 5
      %v8356 = vsel %vm1439, %v8354, %v8355
      %v8357 = vrot.slane %v8324, 5
      %v8358 = vrot.slane %v8357, 4
      %v8359 = vrot.slane %v7918, 5
      %v8360 = vsel %vm1439, %v8358, %v8359
      %v8361 = vrot.slane %v8325, 5
      %v8362 = vrot.slane %v8361, 4
      %v8363 = vrot.slane %v7920, 5
      %v8364 = vsel %vm1439, %v8362, %v8363
      %v8365 = vrot.slane %v8326, 5
      %v8366 = vrot.slane %v8365, 4
      %v8367 = vrot.slane %v7922, 5
      %v8368 = vsel %vm1439, %v8366, %v8367
      %v8369 = vrot.slane %v8327, 5
      %v8370 = vrot.slane %v8369, 4
      %v8371 = vrot.slane %v7924, 5
      %v8372 = vsel %vm1439, %v8370, %v8371
      %v8373 = vrot.slane %v8328, 5
      %v8374 = vrot.slane %v8373, 4
      %v8375 = vrot.slane %v7926, 5
      %v8376 = vsel %vm1439, %v8374, %v8375
      %v8377 = vld [vmem:[%s9 + $0xb0] sm:$0xf]
      %v8378 = vld [vmem:[%s9 + $0xb4] sm:$0xf]
      %v8379 = vld [vmem:[%s9 + $0xb8] sm:$0xf]
      %v8380 = vld [vmem:[%s9 + $0xbc] sm:$0xf]
      %v8381 = vunpack.c.l.b16 %v8348
      %v8382 = vunpack.c.l.b16 %v8352
      %v8383 = vunpack.c.l.b16 %v8356
      %v8384 = vunpack.c.l.b16 %v8360
      %v8385 = vunpack.c.l.b16 %v8364
      %v8386 = vunpack.c.l.b16 %v8368
      %v8387 = vunpack.c.l.b16 %v8372
      %v8388 = vunpack.c.l.b16 %v8376
      %v8389 = vpack.c.b16 %v8382, %v8381
      %v8390 = vpack.c.b16 %v8384, %v8383
      %v8391 = vpack.c.b16 %v8386, %v8385
      %v8392 = vpack.c.b16 %v8388, %v8387
      %v8397 = vunpack.c.l.b16 %v8377
      %v8398 = vunpack.c.l.b16 %v8378
      %v8399 = vunpack.c.l.b16 %v8379
      %v8400 = vunpack.c.l.b16 %v8380
      %v8401 = vpack.c.b16 %v8398, %v8397
      %v8402 = vpack.c.b16 %v8400, %v8399
      %v8406 = vsel %vm830, %v8389, 0
      %v8409 = vsel %vm830, %v8390, 0
      %v8412 = vsel %vm830, %v8391, 0
      %v8415 = vsel %vm830, %v8392, 0
      %8417 = vmatprep.subr.bf16.mxu0 0
      %8418 = vmatpush1.bf16.msra.mxu0 %v8401
      %8419 = vmatprep.subr.bf16.mxu0 0
      %8420 = vmatpush1.bf16.msra.mxu0 %v8402
      %8421 = vmatprep.subr.bf16.mxu0 0
      %8422 = vmatpush1.bf16.msra.mxu0 0
      %8423 = vmatprep.subr.bf16.mxu0 0
      %8424 = vmatpush1.bf16.msra.mxu0 0
      %8425 = vmatprep.subr.bf16.mxu0 0
      %8426 = vmatpush1.bf16.msra.mxu0 0
      %8427 = vmatprep.subr.bf16.mxu0 0
      %8428 = vmatpush1.bf16.msra.mxu0 0
      %8429 = vmatprep.subr.bf16.mxu0 0
      %8430 = vmatpush1.bf16.msra.mxu0 0
      %8431 = vmatprep.subr.bf16.mxu0 0
      %8432 = vmatpush1.bf16.msra.mxu0 0
      %8433 = vmatprep.subr.bf16.mxu0 0
      %8434 = vmatpush1.bf16.msra.mxu0 0
      %8435 = vmatprep.subr.bf16.mxu0 0
      %8436 = vmatpush1.bf16.msra.mxu0 0
      %8437 = vmatprep.subr.bf16.mxu0 0
      %8438 = vmatpush1.bf16.msra.mxu0 0
      %8439 = vmatprep.subr.bf16.mxu0 0
      %8440 = vmatpush1.bf16.msra.mxu0 0
      %8441 = vmatprep.subr.bf16.mxu0 0
      %8442 = vmatpush1.bf16.msra.mxu0 0
      %8443 = vmatprep.subr.bf16.mxu0 0
      %8444 = vmatpush1.bf16.msra.mxu0 0
      %8445 = vmatprep.subr.bf16.mxu0 0
      %8446 = vmatpush1.bf16.msra.mxu0 0
      %8447 = vmatprep.subr.bf16.mxu0 0
      %8448 = vmatpush1.bf16.msra.mxu0 0
      %8449 = vmatprep.mubr.bf16.mxu0 0
      %8450 = vmatmul.mubr.bf16.gmra.mrb[0].mxu0 %v8406
      %v8451 = vpop.f32.mrb[0].mxu0
      %v8452 = vadd.f32 0.0, %v8451
      %v8453 = vpop.f32.mrb[0].mxu0
      %v8454 = vpop.f32.mrb[0].mxu0
      %v8455 = vadd.f32 0.0, %v8454
      %v8456 = vpop.f32.mrb[0].mxu0
      %8457 = vmatprep.mubr.bf16.mxu0 0
      %8458 = vmatmul.mubr.bf16.gmra.mrb[0].mxu0 %v8409
      %v8459 = vpop.f32.mrb[0].mxu0
      %v8460 = vadd.f32 0.0, %v8459
      %v8461 = vpop.f32.mrb[0].mxu0
      %v8462 = vpop.f32.mrb[0].mxu0
      %v8463 = vadd.f32 0.0, %v8462
      %v8464 = vpop.f32.mrb[0].mxu0
      %8465 = vmatprep.mubr.bf16.mxu0 0
      %8466 = vmatmul.mubr.bf16.gmra.mrb[0].mxu0 %v8412
      %v8467 = vpop.f32.mrb[0].mxu0
      %v8468 = vadd.f32 0.0, %v8467
      %v8469 = vpop.f32.mrb[0].mxu0
      %v8470 = vpop.f32.mrb[0].mxu0
      %v8471 = vadd.f32 0.0, %v8470
      %v8472 = vpop.f32.mrb[0].mxu0
      %8473 = vmatprep.mubr.bf16.mxu0 0
      %8474 = vmatmul.mubr.bf16.gmra.mrb[0].mxu0 %v8415
      %v8475 = vpop.f32.mrb[0].mxu0
      %v8476 = vadd.f32 0.0, %v8475
      %v8477 = vpop.f32.mrb[0].mxu0
      %v8478 = vpop.f32.mrb[0].mxu0
      %v8479 = vadd.f32 0.0, %v8478
      %v8480 = vpop.f32.mrb[0].mxu0
      %8481 = vdwg.mxu0
      %v8482 = vadd.f32 %v8313, %v8452
      %v8483 = vadd.f32 %v8314, %v8455
      %v8484 = vadd.f32 %v8315, %v8460
      %v8485 = vadd.f32 %v8316, %v8463
      %v8486 = vadd.f32 %v8317, %v8468
      %v8487 = vadd.f32 %v8318, %v8471
      %v8488 = vadd.f32 %v8319, %v8476
      %v8489 = vadd.f32 %v8320, %v8479
      %s8490 = scalar_lea.vmem [#allocation5], 16
      %v8491 = vld [vmem:[%s8490] sm:$0xf]
      %v8492 = vld [vmem:[%s8490 + $0x8] sm:$0xf]
      %v8493 = vld [vmem:[%s8490 + $0x10] sm:$0xf]
      %v8494 = vld [vmem:[%s8490 + $0x18] sm:$0xf]
      %v8495 = vld [vmem:[%s8490 + $0x20] sm:$0xf]
      %v8496 = vld [vmem:[%s8490 + $0x28] sm:$0xf]
      %v8497 = vld [vmem:[%s8490 + $0x30] sm:$0xf]
      %v8498 = vld [vmem:[%s8490 + $0x38] sm:$0xf]
      %v8499 = vld [vmem:[%s9 + $0xc0] sm:$0xf]
      %v8500 = vld [vmem:[%s9 + $0xc4] sm:$0xf]
      %v8501 = vld [vmem:[%s9 + $0xc8] sm:$0xf]
      %v8502 = vld [vmem:[%s9 + $0xcc] sm:$0xf]
      %v8511 = vunpack.c.l.b16 %v8491
      %v8512 = vunpack.c.l.b16 %v8492
      %v8513 = vunpack.c.l.b16 %v8493
      %v8514 = vunpack.c.l.b16 %v8494
      %v8515 = vunpack.c.l.b16 %v8495
      %v8516 = vunpack.c.l.b16 %v8496
      %v8517 = vunpack.c.l.b16 %v8497
      %v8518 = vunpack.c.l.b16 %v8498
      %v8519 = vpack.c.b16 %v8512, %v8511
      %v8520 = vpack.c.b16 %v8514, %v8513
      %v8521 = vpack.c.b16 %v8516, %v8515
      %v8522 = vpack.c.b16 %v8518, %v8517
      %v8527 = vunpack.c.l.b16 %v8499
      %v8528 = vunpack.c.l.b16 %v8500
      %v8529 = vunpack.c.l.b16 %v8501
      %v8530 = vunpack.c.l.b16 %v8502
      %v8531 = vpack.c.b16 %v8528, %v8527
      %v8532 = vpack.c.b16 %v8530, %v8529
      %v8536 = vsel %vm830, %v8519, 0
      %v8539 = vsel %vm830, %v8520, 0
      %v8542 = vsel %vm830, %v8521, 0
      %v8545 = vsel %vm830, %v8522, 0
      %8547 = vmatprep.subr.bf16.mxu0 0
      %8548 = vmatpush1.bf16.msra.mxu0 %v8531
      %8549 = vmatprep.subr.bf16.mxu0 0
      %8550 = vmatpush1.bf16.msra.mxu0 %v8532
      %8551 = vmatprep.subr.bf16.mxu0 0
      %8552 = vmatpush1.bf16.msra.mxu0 0
      %8553 = vmatprep.subr.bf16.mxu0 0
      %8554 = vmatpush1.bf16.msra.mxu0 0
      %8555 = vmatprep.subr.bf16.mxu0 0
      %8556 = vmatpush1.bf16.msra.mxu0 0
      %8557 = vmatprep.subr.bf16.mxu0 0
      %8558 = vmatpush1.bf16.msra.mxu0 0
      %8559 = vmatprep.subr.bf16.mxu0 0
      %8560 = vmatpush1.bf16.msra.mxu0 0
      %8561 = vmatprep.subr.bf16.mxu0 0
      %8562 = vmatpush1.bf16.msra.mxu0 0
      %8563 = vmatprep.subr.bf16.mxu0 0
      %8564 = vmatpush1.bf16.msra.mxu0 0
      %8565 = vmatprep.subr.bf16.mxu0 0
      %8566 = vmatpush1.bf16.msra.mxu0 0
      %8567 = vmatprep.subr.bf16.mxu0 0
      %8568 = vmatpush1.bf16.msra.mxu0 0
      %8569 = vmatprep.subr.bf16.mxu0 0
      %8570 = vmatpush1.bf16.msra.mxu0 0
      %8571 = vmatprep.subr.bf16.mxu0 0
      %8572 = vmatpush1.bf16.msra.mxu0 0
      %8573 = vmatprep.subr.bf16.mxu0 0
      %8574 = vmatpush1.bf16.msra.mxu0 0
      %8575 = vmatprep.subr.bf16.mxu0 0
      %8576 = vmatpush1.bf16.msra.mxu0 0
      %8577 = vmatprep.subr.bf16.mxu0 0
      %8578 = vmatpush1.bf16.msra.mxu0 0
      %8579 = vmatprep.mubr.bf16.mxu0 0
      %8580 = vmatmul.mubr.bf16.gmra.mrb[0].mxu0 %v8536
      %v8581 = vpop.f32.mrb[0].mxu0
      %v8582 = vadd.f32 0.0, %v8581
      %v8583 = vpop.f32.mrb[0].mxu0
      %v8584 = vpop.f32.mrb[0].mxu0
      %v8585 = vadd.f32 0.0, %v8584
      %v8586 = vpop.f32.mrb[0].mxu0
      %8587 = vmatprep.mubr.bf16.mxu0 0
      %8588 = vmatmul.mubr.bf16.gmra.mrb[0].mxu0 %v8539
      %v8589 = vpop.f32.mrb[0].mxu0
      %v8590 = vadd.f32 0.0, %v8589
      %v8591 = vpop.f32.mrb[0].mxu0
      %v8592 = vpop.f32.mrb[0].mxu0
      %v8593 = vadd.f32 0.0, %v8592
      %v8594 = vpop.f32.mrb[0].mxu0
      %8595 = vmatprep.mubr.bf16.mxu0 0
      %8596 = vmatmul.mubr.bf16.gmra.mrb[0].mxu0 %v8542
      %v8597 = vpop.f32.mrb[0].mxu0
      %v8598 = vadd.f32 0.0, %v8597
      %v8599 = vpop.f32.mrb[0].mxu0
      %v8600 = vpop.f32.mrb[0].mxu0
      %v8601 = vadd.f32 0.0, %v8600
      %v8602 = vpop.f32.mrb[0].mxu0
      %8603 = vmatprep.mubr.bf16.mxu0 0
      %8604 = vmatmul.mubr.bf16.gmra.mrb[0].mxu0 %v8545
      %v8605 = vpop.f32.mrb[0].mxu0
      %v8606 = vadd.f32 0.0, %v8605
      %v8607 = vpop.f32.mrb[0].mxu0
      %v8608 = vpop.f32.mrb[0].mxu0
      %v8609 = vadd.f32 0.0, %v8608
      %v8610 = vpop.f32.mrb[0].mxu0
      %8611 = vdwg.mxu0
      %v8612 = vadd.f32 %v8482, %v8582
      %v8613 = vadd.f32 %v8483, %v8585
      %v8614 = vadd.f32 %v8484, %v8590
      %v8615 = vadd.f32 %v8485, %v8593
      %v8616 = vadd.f32 %v8486, %v8598
      %v8617 = vadd.f32 %v8487, %v8601
      %v8618 = vadd.f32 %v8488, %v8606
      %v8619 = vadd.f32 %v8489, %v8609
      %v8620 = vld [vmem:[%s3848] sm:$0xf]
      %v8621 = vld [vmem:[%s3848 + $0x8] sm:$0xf]
      %v8622 = vld [vmem:[%s3848 + $0x10] sm:$0xf]
      %v8623 = vld [vmem:[%s3848 + $0x18] sm:$0xf]
      %v8624 = vld [vmem:[%s3848 + $0x20] sm:$0xf]
      %v8625 = vld [vmem:[%s3848 + $0x28] sm:$0xf]
      %v8626 = vld [vmem:[%s3848 + $0x30] sm:$0xf]
      %v8627 = vld [vmem:[%s3848 + $0x38] sm:$0xf]
      %v8628 = vld [vmem:[%s9 + $0xd0] sm:$0xf]
      %v8629 = vld [vmem:[%s9 + $0xd4] sm:$0xf]
      %v8630 = vld [vmem:[%s9 + $0xd8] sm:$0xf]
      %v8631 = vld [vmem:[%s9 + $0xdc] sm:$0xf]
      %v8640 = vunpack.c.l.b16 %v8620
      %v8641 = vunpack.c.l.b16 %v8621
      %v8642 = vunpack.c.l.b16 %v8622
      %v8643 = vunpack.c.l.b16 %v8623
      %v8644 = vunpack.c.l.b16 %v8624
      %v8645 = vunpack.c.l.b16 %v8625
      %v8646 = vunpack.c.l.b16 %v8626
      %v8647 = vunpack.c.l.b16 %v8627
      %v8648 = vpack.c.b16 %v8641, %v8640
      %v8649 = vpack.c.b16 %v8643, %v8642
      %v8650 = vpack.c.b16 %v8645, %v8644
      %v8651 = vpack.c.b16 %v8647, %v8646
      %v8656 = vunpack.c.l.b16 %v8628
      %v8657 = vunpack.c.l.b16 %v8629
      %v8658 = vunpack.c.l.b16 %v8630
      %v8659 = vunpack.c.l.b16 %v8631
      %v8660 = vpack.c.b16 %v8657, %v8656
      %v8661 = vpack.c.b16 %v8659, %v8658
      %v8665 = vsel %vm830, %v8648, 0
      %v8668 = vsel %vm830, %v8649, 0
      %v8671 = vsel %vm830, %v8650, 0
      %v8674 = vsel %vm830, %v8651, 0
      %8676 = vmatprep.subr.bf16.mxu0 0
      %8677 = vmatpush1.bf16.msra.mxu0 %v8660
      %8678 = vmatprep.subr.bf16.mxu0 0
      %8679 = vmatpush1.bf16.msra.mxu0 %v8661
      %8680 = vmatprep.subr.bf16.mxu0 0
      %8681 = vmatpush1.bf16.msra.mxu0 0
      %8682 = vmatprep.subr.bf16.mxu0 0
      %8683 = vmatpush1.bf16.msra.mxu0 0
      %8684 = vmatprep.subr.bf16.mxu0 0
      %8685 = vmatpush1.bf16.msra.mxu0 0
      %8686 = vmatprep.subr.bf16.mxu0 0
      %8687 = vmatpush1.bf16.msra.mxu0 0
      %8688 = vmatprep.subr.bf16.mxu0 0
      %8689 = vmatpush1.bf16.msra.mxu0 0
      %8690 = vmatprep.subr.bf16.mxu0 0
      %8691 = vmatpush1.bf16.msra.mxu0 0
      %8692 = vmatprep.subr.bf16.mxu0 0
      %8693 = vmatpush1.bf16.msra.mxu0 0
      %8694 = vmatprep.subr.bf16.mxu0 0
      %8695 = vmatpush1.bf16.msra.mxu0 0
      %8696 = vmatprep.subr.bf16.mxu0 0
      %8697 = vmatpush1.bf16.msra.mxu0 0
      %8698 = vmatprep.subr.bf16.mxu0 0
      %8699 = vmatpush1.bf16.msra.mxu0 0
      %8700 = vmatprep.subr.bf16.mxu0 0
      %8701 = vmatpush1.bf16.msra.mxu0 0
      %8702 = vmatprep.subr.bf16.mxu0 0
      %8703 = vmatpush1.bf16.msra.mxu0 0
      %8704 = vmatprep.subr.bf16.mxu0 0
      %8705 = vmatpush1.bf16.msra.mxu0 0
      %8706 = vmatprep.subr.bf16.mxu0 0
      %8707 = vmatpush1.bf16.msra.mxu0 0
      %8708 = vmatprep.mubr.bf16.mxu0 0
      %8709 = vmatmul.mubr.bf16.gmra.mrb[0].mxu0 %v8665
      %v8710 = vpop.f32.mrb[0].mxu0
      %v8711 = vadd.f32 0.0, %v8710
      %v8712 = vpop.f32.mrb[0].mxu0
      %v8713 = vpop.f32.mrb[0].mxu0
      %v8714 = vadd.f32 0.0, %v8713
      %v8715 = vpop.f32.mrb[0].mxu0
      %8716 = vmatprep.mubr.bf16.mxu0 0
      %8717 = vmatmul.mubr.bf16.gmra.mrb[0].mxu0 %v8668
      %v8718 = vpop.f32.mrb[0].mxu0
      %v8719 = vadd.f32 0.0, %v8718
      %v8720 = vpop.f32.mrb[0].mxu0
      %v8721 = vpop.f32.mrb[0].mxu0
      %v8722 = vadd.f32 0.0, %v8721
      %v8723 = vpop.f32.mrb[0].mxu0
      %8724 = vmatprep.mubr.bf16.mxu0 0
      %8725 = vmatmul.mubr.bf16.gmra.mrb[0].mxu0 %v8671
      %v8726 = vpop.f32.mrb[0].mxu0
      %v8727 = vadd.f32 0.0, %v8726
      %v8728 = vpop.f32.mrb[0].mxu0
      %v8729 = vpop.f32.mrb[0].mxu0
      %v8730 = vadd.f32 0.0, %v8729
      %v8731 = vpop.f32.mrb[0].mxu0
      %8732 = vmatprep.mubr.bf16.mxu0 0
      %8733 = vmatmul.mubr.bf16.gmra.mrb[0].mxu0 %v8674
      %v8734 = vpop.f32.mrb[0].mxu0
      %v8735 = vadd.f32 0.0, %v8734
      %v8736 = vpop.f32.mrb[0].mxu0
      %v8737 = vpop.f32.mrb[0].mxu0
      %v8738 = vadd.f32 0.0, %v8737
      %v8739 = vpop.f32.mrb[0].mxu0
      %8740 = vdwg.mxu0
      %v8741 = vadd.f32 %v8612, %v8711
      %v8742 = vadd.f32 %v8613, %v8714
      %v8743 = vadd.f32 %v8614, %v8719
      %v8744 = vadd.f32 %v8615, %v8722
      %v8745 = vadd.f32 %v8616, %v8727
      %v8746 = vadd.f32 %v8617, %v8730
      %v8747 = vadd.f32 %v8618, %v8735
      %v8748 = vadd.f32 %v8619, %v8738
      %v8749 = vld [vmem:[%s8490] sm:$0xf]
      %v8750 = vld [vmem:[%s8490 + $0x4] sm:$0x1]
      %v8751 = vld [vmem:[%s8490 + $0x8] sm:$0xf]
      %v8752 = vld [vmem:[%s8490 + $0xc] sm:$0x1]
      %v8753 = vld [vmem:[%s8490 + $0x10] sm:$0xf]
      %v8754 = vld [vmem:[%s8490 + $0x14] sm:$0x1]
      %v8755 = vld [vmem:[%s8490 + $0x18] sm:$0xf]
      %v8756 = vld [vmem:[%s8490 + $0x1c] sm:$0x1]
      %v8757 = vld [vmem:[%s8490 + $0x20] sm:$0xf]
      %v8758 = vld [vmem:[%s8490 + $0x24] sm:$0x1]
      %v8759 = vld [vmem:[%s8490 + $0x28] sm:$0xf]
      %v8760 = vld [vmem:[%s8490 + $0x2c] sm:$0x1]
      %v8761 = vld [vmem:[%s8490 + $0x30] sm:$0xf]
      %v8762 = vld [vmem:[%s8490 + $0x34] sm:$0x1]
      %v8763 = vld [vmem:[%s8490 + $0x38] sm:$0xf]
      %v8764 = vld [vmem:[%s8490 + $0x3c] sm:$0x1]
      %v8766 = vshrl.u32 %v8749, 16
      %v8768 = vrot.slane %v8766, 4
      %v8769 = vshll.u32 %v8749, 16
      %v8771 = vrot.slane %v8769, 5
      %v8772 = vor.u32 %v8768, %v8771
      %v8773 = vrot.slane %v8772, 4
      %v8775 = vshll.u32 %v8750, 16
      %v8777 = vrot.slane %v8775, 5
      %v8778 = vsel %vm1099, %v8773, %v8777
      %v8780 = vshrl.u32 %v8751, 16
      %v8782 = vrot.slane %v8780, 4
      %v8783 = vshll.u32 %v8751, 16
      %v8785 = vrot.slane %v8783, 5
      %v8786 = vor.u32 %v8782, %v8785
      %v8787 = vrot.slane %v8786, 4
      %v8789 = vshll.u32 %v8752, 16
      %v8791 = vrot.slane %v8789, 5
      %v8792 = vsel %vm1099, %v8787, %v8791
      %v8794 = vshrl.u32 %v8753, 16
      %v8796 = vrot.slane %v8794, 4
      %v8797 = vshll.u32 %v8753, 16
      %v8799 = vrot.slane %v8797, 5
      %v8800 = vor.u32 %v8796, %v8799
      %v8801 = vrot.slane %v8800, 4
      %v8803 = vshll.u32 %v8754, 16
      %v8805 = vrot.slane %v8803, 5
      %v8806 = vsel %vm1099, %v8801, %v8805
      %v8808 = vshrl.u32 %v8755, 16
      %v8810 = vrot.slane %v8808, 4
      %v8811 = vshll.u32 %v8755, 16
      %v8813 = vrot.slane %v8811, 5
      %v8814 = vor.u32 %v8810, %v8813
      %v8815 = vrot.slane %v8814, 4
      %v8817 = vshll.u32 %v8756, 16
      %v8819 = vrot.slane %v8817, 5
      %v8820 = vsel %vm1099, %v8815, %v8819
      %v8822 = vshrl.u32 %v8757, 16
      %v8824 = vrot.slane %v8822, 4
      %v8825 = vshll.u32 %v8757, 16
      %v8827 = vrot.slane %v8825, 5
      %v8828 = vor.u32 %v8824, %v8827
      %v8829 = vrot.slane %v8828, 4
      %v8831 = vshll.u32 %v8758, 16
      %v8833 = vrot.slane %v8831, 5
      %v8834 = vsel %vm1099, %v8829, %v8833
      %v8836 = vshrl.u32 %v8759, 16
      %v8838 = vrot.slane %v8836, 4
      %v8839 = vshll.u32 %v8759, 16
      %v8841 = vrot.slane %v8839, 5
      %v8842 = vor.u32 %v8838, %v8841
      %v8843 = vrot.slane %v8842, 4
      %v8845 = vshll.u32 %v8760, 16
      %v8847 = vrot.slane %v8845, 5
      %v8848 = vsel %vm1099, %v8843, %v8847
      %v8850 = vshrl.u32 %v8761, 16
      %v8852 = vrot.slane %v8850, 4
      %v8853 = vshll.u32 %v8761, 16
      %v8855 = vrot.slane %v8853, 5
      %v8856 = vor.u32 %v8852, %v8855
      %v8857 = vrot.slane %v8856, 4
      %v8859 = vshll.u32 %v8762, 16
      %v8861 = vrot.slane %v8859, 5
      %v8862 = vsel %vm1099, %v8857, %v8861
      %v8864 = vshrl.u32 %v8763, 16
      %v8866 = vrot.slane %v8864, 4
      %v8867 = vshll.u32 %v8763, 16
      %v8869 = vrot.slane %v8867, 5
      %v8870 = vor.u32 %v8866, %v8869
      %v8871 = vrot.slane %v8870, 4
      %v8873 = vshll.u32 %v8764, 16
      %v8875 = vrot.slane %v8873, 5
      %v8876 = vsel %vm1099, %v8871, %v8875
      %v8877 = vld [vmem:[%s9 + $0xe0] sm:$0xf]
      %v8878 = vld [vmem:[%s9 + $0xe4] sm:$0xf]
      %v8879 = vld [vmem:[%s9 + $0xe8] sm:$0xf]
      %v8880 = vld [vmem:[%s9 + $0xec] sm:$0xf]
      %v8881 = vunpack.c.l.b16 %v8778
      %v8882 = vunpack.c.l.b16 %v8792
      %v8883 = vunpack.c.l.b16 %v8806
      %v8884 = vunpack.c.l.b16 %v8820
      %v8885 = vunpack.c.l.b16 %v8834
      %v8886 = vunpack.c.l.b16 %v8848
      %v8887 = vunpack.c.l.b16 %v8862
      %v8888 = vunpack.c.l.b16 %v8876
      %v8889 = vpack.c.b16 %v8882, %v8881
      %v8890 = vpack.c.b16 %v8884, %v8883
      %v8891 = vpack.c.b16 %v8886, %v8885
      %v8892 = vpack.c.b16 %v8888, %v8887
      %v8897 = vunpack.c.l.b16 %v8877
      %v8898 = vunpack.c.l.b16 %v8878
      %v8899 = vunpack.c.l.b16 %v8879
      %v8900 = vunpack.c.l.b16 %v8880
      %v8901 = vpack.c.b16 %v8898, %v8897
      %v8902 = vpack.c.b16 %v8900, %v8899
      %v8906 = vsel %vm830, %v8889, 0
      %v8909 = vsel %vm830, %v8890, 0
      %v8912 = vsel %vm830, %v8891, 0
      %v8915 = vsel %vm830, %v8892, 0
      %8917 = vmatprep.subr.bf16.mxu0 0
      %8918 = vmatpush1.bf16.msra.mxu0 %v8901
      %8919 = vmatprep.subr.bf16.mxu0 0
      %8920 = vmatpush1.bf16.msra.mxu0 %v8902
      %8921 = vmatprep.subr.bf16.mxu0 0
      %8922 = vmatpush1.bf16.msra.mxu0 0
      %8923 = vmatprep.subr.bf16.mxu0 0
      %8924 = vmatpush1.bf16.msra.mxu0 0
      %8925 = vmatprep.subr.bf16.mxu0 0
      %8926 = vmatpush1.bf16.msra.mxu0 0
      %8927 = vmatprep.subr.bf16.mxu0 0
      %8928 = vmatpush1.bf16.msra.mxu0 0
      %8929 = vmatprep.subr.bf16.mxu0 0
      %8930 = vmatpush1.bf16.msra.mxu0 0
      %8931 = vmatprep.subr.bf16.mxu0 0
      %8932 = vmatpush1.bf16.msra.mxu0 0
      %8933 = vmatprep.subr.bf16.mxu0 0
      %8934 = vmatpush1.bf16.msra.mxu0 0
      %8935 = vmatprep.subr.bf16.mxu0 0
      %8936 = vmatpush1.bf16.msra.mxu0 0
      %8937 = vmatprep.subr.bf16.mxu0 0
      %8938 = vmatpush1.bf16.msra.mxu0 0
      %8939 = vmatprep.subr.bf16.mxu0 0
      %8940 = vmatpush1.bf16.msra.mxu0 0
      %8941 = vmatprep.subr.bf16.mxu0 0
      %8942 = vmatpush1.bf16.msra.mxu0 0
      %8943 = vmatprep.subr.bf16.mxu0 0
      %8944 = vmatpush1.bf16.msra.mxu0 0
      %8945 = vmatprep.subr.bf16.mxu0 0
      %8946 = vmatpush1.bf16.msra.mxu0 0
      %8947 = vmatprep.subr.bf16.mxu0 0
      %8948 = vmatpush1.bf16.msra.mxu0 0
      %8949 = vmatprep.mubr.bf16.mxu0 0
      %8950 = vmatmul.mubr.bf16.gmra.mrb[0].mxu0 %v8906
      %v8951 = vpop.f32.mrb[0].mxu0
      %v8952 = vadd.f32 0.0, %v8951
      %v8953 = vpop.f32.mrb[0].mxu0
      %v8954 = vpop.f32.mrb[0].mxu0
      %v8955 = vadd.f32 0.0, %v8954
      %v8956 = vpop.f32.mrb[0].mxu0
      %8957 = vmatprep.mubr.bf16.mxu0 0
      %8958 = vmatmul.mubr.bf16.gmra.mrb[0].mxu0 %v8909
      %v8959 = vpop.f32.mrb[0].mxu0
      %v8960 = vadd.f32 0.0, %v8959
      %v8961 = vpop.f32.mrb[0].mxu0
      %v8962 = vpop.f32.mrb[0].mxu0
      %v8963 = vadd.f32 0.0, %v8962
      %v8964 = vpop.f32.mrb[0].mxu0
      %8965 = vmatprep.mubr.bf16.mxu0 0
      %8966 = vmatmul.mubr.bf16.gmra.mrb[0].mxu0 %v8912
      %v8967 = vpop.f32.mrb[0].mxu0
      %v8968 = vadd.f32 0.0, %v8967
      %v8969 = vpop.f32.mrb[0].mxu0
      %v8970 = vpop.f32.mrb[0].mxu0
      %v8971 = vadd.f32 0.0, %v8970
      %v8972 = vpop.f32.mrb[0].mxu0
      %8973 = vmatprep.mubr.bf16.mxu0 0
      %8974 = vmatmul.mubr.bf16.gmra.mrb[0].mxu0 %v8915
      %v8975 = vpop.f32.mrb[0].mxu0
      %v8976 = vadd.f32 0.0, %v8975
      %v8977 = vpop.f32.mrb[0].mxu0
      %v8978 = vpop.f32.mrb[0].mxu0
      %v8979 = vadd.f32 0.0, %v8978
      %v8980 = vpop.f32.mrb[0].mxu0
      %8981 = vdwg.mxu0
      %v8982 = vadd.f32 %v8741, %v8952
      %v8983 = vadd.f32 %v8742, %v8955
      %v8984 = vadd.f32 %v8743, %v8960
      %v8985 = vadd.f32 %v8744, %v8963
      %v8986 = vadd.f32 %v8745, %v8968
      %v8987 = vadd.f32 %v8746, %v8971
      %v8988 = vadd.f32 %v8747, %v8976
      %v8989 = vadd.f32 %v8748, %v8979
      %v8990 = vld [vmem:[%s3848] sm:$0xf]
      %v8991 = vld [vmem:[%s3848 + $0x4] sm:$0x1]
      %v8992 = vld [vmem:[%s3848 + $0x8] sm:$0xf]
      %v8993 = vld [vmem:[%s3848 + $0xc] sm:$0x1]
      %v8994 = vld [vmem:[%s3848 + $0x10] sm:$0xf]
      %v8995 = vld [vmem:[%s3848 + $0x14] sm:$0x1]
      %v8996 = vld [vmem:[%s3848 + $0x18] sm:$0xf]
      %v8997 = vld [vmem:[%s3848 + $0x1c] sm:$0x1]
      %v8998 = vld [vmem:[%s3848 + $0x20] sm:$0xf]
      %v8999 = vld [vmem:[%s3848 + $0x24] sm:$0x1]
      %v9000 = vld [vmem:[%s3848 + $0x28] sm:$0xf]
      %v9001 = vld [vmem:[%s3848 + $0x2c] sm:$0x1]
      %v9002 = vld [vmem:[%s3848 + $0x30] sm:$0xf]
      %v9003 = vld [vmem:[%s3848 + $0x34] sm:$0x1]
      %v9004 = vld [vmem:[%s3848 + $0x38] sm:$0xf]
      %v9005 = vld [vmem:[%s3848 + $0x3c] sm:$0x1]
      %v9007 = vshrl.u32 %v8990, 16
      %v9009 = vrot.slane %v9007, 4
      %v9010 = vshll.u32 %v8990, 16
      %v9012 = vrot.slane %v9010, 5
      %v9013 = vor.u32 %v9009, %v9012
      %v9014 = vrot.slane %v9013, 4
      %v9016 = vshll.u32 %v8991, 16
      %v9018 = vrot.slane %v9016, 5
      %v9019 = vsel %vm1099, %v9014, %v9018
      %v9021 = vshrl.u32 %v8992, 16
      %v9023 = vrot.slane %v9021, 4
      %v9024 = vshll.u32 %v8992, 16
      %v9026 = vrot.slane %v9024, 5
      %v9027 = vor.u32 %v9023, %v9026
      %v9028 = vrot.slane %v9027, 4
      %v9030 = vshll.u32 %v8993, 16
      %v9032 = vrot.slane %v9030, 5
      %v9033 = vsel %vm1099, %v9028, %v9032
      %v9035 = vshrl.u32 %v8994, 16
      %v9037 = vrot.slane %v9035, 4
      %v9038 = vshll.u32 %v8994, 16
      %v9040 = vrot.slane %v9038, 5
      %v9041 = vor.u32 %v9037, %v9040
      %v9042 = vrot.slane %v9041, 4
      %v9044 = vshll.u32 %v8995, 16
      %v9046 = vrot.slane %v9044, 5
      %v9047 = vsel %vm1099, %v9042, %v9046
      %v9049 = vshrl.u32 %v8996, 16
      %v9051 = vrot.slane %v9049, 4
      %v9052 = vshll.u32 %v8996, 16
      %v9054 = vrot.slane %v9052, 5
      %v9055 = vor.u32 %v9051, %v9054
      %v9056 = vrot.slane %v9055, 4
      %v9058 = vshll.u32 %v8997, 16
      %v9060 = vrot.slane %v9058, 5
      %v9061 = vsel %vm1099, %v9056, %v9060
      %v9063 = vshrl.u32 %v8998, 16
      %v9065 = vrot.slane %v9063, 4
      %v9066 = vshll.u32 %v8998, 16
      %v9068 = vrot.slane %v9066, 5
      %v9069 = vor.u32 %v9065, %v9068
      %v9070 = vrot.slane %v9069, 4
      %v9072 = vshll.u32 %v8999, 16
      %v9074 = vrot.slane %v9072, 5
      %v9075 = vsel %vm1099, %v9070, %v9074
      %v9077 = vshrl.u32 %v9000, 16
      %v9079 = vrot.slane %v9077, 4
      %v9080 = vshll.u32 %v9000, 16
      %v9082 = vrot.slane %v9080, 5
      %v9083 = vor.u32 %v9079, %v9082
      %v9084 = vrot.slane %v9083, 4
      %v9086 = vshll.u32 %v9001, 16
      %v9088 = vrot.slane %v9086, 5
      %v9089 = vsel %vm1099, %v9084, %v9088
      %v9091 = vshrl.u32 %v9002, 16
      %v9093 = vrot.slane %v9091, 4
      %v9094 = vshll.u32 %v9002, 16
      %v9096 = vrot.slane %v9094, 5
      %v9097 = vor.u32 %v9093, %v9096
      %v9098 = vrot.slane %v9097, 4
      %v9100 = vshll.u32 %v9003, 16
      %v9102 = vrot.slane %v9100, 5
      %v9103 = vsel %vm1099, %v9098, %v9102
      %v9105 = vshrl.u32 %v9004, 16
      %v9107 = vrot.slane %v9105, 4
      %v9108 = vshll.u32 %v9004, 16
      %v9110 = vrot.slane %v9108, 5
      %v9111 = vor.u32 %v9107, %v9110
      %v9112 = vrot.slane %v9111, 4
      %v9114 = vshll.u32 %v9005, 16
      %v9116 = vrot.slane %v9114, 5
      %v9117 = vsel %vm1099, %v9112, %v9116
      %v9118 = vld [vmem:[%s9 + $0xf0] sm:$0xf]
      %v9119 = vld [vmem:[%s9 + $0xf4] sm:$0xf]
      %v9120 = vld [vmem:[%s9 + $0xf8] sm:$0xf]
      %v9121 = vld [vmem:[%s9 + $0xfc] sm:$0xf]
      %v9122 = vunpack.c.l.b16 %v9019
      %v9123 = vunpack.c.l.b16 %v9033
      %v9124 = vunpack.c.l.b16 %v9047
      %v9125 = vunpack.c.l.b16 %v9061
      %v9126 = vunpack.c.l.b16 %v9075
      %v9127 = vunpack.c.l.b16 %v9089
      %v9128 = vunpack.c.l.b16 %v9103
      %v9129 = vunpack.c.l.b16 %v9117
      %v9130 = vpack.c.b16 %v9123, %v9122
      %v9131 = vpack.c.b16 %v9125, %v9124
      %v9132 = vpack.c.b16 %v9127, %v9126
      %v9133 = vpack.c.b16 %v9129, %v9128
      %v9138 = vunpack.c.l.b16 %v9118
      %v9139 = vunpack.c.l.b16 %v9119
      %v9140 = vunpack.c.l.b16 %v9120
      %v9141 = vunpack.c.l.b16 %v9121
      %v9142 = vpack.c.b16 %v9139, %v9138
      %v9143 = vpack.c.b16 %v9141, %v9140
      %v9147 = vsel %vm830, %v9130, 0
      %v9150 = vsel %vm830, %v9131, 0
      %v9153 = vsel %vm830, %v9132, 0
      %v9156 = vsel %vm830, %v9133, 0
      %9158 = vmatprep.subr.bf16.mxu0 0
      %9159 = vmatpush1.bf16.msra.mxu0 %v9142
      %9160 = vmatprep.subr.bf16.mxu0 0
      %9161 = vmatpush1.bf16.msra.mxu0 %v9143
      %9162 = vmatprep.subr.bf16.mxu0 0
      %9163 = vmatpush1.bf16.msra.mxu0 0
      %9164 = vmatprep.subr.bf16.mxu0 0
      %9165 = vmatpush1.bf16.msra.mxu0 0
      %9166 = vmatprep.subr.bf16.mxu0 0
      %9167 = vmatpush1.bf16.msra.mxu0 0
      %9168 = vmatprep.subr.bf16.mxu0 0
      %9169 = vmatpush1.bf16.msra.mxu0 0
      %9170 = vmatprep.subr.bf16.mxu0 0
      %9171 = vmatpush1.bf16.msra.mxu0 0
      %9172 = vmatprep.subr.bf16.mxu0 0
      %9173 = vmatpush1.bf16.msra.mxu0 0
      %9174 = vmatprep.subr.bf16.mxu0 0
      %9175 = vmatpush1.bf16.msra.mxu0 0
      %9176 = vmatprep.subr.bf16.mxu0 0
      %9177 = vmatpush1.bf16.msra.mxu0 0
      %9178 = vmatprep.subr.bf16.mxu0 0
      %9179 = vmatpush1.bf16.msra.mxu0 0
      %9180 = vmatprep.subr.bf16.mxu0 0
      %9181 = vmatpush1.bf16.msra.mxu0 0
      %9182 = vmatprep.subr.bf16.mxu0 0
      %9183 = vmatpush1.bf16.msra.mxu0 0
      %9184 = vmatprep.subr.bf16.mxu0 0
      %9185 = vmatpush1.bf16.msra.mxu0 0
      %9186 = vmatprep.subr.bf16.mxu0 0
      %9187 = vmatpush1.bf16.msra.mxu0 0
      %9188 = vmatprep.subr.bf16.mxu0 0
      %9189 = vmatpush1.bf16.msra.mxu0 0
      %9190 = vmatprep.mubr.bf16.mxu0 0
      %9191 = vmatmul.mubr.bf16.gmra.mrb[0].mxu0 %v9147
      %v9192 = vpop.f32.mrb[0].mxu0
      %v9193 = vadd.f32 0.0, %v9192
      %v9194 = vpop.f32.mrb[0].mxu0
      %v9195 = vpop.f32.mrb[0].mxu0
      %v9196 = vadd.f32 0.0, %v9195
      %v9197 = vpop.f32.mrb[0].mxu0
      %9198 = vmatprep.mubr.bf16.mxu0 0
      %9199 = vmatmul.mubr.bf16.gmra.mrb[0].mxu0 %v9150
      %v9200 = vpop.f32.mrb[0].mxu0
      %v9201 = vadd.f32 0.0, %v9200
      %v9202 = vpop.f32.mrb[0].mxu0
      %v9203 = vpop.f32.mrb[0].mxu0
      %v9204 = vadd.f32 0.0, %v9203
      %v9205 = vpop.f32.mrb[0].mxu0
      %9206 = vmatprep.mubr.bf16.mxu0 0
      %9207 = vmatmul.mubr.bf16.gmra.mrb[0].mxu0 %v9153
      %v9208 = vpop.f32.mrb[0].mxu0
      %v9209 = vadd.f32 0.0, %v9208
      %v9210 = vpop.f32.mrb[0].mxu0
      %v9211 = vpop.f32.mrb[0].mxu0
      %v9212 = vadd.f32 0.0, %v9211
      %v9213 = vpop.f32.mrb[0].mxu0
      %9214 = vmatprep.mubr.bf16.mxu0 0
      %9215 = vmatmul.mubr.bf16.gmra.mrb[0].mxu0 %v9156
      %v9216 = vpop.f32.mrb[0].mxu0
      %v9217 = vadd.f32 0.0, %v9216
      %v9218 = vpop.f32.mrb[0].mxu0
      %v9219 = vpop.f32.mrb[0].mxu0
      %v9220 = vadd.f32 0.0, %v9219
      %v9221 = vpop.f32.mrb[0].mxu0
      %9222 = vdwg.mxu0
      %v9223 = vadd.f32 %v8982, %v9193
      %v9224 = vadd.f32 %v8983, %v9196
      %v9225 = vadd.f32 %v8984, %v9201
      %v9226 = vadd.f32 %v8985, %v9204
      %v9227 = vadd.f32 %v8986, %v9209
      %v9228 = vadd.f32 %v8987, %v9212
      %v9229 = vadd.f32 %v8988, %v9217
      %v9230 = vadd.f32 %v8989, %v9220
      %v9231 = vld [vmem:[%s8490] sm:$0xe]
      %v9232 = vld [vmem:[%s8490 + $0x8] sm:$0xe]
      %v9233 = vld [vmem:[%s8490 + $0x10] sm:$0xe]
      %v9234 = vld [vmem:[%s8490 + $0x18] sm:$0xe]
      %v9235 = vld [vmem:[%s8490 + $0x20] sm:$0xe]
      %v9236 = vld [vmem:[%s8490 + $0x28] sm:$0xe]
      %v9237 = vld [vmem:[%s8490 + $0x30] sm:$0xe]
      %v9238 = vld [vmem:[%s8490 + $0x38] sm:$0xe]
      %v9255 = vrot.slane %v9231, 5
      %v9256 = vrot.slane %v9255, 4
      %v9257 = vrot.slane %v8750, 5
      %v9258 = vsel %vm1439, %v9256, %v9257
      %v9259 = vrot.slane %v9232, 5
      %v9260 = vrot.slane %v9259, 4
      %v9261 = vrot.slane %v8752, 5
      %v9262 = vsel %vm1439, %v9260, %v9261
      %v9263 = vrot.slane %v9233, 5
      %v9264 = vrot.slane %v9263, 4
      %v9265 = vrot.slane %v8754, 5
      %v9266 = vsel %vm1439, %v9264, %v9265
      %v9267 = vrot.slane %v9234, 5
      %v9268 = vrot.slane %v9267, 4
      %v9269 = vrot.slane %v8756, 5
      %v9270 = vsel %vm1439, %v9268, %v9269
      %v9271 = vrot.slane %v9235, 5
      %v9272 = vrot.slane %v9271, 4
      %v9273 = vrot.slane %v8758, 5
      %v9274 = vsel %vm1439, %v9272, %v9273
      %v9275 = vrot.slane %v9236, 5
      %v9276 = vrot.slane %v9275, 4
      %v9277 = vrot.slane %v8760, 5
      %v9278 = vsel %vm1439, %v9276, %v9277
      %v9279 = vrot.slane %v9237, 5
      %v9280 = vrot.slane %v9279, 4
      %v9281 = vrot.slane %v8762, 5
      %v9282 = vsel %vm1439, %v9280, %v9281
      %v9283 = vrot.slane %v9238, 5
      %v9284 = vrot.slane %v9283, 4
      %v9285 = vrot.slane %v8764, 5
      %v9286 = vsel %vm1439, %v9284, %v9285
      %v9287 = vld [vmem:[%s9 + $0x100] sm:$0xf]
      %v9288 = vld [vmem:[%s9 + $0x104] sm:$0xf]
      %v9289 = vld [vmem:[%s9 + $0x108] sm:$0xf]
      %v9290 = vld [vmem:[%s9 + $0x10c] sm:$0xf]
      %v9291 = vunpack.c.l.b16 %v9258
      %v9292 = vunpack.c.l.b16 %v9262
      %v9293 = vunpack.c.l.b16 %v9266
      %v9294 = vunpack.c.l.b16 %v9270
      %v9295 = vunpack.c.l.b16 %v9274
      %v9296 = vunpack.c.l.b16 %v9278
      %v9297 = vunpack.c.l.b16 %v9282
      %v9298 = vunpack.c.l.b16 %v9286
      %v9299 = vpack.c.b16 %v9292, %v9291
      %v9300 = vpack.c.b16 %v9294, %v9293
      %v9301 = vpack.c.b16 %v9296, %v9295
      %v9302 = vpack.c.b16 %v9298, %v9297
      %v9307 = vunpack.c.l.b16 %v9287
      %v9308 = vunpack.c.l.b16 %v9288
      %v9309 = vunpack.c.l.b16 %v9289
      %v9310 = vunpack.c.l.b16 %v9290
      %v9311 = vpack.c.b16 %v9308, %v9307
      %v9312 = vpack.c.b16 %v9310, %v9309
      %v9316 = vsel %vm830, %v9299, 0
      %v9319 = vsel %vm830, %v9300, 0
      %v9322 = vsel %vm830, %v9301, 0
      %v9325 = vsel %vm830, %v9302, 0
      %9327 = vmatprep.subr.bf16.mxu0 0
      %9328 = vmatpush1.bf16.msra.mxu0 %v9311
      %9329 = vmatprep.subr.bf16.mxu0 0
      %9330 = vmatpush1.bf16.msra.mxu0 %v9312
      %9331 = vmatprep.subr.bf16.mxu0 0
      %9332 = vmatpush1.bf16.msra.mxu0 0
      %9333 = vmatprep.subr.bf16.mxu0 0
      %9334 = vmatpush1.bf16.msra.mxu0 0
      %9335 = vmatprep.subr.bf16.mxu0 0
      %9336 = vmatpush1.bf16.msra.mxu0 0
      %9337 = vmatprep.subr.bf16.mxu0 0
      %9338 = vmatpush1.bf16.msra.mxu0 0
      %9339 = vmatprep.subr.bf16.mxu0 0
      %9340 = vmatpush1.bf16.msra.mxu0 0
      %9341 = vmatprep.subr.bf16.mxu0 0
      %9342 = vmatpush1.bf16.msra.mxu0 0
      %9343 = vmatprep.subr.bf16.mxu0 0
      %9344 = vmatpush1.bf16.msra.mxu0 0
      %9345 = vmatprep.subr.bf16.mxu0 0
      %9346 = vmatpush1.bf16.msra.mxu0 0
      %9347 = vmatprep.subr.bf16.mxu0 0
      %9348 = vmatpush1.bf16.msra.mxu0 0
      %9349 = vmatprep.subr.bf16.mxu0 0
      %9350 = vmatpush1.bf16.msra.mxu0 0
      %9351 = vmatprep.subr.bf16.mxu0 0
      %9352 = vmatpush1.bf16.msra.mxu0 0
      %9353 = vmatprep.subr.bf16.mxu0 0
      %9354 = vmatpush1.bf16.msra.mxu0 0
      %9355 = vmatprep.subr.bf16.mxu0 0
      %9356 = vmatpush1.bf16.msra.mxu0 0
      %9357 = vmatprep.subr.bf16.mxu0 0
      %9358 = vmatpush1.bf16.msra.mxu0 0
      %9359 = vmatprep.mubr.bf16.mxu0 0
      %9360 = vmatmul.mubr.bf16.gmra.mrb[0].mxu0 %v9316
      %v9361 = vpop.f32.mrb[0].mxu0
      %v9362 = vadd.f32 0.0, %v9361
      %v9363 = vpop.f32.mrb[0].mxu0
      %v9364 = vpop.f32.mrb[0].mxu0
      %v9365 = vadd.f32 0.0, %v9364
      %v9366 = vpop.f32.mrb[0].mxu0
      %9367 = vmatprep.mubr.bf16.mxu0 0
      %9368 = vmatmul.mubr.bf16.gmra.mrb[0].mxu0 %v9319
      %v9369 = vpop.f32.mrb[0].mxu0
      %v9370 = vadd.f32 0.0, %v9369
      %v9371 = vpop.f32.mrb[0].mxu0
      %v9372 = vpop.f32.mrb[0].mxu0
      %v9373 = vadd.f32 0.0, %v9372
      %v9374 = vpop.f32.mrb[0].mxu0
      %9375 = vmatprep.mubr.bf16.mxu0 0
      %9376 = vmatmul.mubr.bf16.gmra.mrb[0].mxu0 %v9322
      %v9377 = vpop.f32.mrb[0].mxu0
      %v9378 = vadd.f32 0.0, %v9377
      %v9379 = vpop.f32.mrb[0].mxu0
      %v9380 = vpop.f32.mrb[0].mxu0
      %v9381 = vadd.f32 0.0, %v9380
      %v9382 = vpop.f32.mrb[0].mxu0
      %9383 = vmatprep.mubr.bf16.mxu0 0
      %9384 = vmatmul.mubr.bf16.gmra.mrb[0].mxu0 %v9325
      %v9385 = vpop.f32.mrb[0].mxu0
      %v9386 = vadd.f32 0.0, %v9385
      %v9387 = vpop.f32.mrb[0].mxu0
      %v9388 = vpop.f32.mrb[0].mxu0
      %v9389 = vadd.f32 0.0, %v9388
      %v9390 = vpop.f32.mrb[0].mxu0
      %9391 = vdwg.mxu0
      %v9392 = vadd.f32 %v9223, %v9362
      %v9393 = vadd.f32 %v9224, %v9365
      %v9394 = vadd.f32 %v9225, %v9370
      %v9395 = vadd.f32 %v9226, %v9373
      %v9396 = vadd.f32 %v9227, %v9378
      %v9397 = vadd.f32 %v9228, %v9381
      %v9398 = vadd.f32 %v9229, %v9386
      %v9399 = vadd.f32 %v9230, %v9389
      %v9400 = vld [vmem:[%s3848] sm:$0xe]
      %v9401 = vld [vmem:[%s3848 + $0x8] sm:$0xe]
      %v9402 = vld [vmem:[%s3848 + $0x10] sm:$0xe]
      %v9403 = vld [vmem:[%s3848 + $0x18] sm:$0xe]
      %v9404 = vld [vmem:[%s3848 + $0x20] sm:$0xe]
      %v9405 = vld [vmem:[%s3848 + $0x28] sm:$0xe]
      %v9406 = vld [vmem:[%s3848 + $0x30] sm:$0xe]
      %v9407 = vld [vmem:[%s3848 + $0x38] sm:$0xe]
      %v9424 = vrot.slane %v9400, 5
      %v9425 = vrot.slane %v9424, 4
      %v9426 = vrot.slane %v8991, 5
      %v9427 = vsel %vm1439, %v9425, %v9426
      %v9428 = vrot.slane %v9401, 5
      %v9429 = vrot.slane %v9428, 4
      %v9430 = vrot.slane %v8993, 5
      %v9431 = vsel %vm1439, %v9429, %v9430
      %v9432 = vrot.slane %v9402, 5
      %v9433 = vrot.slane %v9432, 4
      %v9434 = vrot.slane %v8995, 5
      %v9435 = vsel %vm1439, %v9433, %v9434
      %v9436 = vrot.slane %v9403, 5
      %v9437 = vrot.slane %v9436, 4
      %v9438 = vrot.slane %v8997, 5
      %v9439 = vsel %vm1439, %v9437, %v9438
      %v9440 = vrot.slane %v9404, 5
      %v9441 = vrot.slane %v9440, 4
      %v9442 = vrot.slane %v8999, 5
      %v9443 = vsel %vm1439, %v9441, %v9442
      %v9444 = vrot.slane %v9405, 5
      %v9445 = vrot.slane %v9444, 4
      %v9446 = vrot.slane %v9001, 5
      %v9447 = vsel %vm1439, %v9445, %v9446
      %v9448 = vrot.slane %v9406, 5
      %v9449 = vrot.slane %v9448, 4
      %v9450 = vrot.slane %v9003, 5
      %v9451 = vsel %vm1439, %v9449, %v9450
      %v9452 = vrot.slane %v9407, 5
      %v9453 = vrot.slane %v9452, 4
      %v9454 = vrot.slane %v9005, 5
      %v9455 = vsel %vm1439, %v9453, %v9454
      %v9456 = vld [vmem:[%s9 + $0x110] sm:$0xf]
      %v9457 = vld [vmem:[%s9 + $0x114] sm:$0xf]
      %v9458 = vld [vmem:[%s9 + $0x118] sm:$0xf]
      %v9459 = vld [vmem:[%s9 + $0x11c] sm:$0xf]
      %v9460 = vunpack.c.l.b16 %v9427
      %v9461 = vunpack.c.l.b16 %v9431
      %v9462 = vunpack.c.l.b16 %v9435
      %v9463 = vunpack.c.l.b16 %v9439
      %v9464 = vunpack.c.l.b16 %v9443
      %v9465 = vunpack.c.l.b16 %v9447
      %v9466 = vunpack.c.l.b16 %v9451
      %v9467 = vunpack.c.l.b16 %v9455
      %v9468 = vpack.c.b16 %v9461, %v9460
      %v9469 = vpack.c.b16 %v9463, %v9462
      %v9470 = vpack.c.b16 %v9465, %v9464
      %v9471 = vpack.c.b16 %v9467, %v9466
      %v9476 = vunpack.c.l.b16 %v9456
      %v9477 = vunpack.c.l.b16 %v9457
      %v9478 = vunpack.c.l.b16 %v9458
      %v9479 = vunpack.c.l.b16 %v9459
      %v9480 = vpack.c.b16 %v9477, %v9476
      %v9481 = vpack.c.b16 %v9479, %v9478
      %v9485 = vsel %vm830, %v9468, 0
      %v9488 = vsel %vm830, %v9469, 0
      %v9491 = vsel %vm830, %v9470, 0
      %v9494 = vsel %vm830, %v9471, 0
      %9496 = vmatprep.subr.bf16.mxu0 0
      %9497 = vmatpush1.bf16.msra.mxu0 %v9480
      %9498 = vmatprep.subr.bf16.mxu0 0
      %9499 = vmatpush1.bf16.msra.mxu0 %v9481
      %9500 = vmatprep.subr.bf16.mxu0 0
      %9501 = vmatpush1.bf16.msra.mxu0 0
      %9502 = vmatprep.subr.bf16.mxu0 0
      %9503 = vmatpush1.bf16.msra.mxu0 0
      %9504 = vmatprep.subr.bf16.mxu0 0
      %9505 = vmatpush1.bf16.msra.mxu0 0
      %9506 = vmatprep.subr.bf16.mxu0 0
      %9507 = vmatpush1.bf16.msra.mxu0 0
      %9508 = vmatprep.subr.bf16.mxu0 0
      %9509 = vmatpush1.bf16.msra.mxu0 0
      %9510 = vmatprep.subr.bf16.mxu0 0
      %9511 = vmatpush1.bf16.msra.mxu0 0
      %9512 = vmatprep.subr.bf16.mxu0 0
      %9513 = vmatpush1.bf16.msra.mxu0 0
      %9514 = vmatprep.subr.bf16.mxu0 0
      %9515 = vmatpush1.bf16.msra.mxu0 0
      %9516 = vmatprep.subr.bf16.mxu0 0
      %9517 = vmatpush1.bf16.msra.mxu0 0
      %9518 = vmatprep.subr.bf16.mxu0 0
      %9519 = vmatpush1.bf16.msra.mxu0 0
      %9520 = vmatprep.subr.bf16.mxu0 0
      %9521 = vmatpush1.bf16.msra.mxu0 0
      %9522 = vmatprep.subr.bf16.mxu0 0
      %9523 = vmatpush1.bf16.msra.mxu0 0
      %9524 = vmatprep.subr.bf16.mxu0 0
      %9525 = vmatpush1.bf16.msra.mxu0 0
      %9526 = vmatprep.subr.bf16.mxu0 0
      %9527 = vmatpush1.bf16.msra.mxu0 0
      %9528 = vmatprep.mubr.bf16.mxu0 0
      %9529 = vmatmul.mubr.bf16.gmra.mrb[0].mxu0 %v9485
      %v9530 = vpop.f32.mrb[0].mxu0
      %v9531 = vadd.f32 0.0, %v9530
      %v9532 = vpop.f32.mrb[0].mxu0
      %v9533 = vpop.f32.mrb[0].mxu0
      %v9534 = vadd.f32 0.0, %v9533
      %v9535 = vpop.f32.mrb[0].mxu0
      %9536 = vmatprep.mubr.bf16.mxu0 0
      %9537 = vmatmul.mubr.bf16.gmra.mrb[0].mxu0 %v9488
      %v9538 = vpop.f32.mrb[0].mxu0
      %v9539 = vadd.f32 0.0, %v9538
      %v9540 = vpop.f32.mrb[0].mxu0
      %v9541 = vpop.f32.mrb[0].mxu0
      %v9542 = vadd.f32 0.0, %v9541
      %v9543 = vpop.f32.mrb[0].mxu0
      %9544 = vmatprep.mubr.bf16.mxu0 0
      %9545 = vmatmul.mubr.bf16.gmra.mrb[0].mxu0 %v9491
      %v9546 = vpop.f32.mrb[0].mxu0
      %v9547 = vadd.f32 0.0, %v9546
      %v9548 = vpop.f32.mrb[0].mxu0
      %v9549 = vpop.f32.mrb[0].mxu0
      %v9550 = vadd.f32 0.0, %v9549
      %v9551 = vpop.f32.mrb[0].mxu0
      %9552 = vmatprep.mubr.bf16.mxu0 0
      %9553 = vmatmul.mubr.bf16.gmra.mrb[0].mxu0 %v9494
      %v9554 = vpop.f32.mrb[0].mxu0
      %v9555 = vadd.f32 0.0, %v9554
      %v9556 = vpop.f32.mrb[0].mxu0
      %v9557 = vpop.f32.mrb[0].mxu0
      %v9558 = vadd.f32 0.0, %v9557
      %v9559 = vpop.f32.mrb[0].mxu0
      %9560 = vdwg.mxu0
      %v9561 = vadd.f32 %v9392, %v9531
      %v9562 = vadd.f32 %v9393, %v9534
      %v9563 = vadd.f32 %v9394, %v9539
      %v9564 = vadd.f32 %v9395, %v9542
      %v9565 = vadd.f32 %v9396, %v9547
      %v9566 = vadd.f32 %v9397, %v9550
      %v9567 = vadd.f32 %v9398, %v9555
      %v9568 = vadd.f32 %v9399, %v9558
      %v9569 = vld [vmem:[%s10] sm:$0x1]
      %v9571 = vlaneseq
      %v9572 = vshrl.u32 %v9571, 7
      %v9573 = vsub.s32 0, %v9572
      %v9574 = vrot.slane %v9569, %v9573
      %v9576 = vadd.f32 %v9561, %v9574
      %v9577 = vadd.f32 %v9562, %v9574
      %v9578 = vadd.f32 %v9563, %v9574
      %v9579 = vadd.f32 %v9564, %v9574
      %v9580 = vadd.f32 %v9565, %v9574
      %v9581 = vadd.f32 %v9566, %v9574
      %v9582 = vadd.f32 %v9567, %v9574
      %v9583 = vadd.f32 %v9568, %v9574
      %v9584 = vmax.f32 %v9576, 0.0
      %v9585 = vmax.f32 %v9577, 0.0
      %v9586 = vmax.f32 %v9578, 0.0
      %v9587 = vmax.f32 %v9579, 0.0
      %v9588 = vmax.f32 %v9580, 0.0
      %v9589 = vmax.f32 %v9581, 0.0
      %v9590 = vmax.f32 %v9582, 0.0
      %v9591 = vmax.f32 %v9583, 0.0
      %v9592 = vpack.c.bf16 %v9584, %v9584
      %v9593 = vpack.c.bf16 %v9585, %v9585
      %v9594 = vpack.c.bf16 %v9586, %v9586
      %v9595 = vpack.c.bf16 %v9587, %v9587
      %v9596 = vpack.c.bf16 %v9588, %v9588
      %v9597 = vpack.c.bf16 %v9589, %v9589
      %v9598 = vpack.c.bf16 %v9590, %v9590
      %v9599 = vpack.c.bf16 %v9591, %v9591
      %v9608 = vunpack.c.l.b16 %v9592
      %v9609 = vunpack.c.l.b16 %v9593
      %v9610 = vunpack.c.l.b16 %v9594
      %v9611 = vunpack.c.l.b16 %v9595
      %v9612 = vunpack.c.l.b16 %v9596
      %v9613 = vunpack.c.l.b16 %v9597
      %v9614 = vunpack.c.l.b16 %v9598
      %v9615 = vunpack.c.l.b16 %v9599
      %v9616 = vpack.c.b16 %v9608, %v9608
      %v9617 = vpack.c.b16 %v9609, %v9609
      %v9618 = vpack.c.b16 %v9610, %v9610
      %v9619 = vpack.c.b16 %v9611, %v9611
      %v9620 = vpack.c.b16 %v9612, %v9612
      %v9621 = vpack.c.b16 %v9613, %v9613
      %v9622 = vpack.c.b16 %v9614, %v9614
      %v9623 = vpack.c.b16 %v9615, %v9615
      %v9625 = vshrl.u32 %v9616, 16
      %v9627 = vrot.slane %v9625, 7
      %v9628 = vshll.u32 %v9616, 16
      %v9630 = vor.u32 %v9627, %v9628
      %v9631 = vrot.slane %v9627, 4
      %v9633 = vshrl.u32 %v9617, 16
      %v9635 = vrot.slane %v9633, 7
      %v9636 = vshll.u32 %v9617, 16
      %v9638 = vor.u32 %v9635, %v9636
      %v9639 = vrot.slane %v9635, 4
      %v9641 = vshrl.u32 %v9618, 16
      %v9643 = vrot.slane %v9641, 7
      %v9644 = vshll.u32 %v9618, 16
      %v9646 = vor.u32 %v9643, %v9644
      %v9647 = vrot.slane %v9643, 4
      %v9649 = vshrl.u32 %v9619, 16
      %v9651 = vrot.slane %v9649, 7
      %v9652 = vshll.u32 %v9619, 16
      %v9654 = vor.u32 %v9651, %v9652
      %v9655 = vrot.slane %v9651, 4
      %v9657 = vshrl.u32 %v9620, 16
      %v9659 = vrot.slane %v9657, 7
      %v9660 = vshll.u32 %v9620, 16
      %v9662 = vor.u32 %v9659, %v9660
      %v9663 = vrot.slane %v9659, 4
      %v9665 = vshrl.u32 %v9621, 16
      %v9667 = vrot.slane %v9665, 7
      %v9668 = vshll.u32 %v9621, 16
      %v9670 = vor.u32 %v9667, %v9668
      %v9671 = vrot.slane %v9667, 4
      %v9673 = vshrl.u32 %v9622, 16
      %v9675 = vrot.slane %v9673, 7
      %v9676 = vshll.u32 %v9622, 16
      %v9678 = vor.u32 %v9675, %v9676
      %v9679 = vrot.slane %v9675, 4
      %v9681 = vshrl.u32 %v9623, 16
      %v9683 = vrot.slane %v9681, 7
      %v9684 = vshll.u32 %v9623, 16
      %v9686 = vor.u32 %v9683, %v9684
      %v9687 = vrot.slane %v9683, 4
      %s9704 = scalar_lea.vmem [#allocation6], 8
      %v9705 = vld [vmem:[%s9704] sm:$0xf]
      %v9706 = vsel %vm2745, %v9630, %v9705
      %9707 = vst [vmem:[%s9704] sm:$0xf] %v9706
      %v9708 = vld [vmem:[%s9704 + $0x4] sm:$0x1]
      %v9709 = vsel %vm522, %v9631, %v9708
      %9710 = vst [vmem:[%s9704 + $0x4] sm:$0x1] %v9709
      %v9711 = vld [vmem:[%s9704 + $0x8] sm:$0xf]
      %v9712 = vsel %vm2745, %v9638, %v9711
      %9713 = vst [vmem:[%s9704 + $0x8] sm:$0xf] %v9712
      %v9714 = vld [vmem:[%s9704 + $0xc] sm:$0x1]
      %v9715 = vsel %vm522, %v9639, %v9714
      %9716 = vst [vmem:[%s9704 + $0xc] sm:$0x1] %v9715
      %v9717 = vld [vmem:[%s9704 + $0x10] sm:$0xf]
      %v9718 = vsel %vm2745, %v9646, %v9717
      %9719 = vst [vmem:[%s9704 + $0x10] sm:$0xf] %v9718
      %v9720 = vld [vmem:[%s9704 + $0x14] sm:$0x1]
      %v9721 = vsel %vm522, %v9647, %v9720
      %9722 = vst [vmem:[%s9704 + $0x14] sm:$0x1] %v9721
      %v9723 = vld [vmem:[%s9704 + $0x18] sm:$0xf]
      %v9724 = vsel %vm2745, %v9654, %v9723
      %9725 = vst [vmem:[%s9704 + $0x18] sm:$0xf] %v9724
      %v9726 = vld [vmem:[%s9704 + $0x1c] sm:$0x1]
      %v9727 = vsel %vm522, %v9655, %v9726
      %9728 = vst [vmem:[%s9704 + $0x1c] sm:$0x1] %v9727
      %v9729 = vld [vmem:[%s9704 + $0x20] sm:$0xf]
      %v9730 = vsel %vm2745, %v9662, %v9729
      %9731 = vst [vmem:[%s9704 + $0x20] sm:$0xf] %v9730
      %v9732 = vld [vmem:[%s9704 + $0x24] sm:$0x1]
      %v9733 = vsel %vm522, %v9663, %v9732
      %9734 = vst [vmem:[%s9704 + $0x24] sm:$0x1] %v9733
      %v9735 = vld [vmem:[%s9704 + $0x28] sm:$0xf]
      %v9736 = vsel %vm2745, %v9670, %v9735
      %9737 = vst [vmem:[%s9704 + $0x28] sm:$0xf] %v9736
      %v9738 = vld [vmem:[%s9704 + $0x2c] sm:$0x1]
      %v9739 = vsel %vm522, %v9671, %v9738
      %9740 = vst [vmem:[%s9704 + $0x2c] sm:$0x1] %v9739
      %v9741 = vld [vmem:[%s9704 + $0x30] sm:$0xf]
      %v9742 = vsel %vm2745, %v9678, %v9741
      %9743 = vst [vmem:[%s9704 + $0x30] sm:$0xf] %v9742
      %v9744 = vld [vmem:[%s9704 + $0x34] sm:$0x1]
      %v9745 = vsel %vm522, %v9679, %v9744
      %9746 = vst [vmem:[%s9704 + $0x34] sm:$0x1] %v9745
      %v9747 = vld [vmem:[%s9704 + $0x38] sm:$0xf]
      %v9748 = vsel %vm2745, %v9686, %v9747
      %9749 = vst [vmem:[%s9704 + $0x38] sm:$0xf] %v9748
      %v9750 = vld [vmem:[%s9704 + $0x3c] sm:$0x1]
      %v9751 = vsel %vm522, %v9687, %v9750
      %9752 = vst [vmem:[%s9704 + $0x3c] sm:$0x1] %v9751
      %v9753 = vld [vmem:[#allocation6] sm:$0xf]
      %v9754 = vld [vmem:[#allocation6 + $0x8] sm:$0xf]
      %v9755 = vld [vmem:[#allocation6 + $0x10] sm:$0xf]
      %v9756 = vld [vmem:[#allocation6 + $0x18] sm:$0xf]
      %v9757 = vld [vmem:[#allocation6 + $0x20] sm:$0xf]
      %v9758 = vld [vmem:[#allocation6 + $0x28] sm:$0xf]
      %v9759 = vld [vmem:[#allocation6 + $0x30] sm:$0xf]
      %v9760 = vld [vmem:[#allocation6 + $0x38] sm:$0xf]
      %v9761 = vld [vmem:[%s11] sm:$0xf]
      %v9762 = vld [vmem:[%s11 + $0x4] sm:$0xf]
      %v9763 = vld [vmem:[%s11 + $0x8] sm:$0xf]
      %v9764 = vld [vmem:[%s11 + $0xc] sm:$0xf]
      %v9765 = vld [vmem:[#allocation6 + $0x4] sm:$0x1]
      %v9766 = vld [vmem:[#allocation6 + $0xc] sm:$0x1]
      %v9767 = vld [vmem:[#allocation6 + $0x14] sm:$0x1]
      %v9768 = vld [vmem:[#allocation6 + $0x1c] sm:$0x1]
      %v9769 = vld [vmem:[#allocation6 + $0x24] sm:$0x1]
      %v9770 = vld [vmem:[#allocation6 + $0x2c] sm:$0x1]
      %v9771 = vld [vmem:[#allocation6 + $0x34] sm:$0x1]
      %v9772 = vld [vmem:[#allocation6 + $0x3c] sm:$0x1]
      %v9774 = vshrl.u32 %v9753, 16
      %v9776 = vrot.slane %v9774, 4
      %v9777 = vshll.u32 %v9753, 16
      %v9779 = vrot.slane %v9777, 5
      %v9780 = vor.u32 %v9776, %v9779
      %v9781 = vrot.slane %v9780, 4
      %v9783 = vshll.u32 %v9765, 16
      %v9785 = vrot.slane %v9783, 5
      %v9786 = vsel %vm1099, %v9781, %v9785
      %v9788 = vshrl.u32 %v9754, 16
      %v9790 = vrot.slane %v9788, 4
      %v9791 = vshll.u32 %v9754, 16
      %v9793 = vrot.slane %v9791, 5
      %v9794 = vor.u32 %v9790, %v9793
      %v9795 = vrot.slane %v9794, 4
      %v9797 = vshll.u32 %v9766, 16
      %v9799 = vrot.slane %v9797, 5
      %v9800 = vsel %vm1099, %v9795, %v9799
      %v9802 = vshrl.u32 %v9755, 16
      %v9804 = vrot.slane %v9802, 4
      %v9805 = vshll.u32 %v9755, 16
      %v9807 = vrot.slane %v9805, 5
      %v9808 = vor.u32 %v9804, %v9807
      %v9809 = vrot.slane %v9808, 4
      %v9811 = vshll.u32 %v9767, 16
      %v9813 = vrot.slane %v9811, 5
      %v9814 = vsel %vm1099, %v9809, %v9813
      %v9816 = vshrl.u32 %v9756, 16
      %v9818 = vrot.slane %v9816, 4
      %v9819 = vshll.u32 %v9756, 16
      %v9821 = vrot.slane %v9819, 5
      %v9822 = vor.u32 %v9818, %v9821
      %v9823 = vrot.slane %v9822, 4
      %v9825 = vshll.u32 %v9768, 16
      %v9827 = vrot.slane %v9825, 5
      %v9828 = vsel %vm1099, %v9823, %v9827
      %v9830 = vshrl.u32 %v9757, 16
      %v9832 = vrot.slane %v9830, 4
      %v9833 = vshll.u32 %v9757, 16
      %v9835 = vrot.slane %v9833, 5
      %v9836 = vor.u32 %v9832, %v9835
      %v9837 = vrot.slane %v9836, 4
      %v9839 = vshll.u32 %v9769, 16
      %v9841 = vrot.slane %v9839, 5
      %v9842 = vsel %vm1099, %v9837, %v9841
      %v9844 = vshrl.u32 %v9758, 16
      %v9846 = vrot.slane %v9844, 4
      %v9847 = vshll.u32 %v9758, 16
      %v9849 = vrot.slane %v9847, 5
      %v9850 = vor.u32 %v9846, %v9849
      %v9851 = vrot.slane %v9850, 4
      %v9853 = vshll.u32 %v9770, 16
      %v9855 = vrot.slane %v9853, 5
      %v9856 = vsel %vm1099, %v9851, %v9855
      %v9858 = vshrl.u32 %v9759, 16
      %v9860 = vrot.slane %v9858, 4
      %v9861 = vshll.u32 %v9759, 16
      %v9863 = vrot.slane %v9861, 5
      %v9864 = vor.u32 %v9860, %v9863
      %v9865 = vrot.slane %v9864, 4
      %v9867 = vshll.u32 %v9771, 16
      %v9869 = vrot.slane %v9867, 5
      %v9870 = vsel %vm1099, %v9865, %v9869
      %v9872 = vshrl.u32 %v9760, 16
      %v9874 = vrot.slane %v9872, 4
      %v9875 = vshll.u32 %v9760, 16
      %v9877 = vrot.slane %v9875, 5
      %v9878 = vor.u32 %v9874, %v9877
      %v9879 = vrot.slane %v9878, 4
      %v9881 = vshll.u32 %v9772, 16
      %v9883 = vrot.slane %v9881, 5
      %v9884 = vsel %vm1099, %v9879, %v9883
      %v9885 = vld [vmem:[%s11 + $0x10] sm:$0xf]
      %v9886 = vld [vmem:[%s11 + $0x14] sm:$0xf]
      %v9887 = vld [vmem:[%s11 + $0x18] sm:$0xf]
      %v9888 = vld [vmem:[%s11 + $0x1c] sm:$0xf]
      %v9889 = vunpack.c.l.b16 %v9786
      %v9890 = vunpack.c.l.b16 %v9800
      %v9891 = vunpack.c.l.b16 %v9814
      %v9892 = vunpack.c.l.b16 %v9828
      %v9893 = vunpack.c.l.b16 %v9842
      %v9894 = vunpack.c.l.b16 %v9856
      %v9895 = vunpack.c.l.b16 %v9870
      %v9896 = vunpack.c.l.b16 %v9884
      %v9897 = vpack.c.b16 %v9890, %v9889
      %v9898 = vpack.c.b16 %v9892, %v9891
      %v9899 = vpack.c.b16 %v9894, %v9893
      %v9900 = vpack.c.b16 %v9896, %v9895
      %v9905 = vunpack.c.l.b16 %v9885
      %v9906 = vunpack.c.l.b16 %v9886
      %v9907 = vunpack.c.l.b16 %v9887
      %v9908 = vunpack.c.l.b16 %v9888
      %v9909 = vpack.c.b16 %v9906, %v9905
      %v9910 = vpack.c.b16 %v9908, %v9907
      %v9914 = vsel %vm830, %v9897, 0
      %v9917 = vsel %vm830, %v9898, 0
      %v9920 = vsel %vm830, %v9899, 0
      %v9923 = vsel %vm830, %v9900, 0
      %9925 = vmatprep.subr.bf16.mxu0 0
      %9926 = vmatpush1.bf16.msra.mxu0 %v9909
      %9927 = vmatprep.subr.bf16.mxu0 0
      %9928 = vmatpush1.bf16.msra.mxu0 %v9910
      %9929 = vmatprep.subr.bf16.mxu0 0
      %9930 = vmatpush1.bf16.msra.mxu0 0
      %9931 = vmatprep.subr.bf16.mxu0 0
      %9932 = vmatpush1.bf16.msra.mxu0 0
      %9933 = vmatprep.subr.bf16.mxu0 0
      %9934 = vmatpush1.bf16.msra.mxu0 0
      %9935 = vmatprep.subr.bf16.mxu0 0
      %9936 = vmatpush1.bf16.msra.mxu0 0
      %9937 = vmatprep.subr.bf16.mxu0 0
      %9938 = vmatpush1.bf16.msra.mxu0 0
      %9939 = vmatprep.subr.bf16.mxu0 0
      %9940 = vmatpush1.bf16.msra.mxu0 0
      %9941 = vmatprep.subr.bf16.mxu0 0
      %9942 = vmatpush1.bf16.msra.mxu0 0
      %9943 = vmatprep.subr.bf16.mxu0 0
      %9944 = vmatpush1.bf16.msra.mxu0 0
      %9945 = vmatprep.subr.bf16.mxu0 0
      %9946 = vmatpush1.bf16.msra.mxu0 0
      %9947 = vmatprep.subr.bf16.mxu0 0
      %9948 = vmatpush1.bf16.msra.mxu0 0
      %9949 = vmatprep.subr.bf16.mxu0 0
      %9950 = vmatpush1.bf16.msra.mxu0 0
      %9951 = vmatprep.subr.bf16.mxu0 0
      %9952 = vmatpush1.bf16.msra.mxu0 0
      %9953 = vmatprep.subr.bf16.mxu0 0
      %9954 = vmatpush1.bf16.msra.mxu0 0
      %9955 = vmatprep.subr.bf16.mxu0 0
      %9956 = vmatpush1.bf16.msra.mxu0 0
      %9957 = vmatprep.mubr.bf16.mxu0 0
      %9958 = vmatmul.mubr.bf16.gmra.mrb[0].mxu0 %v9914
      %v9959 = vpop.f32.mrb[0].mxu0
      %v9960 = vadd.f32 0.0, %v9959
      %v9961 = vpop.f32.mrb[0].mxu0
      %v9962 = vpop.f32.mrb[0].mxu0
      %v9963 = vadd.f32 0.0, %v9962
      %v9964 = vpop.f32.mrb[0].mxu0
      %9965 = vmatprep.mubr.bf16.mxu0 0
      %9966 = vmatmul.mubr.bf16.gmra.mrb[0].mxu0 %v9917
      %v9967 = vpop.f32.mrb[0].mxu0
      %v9968 = vadd.f32 0.0, %v9967
      %v9969 = vpop.f32.mrb[0].mxu0
      %v9970 = vpop.f32.mrb[0].mxu0
      %v9971 = vadd.f32 0.0, %v9970
      %v9972 = vpop.f32.mrb[0].mxu0
      %9973 = vmatprep.mubr.bf16.mxu0 0
      %9974 = vmatmul.mubr.bf16.gmra.mrb[0].mxu0 %v9920
      %v9975 = vpop.f32.mrb[0].mxu0
      %v9976 = vadd.f32 0.0, %v9975
      %v9977 = vpop.f32.mrb[0].mxu0
      %v9978 = vpop.f32.mrb[0].mxu0
      %v9979 = vadd.f32 0.0, %v9978
      %v9980 = vpop.f32.mrb[0].mxu0
      %9981 = vmatprep.mubr.bf16.mxu0 0
      %9982 = vmatmul.mubr.bf16.gmra.mrb[0].mxu0 %v9923
      %v9983 = vpop.f32.mrb[0].mxu0
      %v9984 = vadd.f32 0.0, %v9983
      %v9985 = vpop.f32.mrb[0].mxu0
      %v9986 = vpop.f32.mrb[0].mxu0
      %v9987 = vadd.f32 0.0, %v9986
      %v9988 = vpop.f32.mrb[0].mxu0
      %9989 = vdwg.mxu0
      %v9998 = vunpack.c.l.b16 %v9753
      %v9999 = vunpack.c.l.b16 %v9754
      %v10000 = vunpack.c.l.b16 %v9755
      %v10001 = vunpack.c.l.b16 %v9756
      %v10002 = vunpack.c.l.b16 %v9757
      %v10003 = vunpack.c.l.b16 %v9758
      %v10004 = vunpack.c.l.b16 %v9759
      %v10005 = vunpack.c.l.b16 %v9760
      %v10006 = vpack.c.b16 %v9999, %v9998
      %v10007 = vpack.c.b16 %v10001, %v10000
      %v10008 = vpack.c.b16 %v10003, %v10002
      %v10009 = vpack.c.b16 %v10005, %v10004
      %v10014 = vunpack.c.l.b16 %v9761
      %v10015 = vunpack.c.l.b16 %v9762
      %v10016 = vunpack.c.l.b16 %v9763
      %v10017 = vunpack.c.l.b16 %v9764
      %v10018 = vpack.c.b16 %v10015, %v10014
      %v10019 = vpack.c.b16 %v10017, %v10016
      %v10023 = vsel %vm830, %v10006, 0
      %v10026 = vsel %vm830, %v10007, 0
      %v10029 = vsel %vm830, %v10008, 0
      %v10032 = vsel %vm830, %v10009, 0
      %10034 = vmatprep.subr.bf16.mxu0 0
      %10035 = vmatpush1.bf16.msra.mxu0 %v10018
      %10036 = vmatprep.subr.bf16.mxu0 0
      %10037 = vmatpush1.bf16.msra.mxu0 %v10019
      %10038 = vmatprep.subr.bf16.mxu0 0
      %10039 = vmatpush1.bf16.msra.mxu0 0
      %10040 = vmatprep.subr.bf16.mxu0 0
      %10041 = vmatpush1.bf16.msra.mxu0 0
      %10042 = vmatprep.subr.bf16.mxu0 0
      %10043 = vmatpush1.bf16.msra.mxu0 0
      %10044 = vmatprep.subr.bf16.mxu0 0
      %10045 = vmatpush1.bf16.msra.mxu0 0
      %10046 = vmatprep.subr.bf16.mxu0 0
      %10047 = vmatpush1.bf16.msra.mxu0 0
      %10048 = vmatprep.subr.bf16.mxu0 0
      %10049 = vmatpush1.bf16.msra.mxu0 0
      %10050 = vmatprep.subr.bf16.mxu0 0
      %10051 = vmatpush1.bf16.msra.mxu0 0
      %10052 = vmatprep.subr.bf16.mxu0 0
      %10053 = vmatpush1.bf16.msra.mxu0 0
      %10054 = vmatprep.subr.bf16.mxu0 0
      %10055 = vmatpush1.bf16.msra.mxu0 0
      %10056 = vmatprep.subr.bf16.mxu0 0
      %10057 = vmatpush1.bf16.msra.mxu0 0
      %10058 = vmatprep.subr.bf16.mxu0 0
      %10059 = vmatpush1.bf16.msra.mxu0 0
      %10060 = vmatprep.subr.bf16.mxu0 0
      %10061 = vmatpush1.bf16.msra.mxu0 0
      %10062 = vmatprep.subr.bf16.mxu0 0
      %10063 = vmatpush1.bf16.msra.mxu0 0
      %10064 = vmatprep.subr.bf16.mxu0 0
      %10065 = vmatpush1.bf16.msra.mxu0 0
      %10066 = vmatprep.mubr.bf16.mxu0 0
      %10067 = vmatmul.mubr.bf16.gmra.mrb[0].mxu0 %v10023
      %v10068 = vpop.f32.mrb[0].mxu0
      %v10069 = vadd.f32 %v9960, %v10068
      %v10070 = vpop.f32.mrb[0].mxu0
      %v10071 = vpop.f32.mrb[0].mxu0
      %v10072 = vadd.f32 %v9963, %v10071
      %v10073 = vpop.f32.mrb[0].mxu0
      %10074 = vmatprep.mubr.bf16.mxu0 0
      %10075 = vmatmul.mubr.bf16.gmra.mrb[0].mxu0 %v10026
      %v10076 = vpop.f32.mrb[0].mxu0
      %v10077 = vadd.f32 %v9968, %v10076
      %v10078 = vpop.f32.mrb[0].mxu0
      %v10079 = vpop.f32.mrb[0].mxu0
      %v10080 = vadd.f32 %v9971, %v10079
      %v10081 = vpop.f32.mrb[0].mxu0
      %10082 = vmatprep.mubr.bf16.mxu0 0
      %10083 = vmatmul.mubr.bf16.gmra.mrb[0].mxu0 %v10029
      %v10084 = vpop.f32.mrb[0].mxu0
      %v10085 = vadd.f32 %v9976, %v10084
      %v10086 = vpop.f32.mrb[0].mxu0
      %v10087 = vpop.f32.mrb[0].mxu0
      %v10088 = vadd.f32 %v9979, %v10087
      %v10089 = vpop.f32.mrb[0].mxu0
      %10090 = vmatprep.mubr.bf16.mxu0 0
      %10091 = vmatmul.mubr.bf16.gmra.mrb[0].mxu0 %v10032
      %v10092 = vpop.f32.mrb[0].mxu0
      %v10093 = vadd.f32 %v9984, %v10092
      %v10094 = vpop.f32.mrb[0].mxu0
      %v10095 = vpop.f32.mrb[0].mxu0
      %v10096 = vadd.f32 %v9987, %v10095
      %v10097 = vpop.f32.mrb[0].mxu0
      %10098 = vdwg.mxu0
      %v10099 = vld [vmem:[#allocation6] sm:$0xe]
      %v10100 = vld [vmem:[#allocation6 + $0x8] sm:$0xe]
      %v10101 = vld [vmem:[#allocation6 + $0x10] sm:$0xe]
      %v10102 = vld [vmem:[#allocation6 + $0x18] sm:$0xe]
      %v10103 = vld [vmem:[#allocation6 + $0x20] sm:$0xe]
      %v10104 = vld [vmem:[#allocation6 + $0x28] sm:$0xe]
      %v10105 = vld [vmem:[#allocation6 + $0x30] sm:$0xe]
      %v10106 = vld [vmem:[#allocation6 + $0x38] sm:$0xe]
      %v10123 = vrot.slane %v10099, 5
      %v10124 = vrot.slane %v10123, 4
      %v10125 = vrot.slane %v9765, 5
      %v10126 = vsel %vm1439, %v10124, %v10125
      %v10127 = vrot.slane %v10100, 5
      %v10128 = vrot.slane %v10127, 4
      %v10129 = vrot.slane %v9766, 5
      %v10130 = vsel %vm1439, %v10128, %v10129
      %v10131 = vrot.slane %v10101, 5
      %v10132 = vrot.slane %v10131, 4
      %v10133 = vrot.slane %v9767, 5
      %v10134 = vsel %vm1439, %v10132, %v10133
      %v10135 = vrot.slane %v10102, 5
      %v10136 = vrot.slane %v10135, 4
      %v10137 = vrot.slane %v9768, 5
      %v10138 = vsel %vm1439, %v10136, %v10137
      %v10139 = vrot.slane %v10103, 5
      %v10140 = vrot.slane %v10139, 4
      %v10141 = vrot.slane %v9769, 5
      %v10142 = vsel %vm1439, %v10140, %v10141
      %v10143 = vrot.slane %v10104, 5
      %v10144 = vrot.slane %v10143, 4
      %v10145 = vrot.slane %v9770, 5
      %v10146 = vsel %vm1439, %v10144, %v10145
      %v10147 = vrot.slane %v10105, 5
      %v10148 = vrot.slane %v10147, 4
      %v10149 = vrot.slane %v9771, 5
      %v10150 = vsel %vm1439, %v10148, %v10149
      %v10151 = vrot.slane %v10106, 5
      %v10152 = vrot.slane %v10151, 4
      %v10153 = vrot.slane %v9772, 5
      %v10154 = vsel %vm1439, %v10152, %v10153
      %v10155 = vld [vmem:[%s11 + $0x20] sm:$0xf]
      %v10156 = vld [vmem:[%s11 + $0x24] sm:$0xf]
      %v10157 = vld [vmem:[%s11 + $0x28] sm:$0xf]
      %v10158 = vld [vmem:[%s11 + $0x2c] sm:$0xf]
      %v10159 = vunpack.c.l.b16 %v10126
      %v10160 = vunpack.c.l.b16 %v10130
      %v10161 = vunpack.c.l.b16 %v10134
      %v10162 = vunpack.c.l.b16 %v10138
      %v10163 = vunpack.c.l.b16 %v10142
      %v10164 = vunpack.c.l.b16 %v10146
      %v10165 = vunpack.c.l.b16 %v10150
      %v10166 = vunpack.c.l.b16 %v10154
      %v10167 = vpack.c.b16 %v10160, %v10159
      %v10168 = vpack.c.b16 %v10162, %v10161
      %v10169 = vpack.c.b16 %v10164, %v10163
      %v10170 = vpack.c.b16 %v10166, %v10165
      %v10175 = vunpack.c.l.b16 %v10155
      %v10176 = vunpack.c.l.b16 %v10156
      %v10177 = vunpack.c.l.b16 %v10157
      %v10178 = vunpack.c.l.b16 %v10158
      %v10179 = vpack.c.b16 %v10176, %v10175
      %v10180 = vpack.c.b16 %v10178, %v10177
      %v10184 = vsel %vm830, %v10167, 0
      %v10187 = vsel %vm830, %v10168, 0
      %v10190 = vsel %vm830, %v10169, 0
      %v10193 = vsel %vm830, %v10170, 0
      %10195 = vmatprep.subr.bf16.mxu0 0
      %10196 = vmatpush1.bf16.msra.mxu0 %v10179
      %10197 = vmatprep.subr.bf16.mxu0 0
      %10198 = vmatpush1.bf16.msra.mxu0 %v10180
      %10199 = vmatprep.subr.bf16.mxu0 0
      %10200 = vmatpush1.bf16.msra.mxu0 0
      %10201 = vmatprep.subr.bf16.mxu0 0
      %10202 = vmatpush1.bf16.msra.mxu0 0
      %10203 = vmatprep.subr.bf16.mxu0 0
      %10204 = vmatpush1.bf16.msra.mxu0 0
      %10205 = vmatprep.subr.bf16.mxu0 0
      %10206 = vmatpush1.bf16.msra.mxu0 0
      %10207 = vmatprep.subr.bf16.mxu0 0
      %10208 = vmatpush1.bf16.msra.mxu0 0
      %10209 = vmatprep.subr.bf16.mxu0 0
      %10210 = vmatpush1.bf16.msra.mxu0 0
      %10211 = vmatprep.subr.bf16.mxu0 0
      %10212 = vmatpush1.bf16.msra.mxu0 0
      %10213 = vmatprep.subr.bf16.mxu0 0
      %10214 = vmatpush1.bf16.msra.mxu0 0
      %10215 = vmatprep.subr.bf16.mxu0 0
      %10216 = vmatpush1.bf16.msra.mxu0 0
      %10217 = vmatprep.subr.bf16.mxu0 0
      %10218 = vmatpush1.bf16.msra.mxu0 0
      %10219 = vmatprep.subr.bf16.mxu0 0
      %10220 = vmatpush1.bf16.msra.mxu0 0
      %10221 = vmatprep.subr.bf16.mxu0 0
      %10222 = vmatpush1.bf16.msra.mxu0 0
      %10223 = vmatprep.subr.bf16.mxu0 0
      %10224 = vmatpush1.bf16.msra.mxu0 0
      %10225 = vmatprep.subr.bf16.mxu0 0
      %10226 = vmatpush1.bf16.msra.mxu0 0
      %10227 = vmatprep.mubr.bf16.mxu0 0
      %10228 = vmatmul.mubr.bf16.gmra.mrb[0].mxu0 %v10184
      %v10229 = vpop.f32.mrb[0].mxu0
      %v10230 = vadd.f32 0.0, %v10229
      %v10231 = vpop.f32.mrb[0].mxu0
      %v10232 = vpop.f32.mrb[0].mxu0
      %v10233 = vadd.f32 0.0, %v10232
      %v10234 = vpop.f32.mrb[0].mxu0
      %10235 = vmatprep.mubr.bf16.mxu0 0
      %10236 = vmatmul.mubr.bf16.gmra.mrb[0].mxu0 %v10187
      %v10237 = vpop.f32.mrb[0].mxu0
      %v10238 = vadd.f32 0.0, %v10237
      %v10239 = vpop.f32.mrb[0].mxu0
      %v10240 = vpop.f32.mrb[0].mxu0
      %v10241 = vadd.f32 0.0, %v10240
      %v10242 = vpop.f32.mrb[0].mxu0
      %10243 = vmatprep.mubr.bf16.mxu0 0
      %10244 = vmatmul.mubr.bf16.gmra.mrb[0].mxu0 %v10190
      %v10245 = vpop.f32.mrb[0].mxu0
      %v10246 = vadd.f32 0.0, %v10245
      %v10247 = vpop.f32.mrb[0].mxu0
      %v10248 = vpop.f32.mrb[0].mxu0
      %v10249 = vadd.f32 0.0, %v10248
      %v10250 = vpop.f32.mrb[0].mxu0
      %10251 = vmatprep.mubr.bf16.mxu0 0
      %10252 = vmatmul.mubr.bf16.gmra.mrb[0].mxu0 %v10193
      %v10253 = vpop.f32.mrb[0].mxu0
      %v10254 = vadd.f32 0.0, %v10253
      %v10255 = vpop.f32.mrb[0].mxu0
      %v10256 = vpop.f32.mrb[0].mxu0
      %v10257 = vadd.f32 0.0, %v10256
      %v10258 = vpop.f32.mrb[0].mxu0
      %10259 = vdwg.mxu0
      %v10260 = vadd.f32 %v10069, %v10230
      %v10261 = vadd.f32 %v10072, %v10233
      %v10262 = vadd.f32 %v10077, %v10238
      %v10263 = vadd.f32 %v10080, %v10241
      %v10264 = vadd.f32 %v10085, %v10246
      %v10265 = vadd.f32 %v10088, %v10249
      %v10266 = vadd.f32 %v10093, %v10254
      %v10267 = vadd.f32 %v10096, %v10257
      %v10268 = vld [vmem:[%s9704] sm:$0xf]
      %v10269 = vld [vmem:[%s9704 + $0x8] sm:$0xf]
      %v10270 = vld [vmem:[%s9704 + $0x10] sm:$0xf]
      %v10271 = vld [vmem:[%s9704 + $0x18] sm:$0xf]
      %v10272 = vld [vmem:[%s9704 + $0x20] sm:$0xf]
      %v10273 = vld [vmem:[%s9704 + $0x28] sm:$0xf]
      %v10274 = vld [vmem:[%s9704 + $0x30] sm:$0xf]
      %v10275 = vld [vmem:[%s9704 + $0x38] sm:$0xf]
      %v10276 = vld [vmem:[%s11 + $0x30] sm:$0xf]
      %v10277 = vld [vmem:[%s11 + $0x34] sm:$0xf]
      %v10278 = vld [vmem:[%s11 + $0x38] sm:$0xf]
      %v10279 = vld [vmem:[%s11 + $0x3c] sm:$0xf]
      %v10288 = vunpack.c.l.b16 %v10268
      %v10289 = vunpack.c.l.b16 %v10269
      %v10290 = vunpack.c.l.b16 %v10270
      %v10291 = vunpack.c.l.b16 %v10271
      %v10292 = vunpack.c.l.b16 %v10272
      %v10293 = vunpack.c.l.b16 %v10273
      %v10294 = vunpack.c.l.b16 %v10274
      %v10295 = vunpack.c.l.b16 %v10275
      %v10296 = vpack.c.b16 %v10289, %v10288
      %v10297 = vpack.c.b16 %v10291, %v10290
      %v10298 = vpack.c.b16 %v10293, %v10292
      %v10299 = vpack.c.b16 %v10295, %v10294
      %v10304 = vunpack.c.l.b16 %v10276
      %v10305 = vunpack.c.l.b16 %v10277
      %v10306 = vunpack.c.l.b16 %v10278
      %v10307 = vunpack.c.l.b16 %v10279
      %v10308 = vpack.c.b16 %v10305, %v10304
      %v10309 = vpack.c.b16 %v10307, %v10306
      %v10313 = vsel %vm830, %v10296, 0
      %v10316 = vsel %vm830, %v10297, 0
      %v10319 = vsel %vm830, %v10298, 0
      %v10322 = vsel %vm830, %v10299, 0
      %10324 = vmatprep.subr.bf16.mxu0 0
      %10325 = vmatpush1.bf16.msra.mxu0 %v10308
      %10326 = vmatprep.subr.bf16.mxu0 0
      %10327 = vmatpush1.bf16.msra.mxu0 %v10309
      %10328 = vmatprep.subr.bf16.mxu0 0
      %10329 = vmatpush1.bf16.msra.mxu0 0
      %10330 = vmatprep.subr.bf16.mxu0 0
      %10331 = vmatpush1.bf16.msra.mxu0 0
      %10332 = vmatprep.subr.bf16.mxu0 0
      %10333 = vmatpush1.bf16.msra.mxu0 0
      %10334 = vmatprep.subr.bf16.mxu0 0
      %10335 = vmatpush1.bf16.msra.mxu0 0
      %10336 = vmatprep.subr.bf16.mxu0 0
      %10337 = vmatpush1.bf16.msra.mxu0 0
      %10338 = vmatprep.subr.bf16.mxu0 0
      %10339 = vmatpush1.bf16.msra.mxu0 0
      %10340 = vmatprep.subr.bf16.mxu0 0
      %10341 = vmatpush1.bf16.msra.mxu0 0
      %10342 = vmatprep.subr.bf16.mxu0 0
      %10343 = vmatpush1.bf16.msra.mxu0 0
      %10344 = vmatprep.subr.bf16.mxu0 0
      %10345 = vmatpush1.bf16.msra.mxu0 0
      %10346 = vmatprep.subr.bf16.mxu0 0
      %10347 = vmatpush1.bf16.msra.mxu0 0
      %10348 = vmatprep.subr.bf16.mxu0 0
      %10349 = vmatpush1.bf16.msra.mxu0 0
      %10350 = vmatprep.subr.bf16.mxu0 0
      %10351 = vmatpush1.bf16.msra.mxu0 0
      %10352 = vmatprep.subr.bf16.mxu0 0
      %10353 = vmatpush1.bf16.msra.mxu0 0
      %10354 = vmatprep.subr.bf16.mxu0 0
      %10355 = vmatpush1.bf16.msra.mxu0 0
      %10356 = vmatprep.mubr.bf16.mxu0 0
      %10357 = vmatmul.mubr.bf16.gmra.mrb[0].mxu0 %v10313
      %v10358 = vpop.f32.mrb[0].mxu0
      %v10359 = vadd.f32 0.0, %v10358
      %v10360 = vpop.f32.mrb[0].mxu0
      %v10361 = vpop.f32.mrb[0].mxu0
      %v10362 = vadd.f32 0.0, %v10361
      %v10363 = vpop.f32.mrb[0].mxu0
      %10364 = vmatprep.mubr.bf16.mxu0 0
      %10365 = vmatmul.mubr.bf16.gmra.mrb[0].mxu0 %v10316
      %v10366 = vpop.f32.mrb[0].mxu0
      %v10367 = vadd.f32 0.0, %v10366
      %v10368 = vpop.f32.mrb[0].mxu0
      %v10369 = vpop.f32.mrb[0].mxu0
      %v10370 = vadd.f32 0.0, %v10369
      %v10371 = vpop.f32.mrb[0].mxu0
      %10372 = vmatprep.mubr.bf16.mxu0 0
      %10373 = vmatmul.mubr.bf16.gmra.mrb[0].mxu0 %v10319
      %v10374 = vpop.f32.mrb[0].mxu0
      %v10375 = vadd.f32 0.0, %v10374
      %v10376 = vpop.f32.mrb[0].mxu0
      %v10377 = vpop.f32.mrb[0].mxu0
      %v10378 = vadd.f32 0.0, %v10377
      %v10379 = vpop.f32.mrb[0].mxu0
      %10380 = vmatprep.mubr.bf16.mxu0 0
      %10381 = vmatmul.mubr.bf16.gmra.mrb[0].mxu0 %v10322
      %v10382 = vpop.f32.mrb[0].mxu0
      %v10383 = vadd.f32 0.0, %v10382
      %v10384 = vpop.f32.mrb[0].mxu0
      %v10385 = vpop.f32.mrb[0].mxu0
      %v10386 = vadd.f32 0.0, %v10385
      %v10387 = vpop.f32.mrb[0].mxu0
      %10388 = vdwg.mxu0
      %v10389 = vadd.f32 %v10260, %v10359
      %v10390 = vadd.f32 %v10261, %v10362
      %v10391 = vadd.f32 %v10262, %v10367
      %v10392 = vadd.f32 %v10263, %v10370
      %v10393 = vadd.f32 %v10264, %v10375
      %v10394 = vadd.f32 %v10265, %v10378
      %v10395 = vadd.f32 %v10266, %v10383
      %v10396 = vadd.f32 %v10267, %v10386
      %v10397 = vld [vmem:[%s9704] sm:$0xf]
      %v10398 = vld [vmem:[%s9704 + $0x4] sm:$0x1]
      %v10399 = vld [vmem:[%s9704 + $0x8] sm:$0xf]
      %v10400 = vld [vmem:[%s9704 + $0xc] sm:$0x1]
      %v10401 = vld [vmem:[%s9704 + $0x10] sm:$0xf]
      %v10402 = vld [vmem:[%s9704 + $0x14] sm:$0x1]
      %v10403 = vld [vmem:[%s9704 + $0x18] sm:$0xf]
      %v10404 = vld [vmem:[%s9704 + $0x1c] sm:$0x1]
      %v10405 = vld [vmem:[%s9704 + $0x20] sm:$0xf]
      %v10406 = vld [vmem:[%s9704 + $0x24] sm:$0x1]
      %v10407 = vld [vmem:[%s9704 + $0x28] sm:$0xf]
      %v10408 = vld [vmem:[%s9704 + $0x2c] sm:$0x1]
      %v10409 = vld [vmem:[%s9704 + $0x30] sm:$0xf]
      %v10410 = vld [vmem:[%s9704 + $0x34] sm:$0x1]
      %v10411 = vld [vmem:[%s9704 + $0x38] sm:$0xf]
      %v10412 = vld [vmem:[%s9704 + $0x3c] sm:$0x1]
      %v10414 = vshrl.u32 %v10397, 16
      %v10416 = vrot.slane %v10414, 4
      %v10417 = vshll.u32 %v10397, 16
      %v10419 = vrot.slane %v10417, 5
      %v10420 = vor.u32 %v10416, %v10419
      %v10421 = vrot.slane %v10420, 4
      %v10423 = vshll.u32 %v10398, 16
      %v10425 = vrot.slane %v10423, 5
      %v10426 = vsel %vm1099, %v10421, %v10425
      %v10428 = vshrl.u32 %v10399, 16
      %v10430 = vrot.slane %v10428, 4
      %v10431 = vshll.u32 %v10399, 16
      %v10433 = vrot.slane %v10431, 5
      %v10434 = vor.u32 %v10430, %v10433
      %v10435 = vrot.slane %v10434, 4
      %v10437 = vshll.u32 %v10400, 16
      %v10439 = vrot.slane %v10437, 5
      %v10440 = vsel %vm1099, %v10435, %v10439
      %v10442 = vshrl.u32 %v10401, 16
      %v10444 = vrot.slane %v10442, 4
      %v10445 = vshll.u32 %v10401, 16
      %v10447 = vrot.slane %v10445, 5
      %v10448 = vor.u32 %v10444, %v10447
      %v10449 = vrot.slane %v10448, 4
      %v10451 = vshll.u32 %v10402, 16
      %v10453 = vrot.slane %v10451, 5
      %v10454 = vsel %vm1099, %v10449, %v10453
      %v10456 = vshrl.u32 %v10403, 16
      %v10458 = vrot.slane %v10456, 4
      %v10459 = vshll.u32 %v10403, 16
      %v10461 = vrot.slane %v10459, 5
      %v10462 = vor.u32 %v10458, %v10461
      %v10463 = vrot.slane %v10462, 4
      %v10465 = vshll.u32 %v10404, 16
      %v10467 = vrot.slane %v10465, 5
      %v10468 = vsel %vm1099, %v10463, %v10467
      %v10470 = vshrl.u32 %v10405, 16
      %v10472 = vrot.slane %v10470, 4
      %v10473 = vshll.u32 %v10405, 16
      %v10475 = vrot.slane %v10473, 5
      %v10476 = vor.u32 %v10472, %v10475
      %v10477 = vrot.slane %v10476, 4
      %v10479 = vshll.u32 %v10406, 16
      %v10481 = vrot.slane %v10479, 5
      %v10482 = vsel %vm1099, %v10477, %v10481
      %v10484 = vshrl.u32 %v10407, 16
      %v10486 = vrot.slane %v10484, 4
      %v10487 = vshll.u32 %v10407, 16
      %v10489 = vrot.slane %v10487, 5
      %v10490 = vor.u32 %v10486, %v10489
      %v10491 = vrot.slane %v10490, 4
      %v10493 = vshll.u32 %v10408, 16
      %v10495 = vrot.slane %v10493, 5
      %v10496 = vsel %vm1099, %v10491, %v10495
      %v10498 = vshrl.u32 %v10409, 16
      %v10500 = vrot.slane %v10498, 4
      %v10501 = vshll.u32 %v10409, 16
      %v10503 = vrot.slane %v10501, 5
      %v10504 = vor.u32 %v10500, %v10503
      %v10505 = vrot.slane %v10504, 4
      %v10507 = vshll.u32 %v10410, 16
      %v10509 = vrot.slane %v10507, 5
      %v10510 = vsel %vm1099, %v10505, %v10509
      %v10512 = vshrl.u32 %v10411, 16
      %v10514 = vrot.slane %v10512, 4
      %v10515 = vshll.u32 %v10411, 16
      %v10517 = vrot.slane %v10515, 5
      %v10518 = vor.u32 %v10514, %v10517
      %v10519 = vrot.slane %v10518, 4
      %v10521 = vshll.u32 %v10412, 16
      %v10523 = vrot.slane %v10521, 5
      %v10524 = vsel %vm1099, %v10519, %v10523
      %v10525 = vld [vmem:[%s11 + $0x40] sm:$0xf]
      %v10526 = vld [vmem:[%s11 + $0x44] sm:$0xf]
      %v10527 = vld [vmem:[%s11 + $0x48] sm:$0xf]
      %v10528 = vld [vmem:[%s11 + $0x4c] sm:$0xf]
      %v10529 = vunpack.c.l.b16 %v10426
      %v10530 = vunpack.c.l.b16 %v10440
      %v10531 = vunpack.c.l.b16 %v10454
      %v10532 = vunpack.c.l.b16 %v10468
      %v10533 = vunpack.c.l.b16 %v10482
      %v10534 = vunpack.c.l.b16 %v10496
      %v10535 = vunpack.c.l.b16 %v10510
      %v10536 = vunpack.c.l.b16 %v10524
      %v10537 = vpack.c.b16 %v10530, %v10529
      %v10538 = vpack.c.b16 %v10532, %v10531
      %v10539 = vpack.c.b16 %v10534, %v10533
      %v10540 = vpack.c.b16 %v10536, %v10535
      %v10545 = vunpack.c.l.b16 %v10525
      %v10546 = vunpack.c.l.b16 %v10526
      %v10547 = vunpack.c.l.b16 %v10527
      %v10548 = vunpack.c.l.b16 %v10528
      %v10549 = vpack.c.b16 %v10546, %v10545
      %v10550 = vpack.c.b16 %v10548, %v10547
      %v10554 = vsel %vm830, %v10537, 0
      %v10557 = vsel %vm830, %v10538, 0
      %v10560 = vsel %vm830, %v10539, 0
      %v10563 = vsel %vm830, %v10540, 0
      %10565 = vmatprep.subr.bf16.mxu0 0
      %10566 = vmatpush1.bf16.msra.mxu0 %v10549
      %10567 = vmatprep.subr.bf16.mxu0 0
      %10568 = vmatpush1.bf16.msra.mxu0 %v10550
      %10569 = vmatprep.subr.bf16.mxu0 0
      %10570 = vmatpush1.bf16.msra.mxu0 0
      %10571 = vmatprep.subr.bf16.mxu0 0
      %10572 = vmatpush1.bf16.msra.mxu0 0
      %10573 = vmatprep.subr.bf16.mxu0 0
      %10574 = vmatpush1.bf16.msra.mxu0 0
      %10575 = vmatprep.subr.bf16.mxu0 0
      %10576 = vmatpush1.bf16.msra.mxu0 0
      %10577 = vmatprep.subr.bf16.mxu0 0
      %10578 = vmatpush1.bf16.msra.mxu0 0
      %10579 = vmatprep.subr.bf16.mxu0 0
      %10580 = vmatpush1.bf16.msra.mxu0 0
      %10581 = vmatprep.subr.bf16.mxu0 0
      %10582 = vmatpush1.bf16.msra.mxu0 0
      %10583 = vmatprep.subr.bf16.mxu0 0
      %10584 = vmatpush1.bf16.msra.mxu0 0
      %10585 = vmatprep.subr.bf16.mxu0 0
      %10586 = vmatpush1.bf16.msra.mxu0 0
      %10587 = vmatprep.subr.bf16.mxu0 0
      %10588 = vmatpush1.bf16.msra.mxu0 0
      %10589 = vmatprep.subr.bf16.mxu0 0
      %10590 = vmatpush1.bf16.msra.mxu0 0
      %10591 = vmatprep.subr.bf16.mxu0 0
      %10592 = vmatpush1.bf16.msra.mxu0 0
      %10593 = vmatprep.subr.bf16.mxu0 0
      %10594 = vmatpush1.bf16.msra.mxu0 0
      %10595 = vmatprep.subr.bf16.mxu0 0
      %10596 = vmatpush1.bf16.msra.mxu0 0
      %10597 = vmatprep.mubr.bf16.mxu0 0
      %10598 = vmatmul.mubr.bf16.gmra.mrb[0].mxu0 %v10554
      %v10599 = vpop.f32.mrb[0].mxu0
      %v10600 = vadd.f32 0.0, %v10599
      %v10601 = vpop.f32.mrb[0].mxu0
      %v10602 = vpop.f32.mrb[0].mxu0
      %v10603 = vadd.f32 0.0, %v10602
      %v10604 = vpop.f32.mrb[0].mxu0
      %10605 = vmatprep.mubr.bf16.mxu0 0
      %10606 = vmatmul.mubr.bf16.gmra.mrb[0].mxu0 %v10557
      %v10607 = vpop.f32.mrb[0].mxu0
      %v10608 = vadd.f32 0.0, %v10607
      %v10609 = vpop.f32.mrb[0].mxu0
      %v10610 = vpop.f32.mrb[0].mxu0
      %v10611 = vadd.f32 0.0, %v10610
      %v10612 = vpop.f32.mrb[0].mxu0
      %10613 = vmatprep.mubr.bf16.mxu0 0
      %10614 = vmatmul.mubr.bf16.gmra.mrb[0].mxu0 %v10560
      %v10615 = vpop.f32.mrb[0].mxu0
      %v10616 = vadd.f32 0.0, %v10615
      %v10617 = vpop.f32.mrb[0].mxu0
      %v10618 = vpop.f32.mrb[0].mxu0
      %v10619 = vadd.f32 0.0, %v10618
      %v10620 = vpop.f32.mrb[0].mxu0
      %10621 = vmatprep.mubr.bf16.mxu0 0
      %10622 = vmatmul.mubr.bf16.gmra.mrb[0].mxu0 %v10563
      %v10623 = vpop.f32.mrb[0].mxu0
      %v10624 = vadd.f32 0.0, %v10623
      %v10625 = vpop.f32.mrb[0].mxu0
      %v10626 = vpop.f32.mrb[0].mxu0
      %v10627 = vadd.f32 0.0, %v10626
      %v10628 = vpop.f32.mrb[0].mxu0
      %10629 = vdwg.mxu0
      %v10630 = vadd.f32 %v10389, %v10600
      %v10631 = vadd.f32 %v10390, %v10603
      %v10632 = vadd.f32 %v10391, %v10608
      %v10633 = vadd.f32 %v10392, %v10611
      %v10634 = vadd.f32 %v10393, %v10616
      %v10635 = vadd.f32 %v10394, %v10619
      %v10636 = vadd.f32 %v10395, %v10624
      %v10637 = vadd.f32 %v10396, %v10627
      %v10638 = vld [vmem:[%s9704] sm:$0xe]
      %v10639 = vld [vmem:[%s9704 + $0x8] sm:$0xe]
      %v10640 = vld [vmem:[%s9704 + $0x10] sm:$0xe]
      %v10641 = vld [vmem:[%s9704 + $0x18] sm:$0xe]
      %v10642 = vld [vmem:[%s9704 + $0x20] sm:$0xe]
      %v10643 = vld [vmem:[%s9704 + $0x28] sm:$0xe]
      %v10644 = vld [vmem:[%s9704 + $0x30] sm:$0xe]
      %v10645 = vld [vmem:[%s9704 + $0x38] sm:$0xe]
      %v10662 = vrot.slane %v10638, 5
      %v10663 = vrot.slane %v10662, 4
      %v10664 = vrot.slane %v10398, 5
      %v10665 = vsel %vm1439, %v10663, %v10664
      %v10666 = vrot.slane %v10639, 5
      %v10667 = vrot.slane %v10666, 4
      %v10668 = vrot.slane %v10400, 5
      %v10669 = vsel %vm1439, %v10667, %v10668
      %v10670 = vrot.slane %v10640, 5
      %v10671 = vrot.slane %v10670, 4
      %v10672 = vrot.slane %v10402, 5
      %v10673 = vsel %vm1439, %v10671, %v10672
      %v10674 = vrot.slane %v10641, 5
      %v10675 = vrot.slane %v10674, 4
      %v10676 = vrot.slane %v10404, 5
      %v10677 = vsel %vm1439, %v10675, %v10676
      %v10678 = vrot.slane %v10642, 5
      %v10679 = vrot.slane %v10678, 4
      %v10680 = vrot.slane %v10406, 5
      %v10681 = vsel %vm1439, %v10679, %v10680
      %v10682 = vrot.slane %v10643, 5
      %v10683 = vrot.slane %v10682, 4
      %v10684 = vrot.slane %v10408, 5
      %v10685 = vsel %vm1439, %v10683, %v10684
      %v10686 = vrot.slane %v10644, 5
      %v10687 = vrot.slane %v10686, 4
      %v10688 = vrot.slane %v10410, 5
      %v10689 = vsel %vm1439, %v10687, %v10688
      %v10690 = vrot.slane %v10645, 5
      %v10691 = vrot.slane %v10690, 4
      %v10692 = vrot.slane %v10412, 5
      %v10693 = vsel %vm1439, %v10691, %v10692
      %v10694 = vld [vmem:[%s11 + $0x50] sm:$0xf]
      %v10695 = vld [vmem:[%s11 + $0x54] sm:$0xf]
      %v10696 = vld [vmem:[%s11 + $0x58] sm:$0xf]
      %v10697 = vld [vmem:[%s11 + $0x5c] sm:$0xf]
      %v10698 = vunpack.c.l.b16 %v10665
      %v10699 = vunpack.c.l.b16 %v10669
      %v10700 = vunpack.c.l.b16 %v10673
      %v10701 = vunpack.c.l.b16 %v10677
      %v10702 = vunpack.c.l.b16 %v10681
      %v10703 = vunpack.c.l.b16 %v10685
      %v10704 = vunpack.c.l.b16 %v10689
      %v10705 = vunpack.c.l.b16 %v10693
      %v10706 = vpack.c.b16 %v10699, %v10698
      %v10707 = vpack.c.b16 %v10701, %v10700
      %v10708 = vpack.c.b16 %v10703, %v10702
      %v10709 = vpack.c.b16 %v10705, %v10704
      %v10714 = vunpack.c.l.b16 %v10694
      %v10715 = vunpack.c.l.b16 %v10695
      %v10716 = vunpack.c.l.b16 %v10696
      %v10717 = vunpack.c.l.b16 %v10697
      %v10718 = vpack.c.b16 %v10715, %v10714
      %v10719 = vpack.c.b16 %v10717, %v10716
      %v10723 = vsel %vm830, %v10706, 0
      %v10726 = vsel %vm830, %v10707, 0
      %v10729 = vsel %vm830, %v10708, 0
      %v10732 = vsel %vm830, %v10709, 0
      %10734 = vmatprep.subr.bf16.mxu0 0
      %10735 = vmatpush1.bf16.msra.mxu0 %v10718
      %10736 = vmatprep.subr.bf16.mxu0 0
      %10737 = vmatpush1.bf16.msra.mxu0 %v10719
      %10738 = vmatprep.subr.bf16.mxu0 0
      %10739 = vmatpush1.bf16.msra.mxu0 0
      %10740 = vmatprep.subr.bf16.mxu0 0
      %10741 = vmatpush1.bf16.msra.mxu0 0
      %10742 = vmatprep.subr.bf16.mxu0 0
      %10743 = vmatpush1.bf16.msra.mxu0 0
      %10744 = vmatprep.subr.bf16.mxu0 0
      %10745 = vmatpush1.bf16.msra.mxu0 0
      %10746 = vmatprep.subr.bf16.mxu0 0
      %10747 = vmatpush1.bf16.msra.mxu0 0
      %10748 = vmatprep.subr.bf16.mxu0 0
      %10749 = vmatpush1.bf16.msra.mxu0 0
      %10750 = vmatprep.subr.bf16.mxu0 0
      %10751 = vmatpush1.bf16.msra.mxu0 0
      %10752 = vmatprep.subr.bf16.mxu0 0
      %10753 = vmatpush1.bf16.msra.mxu0 0
      %10754 = vmatprep.subr.bf16.mxu0 0
      %10755 = vmatpush1.bf16.msra.mxu0 0
      %10756 = vmatprep.subr.bf16.mxu0 0
      %10757 = vmatpush1.bf16.msra.mxu0 0
      %10758 = vmatprep.subr.bf16.mxu0 0
      %10759 = vmatpush1.bf16.msra.mxu0 0
      %10760 = vmatprep.subr.bf16.mxu0 0
      %10761 = vmatpush1.bf16.msra.mxu0 0
      %10762 = vmatprep.subr.bf16.mxu0 0
      %10763 = vmatpush1.bf16.msra.mxu0 0
      %10764 = vmatprep.subr.bf16.mxu0 0
      %10765 = vmatpush1.bf16.msra.mxu0 0
      %10766 = vmatprep.mubr.bf16.mxu0 0
      %10767 = vmatmul.mubr.bf16.gmra.mrb[0].mxu0 %v10723
      %v10768 = vpop.f32.mrb[0].mxu0
      %v10769 = vadd.f32 0.0, %v10768
      %v10770 = vpop.f32.mrb[0].mxu0
      %v10771 = vpop.f32.mrb[0].mxu0
      %v10772 = vadd.f32 0.0, %v10771
      %v10773 = vpop.f32.mrb[0].mxu0
      %10774 = vmatprep.mubr.bf16.mxu0 0
      %10775 = vmatmul.mubr.bf16.gmra.mrb[0].mxu0 %v10726
      %v10776 = vpop.f32.mrb[0].mxu0
      %v10777 = vadd.f32 0.0, %v10776
      %v10778 = vpop.f32.mrb[0].mxu0
      %v10779 = vpop.f32.mrb[0].mxu0
      %v10780 = vadd.f32 0.0, %v10779
      %v10781 = vpop.f32.mrb[0].mxu0
      %10782 = vmatprep.mubr.bf16.mxu0 0
      %10783 = vmatmul.mubr.bf16.gmra.mrb[0].mxu0 %v10729
      %v10784 = vpop.f32.mrb[0].mxu0
      %v10785 = vadd.f32 0.0, %v10784
      %v10786 = vpop.f32.mrb[0].mxu0
      %v10787 = vpop.f32.mrb[0].mxu0
      %v10788 = vadd.f32 0.0, %v10787
      %v10789 = vpop.f32.mrb[0].mxu0
      %10790 = vmatprep.mubr.bf16.mxu0 0
      %10791 = vmatmul.mubr.bf16.gmra.mrb[0].mxu0 %v10732
      %v10792 = vpop.f32.mrb[0].mxu0
      %v10793 = vadd.f32 0.0, %v10792
      %v10794 = vpop.f32.mrb[0].mxu0
      %v10795 = vpop.f32.mrb[0].mxu0
      %v10796 = vadd.f32 0.0, %v10795
      %v10797 = vpop.f32.mrb[0].mxu0
      %10798 = vdwg.mxu0
      %v10799 = vadd.f32 %v10630, %v10769
      %v10800 = vadd.f32 %v10631, %v10772
      %v10801 = vadd.f32 %v10632, %v10777
      %v10802 = vadd.f32 %v10633, %v10780
      %v10803 = vadd.f32 %v10634, %v10785
      %v10804 = vadd.f32 %v10635, %v10788
      %v10805 = vadd.f32 %v10636, %v10793
      %v10806 = vadd.f32 %v10637, %v10796
      %s10807 = scalar_lea.vmem [#allocation6], 16
      %v10808 = vld [vmem:[%s10807] sm:$0xf]
      %v10809 = vld [vmem:[%s10807 + $0x8] sm:$0xf]
      %v10810 = vld [vmem:[%s10807 + $0x10] sm:$0xf]
      %v10811 = vld [vmem:[%s10807 + $0x18] sm:$0xf]
      %v10812 = vld [vmem:[%s10807 + $0x20] sm:$0xf]
      %v10813 = vld [vmem:[%s10807 + $0x28] sm:$0xf]
      %v10814 = vld [vmem:[%s10807 + $0x30] sm:$0xf]
      %v10815 = vld [vmem:[%s10807 + $0x38] sm:$0xf]
      %v10816 = vld [vmem:[%s11 + $0x60] sm:$0xf]
      %v10817 = vld [vmem:[%s11 + $0x64] sm:$0xf]
      %v10818 = vld [vmem:[%s11 + $0x68] sm:$0xf]
      %v10819 = vld [vmem:[%s11 + $0x6c] sm:$0xf]
      %v10828 = vunpack.c.l.b16 %v10808
      %v10829 = vunpack.c.l.b16 %v10809
      %v10830 = vunpack.c.l.b16 %v10810
      %v10831 = vunpack.c.l.b16 %v10811
      %v10832 = vunpack.c.l.b16 %v10812
      %v10833 = vunpack.c.l.b16 %v10813
      %v10834 = vunpack.c.l.b16 %v10814
      %v10835 = vunpack.c.l.b16 %v10815
      %v10836 = vpack.c.b16 %v10829, %v10828
      %v10837 = vpack.c.b16 %v10831, %v10830
      %v10838 = vpack.c.b16 %v10833, %v10832
      %v10839 = vpack.c.b16 %v10835, %v10834
      %v10844 = vunpack.c.l.b16 %v10816
      %v10845 = vunpack.c.l.b16 %v10817
      %v10846 = vunpack.c.l.b16 %v10818
      %v10847 = vunpack.c.l.b16 %v10819
      %v10848 = vpack.c.b16 %v10845, %v10844
      %v10849 = vpack.c.b16 %v10847, %v10846
      %v10853 = vsel %vm830, %v10836, 0
      %v10856 = vsel %vm830, %v10837, 0
      %v10859 = vsel %vm830, %v10838, 0
      %v10862 = vsel %vm830, %v10839, 0
      %10864 = vmatprep.subr.bf16.mxu0 0
      %10865 = vmatpush1.bf16.msra.mxu0 %v10848
      %10866 = vmatprep.subr.bf16.mxu0 0
      %10867 = vmatpush1.bf16.msra.mxu0 %v10849
      %10868 = vmatprep.subr.bf16.mxu0 0
      %10869 = vmatpush1.bf16.msra.mxu0 0
      %10870 = vmatprep.subr.bf16.mxu0 0
      %10871 = vmatpush1.bf16.msra.mxu0 0
      %10872 = vmatprep.subr.bf16.mxu0 0
      %10873 = vmatpush1.bf16.msra.mxu0 0
      %10874 = vmatprep.subr.bf16.mxu0 0
      %10875 = vmatpush1.bf16.msra.mxu0 0
      %10876 = vmatprep.subr.bf16.mxu0 0
      %10877 = vmatpush1.bf16.msra.mxu0 0
      %10878 = vmatprep.subr.bf16.mxu0 0
      %10879 = vmatpush1.bf16.msra.mxu0 0
      %10880 = vmatprep.subr.bf16.mxu0 0
      %10881 = vmatpush1.bf16.msra.mxu0 0
      %10882 = vmatprep.subr.bf16.mxu0 0
      %10883 = vmatpush1.bf16.msra.mxu0 0
      %10884 = vmatprep.subr.bf16.mxu0 0
      %10885 = vmatpush1.bf16.msra.mxu0 0
      %10886 = vmatprep.subr.bf16.mxu0 0
      %10887 = vmatpush1.bf16.msra.mxu0 0
      %10888 = vmatprep.subr.bf16.mxu0 0
      %10889 = vmatpush1.bf16.msra.mxu0 0
      %10890 = vmatprep.subr.bf16.mxu0 0
      %10891 = vmatpush1.bf16.msra.mxu0 0
      %10892 = vmatprep.subr.bf16.mxu0 0
      %10893 = vmatpush1.bf16.msra.mxu0 0
      %10894 = vmatprep.subr.bf16.mxu0 0
      %10895 = vmatpush1.bf16.msra.mxu0 0
      %10896 = vmatprep.mubr.bf16.mxu0 0
      %10897 = vmatmul.mubr.bf16.gmra.mrb[0].mxu0 %v10853
      %v10898 = vpop.f32.mrb[0].mxu0
      %v10899 = vadd.f32 0.0, %v10898
      %v10900 = vpop.f32.mrb[0].mxu0
      %v10901 = vpop.f32.mrb[0].mxu0
      %v10902 = vadd.f32 0.0, %v10901
      %v10903 = vpop.f32.mrb[0].mxu0
      %10904 = vmatprep.mubr.bf16.mxu0 0
      %10905 = vmatmul.mubr.bf16.gmra.mrb[0].mxu0 %v10856
      %v10906 = vpop.f32.mrb[0].mxu0
      %v10907 = vadd.f32 0.0, %v10906
      %v10908 = vpop.f32.mrb[0].mxu0
      %v10909 = vpop.f32.mrb[0].mxu0
      %v10910 = vadd.f32 0.0, %v10909
      %v10911 = vpop.f32.mrb[0].mxu0
      %10912 = vmatprep.mubr.bf16.mxu0 0
      %10913 = vmatmul.mubr.bf16.gmra.mrb[0].mxu0 %v10859
      %v10914 = vpop.f32.mrb[0].mxu0
      %v10915 = vadd.f32 0.0, %v10914
      %v10916 = vpop.f32.mrb[0].mxu0
      %v10917 = vpop.f32.mrb[0].mxu0
      %v10918 = vadd.f32 0.0, %v10917
      %v10919 = vpop.f32.mrb[0].mxu0
      %10920 = vmatprep.mubr.bf16.mxu0 0
      %10921 = vmatmul.mubr.bf16.gmra.mrb[0].mxu0 %v10862
      %v10922 = vpop.f32.mrb[0].mxu0
      %v10923 = vadd.f32 0.0, %v10922
      %v10924 = vpop.f32.mrb[0].mxu0
      %v10925 = vpop.f32.mrb[0].mxu0
      %v10926 = vadd.f32 0.0, %v10925
      %v10927 = vpop.f32.mrb[0].mxu0
      %10928 = vdwg.mxu0
      %v10929 = vadd.f32 %v10799, %v10899
      %v10930 = vadd.f32 %v10800, %v10902
      %v10931 = vadd.f32 %v10801, %v10907
      %v10932 = vadd.f32 %v10802, %v10910
      %v10933 = vadd.f32 %v10803, %v10915
      %v10934 = vadd.f32 %v10804, %v10918
      %v10935 = vadd.f32 %v10805, %v10923
      %v10936 = vadd.f32 %v10806, %v10926
      %v10937 = vld [vmem:[%s10807] sm:$0xf]
      %v10938 = vld [vmem:[%s10807 + $0x4] sm:$0x1]
      %v10939 = vld [vmem:[%s10807 + $0x8] sm:$0xf]
      %v10940 = vld [vmem:[%s10807 + $0xc] sm:$0x1]
      %v10941 = vld [vmem:[%s10807 + $0x10] sm:$0xf]
      %v10942 = vld [vmem:[%s10807 + $0x14] sm:$0x1]
      %v10943 = vld [vmem:[%s10807 + $0x18] sm:$0xf]
      %v10944 = vld [vmem:[%s10807 + $0x1c] sm:$0x1]
      %v10945 = vld [vmem:[%s10807 + $0x20] sm:$0xf]
      %v10946 = vld [vmem:[%s10807 + $0x24] sm:$0x1]
      %v10947 = vld [vmem:[%s10807 + $0x28] sm:$0xf]
      %v10948 = vld [vmem:[%s10807 + $0x2c] sm:$0x1]
      %v10949 = vld [vmem:[%s10807 + $0x30] sm:$0xf]
      %v10950 = vld [vmem:[%s10807 + $0x34] sm:$0x1]
      %v10951 = vld [vmem:[%s10807 + $0x38] sm:$0xf]
      %v10952 = vld [vmem:[%s10807 + $0x3c] sm:$0x1]
      %v10954 = vshrl.u32 %v10937, 16
      %v10956 = vrot.slane %v10954, 4
      %v10957 = vshll.u32 %v10937, 16
      %v10959 = vrot.slane %v10957, 5
      %v10960 = vor.u32 %v10956, %v10959
      %v10961 = vrot.slane %v10960, 4
      %v10963 = vshll.u32 %v10938, 16
      %v10965 = vrot.slane %v10963, 5
      %v10966 = vsel %vm1099, %v10961, %v10965
      %v10968 = vshrl.u32 %v10939, 16
      %v10970 = vrot.slane %v10968, 4
      %v10971 = vshll.u32 %v10939, 16
      %v10973 = vrot.slane %v10971, 5
      %v10974 = vor.u32 %v10970, %v10973
      %v10975 = vrot.slane %v10974, 4
      %v10977 = vshll.u32 %v10940, 16
      %v10979 = vrot.slane %v10977, 5
      %v10980 = vsel %vm1099, %v10975, %v10979
      %v10982 = vshrl.u32 %v10941, 16
      %v10984 = vrot.slane %v10982, 4
      %v10985 = vshll.u32 %v10941, 16
      %v10987 = vrot.slane %v10985, 5
      %v10988 = vor.u32 %v10984, %v10987
      %v10989 = vrot.slane %v10988, 4
      %v10991 = vshll.u32 %v10942, 16
      %v10993 = vrot.slane %v10991, 5
      %v10994 = vsel %vm1099, %v10989, %v10993
      %v10996 = vshrl.u32 %v10943, 16
      %v10998 = vrot.slane %v10996, 4
      %v10999 = vshll.u32 %v10943, 16
      %v11001 = vrot.slane %v10999, 5
      %v11002 = vor.u32 %v10998, %v11001
      %v11003 = vrot.slane %v11002, 4
      %v11005 = vshll.u32 %v10944, 16
      %v11007 = vrot.slane %v11005, 5
      %v11008 = vsel %vm1099, %v11003, %v11007
      %v11010 = vshrl.u32 %v10945, 16
      %v11012 = vrot.slane %v11010, 4
      %v11013 = vshll.u32 %v10945, 16
      %v11015 = vrot.slane %v11013, 5
      %v11016 = vor.u32 %v11012, %v11015
      %v11017 = vrot.slane %v11016, 4
      %v11019 = vshll.u32 %v10946, 16
      %v11021 = vrot.slane %v11019, 5
      %v11022 = vsel %vm1099, %v11017, %v11021
      %v11024 = vshrl.u32 %v10947, 16
      %v11026 = vrot.slane %v11024, 4
      %v11027 = vshll.u32 %v10947, 16
      %v11029 = vrot.slane %v11027, 5
      %v11030 = vor.u32 %v11026, %v11029
      %v11031 = vrot.slane %v11030, 4
      %v11033 = vshll.u32 %v10948, 16
      %v11035 = vrot.slane %v11033, 5
      %v11036 = vsel %vm1099, %v11031, %v11035
      %v11038 = vshrl.u32 %v10949, 16
      %v11040 = vrot.slane %v11038, 4
      %v11041 = vshll.u32 %v10949, 16
      %v11043 = vrot.slane %v11041, 5
      %v11044 = vor.u32 %v11040, %v11043
      %v11045 = vrot.slane %v11044, 4
      %v11047 = vshll.u32 %v10950, 16
      %v11049 = vrot.slane %v11047, 5
      %v11050 = vsel %vm1099, %v11045, %v11049
      %v11052 = vshrl.u32 %v10951, 16
      %v11054 = vrot.slane %v11052, 4
      %v11055 = vshll.u32 %v10951, 16
      %v11057 = vrot.slane %v11055, 5
      %v11058 = vor.u32 %v11054, %v11057
      %v11059 = vrot.slane %v11058, 4
      %v11061 = vshll.u32 %v10952, 16
      %v11063 = vrot.slane %v11061, 5
      %v11064 = vsel %vm1099, %v11059, %v11063
      %v11065 = vld [vmem:[%s11 + $0x70] sm:$0xf]
      %v11066 = vld [vmem:[%s11 + $0x74] sm:$0xf]
      %v11067 = vld [vmem:[%s11 + $0x78] sm:$0xf]
      %v11068 = vld [vmem:[%s11 + $0x7c] sm:$0xf]
      %v11069 = vunpack.c.l.b16 %v10966
      %v11070 = vunpack.c.l.b16 %v10980
      %v11071 = vunpack.c.l.b16 %v10994
      %v11072 = vunpack.c.l.b16 %v11008
      %v11073 = vunpack.c.l.b16 %v11022
      %v11074 = vunpack.c.l.b16 %v11036
      %v11075 = vunpack.c.l.b16 %v11050
      %v11076 = vunpack.c.l.b16 %v11064
      %v11077 = vpack.c.b16 %v11070, %v11069
      %v11078 = vpack.c.b16 %v11072, %v11071
      %v11079 = vpack.c.b16 %v11074, %v11073
      %v11080 = vpack.c.b16 %v11076, %v11075
      %v11085 = vunpack.c.l.b16 %v11065
      %v11086 = vunpack.c.l.b16 %v11066
      %v11087 = vunpack.c.l.b16 %v11067
      %v11088 = vunpack.c.l.b16 %v11068
      %v11089 = vpack.c.b16 %v11086, %v11085
      %v11090 = vpack.c.b16 %v11088, %v11087
      %v11094 = vsel %vm830, %v11077, 0
      %v11097 = vsel %vm830, %v11078, 0
      %v11100 = vsel %vm830, %v11079, 0
      %v11103 = vsel %vm830, %v11080, 0
      %11105 = vmatprep.subr.bf16.mxu0 0
      %11106 = vmatpush1.bf16.msra.mxu0 %v11089
      %11107 = vmatprep.subr.bf16.mxu0 0
      %11108 = vmatpush1.bf16.msra.mxu0 %v11090
      %11109 = vmatprep.subr.bf16.mxu0 0
      %11110 = vmatpush1.bf16.msra.mxu0 0
      %11111 = vmatprep.subr.bf16.mxu0 0
      %11112 = vmatpush1.bf16.msra.mxu0 0
      %11113 = vmatprep.subr.bf16.mxu0 0
      %11114 = vmatpush1.bf16.msra.mxu0 0
      %11115 = vmatprep.subr.bf16.mxu0 0
      %11116 = vmatpush1.bf16.msra.mxu0 0
      %11117 = vmatprep.subr.bf16.mxu0 0
      %11118 = vmatpush1.bf16.msra.mxu0 0
      %11119 = vmatprep.subr.bf16.mxu0 0
      %11120 = vmatpush1.bf16.msra.mxu0 0
      %11121 = vmatprep.subr.bf16.mxu0 0
      %11122 = vmatpush1.bf16.msra.mxu0 0
      %11123 = vmatprep.subr.bf16.mxu0 0
      %11124 = vmatpush1.bf16.msra.mxu0 0
      %11125 = vmatprep.subr.bf16.mxu0 0
      %11126 = vmatpush1.bf16.msra.mxu0 0
      %11127 = vmatprep.subr.bf16.mxu0 0
      %11128 = vmatpush1.bf16.msra.mxu0 0
      %11129 = vmatprep.subr.bf16.mxu0 0
      %11130 = vmatpush1.bf16.msra.mxu0 0
      %11131 = vmatprep.subr.bf16.mxu0 0
      %11132 = vmatpush1.bf16.msra.mxu0 0
      %11133 = vmatprep.subr.bf16.mxu0 0
      %11134 = vmatpush1.bf16.msra.mxu0 0
      %11135 = vmatprep.subr.bf16.mxu0 0
      %11136 = vmatpush1.bf16.msra.mxu0 0
      %11137 = vmatprep.mubr.bf16.mxu0 0
      %11138 = vmatmul.mubr.bf16.gmra.mrb[0].mxu0 %v11094
      %v11139 = vpop.f32.mrb[0].mxu0
      %v11140 = vadd.f32 0.0, %v11139
      %v11141 = vpop.f32.mrb[0].mxu0
      %v11142 = vpop.f32.mrb[0].mxu0
      %v11143 = vadd.f32 0.0, %v11142
      %v11144 = vpop.f32.mrb[0].mxu0
      %11145 = vmatprep.mubr.bf16.mxu0 0
      %11146 = vmatmul.mubr.bf16.gmra.mrb[0].mxu0 %v11097
      %v11147 = vpop.f32.mrb[0].mxu0
      %v11148 = vadd.f32 0.0, %v11147
      %v11149 = vpop.f32.mrb[0].mxu0
      %v11150 = vpop.f32.mrb[0].mxu0
      %v11151 = vadd.f32 0.0, %v11150
      %v11152 = vpop.f32.mrb[0].mxu0
      %11153 = vmatprep.mubr.bf16.mxu0 0
      %11154 = vmatmul.mubr.bf16.gmra.mrb[0].mxu0 %v11100
      %v11155 = vpop.f32.mrb[0].mxu0
      %v11156 = vadd.f32 0.0, %v11155
      %v11157 = vpop.f32.mrb[0].mxu0
      %v11158 = vpop.f32.mrb[0].mxu0
      %v11159 = vadd.f32 0.0, %v11158
      %v11160 = vpop.f32.mrb[0].mxu0
      %11161 = vmatprep.mubr.bf16.mxu0 0
      %11162 = vmatmul.mubr.bf16.gmra.mrb[0].mxu0 %v11103
      %v11163 = vpop.f32.mrb[0].mxu0
      %v11164 = vadd.f32 0.0, %v11163
      %v11165 = vpop.f32.mrb[0].mxu0
      %v11166 = vpop.f32.mrb[0].mxu0
      %v11167 = vadd.f32 0.0, %v11166
      %v11168 = vpop.f32.mrb[0].mxu0
      %11169 = vdwg.mxu0
      %v11170 = vadd.f32 %v10929, %v11140
      %v11171 = vadd.f32 %v10930, %v11143
      %v11172 = vadd.f32 %v10931, %v11148
      %v11173 = vadd.f32 %v10932, %v11151
      %v11174 = vadd.f32 %v10933, %v11156
      %v11175 = vadd.f32 %v10934, %v11159
      %v11176 = vadd.f32 %v10935, %v11164
      %v11177 = vadd.f32 %v10936, %v11167
      %v11178 = vld [vmem:[%s10807] sm:$0xe]
      %v11179 = vld [vmem:[%s10807 + $0x8] sm:$0xe]
      %v11180 = vld [vmem:[%s10807 + $0x10] sm:$0xe]
      %v11181 = vld [vmem:[%s10807 + $0x18] sm:$0xe]
      %v11182 = vld [vmem:[%s10807 + $0x20] sm:$0xe]
      %v11183 = vld [vmem:[%s10807 + $0x28] sm:$0xe]
      %v11184 = vld [vmem:[%s10807 + $0x30] sm:$0xe]
      %v11185 = vld [vmem:[%s10807 + $0x38] sm:$0xe]
      %v11202 = vrot.slane %v11178, 5
      %v11203 = vrot.slane %v11202, 4
      %v11204 = vrot.slane %v10938, 5
      %v11205 = vsel %vm1439, %v11203, %v11204
      %v11206 = vrot.slane %v11179, 5
      %v11207 = vrot.slane %v11206, 4
      %v11208 = vrot.slane %v10940, 5
      %v11209 = vsel %vm1439, %v11207, %v11208
      %v11210 = vrot.slane %v11180, 5
      %v11211 = vrot.slane %v11210, 4
      %v11212 = vrot.slane %v10942, 5
      %v11213 = vsel %vm1439, %v11211, %v11212
      %v11214 = vrot.slane %v11181, 5
      %v11215 = vrot.slane %v11214, 4
      %v11216 = vrot.slane %v10944, 5
      %v11217 = vsel %vm1439, %v11215, %v11216
      %v11218 = vrot.slane %v11182, 5
      %v11219 = vrot.slane %v11218, 4
      %v11220 = vrot.slane %v10946, 5
      %v11221 = vsel %vm1439, %v11219, %v11220
      %v11222 = vrot.slane %v11183, 5
      %v11223 = vrot.slane %v11222, 4
      %v11224 = vrot.slane %v10948, 5
      %v11225 = vsel %vm1439, %v11223, %v11224
      %v11226 = vrot.slane %v11184, 5
      %v11227 = vrot.slane %v11226, 4
      %v11228 = vrot.slane %v10950, 5
      %v11229 = vsel %vm1439, %v11227, %v11228
      %v11230 = vrot.slane %v11185, 5
      %v11231 = vrot.slane %v11230, 4
      %v11232 = vrot.slane %v10952, 5
      %v11233 = vsel %vm1439, %v11231, %v11232
      %v11234 = vld [vmem:[%s11 + $0x80] sm:$0xf]
      %v11235 = vld [vmem:[%s11 + $0x84] sm:$0xf]
      %v11236 = vld [vmem:[%s11 + $0x88] sm:$0xf]
      %v11237 = vld [vmem:[%s11 + $0x8c] sm:$0xf]
      %v11238 = vunpack.c.l.b16 %v11205
      %v11239 = vunpack.c.l.b16 %v11209
      %v11240 = vunpack.c.l.b16 %v11213
      %v11241 = vunpack.c.l.b16 %v11217
      %v11242 = vunpack.c.l.b16 %v11221
      %v11243 = vunpack.c.l.b16 %v11225
      %v11244 = vunpack.c.l.b16 %v11229
      %v11245 = vunpack.c.l.b16 %v11233
      %v11246 = vpack.c.b16 %v11239, %v11238
      %v11247 = vpack.c.b16 %v11241, %v11240
      %v11248 = vpack.c.b16 %v11243, %v11242
      %v11249 = vpack.c.b16 %v11245, %v11244
      %v11254 = vunpack.c.l.b16 %v11234
      %v11255 = vunpack.c.l.b16 %v11235
      %v11256 = vunpack.c.l.b16 %v11236
      %v11257 = vunpack.c.l.b16 %v11237
      %v11258 = vpack.c.b16 %v11255, %v11254
      %v11259 = vpack.c.b16 %v11257, %v11256
      %v11263 = vsel %vm830, %v11246, 0
      %v11266 = vsel %vm830, %v11247, 0
      %v11269 = vsel %vm830, %v11248, 0
      %v11272 = vsel %vm830, %v11249, 0
      %11274 = vmatprep.subr.bf16.mxu0 0
      %11275 = vmatpush1.bf16.msra.mxu0 %v11258
      %11276 = vmatprep.subr.bf16.mxu0 0
      %11277 = vmatpush1.bf16.msra.mxu0 %v11259
      %11278 = vmatprep.subr.bf16.mxu0 0
      %11279 = vmatpush1.bf16.msra.mxu0 0
      %11280 = vmatprep.subr.bf16.mxu0 0
      %11281 = vmatpush1.bf16.msra.mxu0 0
      %11282 = vmatprep.subr.bf16.mxu0 0
      %11283 = vmatpush1.bf16.msra.mxu0 0
      %11284 = vmatprep.subr.bf16.mxu0 0
      %11285 = vmatpush1.bf16.msra.mxu0 0
      %11286 = vmatprep.subr.bf16.mxu0 0
      %11287 = vmatpush1.bf16.msra.mxu0 0
      %11288 = vmatprep.subr.bf16.mxu0 0
      %11289 = vmatpush1.bf16.msra.mxu0 0
      %11290 = vmatprep.subr.bf16.mxu0 0
      %11291 = vmatpush1.bf16.msra.mxu0 0
      %11292 = vmatprep.subr.bf16.mxu0 0
      %11293 = vmatpush1.bf16.msra.mxu0 0
      %11294 = vmatprep.subr.bf16.mxu0 0
      %11295 = vmatpush1.bf16.msra.mxu0 0
      %11296 = vmatprep.subr.bf16.mxu0 0
      %11297 = vmatpush1.bf16.msra.mxu0 0
      %11298 = vmatprep.subr.bf16.mxu0 0
      %11299 = vmatpush1.bf16.msra.mxu0 0
      %11300 = vmatprep.subr.bf16.mxu0 0
      %11301 = vmatpush1.bf16.msra.mxu0 0
      %11302 = vmatprep.subr.bf16.mxu0 0
      %11303 = vmatpush1.bf16.msra.mxu0 0
      %11304 = vmatprep.subr.bf16.mxu0 0
      %11305 = vmatpush1.bf16.msra.mxu0 0
      %11306 = vmatprep.mubr.bf16.mxu0 0
      %11307 = vmatmul.mubr.bf16.gmra.mrb[0].mxu0 %v11263
      %v11308 = vpop.f32.mrb[0].mxu0
      %v11309 = vadd.f32 0.0, %v11308
      %v11310 = vpop.f32.mrb[0].mxu0
      %v11311 = vpop.f32.mrb[0].mxu0
      %v11312 = vadd.f32 0.0, %v11311
      %v11313 = vpop.f32.mrb[0].mxu0
      %11314 = vmatprep.mubr.bf16.mxu0 0
      %11315 = vmatmul.mubr.bf16.gmra.mrb[0].mxu0 %v11266
      %v11316 = vpop.f32.mrb[0].mxu0
      %v11317 = vadd.f32 0.0, %v11316
      %v11318 = vpop.f32.mrb[0].mxu0
      %v11319 = vpop.f32.mrb[0].mxu0
      %v11320 = vadd.f32 0.0, %v11319
      %v11321 = vpop.f32.mrb[0].mxu0
      %11322 = vmatprep.mubr.bf16.mxu0 0
      %11323 = vmatmul.mubr.bf16.gmra.mrb[0].mxu0 %v11269
      %v11324 = vpop.f32.mrb[0].mxu0
      %v11325 = vadd.f32 0.0, %v11324
      %v11326 = vpop.f32.mrb[0].mxu0
      %v11327 = vpop.f32.mrb[0].mxu0
      %v11328 = vadd.f32 0.0, %v11327
      %v11329 = vpop.f32.mrb[0].mxu0
      %11330 = vmatprep.mubr.bf16.mxu0 0
      %11331 = vmatmul.mubr.bf16.gmra.mrb[0].mxu0 %v11272
      %v11332 = vpop.f32.mrb[0].mxu0
      %v11333 = vadd.f32 0.0, %v11332
      %v11334 = vpop.f32.mrb[0].mxu0
      %v11335 = vpop.f32.mrb[0].mxu0
      %v11336 = vadd.f32 0.0, %v11335
      %v11337 = vpop.f32.mrb[0].mxu0
      %11338 = vdwg.mxu0
      %v11339 = vadd.f32 %v11170, %v11309
      %v11340 = vadd.f32 %v11171, %v11312
      %v11341 = vadd.f32 %v11172, %v11317
      %v11342 = vadd.f32 %v11173, %v11320
      %v11343 = vadd.f32 %v11174, %v11325
      %v11344 = vadd.f32 %v11175, %v11328
      %v11345 = vadd.f32 %v11176, %v11333
      %v11346 = vadd.f32 %v11177, %v11336
      %v11347 = vld [vmem:[%s12] sm:$0x1]
      %v11349 = vlaneseq
      %v11350 = vshrl.u32 %v11349, 7
      %v11351 = vsub.s32 0, %v11350
      %v11352 = vrot.slane %v11347, %v11351
      %v11354 = vadd.f32 %v11339, %v11352
      %v11355 = vadd.f32 %v11340, %v11352
      %v11356 = vadd.f32 %v11341, %v11352
      %v11357 = vadd.f32 %v11342, %v11352
      %v11358 = vadd.f32 %v11343, %v11352
      %v11359 = vadd.f32 %v11344, %v11352
      %v11360 = vadd.f32 %v11345, %v11352
      %v11361 = vadd.f32 %v11346, %v11352
      %v11362 = vmax.f32 %v11354, 0.0
      %v11363 = vmax.f32 %v11355, 0.0
      %v11364 = vmax.f32 %v11356, 0.0
      %v11365 = vmax.f32 %v11357, 0.0
      %v11366 = vmax.f32 %v11358, 0.0
      %v11367 = vmax.f32 %v11359, 0.0
      %v11368 = vmax.f32 %v11360, 0.0
      %v11369 = vmax.f32 %v11361, 0.0
      %11370 = vxpose.xlu0.b32.start [1/16] %v11362, 128
      %11371 = vxpose.xlu0.b32.cont [2/16] %v11363, 128
      %11372 = vxpose.xlu0.b32.cont [3/16] %v11364, 128
      %11373 = vxpose.xlu0.b32.cont [4/16] %v11365, 128
      %11374 = vxpose.xlu0.b32.cont [5/16] %v11366, 128
      %11375 = vxpose.xlu0.b32.cont [6/16] %v11367, 128
      %11376 = vxpose.xlu0.b32.cont [7/16] %v11368, 128
      %11377 = vxpose.xlu0.b32.cont [8/16] %v11369, 128
      %11378 = vxpose.xlu0.b32.cont [9/16] 0.0, 128
      %11379 = vxpose.xlu0.b32.cont [10/16] 0.0, 128
      %11380 = vxpose.xlu0.b32.cont [11/16] 0.0, 128
      %11381 = vxpose.xlu0.b32.cont [12/16] 0.0, 128
      %11382 = vxpose.xlu0.b32.cont [13/16] 0.0, 128
      %11383 = vxpose.xlu0.b32.cont [14/16] 0.0, 128
      %11384 = vxpose.xlu0.b32.cont [15/16] 0.0, 128
      %11385 = vxpose.xlu0.b32.end [16/16] 0.0, 128
      %v11386 = vpop.trf.xlu0
      %v11387 = vpop.trf.xlu0
      %v11388 = vpop.trf.xlu0
      %v11389 = vpop.trf.xlu0
      %v11390 = vpop.trf.xlu0
      %v11391 = vpop.trf.xlu0
      %v11392 = vpop.trf.xlu0
      %v11393 = vpop.trf.xlu0
      %v11394 = vpop.trf.xlu0
      %v11395 = vpop.trf.xlu0
      %v11396 = vpop.trf.xlu0
      %v11397 = vpop.trf.xlu0
      %v11398 = vpop.trf.xlu0
      %v11399 = vpop.trf.xlu0
      %v11400 = vpop.trf.xlu0
      %v11401 = vpop.trf.xlu0
      %vm11402 = vcmask 523264
      %11403 = vst.msk [vmem:[%s440] sm:$0xff] %vm11402, %v11386
      %vm11404 = vcmask 519168
      %11405 = vst.msk [vmem:[%s440 + $0x8] sm:$0xf] %vm11404, %v11387
      %p11406 = scmp.lt.s32.totalorder %s24, 1
      %s11407 = scalar_select %p11406, %s24, 1
      %s11408 = smul.addr %s11407, 2
      %s11409 = smul.addr %s11408, 8
      %s11410 = scalar_lea.vmem %s13, %s11409
      // Predicated region
      $region73: #{_lambda_.1} parent=71 // pred_check
        %p11411 = pneg %p320
      $region74: #{_lambda_.1} parent=71 // pred_check_branch
        %11413 = sbr.rel (%p11411) target = $region76
      $region75: #{_lambda_.1} parent=71 // pred_region
        _
      $region76: #{_lambda_.1} parent=71 // pred_fallthru
        _
    $region72: #{_lambda_.1} parent=5 // pred_fallthru
      _
    %p11414 = scmp.le.s32.totalorder 2, %s19
    // Predicated region
    $region77: #{_lambda_.1} parent=5 // pred_check
      %p11415 = pneg %p11414
    $region78: #{_lambda_.1} parent=5 // pred_check_branch
      %11417 = sbr.rel (%p11415) target = $region80
    $region79: #{_lambda_.1} parent=5 // pred_region
      %s11418 = ssub.s32 %s19, 2
      // Predicated region
      $region81: #{_lambda_.1} parent=79 // pred_check
        %p11419 = pneg %p326
      $region82: #{_lambda_.1} parent=79 // pred_check_branch
        %11421 = sbr.rel (%p11419) target = $region84
      $region83: #{_lambda_.1} parent=79 // pred_region
        %p11422 = scmp.lt.s32.totalorder %s25, 1
        %s11423 = scalar_select %p11422, %s25, 1
        %s11424 = smul.addr %s11423, 2
        %s11425 = smul.addr %s11424, 8
        %s11426 = scalar_lea.vmem %s13, %s11425
      $region84: #{_lambda_.1} parent=79 // pred_fallthru
        _
    $region80: #{_lambda_.1} parent=5 // pred_fallthru
      _
  $region6: #{_lambda_.1} parent=0 // loop_footer
    %s23 = sadd.s32 1, %s19
  $region7: #{_lambda_.1} parent=0 // loop_footer_branch
    %18 = sbr.rel target = $region3
  $region8: #{_lambda_.1} parent=0 // loop_exit
    _

</llo_original>
